<compile_context>
chip_gen: v5e
topology: v5e:2x2
jax: 0.10.0
libtpu: 0.0.40
codegen_flags: <defaults>
</compile_context>

<pallas_src>
import functools

import numpy as np
import jax
import jax.numpy as jnp
from jax import lax
from jax.experimental import pallas as pl
from jax.experimental.pallas import tpu as pltpu

H, W = 18, 2            # spatial size implied by .view(batch, hidden, 18, 2)
N = H * W               # 36 real spatial positions == attention sequence length
NP = 40                 # sequence padded to a multiple of 8 (sublane alignment)
HIDDEN = 32             # hidden_dim (must be divisible by 4 heads)
NUM_HEADS = 4
HEAD_DIM = HIDDEN // NUM_HEADS
LN_EPS = 1e-5
PAD = 8                 # sublane zero padding used for the static tap shifts
NEG_INF = -1e30
# flat row offset of tap t, with t = (dy+1)*3 + (dx+1) (row-major 3x3 window)
OFFS = tuple((t // 3 - 1) * W + (t % 3 - 1) for t in range(9))


def _erf(x):
    # Abramowitz & Stegun 7.1.26 polynomial approximation (|err| < 1.5e-7),
    # built only from mul/add/exp/where so it lowers cleanly on Mosaic.
    a1, a2, a3, a4, a5 = 0.254829592, -0.284496736, 1.421413741, -1.453152027, 1.061405429
    p = 0.3275911
    ax = jnp.abs(x)
    t = 1.0 / (1.0 + p * ax)
    poly = ((((a5 * t + a4) * t + a3) * t + a2) * t + a1) * t
    y = 1.0 - poly * jnp.exp(-ax * ax)
    return jnp.where(x < 0, -y, y)


def _gelu(x):
    # exact (erf-based) GELU — matches torch nn.GELU() default.
    return 0.5 * x * (1.0 + _erf(x * 0.7071067811865476))


def pilot_encoder_kernel(x_ref, masks_ref, kmask_ref,
                         w1_ref, b1_ref, w2_ref, b2_ref,
                         w3_ref, b3_ref, w4_ref, b4_ref,
                         ln_g_ref, ln_b_ref,
                         wqkv_ref, bqkv_ref, wo_ref, bo_ref,
                         out_ref, *, tb):
    rows = tb * NP
    x = x_ref[...]                                              # (rows, Cin)

    def conv3x3(inp, w_all_ref, b_ref):
        # Fused 3x3 conv (padding=1): ONE MXU matmul for all 9 taps, then the
        # taps are gathered with static sublane shifts + border masks (VPU/XLU).
        p_all = jnp.dot(inp, w_all_ref[...],
                        preferred_element_type=jnp.float32)     # (rows, 9*HIDDEN)
        zpad = jnp.zeros((PAD, 9 * HIDDEN), jnp.float32)
        p_pad = jnp.concatenate([zpad, p_all, zpad], axis=0)    # aligned concat
        acc = None
        for t in range(9):
            r0 = PAD + OFFS[t]                                  # dst row r reads src r+off
            c0 = t * HIDDEN
            tap = p_pad[r0:r0 + rows, c0:c0 + HIDDEN]           # (rows, HIDDEN)
            tap = tap * masks_ref[t]                            # zero out-of-image taps
            acc = tap if acc is None else acc + tap
        return acc + b_ref[...]                                 # bias added once

    # init_proj + spatial_processor: 4 x (conv3x3 -> GELU)
    feat = _gelu(conv3x3(x, w1_ref, b1_ref))
    feat = _gelu(conv3x3(feat, w2_ref, b2_ref))
    feat = _gelu(conv3x3(feat, w3_ref, b3_ref))
    feat = _gelu(conv3x3(feat, w4_ref, b4_ref))                 # (rows, HIDDEN)

    # LayerNorm over the channel axis
    mu = jnp.mean(feat, axis=-1, keepdims=True)
    var = jnp.mean((feat - mu) ** 2, axis=-1, keepdims=True)
    xn = (feat - mu) * lax.rsqrt(var + LN_EPS)
    xn = xn * ln_g_ref[...] + ln_b_ref[...]                     # params: (1, HIDDEN)

    # Fused QKV projection: one (rows, 32) @ (32, 96) matmul.
    qkv = jnp.dot(xn, wqkv_ref[...],
                  preferred_element_type=jnp.float32) + bqkv_ref[...]
    qkv3 = qkv.reshape(tb, NP, 3 * HIDDEN)                      # NP % 8 == 0 -> free reshape

    scale = 1.0 / (HEAD_DIM ** 0.5)
    kbias = kmask_ref[...].reshape(1, 1, NP)                    # 0 real keys / -1e30 pad keys
    head_outs = []
    for h in range(NUM_HEADS):
        qh = qkv3[:, :, h * HEAD_DIM:(h + 1) * HEAD_DIM]
        kh = qkv3[:, :, HIDDEN + h * HEAD_DIM:HIDDEN + (h + 1) * HEAD_DIM]
        vh = qkv3[:, :, 2 * HIDDEN + h * HEAD_DIM:2 * HIDDEN + (h + 1) * HEAD_DIM]
        s = jnp.einsum('bnd,bmd->bnm', qh, kh,
                       preferred_element_type=jnp.float32) * scale + kbias
        m = jnp.max(s, axis=-1, keepdims=True)
        p = jnp.exp(s - m)
        p = p * pl.reciprocal(jnp.sum(p, axis=-1, keepdims=True), approx=True)
        oh = jnp.einsum('bnm,bmd->bnd', p, vh,
                        preferred_element_type=jnp.float32)     # (tb, NP, HEAD_DIM)
        head_outs.append(oh.reshape(rows, HEAD_DIM))
    attn = jnp.concatenate(head_outs, axis=-1)                  # (rows, HIDDEN)
    attn = jnp.dot(attn, wo_ref[...],
                   preferred_element_type=jnp.float32) + bo_ref[...]

    # residual add: conv features + attention output (same (row, channel) layout)
    out_ref[...] = (feat + attn).astype(out_ref.dtype)


def make_tap_masks(tb):
    # mask[t, b*NP + n, :] = 1 iff tap t of real position n stays inside the
    # 18x2 image; padded rows (n >= 36) are fully masked.  Because valid taps
    # never leave their own image in flat-row space, these masks also cancel
    # any cross-image contamination from the row shifts.
    m = np.zeros((9, NP), np.float32)
    for t in range(9):
        dy, dx = t // 3 - 1, t % 3 - 1
        for n in range(N):
            hh, ww = n // W, n % W
            if 0 <= hh + dy < H and 0 <= ww + dx < W:
                m[t, n] = 1.0
    tiled = np.tile(m, (1, tb))                                  # (9, tb*NP)
    return jnp.asarray(np.repeat(tiled[:, :, None], HIDDEN, axis=2))


def make_key_mask():
    km = np.zeros((1, NP), np.float32)
    km[0, N:] = NEG_INF
    return jnp.asarray(km)


def init_params(key, hidden=HIDDEN):
    ks = jax.random.split(key, 12)

    def conv_w(k, cin, cout):
        # torch layout (cout, cin, 3, 3) -> fused per-tap layout (cin, 9*cout)
        w = jax.random.normal(k, (cout, cin, 3, 3), jnp.float32) * 0.05
        wt = jnp.transpose(w.reshape(cout, cin, 9), (2, 1, 0))       # (9, cin, cout)
        return jnp.transpose(wt, (1, 0, 2)).reshape(cin, 9 * cout)   # (cin, 9*cout)

    params = dict(
        w1=conv_w(ks[0], 2, hidden),      b1=jax.random.normal(ks[1], (1, hidden)) * 0.02,
        w2=conv_w(ks[2], hidden, hidden), b2=jax.random.normal(ks[3], (1, hidden)) * 0.02,
        w3=conv_w(ks[4], hidden, hidden), b3=jax.random.normal(ks[5], (1, hidden)) * 0.02,
        w4=conv_w(ks[6], hidden, hidden), b4=jax.random.normal(ks[7], (1, hidden)) * 0.02,
        ln_g=jnp.ones((1, hidden), jnp.float32),
        ln_b=jnp.zeros((1, hidden), jnp.float32),
    )

    # torch MultiheadAttention layouts, converted to fused right-matmul form.
    in_proj_w = jax.random.normal(ks[8], (3 * hidden, hidden), jnp.float32) * 0.05
    in_proj_b = jax.random.normal(ks[9], (3 * hidden,), jnp.float32) * 0.02
    out_proj_w = jax.random.normal(ks[10], (hidden, hidden), jnp.float32) * 0.05
    out_proj_b = jax.random.normal(ks[11], (hidden,), jnp.float32) * 0.02
    params.update(
        wqkv=jnp.transpose(in_proj_w),              # (E, 3E): qkv = x @ wqkv + bqkv
        bqkv=in_proj_b.reshape(1, 3 * hidden),
        wo=jnp.transpose(out_proj_w),               # (E, E)
        bo=out_proj_b.reshape(1, hidden),
    )
    return params


@functools.partial(jax.jit, static_argnames=("tb",))
def pilot_encoder_forward(x_nchw, params, *, tb=8):
    """x_nchw: (B, 2, 18, 2) -> (B, HIDDEN, 18, 2), matching PilotEncoder.forward."""
    B, cin = x_nchw.shape[0], x_nchw.shape[1]
    tb = min(tb, B)
    b_pad = pl.cdiv(B, tb) * tb
    rows = tb * NP

    # NCHW -> (B, N, Cin) with n = h*W + w (matches .flatten(2).transpose(-1,-2)),
    # pad the sequence to NP and the batch to a multiple of tb, flatten to a slab.
    x_bnc = jnp.transpose(x_nchw.reshape(B, cin, N), (0, 2, 1))
    x_bnc = jnp.pad(x_bnc, ((0, b_pad - B), (0, NP - N), (0, 0)))
    x2d = x_bnc.reshape(b_pad * NP, cin)

    masks = make_tap_masks(tb)          # (9, rows, HIDDEN)
    kmask = make_key_mask()             # (1, NP)

    p = params
    weight_args = [masks, kmask,
                   p['w1'], p['b1'], p['w2'], p['b2'],
                   p['w3'], p['b3'], p['w4'], p['b4'],
                   p['ln_g'], p['ln_b'],
                   p['wqkv'], p['bqkv'], p['wo'], p['bo']]

    def full_spec(a):
        return pl.BlockSpec(a.shape, lambda b, nd=a.ndim: (0,) * nd)

    out2d = pl.pallas_call(
        functools.partial(pilot_encoder_kernel, tb=tb),
        out_shape=jax.ShapeDtypeStruct((b_pad * NP, HIDDEN), jnp.float32),
        grid=(b_pad // tb,),
        in_specs=[pl.BlockSpec((rows, cin), lambda b: (b, 0))]
                 + [full_spec(a) for a in weight_args],
        out_specs=pl.BlockSpec((rows, HIDDEN), lambda b: (b, 0)),
        compiler_params=pltpu.CompilerParams(dimension_semantics=("parallel",)),
    )(x2d, *weight_args)

    # drop batch / sequence padding and return NCHW (B, hidden, 18, 2) like torch.
    out = out2d.reshape(b_pad, NP, HIDDEN)[:B, :N]
    return jnp.transpose(out, (0, 2, 1)).reshape(B, HIDDEN, H, W)


if __name__ == "__main__":
    key = jax.random.PRNGKey(0)
    kx, kp = jax.random.split(key)
    B = 4
    # Input is NCHW (B, 2, 18, 2) — the 18x2 spatial size is forced by the final .view().
    x = jax.random.normal(kx, (B, 2, H, W), jnp.float32)
    params = init_params(kp)

    out = pilot_encoder_forward(x, params, tb=2)   # grid of 2 blocks, 2 images per block
    jax.block_until_ready(out)
    assert out.shape == (B, HIDDEN, H, W) and out.dtype == jnp.float32
    assert bool(jnp.all(jnp.isfinite(out)))
    print("KERNEL_OK")
</pallas_src>

<mosaic_0001>
module attributes {stable_mosaic.version = 11 : i64} {
  func.func @pilot_encoder_kernel(%arg0: i32, %arg1: memref<80x2xf32, #tpu.memory_space<vmem>>, %arg2: memref<9x80x32xf32, #tpu.memory_space<vmem>>, %arg3: memref<1x40xf32, #tpu.memory_space<vmem>>, %arg4: memref<2x288xf32, #tpu.memory_space<vmem>>, %arg5: memref<1x32xf32, #tpu.memory_space<vmem>>, %arg6: memref<32x288xf32, #tpu.memory_space<vmem>>, %arg7: memref<1x32xf32, #tpu.memory_space<vmem>>, %arg8: memref<32x288xf32, #tpu.memory_space<vmem>>, %arg9: memref<1x32xf32, #tpu.memory_space<vmem>>, %arg10: memref<32x288xf32, #tpu.memory_space<vmem>>, %arg11: memref<1x32xf32, #tpu.memory_space<vmem>>, %arg12: memref<1x32xf32, #tpu.memory_space<vmem>>, %arg13: memref<1x32xf32, #tpu.memory_space<vmem>>, %arg14: memref<32x96xf32, #tpu.memory_space<vmem>>, %arg15: memref<1x96xf32, #tpu.memory_space<vmem>>, %arg16: memref<32x32xf32, #tpu.memory_space<vmem>>, %arg17: memref<1x32xf32, #tpu.memory_space<vmem>>, %arg18: memref<80x32xf32, #tpu.memory_space<vmem>>) attributes {dimension_semantics = [#tpu.dimension_semantics<parallel>], iteration_bounds = array<i64: 2>, scalar_prefetch = 0 : i64, scratch_operands = 0 : i64, tpu.core_type = #tpu.core_type<tc>, window_params = [{transform_indices = @transform_0, window_bounds = array<i64: 80, 2>}, {pipeline_mode = #tpu.pipeline_mode<synchronous>, transform_indices = @transform_1, window_bounds = array<i64: 9, 80, 32>}, {pipeline_mode = #tpu.pipeline_mode<synchronous>, transform_indices = @transform_2, window_bounds = array<i64: 1, 40>}, {pipeline_mode = #tpu.pipeline_mode<synchronous>, transform_indices = @transform_3, window_bounds = array<i64: 2, 288>}, {pipeline_mode = #tpu.pipeline_mode<synchronous>, transform_indices = @transform_4, window_bounds = array<i64: 1, 32>}, {pipeline_mode = #tpu.pipeline_mode<synchronous>, transform_indices = @transform_5, window_bounds = array<i64: 32, 288>}, {pipeline_mode = #tpu.pipeline_mode<synchronous>, transform_indices = @transform_6, window_bounds = array<i64: 1, 32>}, {pipeline_mode = #tpu.pipeline_mode<synchronous>, transform_indices = @transform_7, window_bounds = array<i64: 32, 288>}, {pipeline_mode = #tpu.pipeline_mode<synchronous>, transform_indices = @transform_8, window_bounds = array<i64: 1, 32>}, {pipeline_mode = #tpu.pipeline_mode<synchronous>, transform_indices = @transform_9, window_bounds = array<i64: 32, 288>}, {pipeline_mode = #tpu.pipeline_mode<synchronous>, transform_indices = @transform_10, window_bounds = array<i64: 1, 32>}, {pipeline_mode = #tpu.pipeline_mode<synchronous>, transform_indices = @transform_11, window_bounds = array<i64: 1, 32>}, {pipeline_mode = #tpu.pipeline_mode<synchronous>, transform_indices = @transform_12, window_bounds = array<i64: 1, 32>}, {pipeline_mode = #tpu.pipeline_mode<synchronous>, transform_indices = @transform_13, window_bounds = array<i64: 32, 96>}, {pipeline_mode = #tpu.pipeline_mode<synchronous>, transform_indices = @transform_14, window_bounds = array<i64: 1, 96>}, {pipeline_mode = #tpu.pipeline_mode<synchronous>, transform_indices = @transform_15, window_bounds = array<i64: 32, 32>}, {pipeline_mode = #tpu.pipeline_mode<synchronous>, transform_indices = @transform_16, window_bounds = array<i64: 1, 32>}, {transform_indices = @transform_17, window_bounds = array<i64: 80, 32>}]} {
    %c0 = arith.constant 0 : index
    %c0_0 = arith.constant 0 : index
    %0 = vector.load %arg1[%c0, %c0_0] : memref<80x2xf32, #tpu.memory_space<vmem>>, vector<80x2xf32>
    %c0_1 = arith.constant 0 : index
    %c0_2 = arith.constant 0 : index
    %1 = vector.load %arg4[%c0_1, %c0_2] : memref<2x288xf32, #tpu.memory_space<vmem>>, vector<2x288xf32>
    %cst = arith.constant dense<0.000000e+00> : vector<80x288xf32>
    %2 = tpu.matmul %0, %1, %cst {dimension_numbers = #tpu.dot_dimension_numbers<[1], [0], [0], [1], [0, 0, 1, 1], [], []>} : vector<80x2xf32>, vector<2x288xf32>, vector<80x288xf32> -> vector<80x288xf32>
    %cst_3 = arith.constant 0.000000e+00 : f32
    %3 = vector.broadcast %cst_3 : f32 to vector<8x288xf32>
    %4 = tpu.concatenate %3, %2, %3 in 0 : vector<8x288xf32>, vector<80x288xf32>, vector<8x288xf32> -> vector<96x288xf32>
    %5 = vector.extract_strided_slice %4 {offsets = [5, 0], sizes = [80, 32], strides = [1, 1]} : vector<96x288xf32> to vector<80x32xf32>
    %c0_4 = arith.constant 0 : index
    %c0_5 = arith.constant 0 : index
    %c0_6 = arith.constant 0 : index
    %6 = vector.load %arg2[%c0_4, %c0_5, %c0_6] : memref<9x80x32xf32, #tpu.memory_space<vmem>>, vector<1x80x32xf32>
    %7 = vector.shape_cast %6 : vector<1x80x32xf32> to vector<80x32xf32>
    %8 = arith.mulf %5, %7 : vector<80x32xf32>
    %9 = vector.extract_strided_slice %4 {offsets = [6, 32], sizes = [80, 32], strides = [1, 1]} : vector<96x288xf32> to vector<80x32xf32>
    %c1 = arith.constant 1 : index
    %c0_7 = arith.constant 0 : index
    %c0_8 = arith.constant 0 : index
    %10 = vector.load %arg2[%c1, %c0_7, %c0_8] : memref<9x80x32xf32, #tpu.memory_space<vmem>>, vector<1x80x32xf32>
    %11 = vector.shape_cast %10 : vector<1x80x32xf32> to vector<80x32xf32>
    %12 = arith.mulf %9, %11 : vector<80x32xf32>
    %13 = arith.addf %8, %12 : vector<80x32xf32>
    %14 = vector.extract_strided_slice %4 {offsets = [7, 64], sizes = [80, 32], strides = [1, 1]} : vector<96x288xf32> to vector<80x32xf32>
    %c2 = arith.constant 2 : index
    %c0_9 = arith.constant 0 : index
    %c0_10 = arith.constant 0 : index
    %15 = vector.load %arg2[%c2, %c0_9, %c0_10] : memref<9x80x32xf32, #tpu.memory_space<vmem>>, vector<1x80x32xf32>
    %16 = vector.shape_cast %15 : vector<1x80x32xf32> to vector<80x32xf32>
    %17 = arith.mulf %14, %16 : vector<80x32xf32>
    %18 = arith.addf %13, %17 : vector<80x32xf32>
    %19 = vector.extract_strided_slice %4 {offsets = [7, 96], sizes = [80, 32], strides = [1, 1]} : vector<96x288xf32> to vector<80x32xf32>
    %c3 = arith.constant 3 : index
    %c0_11 = arith.constant 0 : index
    %c0_12 = arith.constant 0 : index
    %20 = vector.load %arg2[%c3, %c0_11, %c0_12] : memref<9x80x32xf32, #tpu.memory_space<vmem>>, vector<1x80x32xf32>
    %21 = vector.shape_cast %20 : vector<1x80x32xf32> to vector<80x32xf32>
    %22 = arith.mulf %19, %21 : vector<80x32xf32>
    %23 = arith.addf %18, %22 : vector<80x32xf32>
    %24 = vector.extract_strided_slice %4 {offsets = [8, 128], sizes = [80, 32], strides = [1, 1]} : vector<96x288xf32> to vector<80x32xf32>
    %c4 = arith.constant 4 : index
    %c0_13 = arith.constant 0 : index
    %c0_14 = arith.constant 0 : index
    %25 = vector.load %arg2[%c4, %c0_13, %c0_14] : memref<9x80x32xf32, #tpu.memory_space<vmem>>, vector<1x80x32xf32>
    %26 = vector.shape_cast %25 : vector<1x80x32xf32> to vector<80x32xf32>
    %27 = arith.mulf %24, %26 : vector<80x32xf32>
    %28 = arith.addf %23, %27 : vector<80x32xf32>
    %29 = vector.extract_strided_slice %4 {offsets = [9, 160], sizes = [80, 32], strides = [1, 1]} : vector<96x288xf32> to vector<80x32xf32>
    %c5 = arith.constant 5 : index
    %c0_15 = arith.constant 0 : index
    %c0_16 = arith.constant 0 : index
    %30 = vector.load %arg2[%c5, %c0_15, %c0_16] : memref<9x80x32xf32, #tpu.memory_space<vmem>>, vector<1x80x32xf32>
    %31 = vector.shape_cast %30 : vector<1x80x32xf32> to vector<80x32xf32>
    %32 = arith.mulf %29, %31 : vector<80x32xf32>
    %33 = arith.addf %28, %32 : vector<80x32xf32>
    %34 = vector.extract_strided_slice %4 {offsets = [9, 192], sizes = [80, 32], strides = [1, 1]} : vector<96x288xf32> to vector<80x32xf32>
    %c6 = arith.constant 6 : index
    %c0_17 = arith.constant 0 : index
    %c0_18 = arith.constant 0 : index
    %35 = vector.load %arg2[%c6, %c0_17, %c0_18] : memref<9x80x32xf32, #tpu.memory_space<vmem>>, vector<1x80x32xf32>
    %36 = vector.shape_cast %35 : vector<1x80x32xf32> to vector<80x32xf32>
    %37 = arith.mulf %34, %36 : vector<80x32xf32>
    %38 = arith.addf %33, %37 : vector<80x32xf32>
    %39 = vector.extract_strided_slice %4 {offsets = [10, 224], sizes = [80, 32], strides = [1, 1]} : vector<96x288xf32> to vector<80x32xf32>
    %c7 = arith.constant 7 : index
    %c0_19 = arith.constant 0 : index
    %c0_20 = arith.constant 0 : index
    %40 = vector.load %arg2[%c7, %c0_19, %c0_20] : memref<9x80x32xf32, #tpu.memory_space<vmem>>, vector<1x80x32xf32>
    %41 = vector.shape_cast %40 : vector<1x80x32xf32> to vector<80x32xf32>
    %42 = arith.mulf %39, %41 : vector<80x32xf32>
    %43 = arith.addf %38, %42 : vector<80x32xf32>
    %44 = vector.extract_strided_slice %4 {offsets = [11, 256], sizes = [80, 32], strides = [1, 1]} : vector<96x288xf32> to vector<80x32xf32>
    %c8 = arith.constant 8 : index
    %c0_21 = arith.constant 0 : index
    %c0_22 = arith.constant 0 : index
    %45 = vector.load %arg2[%c8, %c0_21, %c0_22] : memref<9x80x32xf32, #tpu.memory_space<vmem>>, vector<1x80x32xf32>
    %46 = vector.shape_cast %45 : vector<1x80x32xf32> to vector<80x32xf32>
    %47 = arith.mulf %44, %46 : vector<80x32xf32>
    %48 = arith.addf %43, %47 : vector<80x32xf32>
    %c0_23 = arith.constant 0 : index
    %c0_24 = arith.constant 0 : index
    %49 = vector.load %arg5[%c0_23, %c0_24] : memref<1x32xf32, #tpu.memory_space<vmem>>, vector<1x32xf32>
    %50 = vector.broadcast %49 : vector<1x32xf32> to vector<80x32xf32>
    %51 = arith.addf %48, %50 : vector<80x32xf32>
    %cst_25 = arith.constant 5.000000e-01 : f32
    %52 = vector.broadcast %cst_25 : f32 to vector<80x32xf32>
    %53 = arith.mulf %52, %51 : vector<80x32xf32>
    %cst_26 = arith.constant 0.707106769 : f32
    %54 = vector.broadcast %cst_26 : f32 to vector<80x32xf32>
    %55 = arith.mulf %51, %54 : vector<80x32xf32>
    %56 = math.absf %55 : vector<80x32xf32>
    %cst_27 = arith.constant 0.327591091 : f32
    %57 = vector.broadcast %cst_27 : f32 to vector<80x32xf32>
    %58 = arith.mulf %57, %56 : vector<80x32xf32>
    %cst_28 = arith.constant 1.000000e+00 : f32
    %59 = vector.broadcast %cst_28 : f32 to vector<80x32xf32>
    %60 = arith.addf %59, %58 : vector<80x32xf32>
    %cst_29 = arith.constant 1.000000e+00 : f32
    %61 = vector.broadcast %cst_29 : f32 to vector<80x32xf32>
    %62 = arith.divf %61, %60 : vector<80x32xf32>
    %cst_30 = arith.constant 1.06140542 : f32
    %63 = vector.broadcast %cst_30 : f32 to vector<80x32xf32>
    %64 = arith.mulf %63, %62 : vector<80x32xf32>
    %cst_31 = arith.constant -1.45315206 : f32
    %65 = vector.broadcast %cst_31 : f32 to vector<80x32xf32>
    %66 = arith.addf %64, %65 : vector<80x32xf32>
    %67 = arith.mulf %66, %62 : vector<80x32xf32>
    %cst_32 = arith.constant 1.42141378 : f32
    %68 = vector.broadcast %cst_32 : f32 to vector<80x32xf32>
    %69 = arith.addf %67, %68 : vector<80x32xf32>
    %70 = arith.mulf %69, %62 : vector<80x32xf32>
    %cst_33 = arith.constant -0.284496725 : f32
    %71 = vector.broadcast %cst_33 : f32 to vector<80x32xf32>
    %72 = arith.addf %70, %71 : vector<80x32xf32>
    %73 = arith.mulf %72, %62 : vector<80x32xf32>
    %cst_34 = arith.constant 0.254829586 : f32
    %74 = vector.broadcast %cst_34 : f32 to vector<80x32xf32>
    %75 = arith.addf %73, %74 : vector<80x32xf32>
    %76 = arith.mulf %75, %62 : vector<80x32xf32>
    %cst_35 = arith.constant 0.000000e+00 : f32
    %77 = vector.broadcast %cst_35 : f32 to vector<80x32xf32>
    %78 = arith.subf %77, %56 : vector<80x32xf32>
    %79 = arith.mulf %78, %56 : vector<80x32xf32>
    %80 = math.exp %79 : vector<80x32xf32>
    %81 = arith.mulf %76, %80 : vector<80x32xf32>
    %cst_36 = arith.constant 1.000000e+00 : f32
    %82 = vector.broadcast %cst_36 : f32 to vector<80x32xf32>
    %83 = arith.subf %82, %81 : vector<80x32xf32>
    %cst_37 = arith.constant 0.000000e+00 : f32
    %84 = vector.broadcast %cst_37 : f32 to vector<80x32xf32>
    %85 = arith.cmpf olt, %55, %84 : vector<80x32xf32>
    %cst_38 = arith.constant 0.000000e+00 : f32
    %86 = vector.broadcast %cst_38 : f32 to vector<80x32xf32>
    %87 = arith.subf %86, %83 : vector<80x32xf32>
    %88 = arith.select %85, %87, %83 : vector<80x32xi1>, vector<80x32xf32>
    %cst_39 = arith.constant 1.000000e+00 : f32
    %89 = vector.broadcast %cst_39 : f32 to vector<80x32xf32>
    %90 = arith.addf %89, %88 : vector<80x32xf32>
    %91 = arith.mulf %53, %90 : vector<80x32xf32>
    %c0_40 = arith.constant 0 : index
    %c0_41 = arith.constant 0 : index
    %92 = vector.load %arg6[%c0_40, %c0_41] : memref<32x288xf32, #tpu.memory_space<vmem>>, vector<32x288xf32>
    %cst_42 = arith.constant dense<0.000000e+00> : vector<80x288xf32>
    %93 = tpu.matmul %91, %92, %cst_42 {dimension_numbers = #tpu.dot_dimension_numbers<[1], [0], [0], [1], [0, 0, 1, 1], [], []>} : vector<80x32xf32>, vector<32x288xf32>, vector<80x288xf32> -> vector<80x288xf32>
    %cst_43 = arith.constant 0.000000e+00 : f32
    %94 = vector.broadcast %cst_43 : f32 to vector<8x288xf32>
    %95 = tpu.concatenate %94, %93, %94 in 0 : vector<8x288xf32>, vector<80x288xf32>, vector<8x288xf32> -> vector<96x288xf32>
    %96 = vector.extract_strided_slice %95 {offsets = [5, 0], sizes = [80, 32], strides = [1, 1]} : vector<96x288xf32> to vector<80x32xf32>
    %c0_44 = arith.constant 0 : index
    %c0_45 = arith.constant 0 : index
    %c0_46 = arith.constant 0 : index
    %97 = vector.load %arg2[%c0_44, %c0_45, %c0_46] : memref<9x80x32xf32, #tpu.memory_space<vmem>>, vector<1x80x32xf32>
    %98 = vector.shape_cast %97 : vector<1x80x32xf32> to vector<80x32xf32>
    %99 = arith.mulf %96, %98 : vector<80x32xf32>
    %100 = vector.extract_strided_slice %95 {offsets = [6, 32], sizes = [80, 32], strides = [1, 1]} : vector<96x288xf32> to vector<80x32xf32>
    %c1_47 = arith.constant 1 : index
    %c0_48 = arith.constant 0 : index
    %c0_49 = arith.constant 0 : index
    %101 = vector.load %arg2[%c1_47, %c0_48, %c0_49] : memref<9x80x32xf32, #tpu.memory_space<vmem>>, vector<1x80x32xf32>
    %102 = vector.shape_cast %101 : vector<1x80x32xf32> to vector<80x32xf32>
    %103 = arith.mulf %100, %102 : vector<80x32xf32>
    %104 = arith.addf %99, %103 : vector<80x32xf32>
    %105 = vector.extract_strided_slice %95 {offsets = [7, 64], sizes = [80, 32], strides = [1, 1]} : vector<96x288xf32> to vector<80x32xf32>
    %c2_50 = arith.constant 2 : index
    %c0_51 = arith.constant 0 : index
    %c0_52 = arith.constant 0 : index
    %106 = vector.load %arg2[%c2_50, %c0_51, %c0_52] : memref<9x80x32xf32, #tpu.memory_space<vmem>>, vector<1x80x32xf32>
    %107 = vector.shape_cast %106 : vector<1x80x32xf32> to vector<80x32xf32>
    %108 = arith.mulf %105, %107 : vector<80x32xf32>
    %109 = arith.addf %104, %108 : vector<80x32xf32>
    %110 = vector.extract_strided_slice %95 {offsets = [7, 96], sizes = [80, 32], strides = [1, 1]} : vector<96x288xf32> to vector<80x32xf32>
    %c3_53 = arith.constant 3 : index
    %c0_54 = arith.constant 0 : index
    %c0_55 = arith.constant 0 : index
    %111 = vector.load %arg2[%c3_53, %c0_54, %c0_55] : memref<9x80x32xf32, #tpu.memory_space<vmem>>, vector<1x80x32xf32>
    %112 = vector.shape_cast %111 : vector<1x80x32xf32> to vector<80x32xf32>
    %113 = arith.mulf %110, %112 : vector<80x32xf32>
    %114 = arith.addf %109, %113 : vector<80x32xf32>
    %115 = vector.extract_strided_slice %95 {offsets = [8, 128], sizes = [80, 32], strides = [1, 1]} : vector<96x288xf32> to vector<80x32xf32>
    %c4_56 = arith.constant 4 : index
    %c0_57 = arith.constant 0 : index
    %c0_58 = arith.constant 0 : index
    %116 = vector.load %arg2[%c4_56, %c0_57, %c0_58] : memref<9x80x32xf32, #tpu.memory_space<vmem>>, vector<1x80x32xf32>
    %117 = vector.shape_cast %116 : vector<1x80x32xf32> to vector<80x32xf32>
    %118 = arith.mulf %115, %117 : vector<80x32xf32>
    %119 = arith.addf %114, %118 : vector<80x32xf32>
    %120 = vector.extract_strided_slice %95 {offsets = [9, 160], sizes = [80, 32], strides = [1, 1]} : vector<96x288xf32> to vector<80x32xf32>
    %c5_59 = arith.constant 5 : index
    %c0_60 = arith.constant 0 : index
    %c0_61 = arith.constant 0 : index
    %121 = vector.load %arg2[%c5_59, %c0_60, %c0_61] : memref<9x80x32xf32, #tpu.memory_space<vmem>>, vector<1x80x32xf32>
    %122 = vector.shape_cast %121 : vector<1x80x32xf32> to vector<80x32xf32>
    %123 = arith.mulf %120, %122 : vector<80x32xf32>
    %124 = arith.addf %119, %123 : vector<80x32xf32>
    %125 = vector.extract_strided_slice %95 {offsets = [9, 192], sizes = [80, 32], strides = [1, 1]} : vector<96x288xf32> to vector<80x32xf32>
    %c6_62 = arith.constant 6 : index
    %c0_63 = arith.constant 0 : index
    %c0_64 = arith.constant 0 : index
    %126 = vector.load %arg2[%c6_62, %c0_63, %c0_64] : memref<9x80x32xf32, #tpu.memory_space<vmem>>, vector<1x80x32xf32>
    %127 = vector.shape_cast %126 : vector<1x80x32xf32> to vector<80x32xf32>
    %128 = arith.mulf %125, %127 : vector<80x32xf32>
    %129 = arith.addf %124, %128 : vector<80x32xf32>
    %130 = vector.extract_strided_slice %95 {offsets = [10, 224], sizes = [80, 32], strides = [1, 1]} : vector<96x288xf32> to vector<80x32xf32>
    %c7_65 = arith.constant 7 : index
    %c0_66 = arith.constant 0 : index
    %c0_67 = arith.constant 0 : index
    %131 = vector.load %arg2[%c7_65, %c0_66, %c0_67] : memref<9x80x32xf32, #tpu.memory_space<vmem>>, vector<1x80x32xf32>
    %132 = vector.shape_cast %131 : vector<1x80x32xf32> to vector<80x32xf32>
    %133 = arith.mulf %130, %132 : vector<80x32xf32>
    %134 = arith.addf %129, %133 : vector<80x32xf32>
    %135 = vector.extract_strided_slice %95 {offsets = [11, 256], sizes = [80, 32], strides = [1, 1]} : vector<96x288xf32> to vector<80x32xf32>
    %c8_68 = arith.constant 8 : index
    %c0_69 = arith.constant 0 : index
    %c0_70 = arith.constant 0 : index
    %136 = vector.load %arg2[%c8_68, %c0_69, %c0_70] : memref<9x80x32xf32, #tpu.memory_space<vmem>>, vector<1x80x32xf32>
    %137 = vector.shape_cast %136 : vector<1x80x32xf32> to vector<80x32xf32>
    %138 = arith.mulf %135, %137 : vector<80x32xf32>
    %139 = arith.addf %134, %138 : vector<80x32xf32>
    %c0_71 = arith.constant 0 : index
    %c0_72 = arith.constant 0 : index
    %140 = vector.load %arg7[%c0_71, %c0_72] : memref<1x32xf32, #tpu.memory_space<vmem>>, vector<1x32xf32>
    %141 = vector.broadcast %140 : vector<1x32xf32> to vector<80x32xf32>
    %142 = arith.addf %139, %141 : vector<80x32xf32>
    %cst_73 = arith.constant 5.000000e-01 : f32
    %143 = vector.broadcast %cst_73 : f32 to vector<80x32xf32>
    %144 = arith.mulf %143, %142 : vector<80x32xf32>
    %cst_74 = arith.constant 0.707106769 : f32
    %145 = vector.broadcast %cst_74 : f32 to vector<80x32xf32>
    %146 = arith.mulf %142, %145 : vector<80x32xf32>
    %147 = math.absf %146 : vector<80x32xf32>
    %cst_75 = arith.constant 0.327591091 : f32
    %148 = vector.broadcast %cst_75 : f32 to vector<80x32xf32>
    %149 = arith.mulf %148, %147 : vector<80x32xf32>
    %cst_76 = arith.constant 1.000000e+00 : f32
    %150 = vector.broadcast %cst_76 : f32 to vector<80x32xf32>
    %151 = arith.addf %150, %149 : vector<80x32xf32>
    %cst_77 = arith.constant 1.000000e+00 : f32
    %152 = vector.broadcast %cst_77 : f32 to vector<80x32xf32>
    %153 = arith.divf %152, %151 : vector<80x32xf32>
    %cst_78 = arith.constant 1.06140542 : f32
    %154 = vector.broadcast %cst_78 : f32 to vector<80x32xf32>
    %155 = arith.mulf %154, %153 : vector<80x32xf32>
    %cst_79 = arith.constant -1.45315206 : f32
    %156 = vector.broadcast %cst_79 : f32 to vector<80x32xf32>
    %157 = arith.addf %155, %156 : vector<80x32xf32>
    %158 = arith.mulf %157, %153 : vector<80x32xf32>
    %cst_80 = arith.constant 1.42141378 : f32
    %159 = vector.broadcast %cst_80 : f32 to vector<80x32xf32>
    %160 = arith.addf %158, %159 : vector<80x32xf32>
    %161 = arith.mulf %160, %153 : vector<80x32xf32>
    %cst_81 = arith.constant -0.284496725 : f32
    %162 = vector.broadcast %cst_81 : f32 to vector<80x32xf32>
    %163 = arith.addf %161, %162 : vector<80x32xf32>
    %164 = arith.mulf %163, %153 : vector<80x32xf32>
    %cst_82 = arith.constant 0.254829586 : f32
    %165 = vector.broadcast %cst_82 : f32 to vector<80x32xf32>
    %166 = arith.addf %164, %165 : vector<80x32xf32>
    %167 = arith.mulf %166, %153 : vector<80x32xf32>
    %cst_83 = arith.constant 0.000000e+00 : f32
    %168 = vector.broadcast %cst_83 : f32 to vector<80x32xf32>
    %169 = arith.subf %168, %147 : vector<80x32xf32>
    %170 = arith.mulf %169, %147 : vector<80x32xf32>
    %171 = math.exp %170 : vector<80x32xf32>
    %172 = arith.mulf %167, %171 : vector<80x32xf32>
    %cst_84 = arith.constant 1.000000e+00 : f32
    %173 = vector.broadcast %cst_84 : f32 to vector<80x32xf32>
    %174 = arith.subf %173, %172 : vector<80x32xf32>
    %cst_85 = arith.constant 0.000000e+00 : f32
    %175 = vector.broadcast %cst_85 : f32 to vector<80x32xf32>
    %176 = arith.cmpf olt, %146, %175 : vector<80x32xf32>
    %cst_86 = arith.constant 0.000000e+00 : f32
    %177 = vector.broadcast %cst_86 : f32 to vector<80x32xf32>
    %178 = arith.subf %177, %174 : vector<80x32xf32>
    %179 = arith.select %176, %178, %174 : vector<80x32xi1>, vector<80x32xf32>
    %cst_87 = arith.constant 1.000000e+00 : f32
    %180 = vector.broadcast %cst_87 : f32 to vector<80x32xf32>
    %181 = arith.addf %180, %179 : vector<80x32xf32>
    %182 = arith.mulf %144, %181 : vector<80x32xf32>
    %c0_88 = arith.constant 0 : index
    %c0_89 = arith.constant 0 : index
    %183 = vector.load %arg8[%c0_88, %c0_89] : memref<32x288xf32, #tpu.memory_space<vmem>>, vector<32x288xf32>
    %cst_90 = arith.constant dense<0.000000e+00> : vector<80x288xf32>
    %184 = tpu.matmul %182, %183, %cst_90 {dimension_numbers = #tpu.dot_dimension_numbers<[1], [0], [0], [1], [0, 0, 1, 1], [], []>} : vector<80x32xf32>, vector<32x288xf32>, vector<80x288xf32> -> vector<80x288xf32>
    %cst_91 = arith.constant 0.000000e+00 : f32
    %185 = vector.broadcast %cst_91 : f32 to vector<8x288xf32>
    %186 = tpu.concatenate %185, %184, %185 in 0 : vector<8x288xf32>, vector<80x288xf32>, vector<8x288xf32> -> vector<96x288xf32>
    %187 = vector.extract_strided_slice %186 {offsets = [5, 0], sizes = [80, 32], strides = [1, 1]} : vector<96x288xf32> to vector<80x32xf32>
    %c0_92 = arith.constant 0 : index
    %c0_93 = arith.constant 0 : index
    %c0_94 = arith.constant 0 : index
    %188 = vector.load %arg2[%c0_92, %c0_93, %c0_94] : memref<9x80x32xf32, #tpu.memory_space<vmem>>, vector<1x80x32xf32>
    %189 = vector.shape_cast %188 : vector<1x80x32xf32> to vector<80x32xf32>
    %190 = arith.mulf %187, %189 : vector<80x32xf32>
    %191 = vector.extract_strided_slice %186 {offsets = [6, 32], sizes = [80, 32], strides = [1, 1]} : vector<96x288xf32> to vector<80x32xf32>
    %c1_95 = arith.constant 1 : index
    %c0_96 = arith.constant 0 : index
    %c0_97 = arith.constant 0 : index
    %192 = vector.load %arg2[%c1_95, %c0_96, %c0_97] : memref<9x80x32xf32, #tpu.memory_space<vmem>>, vector<1x80x32xf32>
    %193 = vector.shape_cast %192 : vector<1x80x32xf32> to vector<80x32xf32>
    %194 = arith.mulf %191, %193 : vector<80x32xf32>
    %195 = arith.addf %190, %194 : vector<80x32xf32>
    %196 = vector.extract_strided_slice %186 {offsets = [7, 64], sizes = [80, 32], strides = [1, 1]} : vector<96x288xf32> to vector<80x32xf32>
    %c2_98 = arith.constant 2 : index
    %c0_99 = arith.constant 0 : index
    %c0_100 = arith.constant 0 : index
    %197 = vector.load %arg2[%c2_98, %c0_99, %c0_100] : memref<9x80x32xf32, #tpu.memory_space<vmem>>, vector<1x80x32xf32>
    %198 = vector.shape_cast %197 : vector<1x80x32xf32> to vector<80x32xf32>
    %199 = arith.mulf %196, %198 : vector<80x32xf32>
    %200 = arith.addf %195, %199 : vector<80x32xf32>
    %201 = vector.extract_strided_slice %186 {offsets = [7, 96], sizes = [80, 32], strides = [1, 1]} : vector<96x288xf32> to vector<80x32xf32>
    %c3_101 = arith.constant 3 : index
    %c0_102 = arith.constant 0 : index
    %c0_103 = arith.constant 0 : index
    %202 = vector.load %arg2[%c3_101, %c0_102, %c0_103] : memref<9x80x32xf32, #tpu.memory_space<vmem>>, vector<1x80x32xf32>
    %203 = vector.shape_cast %202 : vector<1x80x32xf32> to vector<80x32xf32>
    %204 = arith.mulf %201, %203 : vector<80x32xf32>
    %205 = arith.addf %200, %204 : vector<80x32xf32>
    %206 = vector.extract_strided_slice %186 {offsets = [8, 128], sizes = [80, 32], strides = [1, 1]} : vector<96x288xf32> to vector<80x32xf32>
    %c4_104 = arith.constant 4 : index
    %c0_105 = arith.constant 0 : index
    %c0_106 = arith.constant 0 : index
    %207 = vector.load %arg2[%c4_104, %c0_105, %c0_106] : memref<9x80x32xf32, #tpu.memory_space<vmem>>, vector<1x80x32xf32>
    %208 = vector.shape_cast %207 : vector<1x80x32xf32> to vector<80x32xf32>
    %209 = arith.mulf %206, %208 : vector<80x32xf32>
    %210 = arith.addf %205, %209 : vector<80x32xf32>
    %211 = vector.extract_strided_slice %186 {offsets = [9, 160], sizes = [80, 32], strides = [1, 1]} : vector<96x288xf32> to vector<80x32xf32>
    %c5_107 = arith.constant 5 : index
    %c0_108 = arith.constant 0 : index
    %c0_109 = arith.constant 0 : index
    %212 = vector.load %arg2[%c5_107, %c0_108, %c0_109] : memref<9x80x32xf32, #tpu.memory_space<vmem>>, vector<1x80x32xf32>
    %213 = vector.shape_cast %212 : vector<1x80x32xf32> to vector<80x32xf32>
    %214 = arith.mulf %211, %213 : vector<80x32xf32>
    %215 = arith.addf %210, %214 : vector<80x32xf32>
    %216 = vector.extract_strided_slice %186 {offsets = [9, 192], sizes = [80, 32], strides = [1, 1]} : vector<96x288xf32> to vector<80x32xf32>
    %c6_110 = arith.constant 6 : index
    %c0_111 = arith.constant 0 : index
    %c0_112 = arith.constant 0 : index
    %217 = vector.load %arg2[%c6_110, %c0_111, %c0_112] : memref<9x80x32xf32, #tpu.memory_space<vmem>>, vector<1x80x32xf32>
    %218 = vector.shape_cast %217 : vector<1x80x32xf32> to vector<80x32xf32>
    %219 = arith.mulf %216, %218 : vector<80x32xf32>
    %220 = arith.addf %215, %219 : vector<80x32xf32>
    %221 = vector.extract_strided_slice %186 {offsets = [10, 224], sizes = [80, 32], strides = [1, 1]} : vector<96x288xf32> to vector<80x32xf32>
    %c7_113 = arith.constant 7 : index
    %c0_114 = arith.constant 0 : index
    %c0_115 = arith.constant 0 : index
    %222 = vector.load %arg2[%c7_113, %c0_114, %c0_115] : memref<9x80x32xf32, #tpu.memory_space<vmem>>, vector<1x80x32xf32>
    %223 = vector.shape_cast %222 : vector<1x80x32xf32> to vector<80x32xf32>
    %224 = arith.mulf %221, %223 : vector<80x32xf32>
    %225 = arith.addf %220, %224 : vector<80x32xf32>
    %226 = vector.extract_strided_slice %186 {offsets = [11, 256], sizes = [80, 32], strides = [1, 1]} : vector<96x288xf32> to vector<80x32xf32>
    %c8_116 = arith.constant 8 : index
    %c0_117 = arith.constant 0 : index
    %c0_118 = arith.constant 0 : index
    %227 = vector.load %arg2[%c8_116, %c0_117, %c0_118] : memref<9x80x32xf32, #tpu.memory_space<vmem>>, vector<1x80x32xf32>
    %228 = vector.shape_cast %227 : vector<1x80x32xf32> to vector<80x32xf32>
    %229 = arith.mulf %226, %228 : vector<80x32xf32>
    %230 = arith.addf %225, %229 : vector<80x32xf32>
    %c0_119 = arith.constant 0 : index
    %c0_120 = arith.constant 0 : index
    %231 = vector.load %arg9[%c0_119, %c0_120] : memref<1x32xf32, #tpu.memory_space<vmem>>, vector<1x32xf32>
    %232 = vector.broadcast %231 : vector<1x32xf32> to vector<80x32xf32>
    %233 = arith.addf %230, %232 : vector<80x32xf32>
    %cst_121 = arith.constant 5.000000e-01 : f32
    %234 = vector.broadcast %cst_121 : f32 to vector<80x32xf32>
    %235 = arith.mulf %234, %233 : vector<80x32xf32>
    %cst_122 = arith.constant 0.707106769 : f32
    %236 = vector.broadcast %cst_122 : f32 to vector<80x32xf32>
    %237 = arith.mulf %233, %236 : vector<80x32xf32>
    %238 = math.absf %237 : vector<80x32xf32>
    %cst_123 = arith.constant 0.327591091 : f32
    %239 = vector.broadcast %cst_123 : f32 to vector<80x32xf32>
    %240 = arith.mulf %239, %238 : vector<80x32xf32>
    %cst_124 = arith.constant 1.000000e+00 : f32
    %241 = vector.broadcast %cst_124 : f32 to vector<80x32xf32>
    %242 = arith.addf %241, %240 : vector<80x32xf32>
    %cst_125 = arith.constant 1.000000e+00 : f32
    %243 = vector.broadcast %cst_125 : f32 to vector<80x32xf32>
    %244 = arith.divf %243, %242 : vector<80x32xf32>
    %cst_126 = arith.constant 1.06140542 : f32
    %245 = vector.broadcast %cst_126 : f32 to vector<80x32xf32>
    %246 = arith.mulf %245, %244 : vector<80x32xf32>
    %cst_127 = arith.constant -1.45315206 : f32
    %247 = vector.broadcast %cst_127 : f32 to vector<80x32xf32>
    %248 = arith.addf %246, %247 : vector<80x32xf32>
    %249 = arith.mulf %248, %244 : vector<80x32xf32>
    %cst_128 = arith.constant 1.42141378 : f32
    %250 = vector.broadcast %cst_128 : f32 to vector<80x32xf32>
    %251 = arith.addf %249, %250 : vector<80x32xf32>
    %252 = arith.mulf %251, %244 : vector<80x32xf32>
    %cst_129 = arith.constant -0.284496725 : f32
    %253 = vector.broadcast %cst_129 : f32 to vector<80x32xf32>
    %254 = arith.addf %252, %253 : vector<80x32xf32>
    %255 = arith.mulf %254, %244 : vector<80x32xf32>
    %cst_130 = arith.constant 0.254829586 : f32
    %256 = vector.broadcast %cst_130 : f32 to vector<80x32xf32>
    %257 = arith.addf %255, %256 : vector<80x32xf32>
    %258 = arith.mulf %257, %244 : vector<80x32xf32>
    %cst_131 = arith.constant 0.000000e+00 : f32
    %259 = vector.broadcast %cst_131 : f32 to vector<80x32xf32>
    %260 = arith.subf %259, %238 : vector<80x32xf32>
    %261 = arith.mulf %260, %238 : vector<80x32xf32>
    %262 = math.exp %261 : vector<80x32xf32>
    %263 = arith.mulf %258, %262 : vector<80x32xf32>
    %cst_132 = arith.constant 1.000000e+00 : f32
    %264 = vector.broadcast %cst_132 : f32 to vector<80x32xf32>
    %265 = arith.subf %264, %263 : vector<80x32xf32>
    %cst_133 = arith.constant 0.000000e+00 : f32
    %266 = vector.broadcast %cst_133 : f32 to vector<80x32xf32>
    %267 = arith.cmpf olt, %237, %266 : vector<80x32xf32>
    %cst_134 = arith.constant 0.000000e+00 : f32
    %268 = vector.broadcast %cst_134 : f32 to vector<80x32xf32>
    %269 = arith.subf %268, %265 : vector<80x32xf32>
    %270 = arith.select %267, %269, %265 : vector<80x32xi1>, vector<80x32xf32>
    %cst_135 = arith.constant 1.000000e+00 : f32
    %271 = vector.broadcast %cst_135 : f32 to vector<80x32xf32>
    %272 = arith.addf %271, %270 : vector<80x32xf32>
    %273 = arith.mulf %235, %272 : vector<80x32xf32>
    %c0_136 = arith.constant 0 : index
    %c0_137 = arith.constant 0 : index
    %274 = vector.load %arg10[%c0_136, %c0_137] : memref<32x288xf32, #tpu.memory_space<vmem>>, vector<32x288xf32>
    %cst_138 = arith.constant dense<0.000000e+00> : vector<80x288xf32>
    %275 = tpu.matmul %273, %274, %cst_138 {dimension_numbers = #tpu.dot_dimension_numbers<[1], [0], [0], [1], [0, 0, 1, 1], [], []>} : vector<80x32xf32>, vector<32x288xf32>, vector<80x288xf32> -> vector<80x288xf32>
    %cst_139 = arith.constant 0.000000e+00 : f32
    %276 = vector.broadcast %cst_139 : f32 to vector<8x288xf32>
    %277 = tpu.concatenate %276, %275, %276 in 0 : vector<8x288xf32>, vector<80x288xf32>, vector<8x288xf32> -> vector<96x288xf32>
    %278 = vector.extract_strided_slice %277 {offsets = [5, 0], sizes = [80, 32], strides = [1, 1]} : vector<96x288xf32> to vector<80x32xf32>
    %c0_140 = arith.constant 0 : index
    %c0_141 = arith.constant 0 : index
    %c0_142 = arith.constant 0 : index
    %279 = vector.load %arg2[%c0_140, %c0_141, %c0_142] : memref<9x80x32xf32, #tpu.memory_space<vmem>>, vector<1x80x32xf32>
    %280 = vector.shape_cast %279 : vector<1x80x32xf32> to vector<80x32xf32>
    %281 = arith.mulf %278, %280 : vector<80x32xf32>
    %282 = vector.extract_strided_slice %277 {offsets = [6, 32], sizes = [80, 32], strides = [1, 1]} : vector<96x288xf32> to vector<80x32xf32>
    %c1_143 = arith.constant 1 : index
    %c0_144 = arith.constant 0 : index
    %c0_145 = arith.constant 0 : index
    %283 = vector.load %arg2[%c1_143, %c0_144, %c0_145] : memref<9x80x32xf32, #tpu.memory_space<vmem>>, vector<1x80x32xf32>
    %284 = vector.shape_cast %283 : vector<1x80x32xf32> to vector<80x32xf32>
    %285 = arith.mulf %282, %284 : vector<80x32xf32>
    %286 = arith.addf %281, %285 : vector<80x32xf32>
    %287 = vector.extract_strided_slice %277 {offsets = [7, 64], sizes = [80, 32], strides = [1, 1]} : vector<96x288xf32> to vector<80x32xf32>
    %c2_146 = arith.constant 2 : index
    %c0_147 = arith.constant 0 : index
    %c0_148 = arith.constant 0 : index
    %288 = vector.load %arg2[%c2_146, %c0_147, %c0_148] : memref<9x80x32xf32, #tpu.memory_space<vmem>>, vector<1x80x32xf32>
    %289 = vector.shape_cast %288 : vector<1x80x32xf32> to vector<80x32xf32>
    %290 = arith.mulf %287, %289 : vector<80x32xf32>
    %291 = arith.addf %286, %290 : vector<80x32xf32>
    %292 = vector.extract_strided_slice %277 {offsets = [7, 96], sizes = [80, 32], strides = [1, 1]} : vector<96x288xf32> to vector<80x32xf32>
    %c3_149 = arith.constant 3 : index
    %c0_150 = arith.constant 0 : index
    %c0_151 = arith.constant 0 : index
    %293 = vector.load %arg2[%c3_149, %c0_150, %c0_151] : memref<9x80x32xf32, #tpu.memory_space<vmem>>, vector<1x80x32xf32>
    %294 = vector.shape_cast %293 : vector<1x80x32xf32> to vector<80x32xf32>
    %295 = arith.mulf %292, %294 : vector<80x32xf32>
    %296 = arith.addf %291, %295 : vector<80x32xf32>
    %297 = vector.extract_strided_slice %277 {offsets = [8, 128], sizes = [80, 32], strides = [1, 1]} : vector<96x288xf32> to vector<80x32xf32>
    %c4_152 = arith.constant 4 : index
    %c0_153 = arith.constant 0 : index
    %c0_154 = arith.constant 0 : index
    %298 = vector.load %arg2[%c4_152, %c0_153, %c0_154] : memref<9x80x32xf32, #tpu.memory_space<vmem>>, vector<1x80x32xf32>
    %299 = vector.shape_cast %298 : vector<1x80x32xf32> to vector<80x32xf32>
    %300 = arith.mulf %297, %299 : vector<80x32xf32>
    %301 = arith.addf %296, %300 : vector<80x32xf32>
    %302 = vector.extract_strided_slice %277 {offsets = [9, 160], sizes = [80, 32], strides = [1, 1]} : vector<96x288xf32> to vector<80x32xf32>
    %c5_155 = arith.constant 5 : index
    %c0_156 = arith.constant 0 : index
    %c0_157 = arith.constant 0 : index
    %303 = vector.load %arg2[%c5_155, %c0_156, %c0_157] : memref<9x80x32xf32, #tpu.memory_space<vmem>>, vector<1x80x32xf32>
    %304 = vector.shape_cast %303 : vector<1x80x32xf32> to vector<80x32xf32>
    %305 = arith.mulf %302, %304 : vector<80x32xf32>
    %306 = arith.addf %301, %305 : vector<80x32xf32>
    %307 = vector.extract_strided_slice %277 {offsets = [9, 192], sizes = [80, 32], strides = [1, 1]} : vector<96x288xf32> to vector<80x32xf32>
    %c6_158 = arith.constant 6 : index
    %c0_159 = arith.constant 0 : index
    %c0_160 = arith.constant 0 : index
    %308 = vector.load %arg2[%c6_158, %c0_159, %c0_160] : memref<9x80x32xf32, #tpu.memory_space<vmem>>, vector<1x80x32xf32>
    %309 = vector.shape_cast %308 : vector<1x80x32xf32> to vector<80x32xf32>
    %310 = arith.mulf %307, %309 : vector<80x32xf32>
    %311 = arith.addf %306, %310 : vector<80x32xf32>
    %312 = vector.extract_strided_slice %277 {offsets = [10, 224], sizes = [80, 32], strides = [1, 1]} : vector<96x288xf32> to vector<80x32xf32>
    %c7_161 = arith.constant 7 : index
    %c0_162 = arith.constant 0 : index
    %c0_163 = arith.constant 0 : index
    %313 = vector.load %arg2[%c7_161, %c0_162, %c0_163] : memref<9x80x32xf32, #tpu.memory_space<vmem>>, vector<1x80x32xf32>
    %314 = vector.shape_cast %313 : vector<1x80x32xf32> to vector<80x32xf32>
    %315 = arith.mulf %312, %314 : vector<80x32xf32>
    %316 = arith.addf %311, %315 : vector<80x32xf32>
    %317 = vector.extract_strided_slice %277 {offsets = [11, 256], sizes = [80, 32], strides = [1, 1]} : vector<96x288xf32> to vector<80x32xf32>
    %c8_164 = arith.constant 8 : index
    %c0_165 = arith.constant 0 : index
    %c0_166 = arith.constant 0 : index
    %318 = vector.load %arg2[%c8_164, %c0_165, %c0_166] : memref<9x80x32xf32, #tpu.memory_space<vmem>>, vector<1x80x32xf32>
    %319 = vector.shape_cast %318 : vector<1x80x32xf32> to vector<80x32xf32>
    %320 = arith.mulf %317, %319 : vector<80x32xf32>
    %321 = arith.addf %316, %320 : vector<80x32xf32>
    %c0_167 = arith.constant 0 : index
    %c0_168 = arith.constant 0 : index
    %322 = vector.load %arg11[%c0_167, %c0_168] : memref<1x32xf32, #tpu.memory_space<vmem>>, vector<1x32xf32>
    %323 = vector.broadcast %322 : vector<1x32xf32> to vector<80x32xf32>
    %324 = arith.addf %321, %323 : vector<80x32xf32>
    %cst_169 = arith.constant 5.000000e-01 : f32
    %325 = vector.broadcast %cst_169 : f32 to vector<80x32xf32>
    %326 = arith.mulf %325, %324 : vector<80x32xf32>
    %cst_170 = arith.constant 0.707106769 : f32
    %327 = vector.broadcast %cst_170 : f32 to vector<80x32xf32>
    %328 = arith.mulf %324, %327 : vector<80x32xf32>
    %329 = math.absf %328 : vector<80x32xf32>
    %cst_171 = arith.constant 0.327591091 : f32
    %330 = vector.broadcast %cst_171 : f32 to vector<80x32xf32>
    %331 = arith.mulf %330, %329 : vector<80x32xf32>
    %cst_172 = arith.constant 1.000000e+00 : f32
    %332 = vector.broadcast %cst_172 : f32 to vector<80x32xf32>
    %333 = arith.addf %332, %331 : vector<80x32xf32>
    %cst_173 = arith.constant 1.000000e+00 : f32
    %334 = vector.broadcast %cst_173 : f32 to vector<80x32xf32>
    %335 = arith.divf %334, %333 : vector<80x32xf32>
    %cst_174 = arith.constant 1.06140542 : f32
    %336 = vector.broadcast %cst_174 : f32 to vector<80x32xf32>
    %337 = arith.mulf %336, %335 : vector<80x32xf32>
    %cst_175 = arith.constant -1.45315206 : f32
    %338 = vector.broadcast %cst_175 : f32 to vector<80x32xf32>
    %339 = arith.addf %337, %338 : vector<80x32xf32>
    %340 = arith.mulf %339, %335 : vector<80x32xf32>
    %cst_176 = arith.constant 1.42141378 : f32
    %341 = vector.broadcast %cst_176 : f32 to vector<80x32xf32>
    %342 = arith.addf %340, %341 : vector<80x32xf32>
    %343 = arith.mulf %342, %335 : vector<80x32xf32>
    %cst_177 = arith.constant -0.284496725 : f32
    %344 = vector.broadcast %cst_177 : f32 to vector<80x32xf32>
    %345 = arith.addf %343, %344 : vector<80x32xf32>
    %346 = arith.mulf %345, %335 : vector<80x32xf32>
    %cst_178 = arith.constant 0.254829586 : f32
    %347 = vector.broadcast %cst_178 : f32 to vector<80x32xf32>
    %348 = arith.addf %346, %347 : vector<80x32xf32>
    %349 = arith.mulf %348, %335 : vector<80x32xf32>
    %cst_179 = arith.constant 0.000000e+00 : f32
    %350 = vector.broadcast %cst_179 : f32 to vector<80x32xf32>
    %351 = arith.subf %350, %329 : vector<80x32xf32>
    %352 = arith.mulf %351, %329 : vector<80x32xf32>
    %353 = math.exp %352 : vector<80x32xf32>
    %354 = arith.mulf %349, %353 : vector<80x32xf32>
    %cst_180 = arith.constant 1.000000e+00 : f32
    %355 = vector.broadcast %cst_180 : f32 to vector<80x32xf32>
    %356 = arith.subf %355, %354 : vector<80x32xf32>
    %cst_181 = arith.constant 0.000000e+00 : f32
    %357 = vector.broadcast %cst_181 : f32 to vector<80x32xf32>
    %358 = arith.cmpf olt, %328, %357 : vector<80x32xf32>
    %cst_182 = arith.constant 0.000000e+00 : f32
    %359 = vector.broadcast %cst_182 : f32 to vector<80x32xf32>
    %360 = arith.subf %359, %356 : vector<80x32xf32>
    %361 = arith.select %358, %360, %356 : vector<80x32xi1>, vector<80x32xf32>
    %cst_183 = arith.constant 1.000000e+00 : f32
    %362 = vector.broadcast %cst_183 : f32 to vector<80x32xf32>
    %363 = arith.addf %362, %361 : vector<80x32xf32>
    %364 = arith.mulf %326, %363 : vector<80x32xf32>
    %cst_184 = arith.constant dense<0.000000e+00> : vector<80xf32>
    %365 = vector.multi_reduction <add>, %364, %cst_184 [1] : vector<80x32xf32> to vector<80xf32>
    %366 = vector.shape_cast %365 : vector<80xf32> to vector<80x1xf32>
    %cst_185 = arith.constant 3.200000e+01 : f32
    %367 = vector.broadcast %cst_185 : f32 to vector<80x1xf32>
    %368 = arith.divf %366, %367 : vector<80x1xf32>
    %369 = vector.broadcast %368 : vector<80x1xf32> to vector<80x32xf32>
    %370 = arith.subf %364, %369 : vector<80x32xf32>
    %371 = arith.mulf %370, %370 : vector<80x32xf32>
    %cst_186 = arith.constant dense<0.000000e+00> : vector<80xf32>
    %372 = vector.multi_reduction <add>, %371, %cst_186 [1] : vector<80x32xf32> to vector<80xf32>
    %373 = vector.shape_cast %372 : vector<80xf32> to vector<80x1xf32>
    %cst_187 = arith.constant 3.200000e+01 : f32
    %374 = vector.broadcast %cst_187 : f32 to vector<80x1xf32>
    %375 = arith.divf %373, %374 : vector<80x1xf32>
    %376 = vector.broadcast %368 : vector<80x1xf32> to vector<80x32xf32>
    %377 = arith.subf %364, %376 : vector<80x32xf32>
    %cst_188 = arith.constant 9.99999974E-6 : f32
    %378 = vector.broadcast %cst_188 : f32 to vector<80x1xf32>
    %379 = arith.addf %375, %378 : vector<80x1xf32>
    %380 = math.rsqrt %379 : vector<80x1xf32>
    %381 = vector.broadcast %380 : vector<80x1xf32> to vector<80x32xf32>
    %382 = arith.mulf %377, %381 : vector<80x32xf32>
    %c0_189 = arith.constant 0 : index
    %c0_190 = arith.constant 0 : index
    %383 = vector.load %arg12[%c0_189, %c0_190] : memref<1x32xf32, #tpu.memory_space<vmem>>, vector<1x32xf32>
    %384 = vector.broadcast %383 : vector<1x32xf32> to vector<80x32xf32>
    %385 = arith.mulf %382, %384 : vector<80x32xf32>
    %c0_191 = arith.constant 0 : index
    %c0_192 = arith.constant 0 : index
    %386 = vector.load %arg13[%c0_191, %c0_192] : memref<1x32xf32, #tpu.memory_space<vmem>>, vector<1x32xf32>
    %387 = vector.broadcast %386 : vector<1x32xf32> to vector<80x32xf32>
    %388 = arith.addf %385, %387 : vector<80x32xf32>
    %c0_193 = arith.constant 0 : index
    %c0_194 = arith.constant 0 : index
    %389 = vector.load %arg14[%c0_193, %c0_194] : memref<32x96xf32, #tpu.memory_space<vmem>>, vector<32x96xf32>
    %cst_195 = arith.constant dense<0.000000e+00> : vector<80x96xf32>
    %390 = tpu.matmul %388, %389, %cst_195 {dimension_numbers = #tpu.dot_dimension_numbers<[1], [0], [0], [1], [0, 0, 1, 1], [], []>} : vector<80x32xf32>, vector<32x96xf32>, vector<80x96xf32> -> vector<80x96xf32>
    %c0_196 = arith.constant 0 : index
    %c0_197 = arith.constant 0 : index
    %391 = vector.load %arg15[%c0_196, %c0_197] : memref<1x96xf32, #tpu.memory_space<vmem>>, vector<1x96xf32>
    %392 = vector.broadcast %391 : vector<1x96xf32> to vector<80x96xf32>
    %393 = arith.addf %390, %392 : vector<80x96xf32>
    %394 = vector.shape_cast %393 : vector<80x96xf32> to vector<2x40x96xf32>
    %c0_198 = arith.constant 0 : index
    %c0_199 = arith.constant 0 : index
    %395 = vector.load %arg3[%c0_198, %c0_199] : memref<1x40xf32, #tpu.memory_space<vmem>>, vector<1x40xf32>
    %396 = vector.shape_cast %395 : vector<1x40xf32> to vector<1x1x40xf32>
    %397 = vector.extract_strided_slice %394 {offsets = [0, 0, 0], sizes = [2, 40, 8], strides = [1, 1, 1]} : vector<2x40x96xf32> to vector<2x40x8xf32>
    %398 = vector.extract_strided_slice %394 {offsets = [0, 0, 32], sizes = [2, 40, 8], strides = [1, 1, 1]} : vector<2x40x96xf32> to vector<2x40x8xf32>
    %399 = vector.extract_strided_slice %394 {offsets = [0, 0, 64], sizes = [2, 40, 8], strides = [1, 1, 1]} : vector<2x40x96xf32> to vector<2x40x8xf32>
    "tpu.trace_start"() <{level = 10 : i32, message = "bnd,bmd->bnm"}> : () -> ()
    %cst_200 = arith.constant dense<0.000000e+00> : vector<2x40x40xf32>
    %400 = tpu.matmul %397, %398, %cst_200 {dimension_numbers = #tpu.dot_dimension_numbers<[2], [2], [1], [1], [0, 0, 0, 1, 1, 1], [0], [0]>} : vector<2x40x8xf32>, vector<2x40x8xf32>, vector<2x40x40xf32> -> vector<2x40x40xf32>
    "tpu.trace_stop"() : () -> ()
    %cst_201 = arith.constant 0.353553385 : f32
    %401 = vector.broadcast %cst_201 : f32 to vector<2x40x40xf32>
    %402 = arith.mulf %400, %401 : vector<2x40x40xf32>
    %403 = vector.broadcast %396 : vector<1x1x40xf32> to vector<2x40x40xf32>
    %404 = arith.addf %402, %403 : vector<2x40x40xf32>
    %cst_202 = arith.constant dense<0xFF800000> : vector<2x40xf32>
    %405 = vector.multi_reduction <maximumf>, %404, %cst_202 [2] : vector<2x40x40xf32> to vector<2x40xf32>
    %406 = vector.shape_cast %405 : vector<2x40xf32> to vector<2x40x1xf32>
    %407 = vector.broadcast %406 : vector<2x40x1xf32> to vector<2x40x40xf32>
    %408 = arith.subf %404, %407 : vector<2x40x40xf32>
    %409 = math.exp %408 : vector<2x40x40xf32>
    %cst_203 = arith.constant dense<0.000000e+00> : vector<2x40xf32>
    %410 = vector.multi_reduction <add>, %409, %cst_203 [2] : vector<2x40x40xf32> to vector<2x40xf32>
    %411 = vector.shape_cast %410 : vector<2x40xf32> to vector<2x40x1xf32>
    %412 = tpu.reciprocal %411 {approx = true} : vector<2x40x1xf32> -> vector<2x40x1xf32>
    %413 = vector.broadcast %412 : vector<2x40x1xf32> to vector<2x40x40xf32>
    %414 = arith.mulf %409, %413 : vector<2x40x40xf32>
    "tpu.trace_start"() <{level = 10 : i32, message = "bnm,bmd->bnd"}> : () -> ()
    %cst_204 = arith.constant dense<0.000000e+00> : vector<2x40x8xf32>
    %415 = tpu.matmul %414, %399, %cst_204 {dimension_numbers = #tpu.dot_dimension_numbers<[2], [1], [1], [2], [0, 0, 0, 1, 1, 2], [0], [0]>} : vector<2x40x40xf32>, vector<2x40x8xf32>, vector<2x40x8xf32> -> vector<2x40x8xf32>
    "tpu.trace_stop"() : () -> ()
    %416 = vector.shape_cast %415 : vector<2x40x8xf32> to vector<80x8xf32>
    %417 = vector.extract_strided_slice %394 {offsets = [0, 0, 8], sizes = [2, 40, 8], strides = [1, 1, 1]} : vector<2x40x96xf32> to vector<2x40x8xf32>
    %418 = vector.extract_strided_slice %394 {offsets = [0, 0, 40], sizes = [2, 40, 8], strides = [1, 1, 1]} : vector<2x40x96xf32> to vector<2x40x8xf32>
    %419 = vector.extract_strided_slice %394 {offsets = [0, 0, 72], sizes = [2, 40, 8], strides = [1, 1, 1]} : vector<2x40x96xf32> to vector<2x40x8xf32>
    "tpu.trace_start"() <{level = 10 : i32, message = "bnd,bmd->bnm"}> : () -> ()
    %cst_205 = arith.constant dense<0.000000e+00> : vector<2x40x40xf32>
    %420 = tpu.matmul %417, %418, %cst_205 {dimension_numbers = #tpu.dot_dimension_numbers<[2], [2], [1], [1], [0, 0, 0, 1, 1, 1], [0], [0]>} : vector<2x40x8xf32>, vector<2x40x8xf32>, vector<2x40x40xf32> -> vector<2x40x40xf32>
    "tpu.trace_stop"() : () -> ()
    %cst_206 = arith.constant 0.353553385 : f32
    %421 = vector.broadcast %cst_206 : f32 to vector<2x40x40xf32>
    %422 = arith.mulf %420, %421 : vector<2x40x40xf32>
    %423 = vector.broadcast %396 : vector<1x1x40xf32> to vector<2x40x40xf32>
    %424 = arith.addf %422, %423 : vector<2x40x40xf32>
    %cst_207 = arith.constant dense<0xFF800000> : vector<2x40xf32>
    %425 = vector.multi_reduction <maximumf>, %424, %cst_207 [2] : vector<2x40x40xf32> to vector<2x40xf32>
    %426 = vector.shape_cast %425 : vector<2x40xf32> to vector<2x40x1xf32>
    %427 = vector.broadcast %426 : vector<2x40x1xf32> to vector<2x40x40xf32>
    %428 = arith.subf %424, %427 : vector<2x40x40xf32>
    %429 = math.exp %428 : vector<2x40x40xf32>
    %cst_208 = arith.constant dense<0.000000e+00> : vector<2x40xf32>
    %430 = vector.multi_reduction <add>, %429, %cst_208 [2] : vector<2x40x40xf32> to vector<2x40xf32>
    %431 = vector.shape_cast %430 : vector<2x40xf32> to vector<2x40x1xf32>
    %432 = tpu.reciprocal %431 {approx = true} : vector<2x40x1xf32> -> vector<2x40x1xf32>
    %433 = vector.broadcast %432 : vector<2x40x1xf32> to vector<2x40x40xf32>
    %434 = arith.mulf %429, %433 : vector<2x40x40xf32>
    "tpu.trace_start"() <{level = 10 : i32, message = "bnm,bmd->bnd"}> : () -> ()
    %cst_209 = arith.constant dense<0.000000e+00> : vector<2x40x8xf32>
    %435 = tpu.matmul %434, %419, %cst_209 {dimension_numbers = #tpu.dot_dimension_numbers<[2], [1], [1], [2], [0, 0, 0, 1, 1, 2], [0], [0]>} : vector<2x40x40xf32>, vector<2x40x8xf32>, vector<2x40x8xf32> -> vector<2x40x8xf32>
    "tpu.trace_stop"() : () -> ()
    %436 = vector.shape_cast %435 : vector<2x40x8xf32> to vector<80x8xf32>
    %437 = vector.extract_strided_slice %394 {offsets = [0, 0, 16], sizes = [2, 40, 8], strides = [1, 1, 1]} : vector<2x40x96xf32> to vector<2x40x8xf32>
    %438 = vector.extract_strided_slice %394 {offsets = [0, 0, 48], sizes = [2, 40, 8], strides = [1, 1, 1]} : vector<2x40x96xf32> to vector<2x40x8xf32>
    %439 = vector.extract_strided_slice %394 {offsets = [0, 0, 80], sizes = [2, 40, 8], strides = [1, 1, 1]} : vector<2x40x96xf32> to vector<2x40x8xf32>
    "tpu.trace_start"() <{level = 10 : i32, message = "bnd,bmd->bnm"}> : () -> ()
    %cst_210 = arith.constant dense<0.000000e+00> : vector<2x40x40xf32>
    %440 = tpu.matmul %437, %438, %cst_210 {dimension_numbers = #tpu.dot_dimension_numbers<[2], [2], [1], [1], [0, 0, 0, 1, 1, 1], [0], [0]>} : vector<2x40x8xf32>, vector<2x40x8xf32>, vector<2x40x40xf32> -> vector<2x40x40xf32>
    "tpu.trace_stop"() : () -> ()
    %cst_211 = arith.constant 0.353553385 : f32
    %441 = vector.broadcast %cst_211 : f32 to vector<2x40x40xf32>
    %442 = arith.mulf %440, %441 : vector<2x40x40xf32>
    %443 = vector.broadcast %396 : vector<1x1x40xf32> to vector<2x40x40xf32>
    %444 = arith.addf %442, %443 : vector<2x40x40xf32>
    %cst_212 = arith.constant dense<0xFF800000> : vector<2x40xf32>
    %445 = vector.multi_reduction <maximumf>, %444, %cst_212 [2] : vector<2x40x40xf32> to vector<2x40xf32>
    %446 = vector.shape_cast %445 : vector<2x40xf32> to vector<2x40x1xf32>
    %447 = vector.broadcast %446 : vector<2x40x1xf32> to vector<2x40x40xf32>
    %448 = arith.subf %444, %447 : vector<2x40x40xf32>
    %449 = math.exp %448 : vector<2x40x40xf32>
    %cst_213 = arith.constant dense<0.000000e+00> : vector<2x40xf32>
    %450 = vector.multi_reduction <add>, %449, %cst_213 [2] : vector<2x40x40xf32> to vector<2x40xf32>
    %451 = vector.shape_cast %450 : vector<2x40xf32> to vector<2x40x1xf32>
    %452 = tpu.reciprocal %451 {approx = true} : vector<2x40x1xf32> -> vector<2x40x1xf32>
    %453 = vector.broadcast %452 : vector<2x40x1xf32> to vector<2x40x40xf32>
    %454 = arith.mulf %449, %453 : vector<2x40x40xf32>
    "tpu.trace_start"() <{level = 10 : i32, message = "bnm,bmd->bnd"}> : () -> ()
    %cst_214 = arith.constant dense<0.000000e+00> : vector<2x40x8xf32>
    %455 = tpu.matmul %454, %439, %cst_214 {dimension_numbers = #tpu.dot_dimension_numbers<[2], [1], [1], [2], [0, 0, 0, 1, 1, 2], [0], [0]>} : vector<2x40x40xf32>, vector<2x40x8xf32>, vector<2x40x8xf32> -> vector<2x40x8xf32>
    "tpu.trace_stop"() : () -> ()
    %456 = vector.shape_cast %455 : vector<2x40x8xf32> to vector<80x8xf32>
    %457 = vector.extract_strided_slice %394 {offsets = [0, 0, 24], sizes = [2, 40, 8], strides = [1, 1, 1]} : vector<2x40x96xf32> to vector<2x40x8xf32>
    %458 = vector.extract_strided_slice %394 {offsets = [0, 0, 56], sizes = [2, 40, 8], strides = [1, 1, 1]} : vector<2x40x96xf32> to vector<2x40x8xf32>
    %459 = vector.extract_strided_slice %394 {offsets = [0, 0, 88], sizes = [2, 40, 8], strides = [1, 1, 1]} : vector<2x40x96xf32> to vector<2x40x8xf32>
    "tpu.trace_start"() <{level = 10 : i32, message = "bnd,bmd->bnm"}> : () -> ()
    %cst_215 = arith.constant dense<0.000000e+00> : vector<2x40x40xf32>
    %460 = tpu.matmul %457, %458, %cst_215 {dimension_numbers = #tpu.dot_dimension_numbers<[2], [2], [1], [1], [0, 0, 0, 1, 1, 1], [0], [0]>} : vector<2x40x8xf32>, vector<2x40x8xf32>, vector<2x40x40xf32> -> vector<2x40x40xf32>
    "tpu.trace_stop"() : () -> ()
    %cst_216 = arith.constant 0.353553385 : f32
    %461 = vector.broadcast %cst_216 : f32 to vector<2x40x40xf32>
    %462 = arith.mulf %460, %461 : vector<2x40x40xf32>
    %463 = vector.broadcast %396 : vector<1x1x40xf32> to vector<2x40x40xf32>
    %464 = arith.addf %462, %463 : vector<2x40x40xf32>
    %cst_217 = arith.constant dense<0xFF800000> : vector<2x40xf32>
    %465 = vector.multi_reduction <maximumf>, %464, %cst_217 [2] : vector<2x40x40xf32> to vector<2x40xf32>
    %466 = vector.shape_cast %465 : vector<2x40xf32> to vector<2x40x1xf32>
    %467 = vector.broadcast %466 : vector<2x40x1xf32> to vector<2x40x40xf32>
    %468 = arith.subf %464, %467 : vector<2x40x40xf32>
    %469 = math.exp %468 : vector<2x40x40xf32>
    %cst_218 = arith.constant dense<0.000000e+00> : vector<2x40xf32>
    %470 = vector.multi_reduction <add>, %469, %cst_218 [2] : vector<2x40x40xf32> to vector<2x40xf32>
    %471 = vector.shape_cast %470 : vector<2x40xf32> to vector<2x40x1xf32>
    %472 = tpu.reciprocal %471 {approx = true} : vector<2x40x1xf32> -> vector<2x40x1xf32>
    %473 = vector.broadcast %472 : vector<2x40x1xf32> to vector<2x40x40xf32>
    %474 = arith.mulf %469, %473 : vector<2x40x40xf32>
    "tpu.trace_start"() <{level = 10 : i32, message = "bnm,bmd->bnd"}> : () -> ()
    %cst_219 = arith.constant dense<0.000000e+00> : vector<2x40x8xf32>
    %475 = tpu.matmul %474, %459, %cst_219 {dimension_numbers = #tpu.dot_dimension_numbers<[2], [1], [1], [2], [0, 0, 0, 1, 1, 2], [0], [0]>} : vector<2x40x40xf32>, vector<2x40x8xf32>, vector<2x40x8xf32> -> vector<2x40x8xf32>
    "tpu.trace_stop"() : () -> ()
    %476 = vector.shape_cast %475 : vector<2x40x8xf32> to vector<80x8xf32>
    %477 = tpu.concatenate %416, %436, %456, %476 in 1 : vector<80x8xf32>, vector<80x8xf32>, vector<80x8xf32>, vector<80x8xf32> -> vector<80x32xf32>
    %c0_220 = arith.constant 0 : index
    %c0_221 = arith.constant 0 : index
    %478 = vector.load %arg16[%c0_220, %c0_221] : memref<32x32xf32, #tpu.memory_space<vmem>>, vector<32x32xf32>
    %cst_222 = arith.constant dense<0.000000e+00> : vector<80x32xf32>
    %479 = tpu.matmul %477, %478, %cst_222 {dimension_numbers = #tpu.dot_dimension_numbers<[1], [0], [0], [1], [0, 0, 1, 1], [], []>} : vector<80x32xf32>, vector<32x32xf32>, vector<80x32xf32> -> vector<80x32xf32>
    %c0_223 = arith.constant 0 : index
    %c0_224 = arith.constant 0 : index
    %480 = vector.load %arg17[%c0_223, %c0_224] : memref<1x32xf32, #tpu.memory_space<vmem>>, vector<1x32xf32>
    %481 = vector.broadcast %480 : vector<1x32xf32> to vector<80x32xf32>
    %482 = arith.addf %479, %481 : vector<80x32xf32>
    %483 = arith.addf %364, %482 : vector<80x32xf32>
    %c0_225 = arith.constant 0 : index
    %c0_226 = arith.constant 0 : index
    %484 = vector.load %arg18[%c0_225, %c0_226] : memref<80x32xf32, #tpu.memory_space<vmem>>, vector<80x32xf32>
    tpu.vector_store %arg18[%c0_225, %c0_226], %483 {strides = array<i32>} : memref<80x32xf32, #tpu.memory_space<vmem>>, vector<80x32xf32>,
    return
  }
  func.func @transform_0(%arg0: i32) -> (i32, i32) {
    %c0_i32 = arith.constant 0 : i32
    %c0_i32_0 = arith.constant 0 : i32
    return %arg0, %c0_i32 : i32, i32
  }
  func.func @transform_1(%arg0: i32) -> (i32, i32, i32) {
    %c0_i32 = arith.constant 0 : i32
    %c0_i32_0 = arith.constant 0 : i32
    %c0_i32_1 = arith.constant 0 : i32
    %c0_i32_2 = arith.constant 0 : i32
    return %c0_i32, %c0_i32_0, %c0_i32_1 : i32, i32, i32
  }
  func.func @transform_2(%arg0: i32) -> (i32, i32) {
    %c0_i32 = arith.constant 0 : i32
    %c0_i32_0 = arith.constant 0 : i32
    %c0_i32_1 = arith.constant 0 : i32
    return %c0_i32, %c0_i32_0 : i32, i32
  }
  func.func @transform_3(%arg0: i32) -> (i32, i32) {
    %c0_i32 = arith.constant 0 : i32
    %c0_i32_0 = arith.constant 0 : i32
    %c0_i32_1 = arith.constant 0 : i32
    return %c0_i32, %c0_i32_0 : i32, i32
  }
  func.func @transform_4(%arg0: i32) -> (i32, i32) {
    %c0_i32 = arith.constant 0 : i32
    %c0_i32_0 = arith.constant 0 : i32
    %c0_i32_1 = arith.constant 0 : i32
    return %c0_i32, %c0_i32_0 : i32, i32
  }
  func.func @transform_5(%arg0: i32) -> (i32, i32) {
    %c0_i32 = arith.constant 0 : i32
    %c0_i32_0 = arith.constant 0 : i32
    %c0_i32_1 = arith.constant 0 : i32
    return %c0_i32, %c0_i32_0 : i32, i32
  }
  func.func @transform_6(%arg0: i32) -> (i32, i32) {
    %c0_i32 = arith.constant 0 : i32
    %c0_i32_0 = arith.constant 0 : i32
    %c0_i32_1 = arith.constant 0 : i32
    return %c0_i32, %c0_i32_0 : i32, i32
  }
  func.func @transform_7(%arg0: i32) -> (i32, i32) {
    %c0_i32 = arith.constant 0 : i32
    %c0_i32_0 = arith.constant 0 : i32
    %c0_i32_1 = arith.constant 0 : i32
    return %c0_i32, %c0_i32_0 : i32, i32
  }
  func.func @transform_8(%arg0: i32) -> (i32, i32) {
    %c0_i32 = arith.constant 0 : i32
    %c0_i32_0 = arith.constant 0 : i32
    %c0_i32_1 = arith.constant 0 : i32
    return %c0_i32, %c0_i32_0 : i32, i32
  }
  func.func @transform_9(%arg0: i32) -> (i32, i32) {
    %c0_i32 = arith.constant 0 : i32
    %c0_i32_0 = arith.constant 0 : i32
    %c0_i32_1 = arith.constant 0 : i32
    return %c0_i32, %c0_i32_0 : i32, i32
  }
  func.func @transform_10(%arg0: i32) -> (i32, i32) {
    %c0_i32 = arith.constant 0 : i32
    %c0_i32_0 = arith.constant 0 : i32
    %c0_i32_1 = arith.constant 0 : i32
    return %c0_i32, %c0_i32_0 : i32, i32
  }
  func.func @transform_11(%arg0: i32) -> (i32, i32) {
    %c0_i32 = arith.constant 0 : i32
    %c0_i32_0 = arith.constant 0 : i32
    %c0_i32_1 = arith.constant 0 : i32
    return %c0_i32, %c0_i32_0 : i32, i32
  }
  func.func @transform_12(%arg0: i32) -> (i32, i32) {
    %c0_i32 = arith.constant 0 : i32
    %c0_i32_0 = arith.constant 0 : i32
    %c0_i32_1 = arith.constant 0 : i32
    return %c0_i32, %c0_i32_0 : i32, i32
  }
  func.func @transform_13(%arg0: i32) -> (i32, i32) {
    %c0_i32 = arith.constant 0 : i32
    %c0_i32_0 = arith.constant 0 : i32
    %c0_i32_1 = arith.constant 0 : i32
    return %c0_i32, %c0_i32_0 : i32, i32
  }
  func.func @transform_14(%arg0: i32) -> (i32, i32) {
    %c0_i32 = arith.constant 0 : i32
    %c0_i32_0 = arith.constant 0 : i32
    %c0_i32_1 = arith.constant 0 : i32
    return %c0_i32, %c0_i32_0 : i32, i32
  }
  func.func @transform_15(%arg0: i32) -> (i32, i32) {
    %c0_i32 = arith.constant 0 : i32
    %c0_i32_0 = arith.constant 0 : i32
    %c0_i32_1 = arith.constant 0 : i32
    return %c0_i32, %c0_i32_0 : i32, i32
  }
  func.func @transform_16(%arg0: i32) -> (i32, i32) {
    %c0_i32 = arith.constant 0 : i32
    %c0_i32_0 = arith.constant 0 : i32
    %c0_i32_1 = arith.constant 0 : i32
    return %c0_i32, %c0_i32_0 : i32, i32
  }
  func.func @transform_17(%arg0: i32) -> (i32, i32) {
    %c0_i32 = arith.constant 0 : i32
    %c0_i32_0 = arith.constant 0 : i32
    return %arg0, %c0_i32 : i32, i32
  }
}

</mosaic_0001>

<llo_original>
// kernel: pilot_encoder_forward.1
$region0: #{pilot_encoder_forward.1}
  #allocation0 [shape = 'u32[]', space=smem, size = 0x4, offset = 0x4, fixed_abs, tag = 'smem constant byte address 0x4 - core index']
  #allocation1 [shape = 'u32[72,128]{1,0:T(1,128)}', space=vmem, size = 0x9000, scoped, tag = 'internal scratch']
  %s0 = inlined_call_operand.vmem [shape: f32[160,2], index: 0, kind: input, shape index: {}]
  %s1 = inlined_call_operand.hbm [shape: f32[9,80,32], index: 1, kind: input, shape index: {}]
  %s2 = inlined_call_operand.vmem [shape: f32[1,40], index: 2, kind: input, shape index: {}]
  %s3 = inlined_call_operand.vmem [shape: f32[2,288], index: 3, kind: input, shape index: {}]
  %s4 = inlined_call_operand.vmem [shape: f32[1,32], index: 4, kind: input, shape index: {}]
  %s5 = inlined_call_operand.vmem [shape: f32[32,288], index: 5, kind: input, shape index: {}]
  %s6 = inlined_call_operand.vmem [shape: f32[1,32], index: 6, kind: input, shape index: {}]
  %s7 = inlined_call_operand.vmem [shape: f32[32,288], index: 7, kind: input, shape index: {}]
  %s8 = inlined_call_operand.vmem [shape: f32[1,32], index: 8, kind: input, shape index: {}]
  %s9 = inlined_call_operand.vmem [shape: f32[32,288], index: 9, kind: input, shape index: {}]
  %s10 = inlined_call_operand.vmem [shape: f32[1,32], index: 10, kind: input, shape index: {}]
  %s11 = inlined_call_operand.vmem [shape: f32[1,32], index: 11, kind: input, shape index: {}]
  %s12 = inlined_call_operand.vmem [shape: f32[1,32], index: 12, kind: input, shape index: {}]
  %s13 = inlined_call_operand.vmem [shape: f32[32,96], index: 13, kind: input, shape index: {}]
  %s14 = inlined_call_operand.vmem [shape: f32[1,96], index: 14, kind: input, shape index: {}]
  %s15 = inlined_call_operand.vmem [shape: f32[32,32], index: 15, kind: input, shape index: {}]
  %s16 = inlined_call_operand.vmem [shape: f32[1,32], index: 16, kind: input, shape index: {}]
  %s17 = inlined_call_operand.vmem [shape: f32[160,32], index: 17, kind: output, shape index: {}]
  %s18 = sld [smem:[#allocation0]]
  $region105: #{pilot_encoder_forward.1} parent=0
    _
  %s20 = ssub.s32 1, %s18
  %s21 = scalar_select 0, %s20, %s18
  $region1: #{pilot_encoder_forward.1} parent=0
    #allocation2 [shape = 'u8[368640]{0}', space=vmem, size = 0x5a000, scoped, tag = 'input window, operand 1, single buffered']
    #allocation3 [shape = 's32[2]{0}', space=sflag, size = 0x8, scoped, tag = 'scoped memory for pilot_encoder_forward.1']
    %22 = vsyncpa [#allocation3], 0
    loop: start=0, step=1, limit=4
    $region2: #{pilot_encoder_forward.1} parent=1 // loop_pre_header
      _
    $region3: #{pilot_encoder_forward.1} parent=1 // loop_header
      %s24 = sphi 0, %s28
      %p25 = scmp.ge.s32.totalorder %s24, 4
      %s34 = sphi 0, %s36
      %s37 = sphi 0, %s34
      %s38 = sphi 0, %s37
      %s54 = sphi 0, %s38
      %s58 = sphi 0, %s58
      %s60 = sphi 0, %s58
      %s61 = sphi 0, %s60
      %s75 = sphi 0, %s61
      %s79 = sphi 0, %s79
      %s81 = sphi 0, %s79
      %s82 = sphi 0, %s81
      %s96 = sphi 0, %s82
      %s100 = sphi 0, %s100
      %s102 = sphi 0, %s100
      %s103 = sphi 0, %s102
      %s117 = sphi 0, %s103
      %s121 = sphi 0, %s121
      %s123 = sphi 0, %s121
      %s124 = sphi 0, %s123
      %s138 = sphi 0, %s124
      %s142 = sphi 0, %s142
      %s144 = sphi 0, %s142
      %s145 = sphi 0, %s144
      %s159 = sphi 0, %s145
      %s163 = sphi 0, %s163
      %s165 = sphi 0, %s163
      %s166 = sphi 0, %s165
      %s180 = sphi 0, %s166
      %s184 = sphi 0, %s184
      %s186 = sphi 0, %s184
      %s187 = sphi 0, %s186
      %s201 = sphi 0, %s187
      %s205 = sphi 0, %s205
      %s207 = sphi 0, %s205
      %s208 = sphi 0, %s207
      %s222 = sphi 0, %s208
      %s226 = sphi 0, %s226
      %s228 = sphi 0, %s226
      %s229 = sphi 0, %s228
      %s243 = sphi 0, %s229
      %s247 = sphi 0, %s247
      %s249 = sphi 0, %s247
      %s250 = sphi 0, %s249
      %s264 = sphi 0, %s250
      %s268 = sphi 0, %s268
      %s270 = sphi 0, %s268
      %s271 = sphi 0, %s270
      %s285 = sphi 0, %s271
      %s289 = sphi 0, %s289
      %s291 = sphi 0, %s289
      %s292 = sphi 0, %s291
      %s306 = sphi 0, %s292
      %s310 = sphi 0, %s310
      %s312 = sphi 0, %s310
      %s313 = sphi 0, %s312
      %s327 = sphi 0, %s313
      %s331 = sphi 0, %s331
      %s333 = sphi 0, %s331
      %s334 = sphi 0, %s333
      %s348 = sphi 0, %s334
      %s352 = sphi 0, %s352
      %s354 = sphi 0, %s352
      %s355 = sphi 0, %s354
      %s369 = sphi 0, %s355
      %s373 = sphi 0, %s373
      %s375 = sphi 0, %s373
      %s376 = sphi 0, %s375
      %s390 = sphi 0, %s376
      %s396 = sphi 0, %s398
      %s399 = sphi 0, %s396
      %s400 = sphi 0, %s399
      %s416 = sphi 0, %s400
    $region4: #{pilot_encoder_forward.1} parent=1 // loop_header_branch
      %27 = sbr.rel (%p25) target = $region8
    $region5: #{pilot_encoder_forward.1} parent=1 // loop_body
      %s29 = ssub.s32 %s24, 1
      %s30 = ssub.s32 %s24, 2
      %s31 = sadd.s32 %s24, 1
      %s32 = ssub.s32 %s24, %s31
      %p33 = scmp.eq.s32.totalorder %s32, 0
      %s35 = sadd.s32 %s34, 1
      %s36 = scalar_select %p33, %s34, %s35
      %p39 = pneg %p33
      %p40 = scmp.eq.s32.totalorder %s24, 1
      %p41 = por %p39, %p40
      %p42 = scmp.ne.s32.totalorder %s34, %s37
      %p43 = scmp.eq.s32.totalorder %s24, 0
      %p44 = por %p42, %p43
      %p45 = scmp.ne.s32.totalorder %s34, %s37
      %p46 = scmp.eq.s32.totalorder %s29, 1
      %p47 = por %p45, %p46
      %p48 = scmp.ne.s32.totalorder %s37, %s38
      %p49 = scmp.eq.s32.totalorder %s29, 0
      %p50 = por %p48, %p49
      %p51 = scmp.ne.s32.totalorder %s37, %s38
      %p52 = scmp.eq.s32.totalorder %s30, 1
      %p53 = por %p51, %p52
      %p55 = scmp.ne.s32.totalorder %s38, %s54
      %p56 = scmp.eq.s32.totalorder %s30, 0
      %p57 = por %p55, %p56
      %s59 = sadd.s32 %s58, 1
      %p62 = scmp.eq.s32.totalorder %s24, 1
      %p63 = scmp.ne.s32.totalorder %s58, %s60
      %p64 = scmp.eq.s32.totalorder %s24, 0
      %p65 = por %p63, %p64
      %p66 = scmp.ne.s32.totalorder %s58, %s60
      %p67 = scmp.eq.s32.totalorder %s29, 1
      %p68 = por %p66, %p67
      %p69 = scmp.ne.s32.totalorder %s60, %s61
      %p70 = scmp.eq.s32.totalorder %s29, 0
      %p71 = por %p69, %p70
      %p72 = scmp.ne.s32.totalorder %s60, %s61
      %p73 = scmp.eq.s32.totalorder %s30, 1
      %p74 = por %p72, %p73
      %p76 = scmp.ne.s32.totalorder %s61, %s75
      %p77 = scmp.eq.s32.totalorder %s30, 0
      %p78 = por %p76, %p77
      %s80 = sadd.s32 %s79, 1
      %p83 = scmp.eq.s32.totalorder %s24, 1
      %p84 = scmp.ne.s32.totalorder %s79, %s81
      %p85 = scmp.eq.s32.totalorder %s24, 0
      %p86 = por %p84, %p85
      %p87 = scmp.ne.s32.totalorder %s79, %s81
      %p88 = scmp.eq.s32.totalorder %s29, 1
      %p89 = por %p87, %p88
      %p90 = scmp.ne.s32.totalorder %s81, %s82
      %p91 = scmp.eq.s32.totalorder %s29, 0
      %p92 = por %p90, %p91
      %p93 = scmp.ne.s32.totalorder %s81, %s82
      %p94 = scmp.eq.s32.totalorder %s30, 1
      %p95 = por %p93, %p94
      %p97 = scmp.ne.s32.totalorder %s82, %s96
      %p98 = scmp.eq.s32.totalorder %s30, 0
      %p99 = por %p97, %p98
      %s101 = sadd.s32 %s100, 1
      %p104 = scmp.eq.s32.totalorder %s24, 1
      %p105 = scmp.ne.s32.totalorder %s100, %s102
      %p106 = scmp.eq.s32.totalorder %s24, 0
      %p107 = por %p105, %p106
      %p108 = scmp.ne.s32.totalorder %s100, %s102
      %p109 = scmp.eq.s32.totalorder %s29, 1
      %p110 = por %p108, %p109
      %p111 = scmp.ne.s32.totalorder %s102, %s103
      %p112 = scmp.eq.s32.totalorder %s29, 0
      %p113 = por %p111, %p112
      %p114 = scmp.ne.s32.totalorder %s102, %s103
      %p115 = scmp.eq.s32.totalorder %s30, 1
      %p116 = por %p114, %p115
      %p118 = scmp.ne.s32.totalorder %s103, %s117
      %p119 = scmp.eq.s32.totalorder %s30, 0
      %p120 = por %p118, %p119
      %s122 = sadd.s32 %s121, 1
      %p125 = scmp.eq.s32.totalorder %s24, 1
      %p126 = scmp.ne.s32.totalorder %s121, %s123
      %p127 = scmp.eq.s32.totalorder %s24, 0
      %p128 = por %p126, %p127
      %p129 = scmp.ne.s32.totalorder %s121, %s123
      %p130 = scmp.eq.s32.totalorder %s29, 1
      %p131 = por %p129, %p130
      %p132 = scmp.ne.s32.totalorder %s123, %s124
      %p133 = scmp.eq.s32.totalorder %s29, 0
      %p134 = por %p132, %p133
      %p135 = scmp.ne.s32.totalorder %s123, %s124
      %p136 = scmp.eq.s32.totalorder %s30, 1
      %p137 = por %p135, %p136
      %p139 = scmp.ne.s32.totalorder %s124, %s138
      %p140 = scmp.eq.s32.totalorder %s30, 0
      %p141 = por %p139, %p140
      %s143 = sadd.s32 %s142, 1
      %p146 = scmp.eq.s32.totalorder %s24, 1
      %p147 = scmp.ne.s32.totalorder %s142, %s144
      %p148 = scmp.eq.s32.totalorder %s24, 0
      %p149 = por %p147, %p148
      %p150 = scmp.ne.s32.totalorder %s142, %s144
      %p151 = scmp.eq.s32.totalorder %s29, 1
      %p152 = por %p150, %p151
      %p153 = scmp.ne.s32.totalorder %s144, %s145
      %p154 = scmp.eq.s32.totalorder %s29, 0
      %p155 = por %p153, %p154
      %p156 = scmp.ne.s32.totalorder %s144, %s145
      %p157 = scmp.eq.s32.totalorder %s30, 1
      %p158 = por %p156, %p157
      %p160 = scmp.ne.s32.totalorder %s145, %s159
      %p161 = scmp.eq.s32.totalorder %s30, 0
      %p162 = por %p160, %p161
      %s164 = sadd.s32 %s163, 1
      %p167 = scmp.eq.s32.totalorder %s24, 1
      %p168 = scmp.ne.s32.totalorder %s163, %s165
      %p169 = scmp.eq.s32.totalorder %s24, 0
      %p170 = por %p168, %p169
      %p171 = scmp.ne.s32.totalorder %s163, %s165
      %p172 = scmp.eq.s32.totalorder %s29, 1
      %p173 = por %p171, %p172
      %p174 = scmp.ne.s32.totalorder %s165, %s166
      %p175 = scmp.eq.s32.totalorder %s29, 0
      %p176 = por %p174, %p175
      %p177 = scmp.ne.s32.totalorder %s165, %s166
      %p178 = scmp.eq.s32.totalorder %s30, 1
      %p179 = por %p177, %p178
      %p181 = scmp.ne.s32.totalorder %s166, %s180
      %p182 = scmp.eq.s32.totalorder %s30, 0
      %p183 = por %p181, %p182
      %s185 = sadd.s32 %s184, 1
      %p188 = scmp.eq.s32.totalorder %s24, 1
      %p189 = scmp.ne.s32.totalorder %s184, %s186
      %p190 = scmp.eq.s32.totalorder %s24, 0
      %p191 = por %p189, %p190
      %p192 = scmp.ne.s32.totalorder %s184, %s186
      %p193 = scmp.eq.s32.totalorder %s29, 1
      %p194 = por %p192, %p193
      %p195 = scmp.ne.s32.totalorder %s186, %s187
      %p196 = scmp.eq.s32.totalorder %s29, 0
      %p197 = por %p195, %p196
      %p198 = scmp.ne.s32.totalorder %s186, %s187
      %p199 = scmp.eq.s32.totalorder %s30, 1
      %p200 = por %p198, %p199
      %p202 = scmp.ne.s32.totalorder %s187, %s201
      %p203 = scmp.eq.s32.totalorder %s30, 0
      %p204 = por %p202, %p203
      %s206 = sadd.s32 %s205, 1
      %p209 = scmp.eq.s32.totalorder %s24, 1
      %p210 = scmp.ne.s32.totalorder %s205, %s207
      %p211 = scmp.eq.s32.totalorder %s24, 0
      %p212 = por %p210, %p211
      %p213 = scmp.ne.s32.totalorder %s205, %s207
      %p214 = scmp.eq.s32.totalorder %s29, 1
      %p215 = por %p213, %p214
      %p216 = scmp.ne.s32.totalorder %s207, %s208
      %p217 = scmp.eq.s32.totalorder %s29, 0
      %p218 = por %p216, %p217
      %p219 = scmp.ne.s32.totalorder %s207, %s208
      %p220 = scmp.eq.s32.totalorder %s30, 1
      %p221 = por %p219, %p220
      %p223 = scmp.ne.s32.totalorder %s208, %s222
      %p224 = scmp.eq.s32.totalorder %s30, 0
      %p225 = por %p223, %p224
      %s227 = sadd.s32 %s226, 1
      %p230 = scmp.eq.s32.totalorder %s24, 1
      %p231 = scmp.ne.s32.totalorder %s226, %s228
      %p232 = scmp.eq.s32.totalorder %s24, 0
      %p233 = por %p231, %p232
      %p234 = scmp.ne.s32.totalorder %s226, %s228
      %p235 = scmp.eq.s32.totalorder %s29, 1
      %p236 = por %p234, %p235
      %p237 = scmp.ne.s32.totalorder %s228, %s229
      %p238 = scmp.eq.s32.totalorder %s29, 0
      %p239 = por %p237, %p238
      %p240 = scmp.ne.s32.totalorder %s228, %s229
      %p241 = scmp.eq.s32.totalorder %s30, 1
      %p242 = por %p240, %p241
      %p244 = scmp.ne.s32.totalorder %s229, %s243
      %p245 = scmp.eq.s32.totalorder %s30, 0
      %p246 = por %p244, %p245
      %s248 = sadd.s32 %s247, 1
      %p251 = scmp.eq.s32.totalorder %s24, 1
      %p252 = scmp.ne.s32.totalorder %s247, %s249
      %p253 = scmp.eq.s32.totalorder %s24, 0
      %p254 = por %p252, %p253
      %p255 = scmp.ne.s32.totalorder %s247, %s249
      %p256 = scmp.eq.s32.totalorder %s29, 1
      %p257 = por %p255, %p256
      %p258 = scmp.ne.s32.totalorder %s249, %s250
      %p259 = scmp.eq.s32.totalorder %s29, 0
      %p260 = por %p258, %p259
      %p261 = scmp.ne.s32.totalorder %s249, %s250
      %p262 = scmp.eq.s32.totalorder %s30, 1
      %p263 = por %p261, %p262
      %p265 = scmp.ne.s32.totalorder %s250, %s264
      %p266 = scmp.eq.s32.totalorder %s30, 0
      %p267 = por %p265, %p266
      %s269 = sadd.s32 %s268, 1
      %p272 = scmp.eq.s32.totalorder %s24, 1
      %p273 = scmp.ne.s32.totalorder %s268, %s270
      %p274 = scmp.eq.s32.totalorder %s24, 0
      %p275 = por %p273, %p274
      %p276 = scmp.ne.s32.totalorder %s268, %s270
      %p277 = scmp.eq.s32.totalorder %s29, 1
      %p278 = por %p276, %p277
      %p279 = scmp.ne.s32.totalorder %s270, %s271
      %p280 = scmp.eq.s32.totalorder %s29, 0
      %p281 = por %p279, %p280
      %p282 = scmp.ne.s32.totalorder %s270, %s271
      %p283 = scmp.eq.s32.totalorder %s30, 1
      %p284 = por %p282, %p283
      %p286 = scmp.ne.s32.totalorder %s271, %s285
      %p287 = scmp.eq.s32.totalorder %s30, 0
      %p288 = por %p286, %p287
      %s290 = sadd.s32 %s289, 1
      %p293 = scmp.eq.s32.totalorder %s24, 1
      %p294 = scmp.ne.s32.totalorder %s289, %s291
      %p295 = scmp.eq.s32.totalorder %s24, 0
      %p296 = por %p294, %p295
      %p297 = scmp.ne.s32.totalorder %s289, %s291
      %p298 = scmp.eq.s32.totalorder %s29, 1
      %p299 = por %p297, %p298
      %p300 = scmp.ne.s32.totalorder %s291, %s292
      %p301 = scmp.eq.s32.totalorder %s29, 0
      %p302 = por %p300, %p301
      %p303 = scmp.ne.s32.totalorder %s291, %s292
      %p304 = scmp.eq.s32.totalorder %s30, 1
      %p305 = por %p303, %p304
      %p307 = scmp.ne.s32.totalorder %s292, %s306
      %p308 = scmp.eq.s32.totalorder %s30, 0
      %p309 = por %p307, %p308
      %s311 = sadd.s32 %s310, 1
      %p314 = scmp.eq.s32.totalorder %s24, 1
      %p315 = scmp.ne.s32.totalorder %s310, %s312
      %p316 = scmp.eq.s32.totalorder %s24, 0
      %p317 = por %p315, %p316
      %p318 = scmp.ne.s32.totalorder %s310, %s312
      %p319 = scmp.eq.s32.totalorder %s29, 1
      %p320 = por %p318, %p319
      %p321 = scmp.ne.s32.totalorder %s312, %s313
      %p322 = scmp.eq.s32.totalorder %s29, 0
      %p323 = por %p321, %p322
      %p324 = scmp.ne.s32.totalorder %s312, %s313
      %p325 = scmp.eq.s32.totalorder %s30, 1
      %p326 = por %p324, %p325
      %p328 = scmp.ne.s32.totalorder %s313, %s327
      %p329 = scmp.eq.s32.totalorder %s30, 0
      %p330 = por %p328, %p329
      %s332 = sadd.s32 %s331, 1
      %p335 = scmp.eq.s32.totalorder %s24, 1
      %p336 = scmp.ne.s32.totalorder %s331, %s333
      %p337 = scmp.eq.s32.totalorder %s24, 0
      %p338 = por %p336, %p337
      %p339 = scmp.ne.s32.totalorder %s331, %s333
      %p340 = scmp.eq.s32.totalorder %s29, 1
      %p341 = por %p339, %p340
      %p342 = scmp.ne.s32.totalorder %s333, %s334
      %p343 = scmp.eq.s32.totalorder %s29, 0
      %p344 = por %p342, %p343
      %p345 = scmp.ne.s32.totalorder %s333, %s334
      %p346 = scmp.eq.s32.totalorder %s30, 1
      %p347 = por %p345, %p346
      %p349 = scmp.ne.s32.totalorder %s334, %s348
      %p350 = scmp.eq.s32.totalorder %s30, 0
      %p351 = por %p349, %p350
      %s353 = sadd.s32 %s352, 1
      %p356 = scmp.eq.s32.totalorder %s24, 1
      %p357 = scmp.ne.s32.totalorder %s352, %s354
      %p358 = scmp.eq.s32.totalorder %s24, 0
      %p359 = por %p357, %p358
      %p360 = scmp.ne.s32.totalorder %s352, %s354
      %p361 = scmp.eq.s32.totalorder %s29, 1
      %p362 = por %p360, %p361
      %p363 = scmp.ne.s32.totalorder %s354, %s355
      %p364 = scmp.eq.s32.totalorder %s29, 0
      %p365 = por %p363, %p364
      %p366 = scmp.ne.s32.totalorder %s354, %s355
      %p367 = scmp.eq.s32.totalorder %s30, 1
      %p368 = por %p366, %p367
      %p370 = scmp.ne.s32.totalorder %s355, %s369
      %p371 = scmp.eq.s32.totalorder %s30, 0
      %p372 = por %p370, %p371
      %s374 = sadd.s32 %s373, 1
      %p377 = scmp.eq.s32.totalorder %s24, 1
      %p378 = scmp.ne.s32.totalorder %s373, %s375
      %p379 = scmp.eq.s32.totalorder %s24, 0
      %p380 = por %p378, %p379
      %p381 = scmp.ne.s32.totalorder %s373, %s375
      %p382 = scmp.eq.s32.totalorder %s29, 1
      %p383 = por %p381, %p382
      %p384 = scmp.ne.s32.totalorder %s375, %s376
      %p385 = scmp.eq.s32.totalorder %s29, 0
      %p386 = por %p384, %p385
      %p387 = scmp.ne.s32.totalorder %s375, %s376
      %p388 = scmp.eq.s32.totalorder %s30, 1
      %p389 = por %p387, %p388
      %p391 = scmp.ne.s32.totalorder %s376, %s390
      %p392 = scmp.eq.s32.totalorder %s30, 0
      %p393 = por %p391, %p392
      %s394 = ssub.s32 %s24, %s31
      %p395 = scmp.eq.s32.totalorder %s394, 0
      %s397 = sadd.s32 %s396, 1
      %s398 = scalar_select %p395, %s396, %s397
      %p401 = pneg %p395
      %p402 = scmp.eq.s32.totalorder %s24, 1
      %p403 = por %p401, %p402
      %p404 = scmp.ne.s32.totalorder %s396, %s399
      %p405 = scmp.eq.s32.totalorder %s24, 0
      %p406 = por %p404, %p405
      %p407 = scmp.ne.s32.totalorder %s396, %s399
      %p408 = scmp.eq.s32.totalorder %s29, 1
      %p409 = por %p407, %p408
      %p410 = scmp.ne.s32.totalorder %s399, %s400
      %p411 = scmp.eq.s32.totalorder %s29, 0
      %p412 = por %p410, %p411
      %p413 = scmp.ne.s32.totalorder %s399, %s400
      %p414 = scmp.eq.s32.totalorder %s30, 1
      %p415 = por %p413, %p414
      %p417 = scmp.ne.s32.totalorder %s400, %s416
      %p418 = scmp.eq.s32.totalorder %s30, 0
      %p419 = por %p417, %p418
      %p420 = scmp.le.s32.totalorder 1, %s24
      %p421 = scmp.lt.s32.totalorder %s24, 3
      %p422 = pnand %p420, %p421
      %p423 = pneg %p422
      // Predicated region
      $region9: #{pilot_encoder_forward.1} parent=5 // pred_check
        _
      $region10: #{pilot_encoder_forward.1} parent=5 // pred_check_branch
        %425 = sbr.rel (%p422) target = $region12
      $region11: #{pilot_encoder_forward.1} parent=5 // pred_region
        %s426 = ssub.s32 %s24, 1
        // Predicated region
        $region13: #{pilot_encoder_forward.1} parent=11 // pred_check
          %p427 = pneg %p71
        $region14: #{pilot_encoder_forward.1} parent=11 // pred_check_branch
          %429 = sbr.rel (%p427) target = $region16
        $region15: #{pilot_encoder_forward.1} parent=11 // pred_region
          %431 = vsyncadd [#allocation3], 0
          %s432 = sshll.u32 %s1, 4
          %s433 = int_to_ptr.hbm [resolvable:$true] %s432
          %s434 = sshll.u32 [#allocation2], 4
          %s435 = int_to_ptr.vmem [resolvable:$true] %s434
          %440 = dma.hbm_to_vmem [thread:$0]  %s433, 11520, %s435, [#allocation3], 128, 128, 8
        $region16: #{pilot_encoder_forward.1} parent=11 // pred_fallthru
          _
        // Predicated region
        $region17: #{pilot_encoder_forward.1} parent=11 // pred_check
          %p441 = pneg %p92
        $region18: #{pilot_encoder_forward.1} parent=11 // pred_check_branch
          %443 = sbr.rel (%p441) target = $region20
        $region19: #{pilot_encoder_forward.1} parent=11 // pred_region
          _
        $region20: #{pilot_encoder_forward.1} parent=11 // pred_fallthru
          _
        // Predicated region
        $region21: #{pilot_encoder_forward.1} parent=11 // pred_check
          %p444 = pneg %p113
        $region22: #{pilot_encoder_forward.1} parent=11 // pred_check_branch
          %446 = sbr.rel (%p444) target = $region24
        $region23: #{pilot_encoder_forward.1} parent=11 // pred_region
          _
        $region24: #{pilot_encoder_forward.1} parent=11 // pred_fallthru
          _
        // Predicated region
        $region25: #{pilot_encoder_forward.1} parent=11 // pred_check
          %p447 = pneg %p134
        $region26: #{pilot_encoder_forward.1} parent=11 // pred_check_branch
          %449 = sbr.rel (%p447) target = $region28
        $region27: #{pilot_encoder_forward.1} parent=11 // pred_region
          _
        $region28: #{pilot_encoder_forward.1} parent=11 // pred_fallthru
          _
        // Predicated region
        $region29: #{pilot_encoder_forward.1} parent=11 // pred_check
          %p450 = pneg %p155
        $region30: #{pilot_encoder_forward.1} parent=11 // pred_check_branch
          %452 = sbr.rel (%p450) target = $region32
        $region31: #{pilot_encoder_forward.1} parent=11 // pred_region
          _
        $region32: #{pilot_encoder_forward.1} parent=11 // pred_fallthru
          _
        // Predicated region
        $region33: #{pilot_encoder_forward.1} parent=11 // pred_check
          %p453 = pneg %p176
        $region34: #{pilot_encoder_forward.1} parent=11 // pred_check_branch
          %455 = sbr.rel (%p453) target = $region36
        $region35: #{pilot_encoder_forward.1} parent=11 // pred_region
          _
        $region36: #{pilot_encoder_forward.1} parent=11 // pred_fallthru
          _
        // Predicated region
        $region37: #{pilot_encoder_forward.1} parent=11 // pred_check
          %p456 = pneg %p197
        $region38: #{pilot_encoder_forward.1} parent=11 // pred_check_branch
          %458 = sbr.rel (%p456) target = $region40
        $region39: #{pilot_encoder_forward.1} parent=11 // pred_region
          _
        $region40: #{pilot_encoder_forward.1} parent=11 // pred_fallthru
          _
        // Predicated region
        $region41: #{pilot_encoder_forward.1} parent=11 // pred_check
          %p459 = pneg %p218
        $region42: #{pilot_encoder_forward.1} parent=11 // pred_check_branch
          %461 = sbr.rel (%p459) target = $region44
        $region43: #{pilot_encoder_forward.1} parent=11 // pred_region
          _
        $region44: #{pilot_encoder_forward.1} parent=11 // pred_fallthru
          _
        // Predicated region
        $region45: #{pilot_encoder_forward.1} parent=11 // pred_check
          %p462 = pneg %p239
        $region46: #{pilot_encoder_forward.1} parent=11 // pred_check_branch
          %464 = sbr.rel (%p462) target = $region48
        $region47: #{pilot_encoder_forward.1} parent=11 // pred_region
          _
        $region48: #{pilot_encoder_forward.1} parent=11 // pred_fallthru
          _
        // Predicated region
        $region49: #{pilot_encoder_forward.1} parent=11 // pred_check
          %p465 = pneg %p260
        $region50: #{pilot_encoder_forward.1} parent=11 // pred_check_branch
          %467 = sbr.rel (%p465) target = $region52
        $region51: #{pilot_encoder_forward.1} parent=11 // pred_region
          _
        $region52: #{pilot_encoder_forward.1} parent=11 // pred_fallthru
          _
        // Predicated region
        $region53: #{pilot_encoder_forward.1} parent=11 // pred_check
          %p468 = pneg %p281
        $region54: #{pilot_encoder_forward.1} parent=11 // pred_check_branch
          %470 = sbr.rel (%p468) target = $region56
        $region55: #{pilot_encoder_forward.1} parent=11 // pred_region
          _
        $region56: #{pilot_encoder_forward.1} parent=11 // pred_fallthru
          _
        // Predicated region
        $region57: #{pilot_encoder_forward.1} parent=11 // pred_check
          %p471 = pneg %p302
        $region58: #{pilot_encoder_forward.1} parent=11 // pred_check_branch
          %473 = sbr.rel (%p471) target = $region60
        $region59: #{pilot_encoder_forward.1} parent=11 // pred_region
          _
        $region60: #{pilot_encoder_forward.1} parent=11 // pred_fallthru
          _
        // Predicated region
        $region61: #{pilot_encoder_forward.1} parent=11 // pred_check
          %p474 = pneg %p323
        $region62: #{pilot_encoder_forward.1} parent=11 // pred_check_branch
          %476 = sbr.rel (%p474) target = $region64
        $region63: #{pilot_encoder_forward.1} parent=11 // pred_region
          _
        $region64: #{pilot_encoder_forward.1} parent=11 // pred_fallthru
          _
        // Predicated region
        $region65: #{pilot_encoder_forward.1} parent=11 // pred_check
          %p477 = pneg %p344
        $region66: #{pilot_encoder_forward.1} parent=11 // pred_check_branch
          %479 = sbr.rel (%p477) target = $region68
        $region67: #{pilot_encoder_forward.1} parent=11 // pred_region
          _
        $region68: #{pilot_encoder_forward.1} parent=11 // pred_fallthru
          _
        // Predicated region
        $region69: #{pilot_encoder_forward.1} parent=11 // pred_check
          %p480 = pneg %p365
        $region70: #{pilot_encoder_forward.1} parent=11 // pred_check_branch
          %482 = sbr.rel (%p480) target = $region72
        $region71: #{pilot_encoder_forward.1} parent=11 // pred_region
          _
        $region72: #{pilot_encoder_forward.1} parent=11 // pred_fallthru
          _
        // Predicated region
        $region73: #{pilot_encoder_forward.1} parent=11 // pred_check
          %p483 = pneg %p386
        $region74: #{pilot_encoder_forward.1} parent=11 // pred_check_branch
          %485 = sbr.rel (%p483) target = $region76
        $region75: #{pilot_encoder_forward.1} parent=11 // pred_region
          _
        $region76: #{pilot_encoder_forward.1} parent=11 // pred_fallthru
          _
      $region12: #{pilot_encoder_forward.1} parent=5 // pred_fallthru
        _
      %p486 = scmp.lt.s32.totalorder %s24, 2
      // Predicated region
      $region77: #{pilot_encoder_forward.1} parent=5 // pred_check
        %p487 = pneg %p486
      $region78: #{pilot_encoder_forward.1} parent=5 // pred_check_branch
        %489 = sbr.rel (%p487) target = $region80
      $region79: #{pilot_encoder_forward.1} parent=5 // pred_region
        // Predicated region
        $region81: #{pilot_encoder_forward.1} parent=79 // pred_check
          %p490 = pneg %p44
        $region82: #{pilot_encoder_forward.1} parent=79 // pred_check_branch
          %492 = sbr.rel (%p490) target = $region84
        $region83: #{pilot_encoder_forward.1} parent=79 // pred_region
          %s493 = smul.u32 10, %s24
          %p494 = scmp.lt.s32.totalorder %s493, 19
          %s495 = scalar_select %p494, %s493, 19
          %s496 = smul.addr %s495, 8
          %s497 = scalar_lea.vmem %s0, %s496
          %s498 = smul.u32 10, %s24
        $region84: #{pilot_encoder_forward.1} parent=79 // pred_fallthru
          _
      $region80: #{pilot_encoder_forward.1} parent=5 // pred_fallthru
        _
      %p499 = scmp.le.s32.totalorder 1, %s24
      %p500 = scmp.lt.s32.totalorder %s24, 3
      %p501 = pnand %p499, %p500
      %p502 = pneg %p501
      // Predicated region
      $region85: #{pilot_encoder_forward.1} parent=5 // pred_check
        _
      $region86: #{pilot_encoder_forward.1} parent=5 // pred_check_branch
        %504 = sbr.rel (%p501) target = $region88
      $region87: #{pilot_encoder_forward.1} parent=5 // pred_region
        %s505 = ssub.s32 %s24, 1
        // Predicated region
        $region89: #{pilot_encoder_forward.1} parent=87 // pred_check
          %p506 = pneg %p71
        $region90: #{pilot_encoder_forward.1} parent=87 // pred_check_branch
          %508 = sbr.rel (%p506) target = $region92
        $region91: #{pilot_encoder_forward.1} parent=87 // pred_region
          %510 = dma.done [#allocation3], 11520
        $region92: #{pilot_encoder_forward.1} parent=87 // pred_fallthru
          _
        %s511 = smul.u32 10, %s29
        %p512 = scmp.lt.s32.totalorder %s511, 19
        %s513 = scalar_select %p512, %s511, 19
        %s514 = smul.addr %s513, 8
        %s515 = scalar_lea.vmem %s0, %s514
        %p516 = pneg %p50
        %p517 = pneg %p47
        %p518 = pneg %p71
        %p519 = pneg %p68
        %p520 = pneg %p92
        %p521 = pneg %p89
        %p522 = pneg %p113
        %p523 = pneg %p110
        %p524 = pneg %p134
        %p525 = pneg %p131
        %p526 = pneg %p155
        %p527 = pneg %p152
        %p528 = pneg %p176
        %p529 = pneg %p173
        %p530 = pneg %p197
        %p531 = pneg %p194
        %p532 = pneg %p218
        %p533 = pneg %p215
        %p534 = pneg %p239
        %p535 = pneg %p236
        %p536 = pneg %p260
        %p537 = pneg %p257
        %p538 = pneg %p281
        %p539 = pneg %p278
        %p540 = pneg %p302
        %p541 = pneg %p299
        %p542 = pneg %p323
        %p543 = pneg %p320
        %p544 = pneg %p344
        %p545 = pneg %p341
        %p546 = pneg %p365
        %p547 = pneg %p362
        %p548 = pneg %p386
        %p549 = pneg %p383
        %p550 = pneg %p412
        %p551 = pneg %p409
        %s552 = smul.u32 10, %s29
        %p553 = scmp.lt.s32.totalorder %s552, 19
        %s554 = scalar_select %p553, %s552, 19
        %s555 = smul.addr %s554, 8
        %s556 = scalar_lea.vmem %s17, %s555
        %s557 = smul.u32 10, %s29
        %p558 = scmp.lt.s32.totalorder %s557, 19
        %s559 = scalar_select %p558, %s557, 19
        %s560 = smul.addr %s559, 8
        %s561 = scalar_lea.vmem %s0, %s560
        %s562 = smul.u32 10, %s29
        %s563 = smul.u32 10, %s29
        %p564 = scmp.lt.s32.totalorder %s563, 19
        %s565 = scalar_select %p564, %s563, 19
        %s566 = smul.addr %s565, 8
        %s567 = scalar_lea.vmem %s17, %s566
        %s568 = smul.u32 10, %s29
        %v569 = vld [vmem:[%s561] sm:$0xff]
        %v570 = vld [vmem:[%s561 + $0x8] sm:$0xff]
        %v571 = vld [vmem:[%s561 + $0x10] sm:$0xff]
        %v572 = vld [vmem:[%s561 + $0x18] sm:$0xff]
        %v573 = vld [vmem:[%s561 + $0x20] sm:$0xff]
        %v574 = vld [vmem:[%s561 + $0x28] sm:$0xff]
        %v575 = vld [vmem:[%s561 + $0x30] sm:$0xff]
        %v576 = vld [vmem:[%s561 + $0x38] sm:$0xff]
        %v577 = vld [vmem:[%s561 + $0x40] sm:$0xff]
        %v578 = vld [vmem:[%s561 + $0x48] sm:$0xff]
        %v579 = vld [vmem:[%s3] sm:$0x3f]
        %581 = vst [vmem:[#allocation1] ss:$4 sm:$0xff] %v579
        %v582 = vld.sshfl [vmem:[#allocation1] sm:$0xff pattern:$0x73625140]
        %v583 = vld.sshfl [vmem:[#allocation1 + $0x8] sm:$0xff pattern:$0x73625140]
        %v584 = vld.sshfl [vmem:[#allocation1 + $0x10] sm:$0xff pattern:$0x73625140]
        %vm585 = vcmask 15360
        %v587 = vsel %vm585, %v569, 0
        %v590 = vsel %vm585, %v570, 0
        %v593 = vsel %vm585, %v571, 0
        %v596 = vsel %vm585, %v572, 0
        %v599 = vsel %vm585, %v573, 0
        %v602 = vsel %vm585, %v574, 0
        %v605 = vsel %vm585, %v575, 0
        %v608 = vsel %vm585, %v576, 0
        %v611 = vsel %vm585, %v577, 0
        %v614 = vsel %vm585, %v578, 0
        %vm616 = vcmask 1041408
        %v617 = vsel %vm616, %v582, 0
        %v619 = vsel %vm616, %v583, 0
        %v621 = vsel %vm616, %v584, 0
        %623 = vmatpush.msra.mxu0 0.0
        %624 = vmatpush.msra.mxu0 0.0
        %625 = vmatpush.msra.mxu0 0.0
        %626 = vmatpush.msra.mxu0 0.0
        %627 = vmatpush.msra.mxu0 0.0
        %628 = vmatpush.msra.mxu0 0.0
        %629 = vmatpush.msra.mxu0 0.0
        %630 = vmatpush.msra.mxu0 0.0
        %631 = vmatpush.msra.mxu0 0.0
        %632 = vmatpush.msra.mxu0 0.0
        %633 = vmatpush.msra.mxu0 0.0
        %634 = vmatpush.msra.mxu0 0.0
        %635 = vmatpush.msra.mxu0 0.0
        %636 = vmatpush.msra.mxu0 0.0
        %637 = vmatpush.msra.mxu0 0.0
        %638 = vmatpush.msra.mxu0 %v617
        %639 = vmatmul.f32.gmra.mxu0 %v587
        %v640 = vpop.f32.mrf.mxu0
        %v641 = vadd.f32 0.0, %v640
        %642 = vmatmul.f32.gmra.mxu0 %v590
        %v643 = vpop.f32.mrf.mxu0
        %v644 = vadd.f32 0.0, %v643
        %645 = vmatmul.f32.gmra.mxu0 %v593
        %v646 = vpop.f32.mrf.mxu0
        %v647 = vadd.f32 0.0, %v646
        %648 = vmatmul.f32.gmra.mxu0 %v596
        %v649 = vpop.f32.mrf.mxu0
        %v650 = vadd.f32 0.0, %v649
        %651 = vmatmul.f32.gmra.mxu0 %v599
        %v652 = vpop.f32.mrf.mxu0
        %v653 = vadd.f32 0.0, %v652
        %654 = vmatmul.f32.gmra.mxu0 %v602
        %v655 = vpop.f32.mrf.mxu0
        %v656 = vadd.f32 0.0, %v655
        %657 = vmatmul.f32.gmra.mxu0 %v605
        %v658 = vpop.f32.mrf.mxu0
        %v659 = vadd.f32 0.0, %v658
        %660 = vmatmul.f32.gmra.mxu0 %v608
        %v661 = vpop.f32.mrf.mxu0
        %v662 = vadd.f32 0.0, %v661
        %663 = vmatmul.f32.gmra.mxu0 %v611
        %v664 = vpop.f32.mrf.mxu0
        %v665 = vadd.f32 0.0, %v664
        %666 = vmatmul.f32.gmra.mxu0 %v614
        %v667 = vpop.f32.mrf.mxu0
        %v668 = vadd.f32 0.0, %v667
        %669 = vdwg.mxu0
        %670 = vmatpush.msra.mxu0 0.0
        %671 = vmatpush.msra.mxu0 0.0
        %672 = vmatpush.msra.mxu0 0.0
        %673 = vmatpush.msra.mxu0 0.0
        %674 = vmatpush.msra.mxu0 0.0
        %675 = vmatpush.msra.mxu0 0.0
        %676 = vmatpush.msra.mxu0 0.0
        %677 = vmatpush.msra.mxu0 0.0
        %678 = vmatpush.msra.mxu0 0.0
        %679 = vmatpush.msra.mxu0 0.0
        %680 = vmatpush.msra.mxu0 0.0
        %681 = vmatpush.msra.mxu0 0.0
        %682 = vmatpush.msra.mxu0 0.0
        %683 = vmatpush.msra.mxu0 0.0
        %684 = vmatpush.msra.mxu0 0.0
        %685 = vmatpush.msra.mxu0 %v619
        %686 = vmatmul.f32.gmra.mxu0 %v587
        %v687 = vpop.f32.mrf.mxu0
        %v688 = vadd.f32 0.0, %v687
        %689 = vmatmul.f32.gmra.mxu0 %v590
        %v690 = vpop.f32.mrf.mxu0
        %v691 = vadd.f32 0.0, %v690
        %692 = vmatmul.f32.gmra.mxu0 %v593
        %v693 = vpop.f32.mrf.mxu0
        %v694 = vadd.f32 0.0, %v693
        %695 = vmatmul.f32.gmra.mxu0 %v596
        %v696 = vpop.f32.mrf.mxu0
        %v697 = vadd.f32 0.0, %v696
        %698 = vmatmul.f32.gmra.mxu0 %v599
        %v699 = vpop.f32.mrf.mxu0
        %v700 = vadd.f32 0.0, %v699
        %701 = vmatmul.f32.gmra.mxu0 %v602
        %v702 = vpop.f32.mrf.mxu0
        %v703 = vadd.f32 0.0, %v702
        %704 = vmatmul.f32.gmra.mxu0 %v605
        %v705 = vpop.f32.mrf.mxu0
        %v706 = vadd.f32 0.0, %v705
        %707 = vmatmul.f32.gmra.mxu0 %v608
        %v708 = vpop.f32.mrf.mxu0
        %v709 = vadd.f32 0.0, %v708
        %710 = vmatmul.f32.gmra.mxu0 %v611
        %v711 = vpop.f32.mrf.mxu0
        %v712 = vadd.f32 0.0, %v711
        %713 = vmatmul.f32.gmra.mxu0 %v614
        %v714 = vpop.f32.mrf.mxu0
        %v715 = vadd.f32 0.0, %v714
        %716 = vdwg.mxu0
        %717 = vmatpush.msra.mxu0 0.0
        %718 = vmatpush.msra.mxu0 0.0
        %719 = vmatpush.msra.mxu0 0.0
        %720 = vmatpush.msra.mxu0 0.0
        %721 = vmatpush.msra.mxu0 0.0
        %722 = vmatpush.msra.mxu0 0.0
        %723 = vmatpush.msra.mxu0 0.0
        %724 = vmatpush.msra.mxu0 0.0
        %725 = vmatpush.msra.mxu0 0.0
        %726 = vmatpush.msra.mxu0 0.0
        %727 = vmatpush.msra.mxu0 0.0
        %728 = vmatpush.msra.mxu0 0.0
        %729 = vmatpush.msra.mxu0 0.0
        %730 = vmatpush.msra.mxu0 0.0
        %731 = vmatpush.msra.mxu0 0.0
        %732 = vmatpush.msra.mxu0 %v621
        %733 = vmatmul.f32.gmra.mxu0 %v587
        %v734 = vpop.f32.mrf.mxu0
        %v735 = vadd.f32 0.0, %v734
        %736 = vmatmul.f32.gmra.mxu0 %v590
        %v737 = vpop.f32.mrf.mxu0
        %v738 = vadd.f32 0.0, %v737
        %739 = vmatmul.f32.gmra.mxu0 %v593
        %v740 = vpop.f32.mrf.mxu0
        %v741 = vadd.f32 0.0, %v740
        %742 = vmatmul.f32.gmra.mxu0 %v596
        %v743 = vpop.f32.mrf.mxu0
        %v744 = vadd.f32 0.0, %v743
        %745 = vmatmul.f32.gmra.mxu0 %v599
        %v746 = vpop.f32.mrf.mxu0
        %v747 = vadd.f32 0.0, %v746
        %748 = vmatmul.f32.gmra.mxu0 %v602
        %v749 = vpop.f32.mrf.mxu0
        %v750 = vadd.f32 0.0, %v749
        %751 = vmatmul.f32.gmra.mxu0 %v605
        %v752 = vpop.f32.mrf.mxu0
        %v753 = vadd.f32 0.0, %v752
        %754 = vmatmul.f32.gmra.mxu0 %v608
        %v755 = vpop.f32.mrf.mxu0
        %v756 = vadd.f32 0.0, %v755
        %757 = vmatmul.f32.gmra.mxu0 %v611
        %v758 = vpop.f32.mrf.mxu0
        %v759 = vadd.f32 0.0, %v758
        %760 = vmatmul.f32.gmra.mxu0 %v614
        %v761 = vpop.f32.mrf.mxu0
        %v762 = vadd.f32 0.0, %v761
        %763 = vdwg.mxu0
        %v764 = vld [vmem:[#allocation2] sm:$0xff]
        %v765 = vld [vmem:[#allocation2 + $0x8] sm:$0xff]
        %v766 = vld [vmem:[#allocation2 + $0x10] sm:$0xff]
        %v767 = vld [vmem:[#allocation2 + $0x18] sm:$0xff]
        %v768 = vld [vmem:[#allocation2 + $0x20] sm:$0xff]
        %v769 = vld [vmem:[#allocation2 + $0x28] sm:$0xff]
        %v770 = vld [vmem:[#allocation2 + $0x30] sm:$0xff]
        %v771 = vld [vmem:[#allocation2 + $0x38] sm:$0xff]
        %v772 = vld [vmem:[#allocation2 + $0x40] sm:$0xff]
        %v773 = vld [vmem:[#allocation2 + $0x48] sm:$0xff]
        %vm784 = vcmask 1044480
        %v785 = vrot.slane %v764, 3
        %v786 = vrot.slane %v765, 3
        %v787 = vsel %vm784, %v785, %v786
        %v788 = vrot.slane %v766, 3
        %v789 = vsel %vm784, %v786, %v788
        %v790 = vrot.slane %v767, 3
        %v791 = vsel %vm784, %v788, %v790
        %v792 = vrot.slane %v768, 3
        %v793 = vsel %vm784, %v790, %v792
        %v794 = vrot.slane %v769, 3
        %v795 = vsel %vm784, %v792, %v794
        %v796 = vrot.slane %v770, 3
        %v797 = vsel %vm784, %v794, %v796
        %v798 = vrot.slane %v771, 3
        %v799 = vsel %vm784, %v796, %v798
        %v800 = vrot.slane %v772, 3
        %v801 = vsel %vm784, %v798, %v800
        %v802 = vrot.slane %v773, 3
        %v803 = vsel %vm784, %v800, %v802
        %v815 = vmul.f32 %v785, 0.0
        %v816 = vmul.f32 %v641, %v787
        %v817 = vmul.f32 %v644, %v789
        %v818 = vmul.f32 %v647, %v791
        %v819 = vmul.f32 %v650, %v793
        %v820 = vmul.f32 %v653, %v795
        %v821 = vmul.f32 %v656, %v797
        %v822 = vmul.f32 %v659, %v799
        %v823 = vmul.f32 %v662, %v801
        %v824 = vmul.f32 %v665, %v803
        %v825 = vmul.f32 %v668, %v802
        %s826 = scalar_lea.vmem [#allocation2], 80
        %v827 = vld [vmem:[%s826] sm:$0xff]
        %v828 = vld [vmem:[%s826 + $0x8] sm:$0xff]
        %v829 = vld [vmem:[%s826 + $0x10] sm:$0xff]
        %v830 = vld [vmem:[%s826 + $0x18] sm:$0xff]
        %v831 = vld [vmem:[%s826 + $0x20] sm:$0xff]
        %v832 = vld [vmem:[%s826 + $0x28] sm:$0xff]
        %v833 = vld [vmem:[%s826 + $0x30] sm:$0xff]
        %v834 = vld [vmem:[%s826 + $0x38] sm:$0xff]
        %v835 = vld [vmem:[%s826 + $0x40] sm:$0xff]
        %v836 = vld [vmem:[%s826 + $0x48] sm:$0xff]
        %vm847 = vcmask 1045504
        %v848 = vrot.slane %v827, 2
        %v849 = vrot.slane %v828, 2
        %v850 = vsel %vm847, %v848, %v849
        %v851 = vrot.slane %v829, 2
        %v852 = vsel %vm847, %v849, %v851
        %v853 = vrot.slane %v830, 2
        %v854 = vsel %vm847, %v851, %v853
        %v855 = vrot.slane %v831, 2
        %v856 = vsel %vm847, %v853, %v855
        %v857 = vrot.slane %v832, 2
        %v858 = vsel %vm847, %v855, %v857
        %v859 = vrot.slane %v833, 2
        %v860 = vsel %vm847, %v857, %v859
        %v861 = vrot.slane %v834, 2
        %v862 = vsel %vm847, %v859, %v861
        %v863 = vrot.slane %v835, 2
        %v864 = vsel %vm847, %v861, %v863
        %v865 = vrot.slane %v836, 2
        %v866 = vsel %vm847, %v863, %v865
        %867 = vrot.lane.b32.xlu0 %v848, 32
        %v868 = vpop.permute.xlu0 %867
        %869 = vrot.lane.b32.xlu0 %v850, 32
        %v870 = vpop.permute.xlu0 %869
        %871 = vrot.lane.b32.xlu0 %v852, 32
        %v872 = vpop.permute.xlu0 %871
        %873 = vrot.lane.b32.xlu0 %v854, 32
        %v874 = vpop.permute.xlu0 %873
        %875 = vrot.lane.b32.xlu0 %v856, 32
        %v876 = vpop.permute.xlu0 %875
        %877 = vrot.lane.b32.xlu0 %v858, 32
        %v878 = vpop.permute.xlu0 %877
        %879 = vrot.lane.b32.xlu0 %v860, 32
        %v880 = vpop.permute.xlu0 %879
        %881 = vrot.lane.b32.xlu0 %v862, 32
        %v882 = vpop.permute.xlu0 %881
        %883 = vrot.lane.b32.xlu0 %v864, 32
        %v884 = vpop.permute.xlu0 %883
        %885 = vrot.lane.b32.xlu0 %v866, 32
        %v886 = vpop.permute.xlu0 %885
        %887 = vrot.lane.b32.xlu0 %v865, 32
        %v888 = vpop.permute.xlu0 %887
        %v900 = vmul.f32 %v868, 0.0
        %v901 = vmul.f32 %v641, %v870
        %v902 = vmul.f32 %v644, %v872
        %v903 = vmul.f32 %v647, %v874
        %v904 = vmul.f32 %v650, %v876
        %v905 = vmul.f32 %v653, %v878
        %v906 = vmul.f32 %v656, %v880
        %v907 = vmul.f32 %v659, %v882
        %v908 = vmul.f32 %v662, %v884
        %v909 = vmul.f32 %v665, %v886
        %v910 = vmul.f32 %v668, %v888
        %vm922 = vcmask 1046528
        %v923 = vrot.slane %v900, 1
        %v924 = vrot.slane %v901, 1
        %v925 = vsel %vm922, %v923, %v924
        %v926 = vrot.slane %v902, 1
        %v927 = vsel %vm922, %v924, %v926
        %v928 = vrot.slane %v903, 1
        %v929 = vsel %vm922, %v926, %v928
        %v930 = vrot.slane %v904, 1
        %v931 = vsel %vm922, %v928, %v930
        %v932 = vrot.slane %v905, 1
        %v933 = vsel %vm922, %v930, %v932
        %v934 = vrot.slane %v906, 1
        %v935 = vsel %vm922, %v932, %v934
        %v936 = vrot.slane %v907, 1
        %v937 = vsel %vm922, %v934, %v936
        %v938 = vrot.slane %v908, 1
        %v939 = vsel %vm922, %v936, %v938
        %v940 = vrot.slane %v909, 1
        %v941 = vsel %vm922, %v938, %v940
        %v942 = vrot.slane %v910, 1
        %v943 = vsel %vm922, %v940, %v942
        %944 = vrot.lane.b32.xlu0 %v925, 96
        %v945 = vpop.permute.xlu0 %944
        %946 = vrot.lane.b32.xlu0 %v927, 96
        %v947 = vpop.permute.xlu0 %946
        %948 = vrot.lane.b32.xlu0 %v929, 96
        %v949 = vpop.permute.xlu0 %948
        %950 = vrot.lane.b32.xlu0 %v931, 96
        %v951 = vpop.permute.xlu0 %950
        %952 = vrot.lane.b32.xlu0 %v933, 96
        %v953 = vpop.permute.xlu0 %952
        %954 = vrot.lane.b32.xlu0 %v935, 96
        %v955 = vpop.permute.xlu0 %954
        %956 = vrot.lane.b32.xlu0 %v937, 96
        %v957 = vpop.permute.xlu0 %956
        %958 = vrot.lane.b32.xlu0 %v939, 96
        %v959 = vpop.permute.xlu0 %958
        %960 = vrot.lane.b32.xlu0 %v941, 96
        %v961 = vpop.permute.xlu0 %960
        %962 = vrot.lane.b32.xlu0 %v943, 96
        %v963 = vpop.permute.xlu0 %962
        %964 = vrot.lane.b32.xlu0 %v942, 96
        %v965 = vpop.permute.xlu0 %964
        %v977 = vadd.f32 %v815, %v945
        %v978 = vadd.f32 %v816, %v947
        %v979 = vadd.f32 %v817, %v949
        %v980 = vadd.f32 %v818, %v951
        %v981 = vadd.f32 %v819, %v953
        %v982 = vadd.f32 %v820, %v955
        %v983 = vadd.f32 %v821, %v957
        %v984 = vadd.f32 %v822, %v959
        %v985 = vadd.f32 %v823, %v961
        %v986 = vadd.f32 %v824, %v963
        %v987 = vadd.f32 %v825, %v965
        %s988 = scalar_lea.vmem [#allocation2], 160
        %v989 = vld [vmem:[%s988] sm:$0xff]
        %v990 = vld [vmem:[%s988 + $0x8] sm:$0xff]
        %v991 = vld [vmem:[%s988 + $0x10] sm:$0xff]
        %v992 = vld [vmem:[%s988 + $0x18] sm:$0xff]
        %v993 = vld [vmem:[%s988 + $0x20] sm:$0xff]
        %v994 = vld [vmem:[%s988 + $0x28] sm:$0xff]
        %v995 = vld [vmem:[%s988 + $0x30] sm:$0xff]
        %v996 = vld [vmem:[%s988 + $0x38] sm:$0xff]
        %v997 = vld [vmem:[%s988 + $0x40] sm:$0xff]
        %v998 = vld [vmem:[%s988 + $0x48] sm:$0xff]
        %v1009 = vrot.slane %v989, 1
        %v1010 = vrot.slane %v990, 1
        %v1011 = vsel %vm922, %v1009, %v1010
        %v1012 = vrot.slane %v991, 1
        %v1013 = vsel %vm922, %v1010, %v1012
        %v1014 = vrot.slane %v992, 1
        %v1015 = vsel %vm922, %v1012, %v1014
        %v1016 = vrot.slane %v993, 1
        %v1017 = vsel %vm922, %v1014, %v1016
        %v1018 = vrot.slane %v994, 1
        %v1019 = vsel %vm922, %v1016, %v1018
        %v1020 = vrot.slane %v995, 1
        %v1021 = vsel %vm922, %v1018, %v1020
        %v1022 = vrot.slane %v996, 1
        %v1023 = vsel %vm922, %v1020, %v1022
        %v1024 = vrot.slane %v997, 1
        %v1025 = vsel %vm922, %v1022, %v1024
        %v1026 = vrot.slane %v998, 1
        %v1027 = vsel %vm922, %v1024, %v1026
        %1028 = vrot.lane.b32.xlu0 %v1009, 64
        %v1029 = vpop.permute.xlu0 %1028
        %1030 = vrot.lane.b32.xlu0 %v1011, 64
        %v1031 = vpop.permute.xlu0 %1030
        %1032 = vrot.lane.b32.xlu0 %v1013, 64
        %v1033 = vpop.permute.xlu0 %1032
        %1034 = vrot.lane.b32.xlu0 %v1015, 64
        %v1035 = vpop.permute.xlu0 %1034
        %1036 = vrot.lane.b32.xlu0 %v1017, 64
        %v1037 = vpop.permute.xlu0 %1036
        %1038 = vrot.lane.b32.xlu0 %v1019, 64
        %v1039 = vpop.permute.xlu0 %1038
        %1040 = vrot.lane.b32.xlu0 %v1021, 64
        %v1041 = vpop.permute.xlu0 %1040
        %1042 = vrot.lane.b32.xlu0 %v1023, 64
        %v1043 = vpop.permute.xlu0 %1042
        %1044 = vrot.lane.b32.xlu0 %v1025, 64
        %v1045 = vpop.permute.xlu0 %1044
        %1046 = vrot.lane.b32.xlu0 %v1027, 64
        %v1047 = vpop.permute.xlu0 %1046
        %1048 = vrot.lane.b32.xlu0 %v1026, 64
        %v1049 = vpop.permute.xlu0 %1048
        %v1061 = vmul.f32 %v1029, 0.0
        %v1062 = vmul.f32 %v641, %v1031
        %v1063 = vmul.f32 %v644, %v1033
        %v1064 = vmul.f32 %v647, %v1035
        %v1065 = vmul.f32 %v650, %v1037
        %v1066 = vmul.f32 %v653, %v1039
        %v1067 = vmul.f32 %v656, %v1041
        %v1068 = vmul.f32 %v659, %v1043
        %v1069 = vmul.f32 %v662, %v1045
        %v1070 = vmul.f32 %v665, %v1047
        %v1071 = vmul.f32 %v668, %v1049
        %v1083 = vrot.slane %v1061, 2
        %v1084 = vrot.slane %v1062, 2
        %v1085 = vsel %vm847, %v1083, %v1084
        %v1086 = vrot.slane %v1063, 2
        %v1087 = vsel %vm847, %v1084, %v1086
        %v1088 = vrot.slane %v1064, 2
        %v1089 = vsel %vm847, %v1086, %v1088
        %v1090 = vrot.slane %v1065, 2
        %v1091 = vsel %vm847, %v1088, %v1090
        %v1092 = vrot.slane %v1066, 2
        %v1093 = vsel %vm847, %v1090, %v1092
        %v1094 = vrot.slane %v1067, 2
        %v1095 = vsel %vm847, %v1092, %v1094
        %v1096 = vrot.slane %v1068, 2
        %v1097 = vsel %vm847, %v1094, %v1096
        %v1098 = vrot.slane %v1069, 2
        %v1099 = vsel %vm847, %v1096, %v1098
        %v1100 = vrot.slane %v1070, 2
        %v1101 = vsel %vm847, %v1098, %v1100
        %v1102 = vrot.slane %v1071, 2
        %v1103 = vsel %vm847, %v1100, %v1102
        %1104 = vrot.lane.b32.xlu0 %v1085, 64
        %v1105 = vpop.permute.xlu0 %1104
        %1106 = vrot.lane.b32.xlu0 %v1087, 64
        %v1107 = vpop.permute.xlu0 %1106
        %1108 = vrot.lane.b32.xlu0 %v1089, 64
        %v1109 = vpop.permute.xlu0 %1108
        %1110 = vrot.lane.b32.xlu0 %v1091, 64
        %v1111 = vpop.permute.xlu0 %1110
        %1112 = vrot.lane.b32.xlu0 %v1093, 64
        %v1113 = vpop.permute.xlu0 %1112
        %1114 = vrot.lane.b32.xlu0 %v1095, 64
        %v1115 = vpop.permute.xlu0 %1114
        %1116 = vrot.lane.b32.xlu0 %v1097, 64
        %v1117 = vpop.permute.xlu0 %1116
        %1118 = vrot.lane.b32.xlu0 %v1099, 64
        %v1119 = vpop.permute.xlu0 %1118
        %1120 = vrot.lane.b32.xlu0 %v1101, 64
        %v1121 = vpop.permute.xlu0 %1120
        %1122 = vrot.lane.b32.xlu0 %v1103, 64
        %v1123 = vpop.permute.xlu0 %1122
        %1124 = vrot.lane.b32.xlu0 %v1102, 64
        %v1125 = vpop.permute.xlu0 %1124
        %v1137 = vadd.f32 %v977, %v1105
        %v1138 = vadd.f32 %v978, %v1107
        %v1139 = vadd.f32 %v979, %v1109
        %v1140 = vadd.f32 %v980, %v1111
        %v1141 = vadd.f32 %v981, %v1113
        %v1142 = vadd.f32 %v982, %v1115
        %v1143 = vadd.f32 %v983, %v1117
        %v1144 = vadd.f32 %v984, %v1119
        %v1145 = vadd.f32 %v985, %v1121
        %v1146 = vadd.f32 %v986, %v1123
        %v1147 = vadd.f32 %v987, %v1125
        %s1148 = scalar_lea.vmem [#allocation2], 240
        %v1149 = vld [vmem:[%s1148] sm:$0xff]
        %v1150 = vld [vmem:[%s1148 + $0x8] sm:$0xff]
        %v1151 = vld [vmem:[%s1148 + $0x10] sm:$0xff]
        %v1152 = vld [vmem:[%s1148 + $0x18] sm:$0xff]
        %v1153 = vld [vmem:[%s1148 + $0x20] sm:$0xff]
        %v1154 = vld [vmem:[%s1148 + $0x28] sm:$0xff]
        %v1155 = vld [vmem:[%s1148 + $0x30] sm:$0xff]
        %v1156 = vld [vmem:[%s1148 + $0x38] sm:$0xff]
        %v1157 = vld [vmem:[%s1148 + $0x40] sm:$0xff]
        %v1158 = vld [vmem:[%s1148 + $0x48] sm:$0xff]
        %v1169 = vrot.slane %v1149, 1
        %v1170 = vrot.slane %v1150, 1
        %v1171 = vsel %vm922, %v1169, %v1170
        %v1172 = vrot.slane %v1151, 1
        %v1173 = vsel %vm922, %v1170, %v1172
        %v1174 = vrot.slane %v1152, 1
        %v1175 = vsel %vm922, %v1172, %v1174
        %v1176 = vrot.slane %v1153, 1
        %v1177 = vsel %vm922, %v1174, %v1176
        %v1178 = vrot.slane %v1154, 1
        %v1179 = vsel %vm922, %v1176, %v1178
        %v1180 = vrot.slane %v1155, 1
        %v1181 = vsel %vm922, %v1178, %v1180
        %v1182 = vrot.slane %v1156, 1
        %v1183 = vsel %vm922, %v1180, %v1182
        %v1184 = vrot.slane %v1157, 1
        %v1185 = vsel %vm922, %v1182, %v1184
        %v1186 = vrot.slane %v1158, 1
        %v1187 = vsel %vm922, %v1184, %v1186
        %1188 = vrot.lane.b32.xlu0 %v1169, 96
        %v1189 = vpop.permute.xlu0 %1188
        %1190 = vrot.lane.b32.xlu0 %v1171, 96
        %v1191 = vpop.permute.xlu0 %1190
        %1192 = vrot.lane.b32.xlu0 %v1173, 96
        %v1193 = vpop.permute.xlu0 %1192
        %1194 = vrot.lane.b32.xlu0 %v1175, 96
        %v1195 = vpop.permute.xlu0 %1194
        %1196 = vrot.lane.b32.xlu0 %v1177, 96
        %v1197 = vpop.permute.xlu0 %1196
        %1198 = vrot.lane.b32.xlu0 %v1179, 96
        %v1199 = vpop.permute.xlu0 %1198
        %1200 = vrot.lane.b32.xlu0 %v1181, 96
        %v1201 = vpop.permute.xlu0 %1200
        %1202 = vrot.lane.b32.xlu0 %v1183, 96
        %v1203 = vpop.permute.xlu0 %1202
        %1204 = vrot.lane.b32.xlu0 %v1185, 96
        %v1205 = vpop.permute.xlu0 %1204
        %1206 = vrot.lane.b32.xlu0 %v1187, 96
        %v1207 = vpop.permute.xlu0 %1206
        %1208 = vrot.lane.b32.xlu0 %v1186, 96
        %v1209 = vpop.permute.xlu0 %1208
        %v1221 = vmul.f32 %v1189, 0.0
        %v1222 = vmul.f32 %v641, %v1191
        %v1223 = vmul.f32 %v644, %v1193
        %v1224 = vmul.f32 %v647, %v1195
        %v1225 = vmul.f32 %v650, %v1197
        %v1226 = vmul.f32 %v653, %v1199
        %v1227 = vmul.f32 %v656, %v1201
        %v1228 = vmul.f32 %v659, %v1203
        %v1229 = vmul.f32 %v662, %v1205
        %v1230 = vmul.f32 %v665, %v1207
        %v1231 = vmul.f32 %v668, %v1209
        %v1243 = vrot.slane %v1221, 2
        %v1244 = vrot.slane %v1222, 2
        %v1245 = vsel %vm847, %v1243, %v1244
        %v1246 = vrot.slane %v1223, 2
        %v1247 = vsel %vm847, %v1244, %v1246
        %v1248 = vrot.slane %v1224, 2
        %v1249 = vsel %vm847, %v1246, %v1248
        %v1250 = vrot.slane %v1225, 2
        %v1251 = vsel %vm847, %v1248, %v1250
        %v1252 = vrot.slane %v1226, 2
        %v1253 = vsel %vm847, %v1250, %v1252
        %v1254 = vrot.slane %v1227, 2
        %v1255 = vsel %vm847, %v1252, %v1254
        %v1256 = vrot.slane %v1228, 2
        %v1257 = vsel %vm847, %v1254, %v1256
        %v1258 = vrot.slane %v1229, 2
        %v1259 = vsel %vm847, %v1256, %v1258
        %v1260 = vrot.slane %v1230, 2
        %v1261 = vsel %vm847, %v1258, %v1260
        %v1262 = vrot.slane %v1231, 2
        %v1263 = vsel %vm847, %v1260, %v1262
        %1264 = vrot.lane.b32.xlu0 %v1245, 32
        %v1265 = vpop.permute.xlu0 %1264
        %1266 = vrot.lane.b32.xlu0 %v1247, 32
        %v1267 = vpop.permute.xlu0 %1266
        %1268 = vrot.lane.b32.xlu0 %v1249, 32
        %v1269 = vpop.permute.xlu0 %1268
        %1270 = vrot.lane.b32.xlu0 %v1251, 32
        %v1271 = vpop.permute.xlu0 %1270
        %1272 = vrot.lane.b32.xlu0 %v1253, 32
        %v1273 = vpop.permute.xlu0 %1272
        %1274 = vrot.lane.b32.xlu0 %v1255, 32
        %v1275 = vpop.permute.xlu0 %1274
        %1276 = vrot.lane.b32.xlu0 %v1257, 32
        %v1277 = vpop.permute.xlu0 %1276
        %1278 = vrot.lane.b32.xlu0 %v1259, 32
        %v1279 = vpop.permute.xlu0 %1278
        %1280 = vrot.lane.b32.xlu0 %v1261, 32
        %v1281 = vpop.permute.xlu0 %1280
        %1282 = vrot.lane.b32.xlu0 %v1263, 32
        %v1283 = vpop.permute.xlu0 %1282
        %1284 = vrot.lane.b32.xlu0 %v1262, 32
        %v1285 = vpop.permute.xlu0 %1284
        %v1297 = vadd.f32 %v1137, %v1265
        %v1298 = vadd.f32 %v1138, %v1267
        %v1299 = vadd.f32 %v1139, %v1269
        %v1300 = vadd.f32 %v1140, %v1271
        %v1301 = vadd.f32 %v1141, %v1273
        %v1302 = vadd.f32 %v1142, %v1275
        %v1303 = vadd.f32 %v1143, %v1277
        %v1304 = vadd.f32 %v1144, %v1279
        %v1305 = vadd.f32 %v1145, %v1281
        %v1306 = vadd.f32 %v1146, %v1283
        %v1307 = vadd.f32 %v1147, %v1285
        %s1308 = scalar_lea.vmem [#allocation2], 320
        %v1309 = vld [vmem:[%s1308] sm:$0xff]
        %v1310 = vld [vmem:[%s1308 + $0x8] sm:$0xff]
        %v1311 = vld [vmem:[%s1308 + $0x10] sm:$0xff]
        %v1312 = vld [vmem:[%s1308 + $0x18] sm:$0xff]
        %v1313 = vld [vmem:[%s1308 + $0x20] sm:$0xff]
        %v1314 = vld [vmem:[%s1308 + $0x28] sm:$0xff]
        %v1315 = vld [vmem:[%s1308 + $0x30] sm:$0xff]
        %v1316 = vld [vmem:[%s1308 + $0x38] sm:$0xff]
        %v1317 = vld [vmem:[%s1308 + $0x40] sm:$0xff]
        %v1318 = vld [vmem:[%s1308 + $0x48] sm:$0xff]
        %v1319 = vmul.f32 %v688, %v1309
        %v1320 = vmul.f32 %v691, %v1310
        %v1321 = vmul.f32 %v694, %v1311
        %v1322 = vmul.f32 %v697, %v1312
        %v1323 = vmul.f32 %v700, %v1313
        %v1324 = vmul.f32 %v703, %v1314
        %v1325 = vmul.f32 %v706, %v1315
        %v1326 = vmul.f32 %v709, %v1316
        %v1327 = vmul.f32 %v712, %v1317
        %v1328 = vmul.f32 %v715, %v1318
        %v1339 = vrot.slane %v1319, 3
        %v1340 = vrot.slane %v1320, 3
        %v1341 = vsel %vm784, %v1339, %v1340
        %v1342 = vrot.slane %v1321, 3
        %v1343 = vsel %vm784, %v1340, %v1342
        %v1344 = vrot.slane %v1322, 3
        %v1345 = vsel %vm784, %v1342, %v1344
        %v1346 = vrot.slane %v1323, 3
        %v1347 = vsel %vm784, %v1344, %v1346
        %v1348 = vrot.slane %v1324, 3
        %v1349 = vsel %vm784, %v1346, %v1348
        %v1350 = vrot.slane %v1325, 3
        %v1351 = vsel %vm784, %v1348, %v1350
        %v1352 = vrot.slane %v1326, 3
        %v1353 = vsel %vm784, %v1350, %v1352
        %v1354 = vrot.slane %v1327, 3
        %v1355 = vsel %vm784, %v1352, %v1354
        %v1356 = vrot.slane %v1328, 3
        %v1357 = vsel %vm784, %v1354, %v1356
        %v1369 = vadd.f32 %v1297, %v1339
        %v1370 = vadd.f32 %v1298, %v1341
        %v1371 = vadd.f32 %v1299, %v1343
        %v1372 = vadd.f32 %v1300, %v1345
        %v1373 = vadd.f32 %v1301, %v1347
        %v1374 = vadd.f32 %v1302, %v1349
        %v1375 = vadd.f32 %v1303, %v1351
        %v1376 = vadd.f32 %v1304, %v1353
        %v1377 = vadd.f32 %v1305, %v1355
        %v1378 = vadd.f32 %v1306, %v1357
        %v1379 = vadd.f32 %v1307, %v1356
        %s1380 = scalar_lea.vmem [#allocation2], 400
        %v1381 = vld [vmem:[%s1380] sm:$0xff]
        %v1382 = vld [vmem:[%s1380 + $0x8] sm:$0xff]
        %v1383 = vld [vmem:[%s1380 + $0x10] sm:$0xff]
        %v1384 = vld [vmem:[%s1380 + $0x18] sm:$0xff]
        %v1385 = vld [vmem:[%s1380 + $0x20] sm:$0xff]
        %v1386 = vld [vmem:[%s1380 + $0x28] sm:$0xff]
        %v1387 = vld [vmem:[%s1380 + $0x30] sm:$0xff]
        %v1388 = vld [vmem:[%s1380 + $0x38] sm:$0xff]
        %v1389 = vld [vmem:[%s1380 + $0x40] sm:$0xff]
        %v1390 = vld [vmem:[%s1380 + $0x48] sm:$0xff]
        %vm1401 = vcmask 1040384
        %v1402 = vrot.slane %v1381, 7
        %v1403 = vrot.slane %v1382, 7
        %v1404 = vsel %vm1401, %v1402, %v1403
        %v1405 = vrot.slane %v1383, 7
        %v1406 = vsel %vm1401, %v1403, %v1405
        %v1407 = vrot.slane %v1384, 7
        %v1408 = vsel %vm1401, %v1405, %v1407
        %v1409 = vrot.slane %v1385, 7
        %v1410 = vsel %vm1401, %v1407, %v1409
        %v1411 = vrot.slane %v1386, 7
        %v1412 = vsel %vm1401, %v1409, %v1411
        %v1413 = vrot.slane %v1387, 7
        %v1414 = vsel %vm1401, %v1411, %v1413
        %v1415 = vrot.slane %v1388, 7
        %v1416 = vsel %vm1401, %v1413, %v1415
        %v1417 = vrot.slane %v1389, 7
        %v1418 = vsel %vm1401, %v1415, %v1417
        %v1419 = vrot.slane %v1390, 7
        %v1420 = vsel %vm1401, %v1417, %v1419
        %1421 = vrot.lane.b32.xlu0 %v1402, 32
        %v1422 = vpop.permute.xlu0 %1421
        %1423 = vrot.lane.b32.xlu0 %v1404, 32
        %v1424 = vpop.permute.xlu0 %1423
        %1425 = vrot.lane.b32.xlu0 %v1406, 32
        %v1426 = vpop.permute.xlu0 %1425
        %1427 = vrot.lane.b32.xlu0 %v1408, 32
        %v1428 = vpop.permute.xlu0 %1427
        %1429 = vrot.lane.b32.xlu0 %v1410, 32
        %v1430 = vpop.permute.xlu0 %1429
        %1431 = vrot.lane.b32.xlu0 %v1412, 32
        %v1432 = vpop.permute.xlu0 %1431
        %1433 = vrot.lane.b32.xlu0 %v1414, 32
        %v1434 = vpop.permute.xlu0 %1433
        %1435 = vrot.lane.b32.xlu0 %v1416, 32
        %v1436 = vpop.permute.xlu0 %1435
        %1437 = vrot.lane.b32.xlu0 %v1418, 32
        %v1438 = vpop.permute.xlu0 %1437
        %1439 = vrot.lane.b32.xlu0 %v1420, 32
        %v1440 = vpop.permute.xlu0 %1439
        %1441 = vrot.lane.b32.xlu0 %v1419, 32
        %v1442 = vpop.permute.xlu0 %1441
        %v1454 = vmul.f32 %v688, %v1422
        %v1455 = vmul.f32 %v691, %v1424
        %v1456 = vmul.f32 %v694, %v1426
        %v1457 = vmul.f32 %v697, %v1428
        %v1458 = vmul.f32 %v700, %v1430
        %v1459 = vmul.f32 %v703, %v1432
        %v1460 = vmul.f32 %v706, %v1434
        %v1461 = vmul.f32 %v709, %v1436
        %v1462 = vmul.f32 %v712, %v1438
        %v1463 = vmul.f32 %v715, %v1440
        %v1464 = vmul.f32 %v1442, 0.0
        %vm1476 = vcmask 1043456
        %v1477 = vrot.slane %v1454, 4
        %v1478 = vrot.slane %v1455, 4
        %v1479 = vsel %vm1476, %v1477, %v1478
        %v1480 = vrot.slane %v1456, 4
        %v1481 = vsel %vm1476, %v1478, %v1480
        %v1482 = vrot.slane %v1457, 4
        %v1483 = vsel %vm1476, %v1480, %v1482
        %v1484 = vrot.slane %v1458, 4
        %v1485 = vsel %vm1476, %v1482, %v1484
        %v1486 = vrot.slane %v1459, 4
        %v1487 = vsel %vm1476, %v1484, %v1486
        %v1488 = vrot.slane %v1460, 4
        %v1489 = vsel %vm1476, %v1486, %v1488
        %v1490 = vrot.slane %v1461, 4
        %v1491 = vsel %vm1476, %v1488, %v1490
        %v1492 = vrot.slane %v1462, 4
        %v1493 = vsel %vm1476, %v1490, %v1492
        %v1494 = vrot.slane %v1463, 4
        %v1495 = vsel %vm1476, %v1492, %v1494
        %v1496 = vrot.slane %v1464, 4
        %v1497 = vsel %vm1476, %v1494, %v1496
        %1498 = vrot.lane.b32.xlu0 %v1477, 96
        %v1499 = vpop.permute.xlu0 %1498
        %1500 = vrot.lane.b32.xlu0 %v1479, 96
        %v1501 = vpop.permute.xlu0 %1500
        %1502 = vrot.lane.b32.xlu0 %v1481, 96
        %v1503 = vpop.permute.xlu0 %1502
        %1504 = vrot.lane.b32.xlu0 %v1483, 96
        %v1505 = vpop.permute.xlu0 %1504
        %1506 = vrot.lane.b32.xlu0 %v1485, 96
        %v1507 = vpop.permute.xlu0 %1506
        %1508 = vrot.lane.b32.xlu0 %v1487, 96
        %v1509 = vpop.permute.xlu0 %1508
        %1510 = vrot.lane.b32.xlu0 %v1489, 96
        %v1511 = vpop.permute.xlu0 %1510
        %1512 = vrot.lane.b32.xlu0 %v1491, 96
        %v1513 = vpop.permute.xlu0 %1512
        %1514 = vrot.lane.b32.xlu0 %v1493, 96
        %v1515 = vpop.permute.xlu0 %1514
        %1516 = vrot.lane.b32.xlu0 %v1495, 96
        %v1517 = vpop.permute.xlu0 %1516
        %1518 = vrot.lane.b32.xlu0 %v1497, 96
        %v1519 = vpop.permute.xlu0 %1518
        %v1531 = vadd.f32 %v1369, %v1499
        %v1532 = vadd.f32 %v1370, %v1501
        %v1533 = vadd.f32 %v1371, %v1503
        %v1534 = vadd.f32 %v1372, %v1505
        %v1535 = vadd.f32 %v1373, %v1507
        %v1536 = vadd.f32 %v1374, %v1509
        %v1537 = vadd.f32 %v1375, %v1511
        %v1538 = vadd.f32 %v1376, %v1513
        %v1539 = vadd.f32 %v1377, %v1515
        %v1540 = vadd.f32 %v1378, %v1517
        %v1541 = vadd.f32 %v1379, %v1519
        %s1542 = scalar_lea.vmem [#allocation2], 480
        %v1543 = vld [vmem:[%s1542] sm:$0xff]
        %v1544 = vld [vmem:[%s1542 + $0x8] sm:$0xff]
        %v1545 = vld [vmem:[%s1542 + $0x10] sm:$0xff]
        %v1546 = vld [vmem:[%s1542 + $0x18] sm:$0xff]
        %v1547 = vld [vmem:[%s1542 + $0x20] sm:$0xff]
        %v1548 = vld [vmem:[%s1542 + $0x28] sm:$0xff]
        %v1549 = vld [vmem:[%s1542 + $0x30] sm:$0xff]
        %v1550 = vld [vmem:[%s1542 + $0x38] sm:$0xff]
        %v1551 = vld [vmem:[%s1542 + $0x40] sm:$0xff]
        %v1552 = vld [vmem:[%s1542 + $0x48] sm:$0xff]
        %v1563 = vrot.slane %v1543, 7
        %v1564 = vrot.slane %v1544, 7
        %v1565 = vsel %vm1401, %v1563, %v1564
        %v1566 = vrot.slane %v1545, 7
        %v1567 = vsel %vm1401, %v1564, %v1566
        %v1568 = vrot.slane %v1546, 7
        %v1569 = vsel %vm1401, %v1566, %v1568
        %v1570 = vrot.slane %v1547, 7
        %v1571 = vsel %vm1401, %v1568, %v1570
        %v1572 = vrot.slane %v1548, 7
        %v1573 = vsel %vm1401, %v1570, %v1572
        %v1574 = vrot.slane %v1549, 7
        %v1575 = vsel %vm1401, %v1572, %v1574
        %v1576 = vrot.slane %v1550, 7
        %v1577 = vsel %vm1401, %v1574, %v1576
        %v1578 = vrot.slane %v1551, 7
        %v1579 = vsel %vm1401, %v1576, %v1578
        %v1580 = vrot.slane %v1552, 7
        %v1581 = vsel %vm1401, %v1578, %v1580
        %1582 = vrot.lane.b32.xlu0 %v1563, 64
        %v1583 = vpop.permute.xlu0 %1582
        %1584 = vrot.lane.b32.xlu0 %v1565, 64
        %v1585 = vpop.permute.xlu0 %1584
        %1586 = vrot.lane.b32.xlu0 %v1567, 64
        %v1587 = vpop.permute.xlu0 %1586
        %1588 = vrot.lane.b32.xlu0 %v1569, 64
        %v1589 = vpop.permute.xlu0 %1588
        %1590 = vrot.lane.b32.xlu0 %v1571, 64
        %v1591 = vpop.permute.xlu0 %1590
        %1592 = vrot.lane.b32.xlu0 %v1573, 64
        %v1593 = vpop.permute.xlu0 %1592
        %1594 = vrot.lane.b32.xlu0 %v1575, 64
        %v1595 = vpop.permute.xlu0 %1594
        %1596 = vrot.lane.b32.xlu0 %v1577, 64
        %v1597 = vpop.permute.xlu0 %1596
        %1598 = vrot.lane.b32.xlu0 %v1579, 64
        %v1599 = vpop.permute.xlu0 %1598
        %1600 = vrot.lane.b32.xlu0 %v1581, 64
        %v1601 = vpop.permute.xlu0 %1600
        %1602 = vrot.lane.b32.xlu0 %v1580, 64
        %v1603 = vpop.permute.xlu0 %1602
        %v1615 = vmul.f32 %v688, %v1583
        %v1616 = vmul.f32 %v691, %v1585
        %v1617 = vmul.f32 %v694, %v1587
        %v1618 = vmul.f32 %v697, %v1589
        %v1619 = vmul.f32 %v700, %v1591
        %v1620 = vmul.f32 %v703, %v1593
        %v1621 = vmul.f32 %v706, %v1595
        %v1622 = vmul.f32 %v709, %v1597
        %v1623 = vmul.f32 %v712, %v1599
        %v1624 = vmul.f32 %v715, %v1601
        %v1625 = vmul.f32 %v1603, 0.0
        %v1637 = vrot.slane %v1615, 4
        %v1638 = vrot.slane %v1616, 4
        %v1639 = vsel %vm1476, %v1637, %v1638
        %v1640 = vrot.slane %v1617, 4
        %v1641 = vsel %vm1476, %v1638, %v1640
        %v1642 = vrot.slane %v1618, 4
        %v1643 = vsel %vm1476, %v1640, %v1642
        %v1644 = vrot.slane %v1619, 4
        %v1645 = vsel %vm1476, %v1642, %v1644
        %v1646 = vrot.slane %v1620, 4
        %v1647 = vsel %vm1476, %v1644, %v1646
        %v1648 = vrot.slane %v1621, 4
        %v1649 = vsel %vm1476, %v1646, %v1648
        %v1650 = vrot.slane %v1622, 4
        %v1651 = vsel %vm1476, %v1648, %v1650
        %v1652 = vrot.slane %v1623, 4
        %v1653 = vsel %vm1476, %v1650, %v1652
        %v1654 = vrot.slane %v1624, 4
        %v1655 = vsel %vm1476, %v1652, %v1654
        %v1656 = vrot.slane %v1625, 4
        %v1657 = vsel %vm1476, %v1654, %v1656
        %1658 = vrot.lane.b32.xlu0 %v1637, 64
        %v1659 = vpop.permute.xlu0 %1658
        %1660 = vrot.lane.b32.xlu0 %v1639, 64
        %v1661 = vpop.permute.xlu0 %1660
        %1662 = vrot.lane.b32.xlu0 %v1641, 64
        %v1663 = vpop.permute.xlu0 %1662
        %1664 = vrot.lane.b32.xlu0 %v1643, 64
        %v1665 = vpop.permute.xlu0 %1664
        %1666 = vrot.lane.b32.xlu0 %v1645, 64
        %v1667 = vpop.permute.xlu0 %1666
        %1668 = vrot.lane.b32.xlu0 %v1647, 64
        %v1669 = vpop.permute.xlu0 %1668
        %1670 = vrot.lane.b32.xlu0 %v1649, 64
        %v1671 = vpop.permute.xlu0 %1670
        %1672 = vrot.lane.b32.xlu0 %v1651, 64
        %v1673 = vpop.permute.xlu0 %1672
        %1674 = vrot.lane.b32.xlu0 %v1653, 64
        %v1675 = vpop.permute.xlu0 %1674
        %1676 = vrot.lane.b32.xlu0 %v1655, 64
        %v1677 = vpop.permute.xlu0 %1676
        %1678 = vrot.lane.b32.xlu0 %v1657, 64
        %v1679 = vpop.permute.xlu0 %1678
        %v1691 = vadd.f32 %v1531, %v1659
        %v1692 = vadd.f32 %v1532, %v1661
        %v1693 = vadd.f32 %v1533, %v1663
        %v1694 = vadd.f32 %v1534, %v1665
        %v1695 = vadd.f32 %v1535, %v1667
        %v1696 = vadd.f32 %v1536, %v1669
        %v1697 = vadd.f32 %v1537, %v1671
        %v1698 = vadd.f32 %v1538, %v1673
        %v1699 = vadd.f32 %v1539, %v1675
        %v1700 = vadd.f32 %v1540, %v1677
        %v1701 = vadd.f32 %v1541, %v1679
        %s1702 = scalar_lea.vmem [#allocation2], 560
        %v1703 = vld [vmem:[%s1702] sm:$0xff]
        %v1704 = vld [vmem:[%s1702 + $0x8] sm:$0xff]
        %v1705 = vld [vmem:[%s1702 + $0x10] sm:$0xff]
        %v1706 = vld [vmem:[%s1702 + $0x18] sm:$0xff]
        %v1707 = vld [vmem:[%s1702 + $0x20] sm:$0xff]
        %v1708 = vld [vmem:[%s1702 + $0x28] sm:$0xff]
        %v1709 = vld [vmem:[%s1702 + $0x30] sm:$0xff]
        %v1710 = vld [vmem:[%s1702 + $0x38] sm:$0xff]
        %v1711 = vld [vmem:[%s1702 + $0x40] sm:$0xff]
        %v1712 = vld [vmem:[%s1702 + $0x48] sm:$0xff]
        %v1723 = vrot.slane %v1703, 6
        %v1724 = vrot.slane %v1704, 6
        %v1725 = vsel %vm616, %v1723, %v1724
        %v1726 = vrot.slane %v1705, 6
        %v1727 = vsel %vm616, %v1724, %v1726
        %v1728 = vrot.slane %v1706, 6
        %v1729 = vsel %vm616, %v1726, %v1728
        %v1730 = vrot.slane %v1707, 6
        %v1731 = vsel %vm616, %v1728, %v1730
        %v1732 = vrot.slane %v1708, 6
        %v1733 = vsel %vm616, %v1730, %v1732
        %v1734 = vrot.slane %v1709, 6
        %v1735 = vsel %vm616, %v1732, %v1734
        %v1736 = vrot.slane %v1710, 6
        %v1737 = vsel %vm616, %v1734, %v1736
        %v1738 = vrot.slane %v1711, 6
        %v1739 = vsel %vm616, %v1736, %v1738
        %v1740 = vrot.slane %v1712, 6
        %v1741 = vsel %vm616, %v1738, %v1740
        %1742 = vrot.lane.b32.xlu0 %v1723, 96
        %v1743 = vpop.permute.xlu0 %1742
        %1744 = vrot.lane.b32.xlu0 %v1725, 96
        %v1745 = vpop.permute.xlu0 %1744
        %1746 = vrot.lane.b32.xlu0 %v1727, 96
        %v1747 = vpop.permute.xlu0 %1746
        %1748 = vrot.lane.b32.xlu0 %v1729, 96
        %v1749 = vpop.permute.xlu0 %1748
        %1750 = vrot.lane.b32.xlu0 %v1731, 96
        %v1751 = vpop.permute.xlu0 %1750
        %1752 = vrot.lane.b32.xlu0 %v1733, 96
        %v1753 = vpop.permute.xlu0 %1752
        %1754 = vrot.lane.b32.xlu0 %v1735, 96
        %v1755 = vpop.permute.xlu0 %1754
        %1756 = vrot.lane.b32.xlu0 %v1737, 96
        %v1757 = vpop.permute.xlu0 %1756
        %1758 = vrot.lane.b32.xlu0 %v1739, 96
        %v1759 = vpop.permute.xlu0 %1758
        %1760 = vrot.lane.b32.xlu0 %v1741, 96
        %v1761 = vpop.permute.xlu0 %1760
        %1762 = vrot.lane.b32.xlu0 %v1740, 96
        %v1763 = vpop.permute.xlu0 %1762
        %v1775 = vmul.f32 %v688, %v1743
        %v1776 = vmul.f32 %v691, %v1745
        %v1777 = vmul.f32 %v694, %v1747
        %v1778 = vmul.f32 %v697, %v1749
        %v1779 = vmul.f32 %v700, %v1751
        %v1780 = vmul.f32 %v703, %v1753
        %v1781 = vmul.f32 %v706, %v1755
        %v1782 = vmul.f32 %v709, %v1757
        %v1783 = vmul.f32 %v712, %v1759
        %v1784 = vmul.f32 %v715, %v1761
        %v1785 = vmul.f32 %v1763, 0.0
        %vm1797 = vcmask 1042432
        %v1798 = vrot.slane %v1775, 5
        %v1799 = vrot.slane %v1776, 5
        %v1800 = vsel %vm1797, %v1798, %v1799
        %v1801 = vrot.slane %v1777, 5
        %v1802 = vsel %vm1797, %v1799, %v1801
        %v1803 = vrot.slane %v1778, 5
        %v1804 = vsel %vm1797, %v1801, %v1803
        %v1805 = vrot.slane %v1779, 5
        %v1806 = vsel %vm1797, %v1803, %v1805
        %v1807 = vrot.slane %v1780, 5
        %v1808 = vsel %vm1797, %v1805, %v1807
        %v1809 = vrot.slane %v1781, 5
        %v1810 = vsel %vm1797, %v1807, %v1809
        %v1811 = vrot.slane %v1782, 5
        %v1812 = vsel %vm1797, %v1809, %v1811
        %v1813 = vrot.slane %v1783, 5
        %v1814 = vsel %vm1797, %v1811, %v1813
        %v1815 = vrot.slane %v1784, 5
        %v1816 = vsel %vm1797, %v1813, %v1815
        %v1817 = vrot.slane %v1785, 5
        %v1818 = vsel %vm1797, %v1815, %v1817
        %1819 = vrot.lane.b32.xlu0 %v1798, 32
        %v1820 = vpop.permute.xlu0 %1819
        %1821 = vrot.lane.b32.xlu0 %v1800, 32
        %v1822 = vpop.permute.xlu0 %1821
        %1823 = vrot.lane.b32.xlu0 %v1802, 32
        %v1824 = vpop.permute.xlu0 %1823
        %1825 = vrot.lane.b32.xlu0 %v1804, 32
        %v1826 = vpop.permute.xlu0 %1825
        %1827 = vrot.lane.b32.xlu0 %v1806, 32
        %v1828 = vpop.permute.xlu0 %1827
        %1829 = vrot.lane.b32.xlu0 %v1808, 32
        %v1830 = vpop.permute.xlu0 %1829
        %1831 = vrot.lane.b32.xlu0 %v1810, 32
        %v1832 = vpop.permute.xlu0 %1831
        %1833 = vrot.lane.b32.xlu0 %v1812, 32
        %v1834 = vpop.permute.xlu0 %1833
        %1835 = vrot.lane.b32.xlu0 %v1814, 32
        %v1836 = vpop.permute.xlu0 %1835
        %1837 = vrot.lane.b32.xlu0 %v1816, 32
        %v1838 = vpop.permute.xlu0 %1837
        %1839 = vrot.lane.b32.xlu0 %v1818, 32
        %v1840 = vpop.permute.xlu0 %1839
        %v1852 = vadd.f32 %v1691, %v1820
        %v1853 = vadd.f32 %v1692, %v1822
        %v1854 = vadd.f32 %v1693, %v1824
        %v1855 = vadd.f32 %v1694, %v1826
        %v1856 = vadd.f32 %v1695, %v1828
        %v1857 = vadd.f32 %v1696, %v1830
        %v1858 = vadd.f32 %v1697, %v1832
        %v1859 = vadd.f32 %v1698, %v1834
        %v1860 = vadd.f32 %v1699, %v1836
        %v1861 = vadd.f32 %v1700, %v1838
        %v1862 = vadd.f32 %v1701, %v1840
        %s1863 = scalar_lea.vmem [#allocation2], 640
        %v1864 = vld [vmem:[%s1863] sm:$0xff]
        %v1865 = vld [vmem:[%s1863 + $0x8] sm:$0xff]
        %v1866 = vld [vmem:[%s1863 + $0x10] sm:$0xff]
        %v1867 = vld [vmem:[%s1863 + $0x18] sm:$0xff]
        %v1868 = vld [vmem:[%s1863 + $0x20] sm:$0xff]
        %v1869 = vld [vmem:[%s1863 + $0x28] sm:$0xff]
        %v1870 = vld [vmem:[%s1863 + $0x30] sm:$0xff]
        %v1871 = vld [vmem:[%s1863 + $0x38] sm:$0xff]
        %v1872 = vld [vmem:[%s1863 + $0x40] sm:$0xff]
        %v1873 = vld [vmem:[%s1863 + $0x48] sm:$0xff]
        %v1884 = vrot.slane %v1864, 5
        %v1885 = vrot.slane %v1865, 5
        %v1886 = vsel %vm1797, %v1884, %v1885
        %v1887 = vrot.slane %v1866, 5
        %v1888 = vsel %vm1797, %v1885, %v1887
        %v1889 = vrot.slane %v1867, 5
        %v1890 = vsel %vm1797, %v1887, %v1889
        %v1891 = vrot.slane %v1868, 5
        %v1892 = vsel %vm1797, %v1889, %v1891
        %v1893 = vrot.slane %v1869, 5
        %v1894 = vsel %vm1797, %v1891, %v1893
        %v1895 = vrot.slane %v1870, 5
        %v1896 = vsel %vm1797, %v1893, %v1895
        %v1897 = vrot.slane %v1871, 5
        %v1898 = vsel %vm1797, %v1895, %v1897
        %v1899 = vrot.slane %v1872, 5
        %v1900 = vsel %vm1797, %v1897, %v1899
        %v1901 = vrot.slane %v1873, 5
        %v1902 = vsel %vm1797, %v1899, %v1901
        %v1914 = vmul.f32 %v735, %v1884
        %v1915 = vmul.f32 %v738, %v1886
        %v1916 = vmul.f32 %v741, %v1888
        %v1917 = vmul.f32 %v744, %v1890
        %v1918 = vmul.f32 %v747, %v1892
        %v1919 = vmul.f32 %v750, %v1894
        %v1920 = vmul.f32 %v753, %v1896
        %v1921 = vmul.f32 %v756, %v1898
        %v1922 = vmul.f32 %v759, %v1900
        %v1923 = vmul.f32 %v762, %v1902
        %v1924 = vmul.f32 %v1901, 0.0
        %v1936 = vrot.slane %v1914, 6
        %v1937 = vrot.slane %v1915, 6
        %v1938 = vsel %vm616, %v1936, %v1937
        %v1939 = vrot.slane %v1916, 6
        %v1940 = vsel %vm616, %v1937, %v1939
        %v1941 = vrot.slane %v1917, 6
        %v1942 = vsel %vm616, %v1939, %v1941
        %v1943 = vrot.slane %v1918, 6
        %v1944 = vsel %vm616, %v1941, %v1943
        %v1945 = vrot.slane %v1919, 6
        %v1946 = vsel %vm616, %v1943, %v1945
        %v1947 = vrot.slane %v1920, 6
        %v1948 = vsel %vm616, %v1945, %v1947
        %v1949 = vrot.slane %v1921, 6
        %v1950 = vsel %vm616, %v1947, %v1949
        %v1951 = vrot.slane %v1922, 6
        %v1952 = vsel %vm616, %v1949, %v1951
        %v1953 = vrot.slane %v1923, 6
        %v1954 = vsel %vm616, %v1951, %v1953
        %v1955 = vrot.slane %v1924, 6
        %v1956 = vsel %vm616, %v1953, %v1955
        %v1968 = vadd.f32 %v1852, %v1936
        %v1969 = vadd.f32 %v1853, %v1938
        %v1970 = vadd.f32 %v1854, %v1940
        %v1971 = vadd.f32 %v1855, %v1942
        %v1972 = vadd.f32 %v1856, %v1944
        %v1973 = vadd.f32 %v1857, %v1946
        %v1974 = vadd.f32 %v1858, %v1948
        %v1975 = vadd.f32 %v1859, %v1950
        %v1976 = vadd.f32 %v1860, %v1952
        %v1977 = vadd.f32 %v1861, %v1954
        %v1978 = vadd.f32 %v1862, %v1956
        %v1979 = vld [vmem:[%s4] sm:$0x1]
        %v1981 = vperm.slane %v1979, 0
        %v1983 = vadd.f32 %v1968, %v1981
        %v1984 = vadd.f32 %v1969, %v1981
        %v1985 = vadd.f32 %v1970, %v1981
        %v1986 = vadd.f32 %v1971, %v1981
        %v1987 = vadd.f32 %v1972, %v1981
        %v1988 = vadd.f32 %v1973, %v1981
        %v1989 = vadd.f32 %v1974, %v1981
        %v1990 = vadd.f32 %v1975, %v1981
        %v1991 = vadd.f32 %v1976, %v1981
        %v1992 = vadd.f32 %v1977, %v1981
        %v1993 = vadd.f32 %v1978, %v1981
        %v1994 = vmul.f32 %v1983, 0.5
        %v1995 = vmul.f32 %v1984, 0.5
        %v1996 = vmul.f32 %v1985, 0.5
        %v1997 = vmul.f32 %v1986, 0.5
        %v1998 = vmul.f32 %v1987, 0.5
        %v1999 = vmul.f32 %v1988, 0.5
        %v2000 = vmul.f32 %v1989, 0.5
        %v2001 = vmul.f32 %v1990, 0.5
        %v2002 = vmul.f32 %v1991, 0.5
        %v2003 = vmul.f32 %v1992, 0.5
        %v2004 = vmul.f32 %v1993, 0.5
        %v2005 = vmul.f32 %v1983, 0.70710677
        %v2006 = vmul.f32 %v1984, 0.70710677
        %v2007 = vmul.f32 %v1985, 0.70710677
        %v2008 = vmul.f32 %v1986, 0.70710677
        %v2009 = vmul.f32 %v1987, 0.70710677
        %v2010 = vmul.f32 %v1988, 0.70710677
        %v2011 = vmul.f32 %v1989, 0.70710677
        %v2012 = vmul.f32 %v1990, 0.70710677
        %v2013 = vmul.f32 %v1991, 0.70710677
        %v2014 = vmul.f32 %v1992, 0.70710677
        %v2015 = vmul.f32 %v1993, 0.70710677
        %v2016 = vand.u32 2147483647, %v2005
        %v2017 = vand.u32 2147483647, %v2006
        %v2018 = vand.u32 2147483647, %v2007
        %v2019 = vand.u32 2147483647, %v2008
        %v2020 = vand.u32 2147483647, %v2009
        %v2021 = vand.u32 2147483647, %v2010
        %v2022 = vand.u32 2147483647, %v2011
        %v2023 = vand.u32 2147483647, %v2012
        %v2024 = vand.u32 2147483647, %v2013
        %v2025 = vand.u32 2147483647, %v2014
        %v2026 = vand.u32 2147483647, %v2015
        %v2027 = vmul.f32 %v2016, 0.3275911
        %v2028 = vmul.f32 %v2017, 0.3275911
        %v2029 = vmul.f32 %v2018, 0.3275911
        %v2030 = vmul.f32 %v2019, 0.3275911
        %v2031 = vmul.f32 %v2020, 0.3275911
        %v2032 = vmul.f32 %v2021, 0.3275911
        %v2033 = vmul.f32 %v2022, 0.3275911
        %v2034 = vmul.f32 %v2023, 0.3275911
        %v2035 = vmul.f32 %v2024, 0.3275911
        %v2036 = vmul.f32 %v2025, 0.3275911
        %v2037 = vmul.f32 %v2026, 0.3275911
        %v2038 = vadd.f32 %v2027, 1.0
        %v2039 = vadd.f32 %v2028, 1.0
        %v2040 = vadd.f32 %v2029, 1.0
        %v2041 = vadd.f32 %v2030, 1.0
        %v2042 = vadd.f32 %v2031, 1.0
        %v2043 = vadd.f32 %v2032, 1.0
        %v2044 = vadd.f32 %v2033, 1.0
        %v2045 = vadd.f32 %v2034, 1.0
        %v2046 = vadd.f32 %v2035, 1.0
        %v2047 = vadd.f32 %v2036, 1.0
        %v2048 = vadd.f32 %v2037, 1.0
        %v2049 = vrcp.pop %v2038
        %v2050 = vmul.f32 %v2038, %v2049
        %v2051 = vsub.f32 1.0, %v2050
        %v2052 = vmul.f32 %v2049, %v2051
        %v2053 = vadd.f32 %v2049, %v2052
        %vm2054 = vweird.f32 %v2038
        %vm2055 = vweird.f32 %v2049
        %vm2056 = vmor %vm2054, %vm2055
        %v2057 = vsel %vm2056, %v2049, %v2053
        %v2058 = vand.u32 2147483647, %v2038
        %vm2059 = vcmp.eq.f32.partialorder %v2058, 8.507059e+37
        %v2060 = vand.u32 %v2038, 2147483648
        %v2061 = vor.u32 1.1754944e-38, %v2060
        %v2062 = vsel %vm2059, %v2061, %v2057
        %v2063 = vmul.f32 1.0, %v2062
        %v2064 = vrcp.pop %v2039
        %v2065 = vmul.f32 %v2039, %v2064
        %v2066 = vsub.f32 1.0, %v2065
        %v2067 = vmul.f32 %v2064, %v2066
        %v2068 = vadd.f32 %v2064, %v2067
        %vm2069 = vweird.f32 %v2039
        %vm2070 = vweird.f32 %v2064
        %vm2071 = vmor %vm2069, %vm2070
        %v2072 = vsel %vm2071, %v2064, %v2068
        %v2073 = vand.u32 2147483647, %v2039
        %vm2074 = vcmp.eq.f32.partialorder %v2073, 8.507059e+37
        %v2075 = vand.u32 %v2039, 2147483648
        %v2076 = vor.u32 1.1754944e-38, %v2075
        %v2077 = vsel %vm2074, %v2076, %v2072
        %v2078 = vmul.f32 1.0, %v2077
        %v2079 = vrcp.pop %v2040
        %v2080 = vmul.f32 %v2040, %v2079
        %v2081 = vsub.f32 1.0, %v2080
        %v2082 = vmul.f32 %v2079, %v2081
        %v2083 = vadd.f32 %v2079, %v2082
        %vm2084 = vweird.f32 %v2040
        %vm2085 = vweird.f32 %v2079
        %vm2086 = vmor %vm2084, %vm2085
        %v2087 = vsel %vm2086, %v2079, %v2083
        %v2088 = vand.u32 2147483647, %v2040
        %vm2089 = vcmp.eq.f32.partialorder %v2088, 8.507059e+37
        %v2090 = vand.u32 %v2040, 2147483648
        %v2091 = vor.u32 1.1754944e-38, %v2090
        %v2092 = vsel %vm2089, %v2091, %v2087
        %v2093 = vmul.f32 1.0, %v2092
        %v2094 = vrcp.pop %v2041
        %v2095 = vmul.f32 %v2041, %v2094
        %v2096 = vsub.f32 1.0, %v2095
        %v2097 = vmul.f32 %v2094, %v2096
        %v2098 = vadd.f32 %v2094, %v2097
        %vm2099 = vweird.f32 %v2041
        %vm2100 = vweird.f32 %v2094
        %vm2101 = vmor %vm2099, %vm2100
        %v2102 = vsel %vm2101, %v2094, %v2098
        %v2103 = vand.u32 2147483647, %v2041
        %vm2104 = vcmp.eq.f32.partialorder %v2103, 8.507059e+37
        %v2105 = vand.u32 %v2041, 2147483648
        %v2106 = vor.u32 1.1754944e-38, %v2105
        %v2107 = vsel %vm2104, %v2106, %v2102
        %v2108 = vmul.f32 1.0, %v2107
        %v2109 = vrcp.pop %v2042
        %v2110 = vmul.f32 %v2042, %v2109
        %v2111 = vsub.f32 1.0, %v2110
        %v2112 = vmul.f32 %v2109, %v2111
        %v2113 = vadd.f32 %v2109, %v2112
        %vm2114 = vweird.f32 %v2042
        %vm2115 = vweird.f32 %v2109
        %vm2116 = vmor %vm2114, %vm2115
        %v2117 = vsel %vm2116, %v2109, %v2113
        %v2118 = vand.u32 2147483647, %v2042
        %vm2119 = vcmp.eq.f32.partialorder %v2118, 8.507059e+37
        %v2120 = vand.u32 %v2042, 2147483648
        %v2121 = vor.u32 1.1754944e-38, %v2120
        %v2122 = vsel %vm2119, %v2121, %v2117
        %v2123 = vmul.f32 1.0, %v2122
        %v2124 = vrcp.pop %v2043
        %v2125 = vmul.f32 %v2043, %v2124
        %v2126 = vsub.f32 1.0, %v2125
        %v2127 = vmul.f32 %v2124, %v2126
        %v2128 = vadd.f32 %v2124, %v2127
        %vm2129 = vweird.f32 %v2043
        %vm2130 = vweird.f32 %v2124
        %vm2131 = vmor %vm2129, %vm2130
        %v2132 = vsel %vm2131, %v2124, %v2128
        %v2133 = vand.u32 2147483647, %v2043
        %vm2134 = vcmp.eq.f32.partialorder %v2133, 8.507059e+37
        %v2135 = vand.u32 %v2043, 2147483648
        %v2136 = vor.u32 1.1754944e-38, %v2135
        %v2137 = vsel %vm2134, %v2136, %v2132
        %v2138 = vmul.f32 1.0, %v2137
        %v2139 = vrcp.pop %v2044
        %v2140 = vmul.f32 %v2044, %v2139
        %v2141 = vsub.f32 1.0, %v2140
        %v2142 = vmul.f32 %v2139, %v2141
        %v2143 = vadd.f32 %v2139, %v2142
        %vm2144 = vweird.f32 %v2044
        %vm2145 = vweird.f32 %v2139
        %vm2146 = vmor %vm2144, %vm2145
        %v2147 = vsel %vm2146, %v2139, %v2143
        %v2148 = vand.u32 2147483647, %v2044
        %vm2149 = vcmp.eq.f32.partialorder %v2148, 8.507059e+37
        %v2150 = vand.u32 %v2044, 2147483648
        %v2151 = vor.u32 1.1754944e-38, %v2150
        %v2152 = vsel %vm2149, %v2151, %v2147
        %v2153 = vmul.f32 1.0, %v2152
        %v2154 = vrcp.pop %v2045
        %v2155 = vmul.f32 %v2045, %v2154
        %v2156 = vsub.f32 1.0, %v2155
        %v2157 = vmul.f32 %v2154, %v2156
        %v2158 = vadd.f32 %v2154, %v2157
        %vm2159 = vweird.f32 %v2045
        %vm2160 = vweird.f32 %v2154
        %vm2161 = vmor %vm2159, %vm2160
        %v2162 = vsel %vm2161, %v2154, %v2158
        %v2163 = vand.u32 2147483647, %v2045
        %vm2164 = vcmp.eq.f32.partialorder %v2163, 8.507059e+37
        %v2165 = vand.u32 %v2045, 2147483648
        %v2166 = vor.u32 1.1754944e-38, %v2165
        %v2167 = vsel %vm2164, %v2166, %v2162
        %v2168 = vmul.f32 1.0, %v2167
        %v2169 = vrcp.pop %v2046
        %v2170 = vmul.f32 %v2046, %v2169
        %v2171 = vsub.f32 1.0, %v2170
        %v2172 = vmul.f32 %v2169, %v2171
        %v2173 = vadd.f32 %v2169, %v2172
        %vm2174 = vweird.f32 %v2046
        %vm2175 = vweird.f32 %v2169
        %vm2176 = vmor %vm2174, %vm2175
        %v2177 = vsel %vm2176, %v2169, %v2173
        %v2178 = vand.u32 2147483647, %v2046
        %vm2179 = vcmp.eq.f32.partialorder %v2178, 8.507059e+37
        %v2180 = vand.u32 %v2046, 2147483648
        %v2181 = vor.u32 1.1754944e-38, %v2180
        %v2182 = vsel %vm2179, %v2181, %v2177
        %v2183 = vmul.f32 1.0, %v2182
        %v2184 = vrcp.pop %v2047
        %v2185 = vmul.f32 %v2047, %v2184
        %v2186 = vsub.f32 1.0, %v2185
        %v2187 = vmul.f32 %v2184, %v2186
        %v2188 = vadd.f32 %v2184, %v2187
        %vm2189 = vweird.f32 %v2047
        %vm2190 = vweird.f32 %v2184
        %vm2191 = vmor %vm2189, %vm2190
        %v2192 = vsel %vm2191, %v2184, %v2188
        %v2193 = vand.u32 2147483647, %v2047
        %vm2194 = vcmp.eq.f32.partialorder %v2193, 8.507059e+37
        %v2195 = vand.u32 %v2047, 2147483648
        %v2196 = vor.u32 1.1754944e-38, %v2195
        %v2197 = vsel %vm2194, %v2196, %v2192
        %v2198 = vmul.f32 1.0, %v2197
        %v2199 = vrcp.pop %v2048
        %v2200 = vmul.f32 %v2048, %v2199
        %v2201 = vsub.f32 1.0, %v2200
        %v2202 = vmul.f32 %v2199, %v2201
        %v2203 = vadd.f32 %v2199, %v2202
        %vm2204 = vweird.f32 %v2048
        %vm2205 = vweird.f32 %v2199
        %vm2206 = vmor %vm2204, %vm2205
        %v2207 = vsel %vm2206, %v2199, %v2203
        %v2208 = vand.u32 2147483647, %v2048
        %vm2209 = vcmp.eq.f32.partialorder %v2208, 8.507059e+37
        %v2210 = vand.u32 %v2048, 2147483648
        %v2211 = vor.u32 1.1754944e-38, %v2210
        %v2212 = vsel %vm2209, %v2211, %v2207
        %v2213 = vmul.f32 1.0, %v2212
        %v2214 = vmul.f32 %v2063, 1.0614054
        %v2215 = vmul.f32 %v2078, 1.0614054
        %v2216 = vmul.f32 %v2093, 1.0614054
        %v2217 = vmul.f32 %v2108, 1.0614054
        %v2218 = vmul.f32 %v2123, 1.0614054
        %v2219 = vmul.f32 %v2138, 1.0614054
        %v2220 = vmul.f32 %v2153, 1.0614054
        %v2221 = vmul.f32 %v2168, 1.0614054
        %v2222 = vmul.f32 %v2183, 1.0614054
        %v2223 = vmul.f32 %v2198, 1.0614054
        %v2224 = vmul.f32 %v2213, 1.0614054
        %v2225 = vadd.f32 %v2214, -1.4531521
        %v2226 = vadd.f32 %v2215, -1.4531521
        %v2227 = vadd.f32 %v2216, -1.4531521
        %v2228 = vadd.f32 %v2217, -1.4531521
        %v2229 = vadd.f32 %v2218, -1.4531521
        %v2230 = vadd.f32 %v2219, -1.4531521
        %v2231 = vadd.f32 %v2220, -1.4531521
        %v2232 = vadd.f32 %v2221, -1.4531521
        %v2233 = vadd.f32 %v2222, -1.4531521
        %v2234 = vadd.f32 %v2223, -1.4531521
        %v2235 = vadd.f32 %v2224, -1.4531521
        %v2236 = vmul.f32 %v2225, %v2063
        %v2237 = vmul.f32 %v2226, %v2078
        %v2238 = vmul.f32 %v2227, %v2093
        %v2239 = vmul.f32 %v2228, %v2108
        %v2240 = vmul.f32 %v2229, %v2123
        %v2241 = vmul.f32 %v2230, %v2138
        %v2242 = vmul.f32 %v2231, %v2153
        %v2243 = vmul.f32 %v2232, %v2168
        %v2244 = vmul.f32 %v2233, %v2183
        %v2245 = vmul.f32 %v2234, %v2198
        %v2246 = vmul.f32 %v2235, %v2213
        %v2247 = vadd.f32 %v2236, 1.4214138
        %v2248 = vadd.f32 %v2237, 1.4214138
        %v2249 = vadd.f32 %v2238, 1.4214138
        %v2250 = vadd.f32 %v2239, 1.4214138
        %v2251 = vadd.f32 %v2240, 1.4214138
        %v2252 = vadd.f32 %v2241, 1.4214138
        %v2253 = vadd.f32 %v2242, 1.4214138
        %v2254 = vadd.f32 %v2243, 1.4214138
        %v2255 = vadd.f32 %v2244, 1.4214138
        %v2256 = vadd.f32 %v2245, 1.4214138
        %v2257 = vadd.f32 %v2246, 1.4214138
        %v2258 = vmul.f32 %v2247, %v2063
        %v2259 = vmul.f32 %v2248, %v2078
        %v2260 = vmul.f32 %v2249, %v2093
        %v2261 = vmul.f32 %v2250, %v2108
        %v2262 = vmul.f32 %v2251, %v2123
        %v2263 = vmul.f32 %v2252, %v2138
        %v2264 = vmul.f32 %v2253, %v2153
        %v2265 = vmul.f32 %v2254, %v2168
        %v2266 = vmul.f32 %v2255, %v2183
        %v2267 = vmul.f32 %v2256, %v2198
        %v2268 = vmul.f32 %v2257, %v2213
        %v2269 = vadd.f32 %v2258, -0.28449672
        %v2270 = vadd.f32 %v2259, -0.28449672
        %v2271 = vadd.f32 %v2260, -0.28449672
        %v2272 = vadd.f32 %v2261, -0.28449672
        %v2273 = vadd.f32 %v2262, -0.28449672
        %v2274 = vadd.f32 %v2263, -0.28449672
        %v2275 = vadd.f32 %v2264, -0.28449672
        %v2276 = vadd.f32 %v2265, -0.28449672
        %v2277 = vadd.f32 %v2266, -0.28449672
        %v2278 = vadd.f32 %v2267, -0.28449672
        %v2279 = vadd.f32 %v2268, -0.28449672
        %v2280 = vmul.f32 %v2269, %v2063
        %v2281 = vmul.f32 %v2270, %v2078
        %v2282 = vmul.f32 %v2271, %v2093
        %v2283 = vmul.f32 %v2272, %v2108
        %v2284 = vmul.f32 %v2273, %v2123
        %v2285 = vmul.f32 %v2274, %v2138
        %v2286 = vmul.f32 %v2275, %v2153
        %v2287 = vmul.f32 %v2276, %v2168
        %v2288 = vmul.f32 %v2277, %v2183
        %v2289 = vmul.f32 %v2278, %v2198
        %v2290 = vmul.f32 %v2279, %v2213
        %v2291 = vadd.f32 %v2280, 0.2548296
        %v2292 = vadd.f32 %v2281, 0.2548296
        %v2293 = vadd.f32 %v2282, 0.2548296
        %v2294 = vadd.f32 %v2283, 0.2548296
        %v2295 = vadd.f32 %v2284, 0.2548296
        %v2296 = vadd.f32 %v2285, 0.2548296
        %v2297 = vadd.f32 %v2286, 0.2548296
        %v2298 = vadd.f32 %v2287, 0.2548296
        %v2299 = vadd.f32 %v2288, 0.2548296
        %v2300 = vadd.f32 %v2289, 0.2548296
        %v2301 = vadd.f32 %v2290, 0.2548296
        %v2302 = vmul.f32 %v2291, %v2063
        %v2303 = vmul.f32 %v2292, %v2078
        %v2304 = vmul.f32 %v2293, %v2093
        %v2305 = vmul.f32 %v2294, %v2108
        %v2306 = vmul.f32 %v2295, %v2123
        %v2307 = vmul.f32 %v2296, %v2138
        %v2308 = vmul.f32 %v2297, %v2153
        %v2309 = vmul.f32 %v2298, %v2168
        %v2310 = vmul.f32 %v2299, %v2183
        %v2311 = vmul.f32 %v2300, %v2198
        %v2312 = vmul.f32 %v2301, %v2213
        %v2313 = vsub.f32 0.0, %v2016
        %v2314 = vsub.f32 0.0, %v2017
        %v2315 = vsub.f32 0.0, %v2018
        %v2316 = vsub.f32 0.0, %v2019
        %v2317 = vsub.f32 0.0, %v2020
        %v2318 = vsub.f32 0.0, %v2021
        %v2319 = vsub.f32 0.0, %v2022
        %v2320 = vsub.f32 0.0, %v2023
        %v2321 = vsub.f32 0.0, %v2024
        %v2322 = vsub.f32 0.0, %v2025
        %v2323 = vsub.f32 0.0, %v2026
        %v2324 = vmul.f32 %v2313, %v2016
        %v2325 = vmul.f32 %v2314, %v2017
        %v2326 = vmul.f32 %v2315, %v2018
        %v2327 = vmul.f32 %v2316, %v2019
        %v2328 = vmul.f32 %v2317, %v2020
        %v2329 = vmul.f32 %v2318, %v2021
        %v2330 = vmul.f32 %v2319, %v2022
        %v2331 = vmul.f32 %v2320, %v2023
        %v2332 = vmul.f32 %v2321, %v2024
        %v2333 = vmul.f32 %v2322, %v2025
        %v2334 = vmul.f32 %v2323, %v2026
        %v2335 = vmul.f32 %v2324, 1.442695
        %v2336 = vpow.pop %v2335
        %v2337 = vmul.f32 %v2325, 1.442695
        %v2338 = vpow.pop %v2337
        %v2339 = vmul.f32 %v2326, 1.442695
        %v2340 = vpow.pop %v2339
        %v2341 = vmul.f32 %v2327, 1.442695
        %v2342 = vpow.pop %v2341
        %v2343 = vmul.f32 %v2328, 1.442695
        %v2344 = vpow.pop %v2343
        %v2345 = vmul.f32 %v2329, 1.442695
        %v2346 = vpow.pop %v2345
        %v2347 = vmul.f32 %v2330, 1.442695
        %v2348 = vpow.pop %v2347
        %v2349 = vmul.f32 %v2331, 1.442695
        %v2350 = vpow.pop %v2349
        %v2351 = vmul.f32 %v2332, 1.442695
        %v2352 = vpow.pop %v2351
        %v2353 = vmul.f32 %v2333, 1.442695
        %v2354 = vpow.pop %v2353
        %v2355 = vmul.f32 %v2334, 1.442695
        %v2356 = vpow.pop %v2355
        %v2357 = vmul.f32 %v2302, %v2336
        %v2358 = vmul.f32 %v2303, %v2338
        %v2359 = vmul.f32 %v2304, %v2340
        %v2360 = vmul.f32 %v2305, %v2342
        %v2361 = vmul.f32 %v2306, %v2344
        %v2362 = vmul.f32 %v2307, %v2346
        %v2363 = vmul.f32 %v2308, %v2348
        %v2364 = vmul.f32 %v2309, %v2350
        %v2365 = vmul.f32 %v2310, %v2352
        %v2366 = vmul.f32 %v2311, %v2354
        %v2367 = vmul.f32 %v2312, %v2356
        %v2368 = vsub.f32 1.0, %v2357
        %v2369 = vsub.f32 1.0, %v2358
        %v2370 = vsub.f32 1.0, %v2359
        %v2371 = vsub.f32 1.0, %v2360
        %v2372 = vsub.f32 1.0, %v2361
        %v2373 = vsub.f32 1.0, %v2362
        %v2374 = vsub.f32 1.0, %v2363
        %v2375 = vsub.f32 1.0, %v2364
        %v2376 = vsub.f32 1.0, %v2365
        %v2377 = vsub.f32 1.0, %v2366
        %v2378 = vsub.f32 1.0, %v2367
        %vm2379 = vcmp.lt.f32.partialorder %v2005, 0.0
        %vm2380 = vcmp.lt.f32.partialorder %v2006, 0.0
        %vm2381 = vcmp.lt.f32.partialorder %v2007, 0.0
        %vm2382 = vcmp.lt.f32.partialorder %v2008, 0.0
        %vm2383 = vcmp.lt.f32.partialorder %v2009, 0.0
        %vm2384 = vcmp.lt.f32.partialorder %v2010, 0.0
        %vm2385 = vcmp.lt.f32.partialorder %v2011, 0.0
        %vm2386 = vcmp.lt.f32.partialorder %v2012, 0.0
        %vm2387 = vcmp.lt.f32.partialorder %v2013, 0.0
        %vm2388 = vcmp.lt.f32.partialorder %v2014, 0.0
        %vm2389 = vcmp.lt.f32.partialorder %v2015, 0.0
        %v2390 = vsub.f32 0.0, %v2368
        %v2391 = vsub.f32 0.0, %v2369
        %v2392 = vsub.f32 0.0, %v2370
        %v2393 = vsub.f32 0.0, %v2371
        %v2394 = vsub.f32 0.0, %v2372
        %v2395 = vsub.f32 0.0, %v2373
        %v2396 = vsub.f32 0.0, %v2374
        %v2397 = vsub.f32 0.0, %v2375
        %v2398 = vsub.f32 0.0, %v2376
        %v2399 = vsub.f32 0.0, %v2377
        %v2400 = vsub.f32 0.0, %v2378
        %v2401 = vsel %vm2379, %v2390, %v2368
        %v2402 = vsel %vm2380, %v2391, %v2369
        %v2403 = vsel %vm2381, %v2392, %v2370
        %v2404 = vsel %vm2382, %v2393, %v2371
        %v2405 = vsel %vm2383, %v2394, %v2372
        %v2406 = vsel %vm2384, %v2395, %v2373
        %v2407 = vsel %vm2385, %v2396, %v2374
        %v2408 = vsel %vm2386, %v2397, %v2375
        %v2409 = vsel %vm2387, %v2398, %v2376
        %v2410 = vsel %vm2388, %v2399, %v2377
        %v2411 = vsel %vm2389, %v2400, %v2378
        %v2412 = vadd.f32 %v2401, 1.0
        %v2413 = vadd.f32 %v2402, 1.0
        %v2414 = vadd.f32 %v2403, 1.0
        %v2415 = vadd.f32 %v2404, 1.0
        %v2416 = vadd.f32 %v2405, 1.0
        %v2417 = vadd.f32 %v2406, 1.0
        %v2418 = vadd.f32 %v2407, 1.0
        %v2419 = vadd.f32 %v2408, 1.0
        %v2420 = vadd.f32 %v2409, 1.0
        %v2421 = vadd.f32 %v2410, 1.0
        %v2422 = vadd.f32 %v2411, 1.0
        %v2423 = vmul.f32 %v1994, %v2412
        %v2424 = vmul.f32 %v1995, %v2413
        %v2425 = vmul.f32 %v1996, %v2414
        %v2426 = vmul.f32 %v1997, %v2415
        %v2427 = vmul.f32 %v1998, %v2416
        %v2428 = vmul.f32 %v1999, %v2417
        %v2429 = vmul.f32 %v2000, %v2418
        %v2430 = vmul.f32 %v2001, %v2419
        %v2431 = vmul.f32 %v2002, %v2420
        %v2432 = vmul.f32 %v2003, %v2421
        %v2433 = vmul.f32 %v2004, %v2422
        %v2434 = vld [vmem:[%s5] sm:$0xff]
        %v2435 = vld [vmem:[%s5 + $0x8] sm:$0xff]
        %v2436 = vld [vmem:[%s5 + $0x10] sm:$0xff]
        %v2437 = vld [vmem:[%s5 + $0x18] sm:$0xff]
        %v2438 = vld [vmem:[%s5 + $0x20] sm:$0xff]
        %v2439 = vld [vmem:[%s5 + $0x28] sm:$0xff]
        %v2440 = vld [vmem:[%s5 + $0x30] sm:$0xff]
        %v2441 = vld [vmem:[%s5 + $0x38] sm:$0xff]
        %v2442 = vld [vmem:[%s5 + $0x40] sm:$0xff]
        %v2443 = vld [vmem:[%s5 + $0x48] sm:$0xff]
        %v2444 = vld [vmem:[%s5 + $0x50] sm:$0xff]
        %v2445 = vld [vmem:[%s5 + $0x58] sm:$0xff]
        %v2457 = vrot.slane %v2423, 5
        %v2458 = vrot.slane %v2424, 5
        %v2459 = vsel %vm1797, %v2457, %v2458
        %v2460 = vrot.slane %v2425, 5
        %v2461 = vsel %vm1797, %v2458, %v2460
        %v2462 = vrot.slane %v2426, 5
        %v2463 = vsel %vm1797, %v2460, %v2462
        %v2464 = vrot.slane %v2427, 5
        %v2465 = vsel %vm1797, %v2462, %v2464
        %v2466 = vrot.slane %v2428, 5
        %v2467 = vsel %vm1797, %v2464, %v2466
        %v2468 = vrot.slane %v2429, 5
        %v2469 = vsel %vm1797, %v2466, %v2468
        %v2470 = vrot.slane %v2430, 5
        %v2471 = vsel %vm1797, %v2468, %v2470
        %v2472 = vrot.slane %v2431, 5
        %v2473 = vsel %vm1797, %v2470, %v2472
        %v2474 = vrot.slane %v2432, 5
        %v2475 = vsel %vm1797, %v2472, %v2474
        %v2476 = vrot.slane %v2433, 5
        %v2477 = vsel %vm1797, %v2474, %v2476
        %vm2478 = vcmask 261120
        %v2479 = vsel %vm2478, %v2459, 0
        %v2481 = vsel %vm2478, %v2461, 0
        %v2483 = vsel %vm2478, %v2463, 0
        %v2485 = vsel %vm2478, %v2465, 0
        %v2487 = vsel %vm2478, %v2467, 0
        %v2489 = vsel %vm2478, %v2469, 0
        %v2491 = vsel %vm2478, %v2471, 0
        %v2493 = vsel %vm2478, %v2473, 0
        %v2495 = vsel %vm2478, %v2475, 0
        %v2497 = vsel %vm2478, %v2477, 0
        %2499 = vmatpush.msra.mxu0 0.0
        %2500 = vmatpush.msra.mxu0 0.0
        %2501 = vmatpush.msra.mxu0 0.0
        %2502 = vmatpush.msra.mxu0 0.0
        %2503 = vmatpush.msra.mxu0 0.0
        %2504 = vmatpush.msra.mxu0 0.0
        %2505 = vmatpush.msra.mxu0 0.0
        %2506 = vmatpush.msra.mxu0 0.0
        %2507 = vmatpush.msra.mxu0 0.0
        %2508 = vmatpush.msra.mxu0 0.0
        %2509 = vmatpush.msra.mxu0 0.0
        %2510 = vmatpush.msra.mxu0 0.0
        %2511 = vmatpush.msra.mxu0 %v2443
        %2512 = vmatpush.msra.mxu0 %v2440
        %2513 = vmatpush.msra.mxu0 %v2437
        %2514 = vmatpush.msra.mxu0 %v2434
        %2515 = vmatmul.f32.gmra.mxu0 %v2479
        %v2516 = vpop.f32.mrf.mxu0
        %v2517 = vadd.f32 0.0, %v2516
        %2518 = vmatmul.f32.gmra.mxu0 %v2481
        %v2519 = vpop.f32.mrf.mxu0
        %v2520 = vadd.f32 0.0, %v2519
        %2521 = vmatmul.f32.gmra.mxu0 %v2483
        %v2522 = vpop.f32.mrf.mxu0
        %v2523 = vadd.f32 0.0, %v2522
        %2524 = vmatmul.f32.gmra.mxu0 %v2485
        %v2525 = vpop.f32.mrf.mxu0
        %v2526 = vadd.f32 0.0, %v2525
        %2527 = vmatmul.f32.gmra.mxu0 %v2487
        %v2528 = vpop.f32.mrf.mxu0
        %v2529 = vadd.f32 0.0, %v2528
        %2530 = vmatmul.f32.gmra.mxu0 %v2489
        %v2531 = vpop.f32.mrf.mxu0
        %v2532 = vadd.f32 0.0, %v2531
        %2533 = vmatmul.f32.gmra.mxu0 %v2491
        %v2534 = vpop.f32.mrf.mxu0
        %v2535 = vadd.f32 0.0, %v2534
        %2536 = vmatmul.f32.gmra.mxu0 %v2493
        %v2537 = vpop.f32.mrf.mxu0
        %v2538 = vadd.f32 0.0, %v2537
        %2539 = vmatmul.f32.gmra.mxu0 %v2495
        %v2540 = vpop.f32.mrf.mxu0
        %v2541 = vadd.f32 0.0, %v2540
        %2542 = vmatmul.f32.gmra.mxu0 %v2497
        %v2543 = vpop.f32.mrf.mxu0
        %v2544 = vadd.f32 0.0, %v2543
        %2545 = vdwg.mxu0
        %2546 = vmatpush.msra.mxu0 0.0
        %2547 = vmatpush.msra.mxu0 0.0
        %2548 = vmatpush.msra.mxu0 0.0
        %2549 = vmatpush.msra.mxu0 0.0
        %2550 = vmatpush.msra.mxu0 0.0
        %2551 = vmatpush.msra.mxu0 0.0
        %2552 = vmatpush.msra.mxu0 0.0
        %2553 = vmatpush.msra.mxu0 0.0
        %2554 = vmatpush.msra.mxu0 0.0
        %2555 = vmatpush.msra.mxu0 0.0
        %2556 = vmatpush.msra.mxu0 0.0
        %2557 = vmatpush.msra.mxu0 0.0
        %2558 = vmatpush.msra.mxu0 %v2444
        %2559 = vmatpush.msra.mxu0 %v2441
        %2560 = vmatpush.msra.mxu0 %v2438
        %2561 = vmatpush.msra.mxu0 %v2435
        %2562 = vmatmul.f32.gmra.mxu0 %v2479
        %v2563 = vpop.f32.mrf.mxu0
        %v2564 = vadd.f32 0.0, %v2563
        %2565 = vmatmul.f32.gmra.mxu0 %v2481
        %v2566 = vpop.f32.mrf.mxu0
        %v2567 = vadd.f32 0.0, %v2566
        %2568 = vmatmul.f32.gmra.mxu0 %v2483
        %v2569 = vpop.f32.mrf.mxu0
        %v2570 = vadd.f32 0.0, %v2569
        %2571 = vmatmul.f32.gmra.mxu0 %v2485
        %v2572 = vpop.f32.mrf.mxu0
        %v2573 = vadd.f32 0.0, %v2572
        %2574 = vmatmul.f32.gmra.mxu0 %v2487
        %v2575 = vpop.f32.mrf.mxu0
        %v2576 = vadd.f32 0.0, %v2575
        %2577 = vmatmul.f32.gmra.mxu0 %v2489
        %v2578 = vpop.f32.mrf.mxu0
        %v2579 = vadd.f32 0.0, %v2578
        %2580 = vmatmul.f32.gmra.mxu0 %v2491
        %v2581 = vpop.f32.mrf.mxu0
        %v2582 = vadd.f32 0.0, %v2581
        %2583 = vmatmul.f32.gmra.mxu0 %v2493
        %v2584 = vpop.f32.mrf.mxu0
        %v2585 = vadd.f32 0.0, %v2584
        %2586 = vmatmul.f32.gmra.mxu0 %v2495
        %v2587 = vpop.f32.mrf.mxu0
        %v2588 = vadd.f32 0.0, %v2587
        %2589 = vmatmul.f32.gmra.mxu0 %v2497
        %v2590 = vpop.f32.mrf.mxu0
        %v2591 = vadd.f32 0.0, %v2590
        %2592 = vdwg.mxu0
        %2593 = vmatpush.msra.mxu0 0.0
        %2594 = vmatpush.msra.mxu0 0.0
        %2595 = vmatpush.msra.mxu0 0.0
        %2596 = vmatpush.msra.mxu0 0.0
        %2597 = vmatpush.msra.mxu0 0.0
        %2598 = vmatpush.msra.mxu0 0.0
        %2599 = vmatpush.msra.mxu0 0.0
        %2600 = vmatpush.msra.mxu0 0.0
        %2601 = vmatpush.msra.mxu0 0.0
        %2602 = vmatpush.msra.mxu0 0.0
        %2603 = vmatpush.msra.mxu0 0.0
        %2604 = vmatpush.msra.mxu0 0.0
        %2605 = vmatpush.msra.mxu0 %v2445
        %2606 = vmatpush.msra.mxu0 %v2442
        %2607 = vmatpush.msra.mxu0 %v2439
        %2608 = vmatpush.msra.mxu0 %v2436
        %2609 = vmatmul.f32.gmra.mxu0 %v2479
        %v2610 = vpop.f32.mrf.mxu0
        %v2611 = vadd.f32 0.0, %v2610
        %2612 = vmatmul.f32.gmra.mxu0 %v2481
        %v2613 = vpop.f32.mrf.mxu0
        %v2614 = vadd.f32 0.0, %v2613
        %2615 = vmatmul.f32.gmra.mxu0 %v2483
        %v2616 = vpop.f32.mrf.mxu0
        %v2617 = vadd.f32 0.0, %v2616
        %2618 = vmatmul.f32.gmra.mxu0 %v2485
        %v2619 = vpop.f32.mrf.mxu0
        %v2620 = vadd.f32 0.0, %v2619
        %2621 = vmatmul.f32.gmra.mxu0 %v2487
        %v2622 = vpop.f32.mrf.mxu0
        %v2623 = vadd.f32 0.0, %v2622
        %2624 = vmatmul.f32.gmra.mxu0 %v2489
        %v2625 = vpop.f32.mrf.mxu0
        %v2626 = vadd.f32 0.0, %v2625
        %2627 = vmatmul.f32.gmra.mxu0 %v2491
        %v2628 = vpop.f32.mrf.mxu0
        %v2629 = vadd.f32 0.0, %v2628
        %2630 = vmatmul.f32.gmra.mxu0 %v2493
        %v2631 = vpop.f32.mrf.mxu0
        %v2632 = vadd.f32 0.0, %v2631
        %2633 = vmatmul.f32.gmra.mxu0 %v2495
        %v2634 = vpop.f32.mrf.mxu0
        %v2635 = vadd.f32 0.0, %v2634
        %2636 = vmatmul.f32.gmra.mxu0 %v2497
        %v2637 = vpop.f32.mrf.mxu0
        %v2638 = vadd.f32 0.0, %v2637
        %2639 = vdwg.mxu0
        %v2640 = vmul.f32 %v2517, %v787
        %v2641 = vmul.f32 %v2520, %v789
        %v2642 = vmul.f32 %v2523, %v791
        %v2643 = vmul.f32 %v2526, %v793
        %v2644 = vmul.f32 %v2529, %v795
        %v2645 = vmul.f32 %v2532, %v797
        %v2646 = vmul.f32 %v2535, %v799
        %v2647 = vmul.f32 %v2538, %v801
        %v2648 = vmul.f32 %v2541, %v803
        %v2649 = vmul.f32 %v2544, %v802
        %v2650 = vmul.f32 %v2517, %v870
        %v2651 = vmul.f32 %v2520, %v872
        %v2652 = vmul.f32 %v2523, %v874
        %v2653 = vmul.f32 %v2526, %v876
        %v2654 = vmul.f32 %v2529, %v878
        %v2655 = vmul.f32 %v2532, %v880
        %v2656 = vmul.f32 %v2535, %v882
        %v2657 = vmul.f32 %v2538, %v884
        %v2658 = vmul.f32 %v2541, %v886
        %v2659 = vmul.f32 %v2544, %v888
        %v2670 = vrot.slane %v2650, 1
        %v2671 = vsel %vm922, %v923, %v2670
        %v2672 = vrot.slane %v2651, 1
        %v2673 = vsel %vm922, %v2670, %v2672
        %v2674 = vrot.slane %v2652, 1
        %v2675 = vsel %vm922, %v2672, %v2674
        %v2676 = vrot.slane %v2653, 1
        %v2677 = vsel %vm922, %v2674, %v2676
        %v2678 = vrot.slane %v2654, 1
        %v2679 = vsel %vm922, %v2676, %v2678
        %v2680 = vrot.slane %v2655, 1
        %v2681 = vsel %vm922, %v2678, %v2680
        %v2682 = vrot.slane %v2656, 1
        %v2683 = vsel %vm922, %v2680, %v2682
        %v2684 = vrot.slane %v2657, 1
        %v2685 = vsel %vm922, %v2682, %v2684
        %v2686 = vrot.slane %v2658, 1
        %v2687 = vsel %vm922, %v2684, %v2686
        %v2688 = vrot.slane %v2659, 1
        %v2689 = vsel %vm922, %v2686, %v2688
        %2690 = vrot.lane.b32.xlu0 %v2671, 96
        %v2691 = vpop.permute.xlu0 %2690
        %2692 = vrot.lane.b32.xlu0 %v2673, 96
        %v2693 = vpop.permute.xlu0 %2692
        %2694 = vrot.lane.b32.xlu0 %v2675, 96
        %v2695 = vpop.permute.xlu0 %2694
        %2696 = vrot.lane.b32.xlu0 %v2677, 96
        %v2697 = vpop.permute.xlu0 %2696
        %2698 = vrot.lane.b32.xlu0 %v2679, 96
        %v2699 = vpop.permute.xlu0 %2698
        %2700 = vrot.lane.b32.xlu0 %v2681, 96
        %v2701 = vpop.permute.xlu0 %2700
        %2702 = vrot.lane.b32.xlu0 %v2683, 96
        %v2703 = vpop.permute.xlu0 %2702
        %2704 = vrot.lane.b32.xlu0 %v2685, 96
        %v2705 = vpop.permute.xlu0 %2704
        %2706 = vrot.lane.b32.xlu0 %v2687, 96
        %v2707 = vpop.permute.xlu0 %2706
        %2708 = vrot.lane.b32.xlu0 %v2689, 96
        %v2709 = vpop.permute.xlu0 %2708
        %2710 = vrot.lane.b32.xlu0 %v2688, 96
        %v2711 = vpop.permute.xlu0 %2710
        %v2723 = vadd.f32 %v815, %v2691
        %v2724 = vadd.f32 %v2640, %v2693
        %v2725 = vadd.f32 %v2641, %v2695
        %v2726 = vadd.f32 %v2642, %v2697
        %v2727 = vadd.f32 %v2643, %v2699
        %v2728 = vadd.f32 %v2644, %v2701
        %v2729 = vadd.f32 %v2645, %v2703
        %v2730 = vadd.f32 %v2646, %v2705
        %v2731 = vadd.f32 %v2647, %v2707
        %v2732 = vadd.f32 %v2648, %v2709
        %v2733 = vadd.f32 %v2649, %v2711
        %v2734 = vmul.f32 %v2517, %v1031
        %v2735 = vmul.f32 %v2520, %v1033
        %v2736 = vmul.f32 %v2523, %v1035
        %v2737 = vmul.f32 %v2526, %v1037
        %v2738 = vmul.f32 %v2529, %v1039
        %v2739 = vmul.f32 %v2532, %v1041
        %v2740 = vmul.f32 %v2535, %v1043
        %v2741 = vmul.f32 %v2538, %v1045
        %v2742 = vmul.f32 %v2541, %v1047
        %v2743 = vmul.f32 %v2544, %v1049
        %v2754 = vrot.slane %v2734, 2
        %v2755 = vsel %vm847, %v1083, %v2754
        %v2756 = vrot.slane %v2735, 2
        %v2757 = vsel %vm847, %v2754, %v2756
        %v2758 = vrot.slane %v2736, 2
        %v2759 = vsel %vm847, %v2756, %v2758
        %v2760 = vrot.slane %v2737, 2
        %v2761 = vsel %vm847, %v2758, %v2760
        %v2762 = vrot.slane %v2738, 2
        %v2763 = vsel %vm847, %v2760, %v2762
        %v2764 = vrot.slane %v2739, 2
        %v2765 = vsel %vm847, %v2762, %v2764
        %v2766 = vrot.slane %v2740, 2
        %v2767 = vsel %vm847, %v2764, %v2766
        %v2768 = vrot.slane %v2741, 2
        %v2769 = vsel %vm847, %v2766, %v2768
        %v2770 = vrot.slane %v2742, 2
        %v2771 = vsel %vm847, %v2768, %v2770
        %v2772 = vrot.slane %v2743, 2
        %v2773 = vsel %vm847, %v2770, %v2772
        %2774 = vrot.lane.b32.xlu0 %v2755, 64
        %v2775 = vpop.permute.xlu0 %2774
        %2776 = vrot.lane.b32.xlu0 %v2757, 64
        %v2777 = vpop.permute.xlu0 %2776
        %2778 = vrot.lane.b32.xlu0 %v2759, 64
        %v2779 = vpop.permute.xlu0 %2778
        %2780 = vrot.lane.b32.xlu0 %v2761, 64
        %v2781 = vpop.permute.xlu0 %2780
        %2782 = vrot.lane.b32.xlu0 %v2763, 64
        %v2783 = vpop.permute.xlu0 %2782
        %2784 = vrot.lane.b32.xlu0 %v2765, 64
        %v2785 = vpop.permute.xlu0 %2784
        %2786 = vrot.lane.b32.xlu0 %v2767, 64
        %v2787 = vpop.permute.xlu0 %2786
        %2788 = vrot.lane.b32.xlu0 %v2769, 64
        %v2789 = vpop.permute.xlu0 %2788
        %2790 = vrot.lane.b32.xlu0 %v2771, 64
        %v2791 = vpop.permute.xlu0 %2790
        %2792 = vrot.lane.b32.xlu0 %v2773, 64
        %v2793 = vpop.permute.xlu0 %2792
        %2794 = vrot.lane.b32.xlu0 %v2772, 64
        %v2795 = vpop.permute.xlu0 %2794
        %v2807 = vadd.f32 %v2723, %v2775
        %v2808 = vadd.f32 %v2724, %v2777
        %v2809 = vadd.f32 %v2725, %v2779
        %v2810 = vadd.f32 %v2726, %v2781
        %v2811 = vadd.f32 %v2727, %v2783
        %v2812 = vadd.f32 %v2728, %v2785
        %v2813 = vadd.f32 %v2729, %v2787
        %v2814 = vadd.f32 %v2730, %v2789
        %v2815 = vadd.f32 %v2731, %v2791
        %v2816 = vadd.f32 %v2732, %v2793
        %v2817 = vadd.f32 %v2733, %v2795
        %v2818 = vmul.f32 %v2517, %v1191
        %v2819 = vmul.f32 %v2520, %v1193
        %v2820 = vmul.f32 %v2523, %v1195
        %v2821 = vmul.f32 %v2526, %v1197
        %v2822 = vmul.f32 %v2529, %v1199
        %v2823 = vmul.f32 %v2532, %v1201
        %v2824 = vmul.f32 %v2535, %v1203
        %v2825 = vmul.f32 %v2538, %v1205
        %v2826 = vmul.f32 %v2541, %v1207
        %v2827 = vmul.f32 %v2544, %v1209
        %v2838 = vrot.slane %v2818, 2
        %v2839 = vsel %vm847, %v1243, %v2838
        %v2840 = vrot.slane %v2819, 2
        %v2841 = vsel %vm847, %v2838, %v2840
        %v2842 = vrot.slane %v2820, 2
        %v2843 = vsel %vm847, %v2840, %v2842
        %v2844 = vrot.slane %v2821, 2
        %v2845 = vsel %vm847, %v2842, %v2844
        %v2846 = vrot.slane %v2822, 2
        %v2847 = vsel %vm847, %v2844, %v2846
        %v2848 = vrot.slane %v2823, 2
        %v2849 = vsel %vm847, %v2846, %v2848
        %v2850 = vrot.slane %v2824, 2
        %v2851 = vsel %vm847, %v2848, %v2850
        %v2852 = vrot.slane %v2825, 2
        %v2853 = vsel %vm847, %v2850, %v2852
        %v2854 = vrot.slane %v2826, 2
        %v2855 = vsel %vm847, %v2852, %v2854
        %v2856 = vrot.slane %v2827, 2
        %v2857 = vsel %vm847, %v2854, %v2856
        %2858 = vrot.lane.b32.xlu0 %v2839, 32
        %v2859 = vpop.permute.xlu0 %2858
        %2860 = vrot.lane.b32.xlu0 %v2841, 32
        %v2861 = vpop.permute.xlu0 %2860
        %2862 = vrot.lane.b32.xlu0 %v2843, 32
        %v2863 = vpop.permute.xlu0 %2862
        %2864 = vrot.lane.b32.xlu0 %v2845, 32
        %v2865 = vpop.permute.xlu0 %2864
        %2866 = vrot.lane.b32.xlu0 %v2847, 32
        %v2867 = vpop.permute.xlu0 %2866
        %2868 = vrot.lane.b32.xlu0 %v2849, 32
        %v2869 = vpop.permute.xlu0 %2868
        %2870 = vrot.lane.b32.xlu0 %v2851, 32
        %v2871 = vpop.permute.xlu0 %2870
        %2872 = vrot.lane.b32.xlu0 %v2853, 32
        %v2873 = vpop.permute.xlu0 %2872
        %2874 = vrot.lane.b32.xlu0 %v2855, 32
        %v2875 = vpop.permute.xlu0 %2874
        %2876 = vrot.lane.b32.xlu0 %v2857, 32
        %v2877 = vpop.permute.xlu0 %2876
        %2878 = vrot.lane.b32.xlu0 %v2856, 32
        %v2879 = vpop.permute.xlu0 %2878
        %v2891 = vadd.f32 %v2807, %v2859
        %v2892 = vadd.f32 %v2808, %v2861
        %v2893 = vadd.f32 %v2809, %v2863
        %v2894 = vadd.f32 %v2810, %v2865
        %v2895 = vadd.f32 %v2811, %v2867
        %v2896 = vadd.f32 %v2812, %v2869
        %v2897 = vadd.f32 %v2813, %v2871
        %v2898 = vadd.f32 %v2814, %v2873
        %v2899 = vadd.f32 %v2815, %v2875
        %v2900 = vadd.f32 %v2816, %v2877
        %v2901 = vadd.f32 %v2817, %v2879
        %v2902 = vmul.f32 %v2564, %v1309
        %v2903 = vmul.f32 %v2567, %v1310
        %v2904 = vmul.f32 %v2570, %v1311
        %v2905 = vmul.f32 %v2573, %v1312
        %v2906 = vmul.f32 %v2576, %v1313
        %v2907 = vmul.f32 %v2579, %v1314
        %v2908 = vmul.f32 %v2582, %v1315
        %v2909 = vmul.f32 %v2585, %v1316
        %v2910 = vmul.f32 %v2588, %v1317
        %v2911 = vmul.f32 %v2591, %v1318
        %v2922 = vrot.slane %v2902, 3
        %v2923 = vrot.slane %v2903, 3
        %v2924 = vsel %vm784, %v2922, %v2923
        %v2925 = vrot.slane %v2904, 3
        %v2926 = vsel %vm784, %v2923, %v2925
        %v2927 = vrot.slane %v2905, 3
        %v2928 = vsel %vm784, %v2925, %v2927
        %v2929 = vrot.slane %v2906, 3
        %v2930 = vsel %vm784, %v2927, %v2929
        %v2931 = vrot.slane %v2907, 3
        %v2932 = vsel %vm784, %v2929, %v2931
        %v2933 = vrot.slane %v2908, 3
        %v2934 = vsel %vm784, %v2931, %v2933
        %v2935 = vrot.slane %v2909, 3
        %v2936 = vsel %vm784, %v2933, %v2935
        %v2937 = vrot.slane %v2910, 3
        %v2938 = vsel %vm784, %v2935, %v2937
        %v2939 = vrot.slane %v2911, 3
        %v2940 = vsel %vm784, %v2937, %v2939
        %v2952 = vadd.f32 %v2891, %v2922
        %v2953 = vadd.f32 %v2892, %v2924
        %v2954 = vadd.f32 %v2893, %v2926
        %v2955 = vadd.f32 %v2894, %v2928
        %v2956 = vadd.f32 %v2895, %v2930
        %v2957 = vadd.f32 %v2896, %v2932
        %v2958 = vadd.f32 %v2897, %v2934
        %v2959 = vadd.f32 %v2898, %v2936
        %v2960 = vadd.f32 %v2899, %v2938
        %v2961 = vadd.f32 %v2900, %v2940
        %v2962 = vadd.f32 %v2901, %v2939
        %v2963 = vmul.f32 %v2564, %v1422
        %v2964 = vmul.f32 %v2567, %v1424
        %v2965 = vmul.f32 %v2570, %v1426
        %v2966 = vmul.f32 %v2573, %v1428
        %v2967 = vmul.f32 %v2576, %v1430
        %v2968 = vmul.f32 %v2579, %v1432
        %v2969 = vmul.f32 %v2582, %v1434
        %v2970 = vmul.f32 %v2585, %v1436
        %v2971 = vmul.f32 %v2588, %v1438
        %v2972 = vmul.f32 %v2591, %v1440
        %v2983 = vrot.slane %v2963, 4
        %v2984 = vrot.slane %v2964, 4
        %v2985 = vsel %vm1476, %v2983, %v2984
        %v2986 = vrot.slane %v2965, 4
        %v2987 = vsel %vm1476, %v2984, %v2986
        %v2988 = vrot.slane %v2966, 4
        %v2989 = vsel %vm1476, %v2986, %v2988
        %v2990 = vrot.slane %v2967, 4
        %v2991 = vsel %vm1476, %v2988, %v2990
        %v2992 = vrot.slane %v2968, 4
        %v2993 = vsel %vm1476, %v2990, %v2992
        %v2994 = vrot.slane %v2969, 4
        %v2995 = vsel %vm1476, %v2992, %v2994
        %v2996 = vrot.slane %v2970, 4
        %v2997 = vsel %vm1476, %v2994, %v2996
        %v2998 = vrot.slane %v2971, 4
        %v2999 = vsel %vm1476, %v2996, %v2998
        %v3000 = vrot.slane %v2972, 4
        %v3001 = vsel %vm1476, %v2998, %v3000
        %v3002 = vsel %vm1476, %v3000, %v1496
        %3003 = vrot.lane.b32.xlu0 %v2983, 96
        %v3004 = vpop.permute.xlu0 %3003
        %3005 = vrot.lane.b32.xlu0 %v2985, 96
        %v3006 = vpop.permute.xlu0 %3005
        %3007 = vrot.lane.b32.xlu0 %v2987, 96
        %v3008 = vpop.permute.xlu0 %3007
        %3009 = vrot.lane.b32.xlu0 %v2989, 96
        %v3010 = vpop.permute.xlu0 %3009
        %3011 = vrot.lane.b32.xlu0 %v2991, 96
        %v3012 = vpop.permute.xlu0 %3011
        %3013 = vrot.lane.b32.xlu0 %v2993, 96
        %v3014 = vpop.permute.xlu0 %3013
        %3015 = vrot.lane.b32.xlu0 %v2995, 96
        %v3016 = vpop.permute.xlu0 %3015
        %3017 = vrot.lane.b32.xlu0 %v2997, 96
        %v3018 = vpop.permute.xlu0 %3017
        %3019 = vrot.lane.b32.xlu0 %v2999, 96
        %v3020 = vpop.permute.xlu0 %3019
        %3021 = vrot.lane.b32.xlu0 %v3001, 96
        %v3022 = vpop.permute.xlu0 %3021
        %3023 = vrot.lane.b32.xlu0 %v3002, 96
        %v3024 = vpop.permute.xlu0 %3023
        %v3036 = vadd.f32 %v2952, %v3004
        %v3037 = vadd.f32 %v2953, %v3006
        %v3038 = vadd.f32 %v2954, %v3008
        %v3039 = vadd.f32 %v2955, %v3010
        %v3040 = vadd.f32 %v2956, %v3012
        %v3041 = vadd.f32 %v2957, %v3014
        %v3042 = vadd.f32 %v2958, %v3016
        %v3043 = vadd.f32 %v2959, %v3018
        %v3044 = vadd.f32 %v2960, %v3020
        %v3045 = vadd.f32 %v2961, %v3022
        %v3046 = vadd.f32 %v2962, %v3024
        %v3047 = vmul.f32 %v2564, %v1583
        %v3048 = vmul.f32 %v2567, %v1585
        %v3049 = vmul.f32 %v2570, %v1587
        %v3050 = vmul.f32 %v2573, %v1589
        %v3051 = vmul.f32 %v2576, %v1591
        %v3052 = vmul.f32 %v2579, %v1593
        %v3053 = vmul.f32 %v2582, %v1595
        %v3054 = vmul.f32 %v2585, %v1597
        %v3055 = vmul.f32 %v2588, %v1599
        %v3056 = vmul.f32 %v2591, %v1601
        %v3067 = vrot.slane %v3047, 4
        %v3068 = vrot.slane %v3048, 4
        %v3069 = vsel %vm1476, %v3067, %v3068
        %v3070 = vrot.slane %v3049, 4
        %v3071 = vsel %vm1476, %v3068, %v3070
        %v3072 = vrot.slane %v3050, 4
        %v3073 = vsel %vm1476, %v3070, %v3072
        %v3074 = vrot.slane %v3051, 4
        %v3075 = vsel %vm1476, %v3072, %v3074
        %v3076 = vrot.slane %v3052, 4
        %v3077 = vsel %vm1476, %v3074, %v3076
        %v3078 = vrot.slane %v3053, 4
        %v3079 = vsel %vm1476, %v3076, %v3078
        %v3080 = vrot.slane %v3054, 4
        %v3081 = vsel %vm1476, %v3078, %v3080
        %v3082 = vrot.slane %v3055, 4
        %v3083 = vsel %vm1476, %v3080, %v3082
        %v3084 = vrot.slane %v3056, 4
        %v3085 = vsel %vm1476, %v3082, %v3084
        %v3086 = vsel %vm1476, %v3084, %v1656
        %3087 = vrot.lane.b32.xlu0 %v3067, 64
        %v3088 = vpop.permute.xlu0 %3087
        %3089 = vrot.lane.b32.xlu0 %v3069, 64
        %v3090 = vpop.permute.xlu0 %3089
        %3091 = vrot.lane.b32.xlu0 %v3071, 64
        %v3092 = vpop.permute.xlu0 %3091
        %3093 = vrot.lane.b32.xlu0 %v3073, 64
        %v3094 = vpop.permute.xlu0 %3093
        %3095 = vrot.lane.b32.xlu0 %v3075, 64
        %v3096 = vpop.permute.xlu0 %3095
        %3097 = vrot.lane.b32.xlu0 %v3077, 64
        %v3098 = vpop.permute.xlu0 %3097
        %3099 = vrot.lane.b32.xlu0 %v3079, 64
        %v3100 = vpop.permute.xlu0 %3099
        %3101 = vrot.lane.b32.xlu0 %v3081, 64
        %v3102 = vpop.permute.xlu0 %3101
        %3103 = vrot.lane.b32.xlu0 %v3083, 64
        %v3104 = vpop.permute.xlu0 %3103
        %3105 = vrot.lane.b32.xlu0 %v3085, 64
        %v3106 = vpop.permute.xlu0 %3105
        %3107 = vrot.lane.b32.xlu0 %v3086, 64
        %v3108 = vpop.permute.xlu0 %3107
        %v3120 = vadd.f32 %v3036, %v3088
        %v3121 = vadd.f32 %v3037, %v3090
        %v3122 = vadd.f32 %v3038, %v3092
        %v3123 = vadd.f32 %v3039, %v3094
        %v3124 = vadd.f32 %v3040, %v3096
        %v3125 = vadd.f32 %v3041, %v3098
        %v3126 = vadd.f32 %v3042, %v3100
        %v3127 = vadd.f32 %v3043, %v3102
        %v3128 = vadd.f32 %v3044, %v3104
        %v3129 = vadd.f32 %v3045, %v3106
        %v3130 = vadd.f32 %v3046, %v3108
        %v3131 = vmul.f32 %v2564, %v1743
        %v3132 = vmul.f32 %v2567, %v1745
        %v3133 = vmul.f32 %v2570, %v1747
        %v3134 = vmul.f32 %v2573, %v1749
        %v3135 = vmul.f32 %v2576, %v1751
        %v3136 = vmul.f32 %v2579, %v1753
        %v3137 = vmul.f32 %v2582, %v1755
        %v3138 = vmul.f32 %v2585, %v1757
        %v3139 = vmul.f32 %v2588, %v1759
        %v3140 = vmul.f32 %v2591, %v1761
        %v3151 = vrot.slane %v3131, 5
        %v3152 = vrot.slane %v3132, 5
        %v3153 = vsel %vm1797, %v3151, %v3152
        %v3154 = vrot.slane %v3133, 5
        %v3155 = vsel %vm1797, %v3152, %v3154
        %v3156 = vrot.slane %v3134, 5
        %v3157 = vsel %vm1797, %v3154, %v3156
        %v3158 = vrot.slane %v3135, 5
        %v3159 = vsel %vm1797, %v3156, %v3158
        %v3160 = vrot.slane %v3136, 5
        %v3161 = vsel %vm1797, %v3158, %v3160
        %v3162 = vrot.slane %v3137, 5
        %v3163 = vsel %vm1797, %v3160, %v3162
        %v3164 = vrot.slane %v3138, 5
        %v3165 = vsel %vm1797, %v3162, %v3164
        %v3166 = vrot.slane %v3139, 5
        %v3167 = vsel %vm1797, %v3164, %v3166
        %v3168 = vrot.slane %v3140, 5
        %v3169 = vsel %vm1797, %v3166, %v3168
        %v3170 = vsel %vm1797, %v3168, %v1817
        %3171 = vrot.lane.b32.xlu0 %v3151, 32
        %v3172 = vpop.permute.xlu0 %3171
        %3173 = vrot.lane.b32.xlu0 %v3153, 32
        %v3174 = vpop.permute.xlu0 %3173
        %3175 = vrot.lane.b32.xlu0 %v3155, 32
        %v3176 = vpop.permute.xlu0 %3175
        %3177 = vrot.lane.b32.xlu0 %v3157, 32
        %v3178 = vpop.permute.xlu0 %3177
        %3179 = vrot.lane.b32.xlu0 %v3159, 32
        %v3180 = vpop.permute.xlu0 %3179
        %3181 = vrot.lane.b32.xlu0 %v3161, 32
        %v3182 = vpop.permute.xlu0 %3181
        %3183 = vrot.lane.b32.xlu0 %v3163, 32
        %v3184 = vpop.permute.xlu0 %3183
        %3185 = vrot.lane.b32.xlu0 %v3165, 32
        %v3186 = vpop.permute.xlu0 %3185
        %3187 = vrot.lane.b32.xlu0 %v3167, 32
        %v3188 = vpop.permute.xlu0 %3187
        %3189 = vrot.lane.b32.xlu0 %v3169, 32
        %v3190 = vpop.permute.xlu0 %3189
        %3191 = vrot.lane.b32.xlu0 %v3170, 32
        %v3192 = vpop.permute.xlu0 %3191
        %v3204 = vadd.f32 %v3120, %v3172
        %v3205 = vadd.f32 %v3121, %v3174
        %v3206 = vadd.f32 %v3122, %v3176
        %v3207 = vadd.f32 %v3123, %v3178
        %v3208 = vadd.f32 %v3124, %v3180
        %v3209 = vadd.f32 %v3125, %v3182
        %v3210 = vadd.f32 %v3126, %v3184
        %v3211 = vadd.f32 %v3127, %v3186
        %v3212 = vadd.f32 %v3128, %v3188
        %v3213 = vadd.f32 %v3129, %v3190
        %v3214 = vadd.f32 %v3130, %v3192
        %v3215 = vmul.f32 %v2611, %v1884
        %v3216 = vmul.f32 %v2614, %v1886
        %v3217 = vmul.f32 %v2617, %v1888
        %v3218 = vmul.f32 %v2620, %v1890
        %v3219 = vmul.f32 %v2623, %v1892
        %v3220 = vmul.f32 %v2626, %v1894
        %v3221 = vmul.f32 %v2629, %v1896
        %v3222 = vmul.f32 %v2632, %v1898
        %v3223 = vmul.f32 %v2635, %v1900
        %v3224 = vmul.f32 %v2638, %v1902
        %v3235 = vrot.slane %v3215, 6
        %v3236 = vrot.slane %v3216, 6
        %v3237 = vsel %vm616, %v3235, %v3236
        %v3238 = vrot.slane %v3217, 6
        %v3239 = vsel %vm616, %v3236, %v3238
        %v3240 = vrot.slane %v3218, 6
        %v3241 = vsel %vm616, %v3238, %v3240
        %v3242 = vrot.slane %v3219, 6
        %v3243 = vsel %vm616, %v3240, %v3242
        %v3244 = vrot.slane %v3220, 6
        %v3245 = vsel %vm616, %v3242, %v3244
        %v3246 = vrot.slane %v3221, 6
        %v3247 = vsel %vm616, %v3244, %v3246
        %v3248 = vrot.slane %v3222, 6
        %v3249 = vsel %vm616, %v3246, %v3248
        %v3250 = vrot.slane %v3223, 6
        %v3251 = vsel %vm616, %v3248, %v3250
        %v3252 = vrot.slane %v3224, 6
        %v3253 = vsel %vm616, %v3250, %v3252
        %v3254 = vsel %vm616, %v3252, %v1955
        %v3266 = vadd.f32 %v3204, %v3235
        %v3267 = vadd.f32 %v3205, %v3237
        %v3268 = vadd.f32 %v3206, %v3239
        %v3269 = vadd.f32 %v3207, %v3241
        %v3270 = vadd.f32 %v3208, %v3243
        %v3271 = vadd.f32 %v3209, %v3245
        %v3272 = vadd.f32 %v3210, %v3247
        %v3273 = vadd.f32 %v3211, %v3249
        %v3274 = vadd.f32 %v3212, %v3251
        %v3275 = vadd.f32 %v3213, %v3253
        %v3276 = vadd.f32 %v3214, %v3254
        %v3277 = vld [vmem:[%s6] sm:$0x1]
        %v3279 = vperm.slane %v3277, 0
        %v3281 = vadd.f32 %v3266, %v3279
        %v3282 = vadd.f32 %v3267, %v3279
        %v3283 = vadd.f32 %v3268, %v3279
        %v3284 = vadd.f32 %v3269, %v3279
        %v3285 = vadd.f32 %v3270, %v3279
        %v3286 = vadd.f32 %v3271, %v3279
        %v3287 = vadd.f32 %v3272, %v3279
        %v3288 = vadd.f32 %v3273, %v3279
        %v3289 = vadd.f32 %v3274, %v3279
        %v3290 = vadd.f32 %v3275, %v3279
        %v3291 = vadd.f32 %v3276, %v3279
        %v3292 = vmul.f32 %v3281, 0.5
        %v3293 = vmul.f32 %v3282, 0.5
        %v3294 = vmul.f32 %v3283, 0.5
        %v3295 = vmul.f32 %v3284, 0.5
        %v3296 = vmul.f32 %v3285, 0.5
        %v3297 = vmul.f32 %v3286, 0.5
        %v3298 = vmul.f32 %v3287, 0.5
        %v3299 = vmul.f32 %v3288, 0.5
        %v3300 = vmul.f32 %v3289, 0.5
        %v3301 = vmul.f32 %v3290, 0.5
        %v3302 = vmul.f32 %v3291, 0.5
        %v3303 = vmul.f32 %v3281, 0.70710677
        %v3304 = vmul.f32 %v3282, 0.70710677
        %v3305 = vmul.f32 %v3283, 0.70710677
        %v3306 = vmul.f32 %v3284, 0.70710677
        %v3307 = vmul.f32 %v3285, 0.70710677
        %v3308 = vmul.f32 %v3286, 0.70710677
        %v3309 = vmul.f32 %v3287, 0.70710677
        %v3310 = vmul.f32 %v3288, 0.70710677
        %v3311 = vmul.f32 %v3289, 0.70710677
        %v3312 = vmul.f32 %v3290, 0.70710677
        %v3313 = vmul.f32 %v3291, 0.70710677
        %v3314 = vand.u32 2147483647, %v3303
        %v3315 = vand.u32 2147483647, %v3304
        %v3316 = vand.u32 2147483647, %v3305
        %v3317 = vand.u32 2147483647, %v3306
        %v3318 = vand.u32 2147483647, %v3307
        %v3319 = vand.u32 2147483647, %v3308
        %v3320 = vand.u32 2147483647, %v3309
        %v3321 = vand.u32 2147483647, %v3310
        %v3322 = vand.u32 2147483647, %v3311
        %v3323 = vand.u32 2147483647, %v3312
        %v3324 = vand.u32 2147483647, %v3313
        %v3325 = vmul.f32 %v3314, 0.3275911
        %v3326 = vmul.f32 %v3315, 0.3275911
        %v3327 = vmul.f32 %v3316, 0.3275911
        %v3328 = vmul.f32 %v3317, 0.3275911
        %v3329 = vmul.f32 %v3318, 0.3275911
        %v3330 = vmul.f32 %v3319, 0.3275911
        %v3331 = vmul.f32 %v3320, 0.3275911
        %v3332 = vmul.f32 %v3321, 0.3275911
        %v3333 = vmul.f32 %v3322, 0.3275911
        %v3334 = vmul.f32 %v3323, 0.3275911
        %v3335 = vmul.f32 %v3324, 0.3275911
        %v3336 = vadd.f32 %v3325, 1.0
        %v3337 = vadd.f32 %v3326, 1.0
        %v3338 = vadd.f32 %v3327, 1.0
        %v3339 = vadd.f32 %v3328, 1.0
        %v3340 = vadd.f32 %v3329, 1.0
        %v3341 = vadd.f32 %v3330, 1.0
        %v3342 = vadd.f32 %v3331, 1.0
        %v3343 = vadd.f32 %v3332, 1.0
        %v3344 = vadd.f32 %v3333, 1.0
        %v3345 = vadd.f32 %v3334, 1.0
        %v3346 = vadd.f32 %v3335, 1.0
        %v3347 = vrcp.pop %v3336
        %v3348 = vmul.f32 %v3336, %v3347
        %v3349 = vsub.f32 1.0, %v3348
        %v3350 = vmul.f32 %v3347, %v3349
        %v3351 = vadd.f32 %v3347, %v3350
        %vm3352 = vweird.f32 %v3336
        %vm3353 = vweird.f32 %v3347
        %vm3354 = vmor %vm3352, %vm3353
        %v3355 = vsel %vm3354, %v3347, %v3351
        %v3356 = vand.u32 2147483647, %v3336
        %vm3357 = vcmp.eq.f32.partialorder %v3356, 8.507059e+37
        %v3358 = vand.u32 %v3336, 2147483648
        %v3359 = vor.u32 1.1754944e-38, %v3358
        %v3360 = vsel %vm3357, %v3359, %v3355
        %v3361 = vmul.f32 1.0, %v3360
        %v3362 = vrcp.pop %v3337
        %v3363 = vmul.f32 %v3337, %v3362
        %v3364 = vsub.f32 1.0, %v3363
        %v3365 = vmul.f32 %v3362, %v3364
        %v3366 = vadd.f32 %v3362, %v3365
        %vm3367 = vweird.f32 %v3337
        %vm3368 = vweird.f32 %v3362
        %vm3369 = vmor %vm3367, %vm3368
        %v3370 = vsel %vm3369, %v3362, %v3366
        %v3371 = vand.u32 2147483647, %v3337
        %vm3372 = vcmp.eq.f32.partialorder %v3371, 8.507059e+37
        %v3373 = vand.u32 %v3337, 2147483648
        %v3374 = vor.u32 1.1754944e-38, %v3373
        %v3375 = vsel %vm3372, %v3374, %v3370
        %v3376 = vmul.f32 1.0, %v3375
        %v3377 = vrcp.pop %v3338
        %v3378 = vmul.f32 %v3338, %v3377
        %v3379 = vsub.f32 1.0, %v3378
        %v3380 = vmul.f32 %v3377, %v3379
        %v3381 = vadd.f32 %v3377, %v3380
        %vm3382 = vweird.f32 %v3338
        %vm3383 = vweird.f32 %v3377
        %vm3384 = vmor %vm3382, %vm3383
        %v3385 = vsel %vm3384, %v3377, %v3381
        %v3386 = vand.u32 2147483647, %v3338
        %vm3387 = vcmp.eq.f32.partialorder %v3386, 8.507059e+37
        %v3388 = vand.u32 %v3338, 2147483648
        %v3389 = vor.u32 1.1754944e-38, %v3388
        %v3390 = vsel %vm3387, %v3389, %v3385
        %v3391 = vmul.f32 1.0, %v3390
        %v3392 = vrcp.pop %v3339
        %v3393 = vmul.f32 %v3339, %v3392
        %v3394 = vsub.f32 1.0, %v3393
        %v3395 = vmul.f32 %v3392, %v3394
        %v3396 = vadd.f32 %v3392, %v3395
        %vm3397 = vweird.f32 %v3339
        %vm3398 = vweird.f32 %v3392
        %vm3399 = vmor %vm3397, %vm3398
        %v3400 = vsel %vm3399, %v3392, %v3396
        %v3401 = vand.u32 2147483647, %v3339
        %vm3402 = vcmp.eq.f32.partialorder %v3401, 8.507059e+37
        %v3403 = vand.u32 %v3339, 2147483648
        %v3404 = vor.u32 1.1754944e-38, %v3403
        %v3405 = vsel %vm3402, %v3404, %v3400
        %v3406 = vmul.f32 1.0, %v3405
        %v3407 = vrcp.pop %v3340
        %v3408 = vmul.f32 %v3340, %v3407
        %v3409 = vsub.f32 1.0, %v3408
        %v3410 = vmul.f32 %v3407, %v3409
        %v3411 = vadd.f32 %v3407, %v3410
        %vm3412 = vweird.f32 %v3340
        %vm3413 = vweird.f32 %v3407
        %vm3414 = vmor %vm3412, %vm3413
        %v3415 = vsel %vm3414, %v3407, %v3411
        %v3416 = vand.u32 2147483647, %v3340
        %vm3417 = vcmp.eq.f32.partialorder %v3416, 8.507059e+37
        %v3418 = vand.u32 %v3340, 2147483648
        %v3419 = vor.u32 1.1754944e-38, %v3418
        %v3420 = vsel %vm3417, %v3419, %v3415
        %v3421 = vmul.f32 1.0, %v3420
        %v3422 = vrcp.pop %v3341
        %v3423 = vmul.f32 %v3341, %v3422
        %v3424 = vsub.f32 1.0, %v3423
        %v3425 = vmul.f32 %v3422, %v3424
        %v3426 = vadd.f32 %v3422, %v3425
        %vm3427 = vweird.f32 %v3341
        %vm3428 = vweird.f32 %v3422
        %vm3429 = vmor %vm3427, %vm3428
        %v3430 = vsel %vm3429, %v3422, %v3426
        %v3431 = vand.u32 2147483647, %v3341
        %vm3432 = vcmp.eq.f32.partialorder %v3431, 8.507059e+37
        %v3433 = vand.u32 %v3341, 2147483648
        %v3434 = vor.u32 1.1754944e-38, %v3433
        %v3435 = vsel %vm3432, %v3434, %v3430
        %v3436 = vmul.f32 1.0, %v3435
        %v3437 = vrcp.pop %v3342
        %v3438 = vmul.f32 %v3342, %v3437
        %v3439 = vsub.f32 1.0, %v3438
        %v3440 = vmul.f32 %v3437, %v3439
        %v3441 = vadd.f32 %v3437, %v3440
        %vm3442 = vweird.f32 %v3342
        %vm3443 = vweird.f32 %v3437
        %vm3444 = vmor %vm3442, %vm3443
        %v3445 = vsel %vm3444, %v3437, %v3441
        %v3446 = vand.u32 2147483647, %v3342
        %vm3447 = vcmp.eq.f32.partialorder %v3446, 8.507059e+37
        %v3448 = vand.u32 %v3342, 2147483648
        %v3449 = vor.u32 1.1754944e-38, %v3448
        %v3450 = vsel %vm3447, %v3449, %v3445
        %v3451 = vmul.f32 1.0, %v3450
        %v3452 = vrcp.pop %v3343
        %v3453 = vmul.f32 %v3343, %v3452
        %v3454 = vsub.f32 1.0, %v3453
        %v3455 = vmul.f32 %v3452, %v3454
        %v3456 = vadd.f32 %v3452, %v3455
        %vm3457 = vweird.f32 %v3343
        %vm3458 = vweird.f32 %v3452
        %vm3459 = vmor %vm3457, %vm3458
        %v3460 = vsel %vm3459, %v3452, %v3456
        %v3461 = vand.u32 2147483647, %v3343
        %vm3462 = vcmp.eq.f32.partialorder %v3461, 8.507059e+37
        %v3463 = vand.u32 %v3343, 2147483648
        %v3464 = vor.u32 1.1754944e-38, %v3463
        %v3465 = vsel %vm3462, %v3464, %v3460
        %v3466 = vmul.f32 1.0, %v3465
        %v3467 = vrcp.pop %v3344
        %v3468 = vmul.f32 %v3344, %v3467
        %v3469 = vsub.f32 1.0, %v3468
        %v3470 = vmul.f32 %v3467, %v3469
        %v3471 = vadd.f32 %v3467, %v3470
        %vm3472 = vweird.f32 %v3344
        %vm3473 = vweird.f32 %v3467
        %vm3474 = vmor %vm3472, %vm3473
        %v3475 = vsel %vm3474, %v3467, %v3471
        %v3476 = vand.u32 2147483647, %v3344
        %vm3477 = vcmp.eq.f32.partialorder %v3476, 8.507059e+37
        %v3478 = vand.u32 %v3344, 2147483648
        %v3479 = vor.u32 1.1754944e-38, %v3478
        %v3480 = vsel %vm3477, %v3479, %v3475
        %v3481 = vmul.f32 1.0, %v3480
        %v3482 = vrcp.pop %v3345
        %v3483 = vmul.f32 %v3345, %v3482
        %v3484 = vsub.f32 1.0, %v3483
        %v3485 = vmul.f32 %v3482, %v3484
        %v3486 = vadd.f32 %v3482, %v3485
        %vm3487 = vweird.f32 %v3345
        %vm3488 = vweird.f32 %v3482
        %vm3489 = vmor %vm3487, %vm3488
        %v3490 = vsel %vm3489, %v3482, %v3486
        %v3491 = vand.u32 2147483647, %v3345
        %vm3492 = vcmp.eq.f32.partialorder %v3491, 8.507059e+37
        %v3493 = vand.u32 %v3345, 2147483648
        %v3494 = vor.u32 1.1754944e-38, %v3493
        %v3495 = vsel %vm3492, %v3494, %v3490
        %v3496 = vmul.f32 1.0, %v3495
        %v3497 = vrcp.pop %v3346
        %v3498 = vmul.f32 %v3346, %v3497
        %v3499 = vsub.f32 1.0, %v3498
        %v3500 = vmul.f32 %v3497, %v3499
        %v3501 = vadd.f32 %v3497, %v3500
        %vm3502 = vweird.f32 %v3346
        %vm3503 = vweird.f32 %v3497
        %vm3504 = vmor %vm3502, %vm3503
        %v3505 = vsel %vm3504, %v3497, %v3501
        %v3506 = vand.u32 2147483647, %v3346
        %vm3507 = vcmp.eq.f32.partialorder %v3506, 8.507059e+37
        %v3508 = vand.u32 %v3346, 2147483648
        %v3509 = vor.u32 1.1754944e-38, %v3508
        %v3510 = vsel %vm3507, %v3509, %v3505
        %v3511 = vmul.f32 1.0, %v3510
        %v3512 = vmul.f32 %v3361, 1.0614054
        %v3513 = vmul.f32 %v3376, 1.0614054
        %v3514 = vmul.f32 %v3391, 1.0614054
        %v3515 = vmul.f32 %v3406, 1.0614054
        %v3516 = vmul.f32 %v3421, 1.0614054
        %v3517 = vmul.f32 %v3436, 1.0614054
        %v3518 = vmul.f32 %v3451, 1.0614054
        %v3519 = vmul.f32 %v3466, 1.0614054
        %v3520 = vmul.f32 %v3481, 1.0614054
        %v3521 = vmul.f32 %v3496, 1.0614054
        %v3522 = vmul.f32 %v3511, 1.0614054
        %v3523 = vadd.f32 %v3512, -1.4531521
        %v3524 = vadd.f32 %v3513, -1.4531521
        %v3525 = vadd.f32 %v3514, -1.4531521
        %v3526 = vadd.f32 %v3515, -1.4531521
        %v3527 = vadd.f32 %v3516, -1.4531521
        %v3528 = vadd.f32 %v3517, -1.4531521
        %v3529 = vadd.f32 %v3518, -1.4531521
        %v3530 = vadd.f32 %v3519, -1.4531521
        %v3531 = vadd.f32 %v3520, -1.4531521
        %v3532 = vadd.f32 %v3521, -1.4531521
        %v3533 = vadd.f32 %v3522, -1.4531521
        %v3534 = vmul.f32 %v3523, %v3361
        %v3535 = vmul.f32 %v3524, %v3376
        %v3536 = vmul.f32 %v3525, %v3391
        %v3537 = vmul.f32 %v3526, %v3406
        %v3538 = vmul.f32 %v3527, %v3421
        %v3539 = vmul.f32 %v3528, %v3436
        %v3540 = vmul.f32 %v3529, %v3451
        %v3541 = vmul.f32 %v3530, %v3466
        %v3542 = vmul.f32 %v3531, %v3481
        %v3543 = vmul.f32 %v3532, %v3496
        %v3544 = vmul.f32 %v3533, %v3511
        %v3545 = vadd.f32 %v3534, 1.4214138
        %v3546 = vadd.f32 %v3535, 1.4214138
        %v3547 = vadd.f32 %v3536, 1.4214138
        %v3548 = vadd.f32 %v3537, 1.4214138
        %v3549 = vadd.f32 %v3538, 1.4214138
        %v3550 = vadd.f32 %v3539, 1.4214138
        %v3551 = vadd.f32 %v3540, 1.4214138
        %v3552 = vadd.f32 %v3541, 1.4214138
        %v3553 = vadd.f32 %v3542, 1.4214138
        %v3554 = vadd.f32 %v3543, 1.4214138
        %v3555 = vadd.f32 %v3544, 1.4214138
        %v3556 = vmul.f32 %v3545, %v3361
        %v3557 = vmul.f32 %v3546, %v3376
        %v3558 = vmul.f32 %v3547, %v3391
        %v3559 = vmul.f32 %v3548, %v3406
        %v3560 = vmul.f32 %v3549, %v3421
        %v3561 = vmul.f32 %v3550, %v3436
        %v3562 = vmul.f32 %v3551, %v3451
        %v3563 = vmul.f32 %v3552, %v3466
        %v3564 = vmul.f32 %v3553, %v3481
        %v3565 = vmul.f32 %v3554, %v3496
        %v3566 = vmul.f32 %v3555, %v3511
        %v3567 = vadd.f32 %v3556, -0.28449672
        %v3568 = vadd.f32 %v3557, -0.28449672
        %v3569 = vadd.f32 %v3558, -0.28449672
        %v3570 = vadd.f32 %v3559, -0.28449672
        %v3571 = vadd.f32 %v3560, -0.28449672
        %v3572 = vadd.f32 %v3561, -0.28449672
        %v3573 = vadd.f32 %v3562, -0.28449672
        %v3574 = vadd.f32 %v3563, -0.28449672
        %v3575 = vadd.f32 %v3564, -0.28449672
        %v3576 = vadd.f32 %v3565, -0.28449672
        %v3577 = vadd.f32 %v3566, -0.28449672
        %v3578 = vmul.f32 %v3567, %v3361
        %v3579 = vmul.f32 %v3568, %v3376
        %v3580 = vmul.f32 %v3569, %v3391
        %v3581 = vmul.f32 %v3570, %v3406
        %v3582 = vmul.f32 %v3571, %v3421
        %v3583 = vmul.f32 %v3572, %v3436
        %v3584 = vmul.f32 %v3573, %v3451
        %v3585 = vmul.f32 %v3574, %v3466
        %v3586 = vmul.f32 %v3575, %v3481
        %v3587 = vmul.f32 %v3576, %v3496
        %v3588 = vmul.f32 %v3577, %v3511
        %v3589 = vadd.f32 %v3578, 0.2548296
        %v3590 = vadd.f32 %v3579, 0.2548296
        %v3591 = vadd.f32 %v3580, 0.2548296
        %v3592 = vadd.f32 %v3581, 0.2548296
        %v3593 = vadd.f32 %v3582, 0.2548296
        %v3594 = vadd.f32 %v3583, 0.2548296
        %v3595 = vadd.f32 %v3584, 0.2548296
        %v3596 = vadd.f32 %v3585, 0.2548296
        %v3597 = vadd.f32 %v3586, 0.2548296
        %v3598 = vadd.f32 %v3587, 0.2548296
        %v3599 = vadd.f32 %v3588, 0.2548296
        %v3600 = vmul.f32 %v3589, %v3361
        %v3601 = vmul.f32 %v3590, %v3376
        %v3602 = vmul.f32 %v3591, %v3391
        %v3603 = vmul.f32 %v3592, %v3406
        %v3604 = vmul.f32 %v3593, %v3421
        %v3605 = vmul.f32 %v3594, %v3436
        %v3606 = vmul.f32 %v3595, %v3451
        %v3607 = vmul.f32 %v3596, %v3466
        %v3608 = vmul.f32 %v3597, %v3481
        %v3609 = vmul.f32 %v3598, %v3496
        %v3610 = vmul.f32 %v3599, %v3511
        %v3611 = vsub.f32 0.0, %v3314
        %v3612 = vsub.f32 0.0, %v3315
        %v3613 = vsub.f32 0.0, %v3316
        %v3614 = vsub.f32 0.0, %v3317
        %v3615 = vsub.f32 0.0, %v3318
        %v3616 = vsub.f32 0.0, %v3319
        %v3617 = vsub.f32 0.0, %v3320
        %v3618 = vsub.f32 0.0, %v3321
        %v3619 = vsub.f32 0.0, %v3322
        %v3620 = vsub.f32 0.0, %v3323
        %v3621 = vsub.f32 0.0, %v3324
        %v3622 = vmul.f32 %v3611, %v3314
        %v3623 = vmul.f32 %v3612, %v3315
        %v3624 = vmul.f32 %v3613, %v3316
        %v3625 = vmul.f32 %v3614, %v3317
        %v3626 = vmul.f32 %v3615, %v3318
        %v3627 = vmul.f32 %v3616, %v3319
        %v3628 = vmul.f32 %v3617, %v3320
        %v3629 = vmul.f32 %v3618, %v3321
        %v3630 = vmul.f32 %v3619, %v3322
        %v3631 = vmul.f32 %v3620, %v3323
        %v3632 = vmul.f32 %v3621, %v3324
        %v3633 = vmul.f32 %v3622, 1.442695
        %v3634 = vpow.pop %v3633
        %v3635 = vmul.f32 %v3623, 1.442695
        %v3636 = vpow.pop %v3635
        %v3637 = vmul.f32 %v3624, 1.442695
        %v3638 = vpow.pop %v3637
        %v3639 = vmul.f32 %v3625, 1.442695
        %v3640 = vpow.pop %v3639
        %v3641 = vmul.f32 %v3626, 1.442695
        %v3642 = vpow.pop %v3641
        %v3643 = vmul.f32 %v3627, 1.442695
        %v3644 = vpow.pop %v3643
        %v3645 = vmul.f32 %v3628, 1.442695
        %v3646 = vpow.pop %v3645
        %v3647 = vmul.f32 %v3629, 1.442695
        %v3648 = vpow.pop %v3647
        %v3649 = vmul.f32 %v3630, 1.442695
        %v3650 = vpow.pop %v3649
        %v3651 = vmul.f32 %v3631, 1.442695
        %v3652 = vpow.pop %v3651
        %v3653 = vmul.f32 %v3632, 1.442695
        %v3654 = vpow.pop %v3653
        %v3655 = vmul.f32 %v3600, %v3634
        %v3656 = vmul.f32 %v3601, %v3636
        %v3657 = vmul.f32 %v3602, %v3638
        %v3658 = vmul.f32 %v3603, %v3640
        %v3659 = vmul.f32 %v3604, %v3642
        %v3660 = vmul.f32 %v3605, %v3644
        %v3661 = vmul.f32 %v3606, %v3646
        %v3662 = vmul.f32 %v3607, %v3648
        %v3663 = vmul.f32 %v3608, %v3650
        %v3664 = vmul.f32 %v3609, %v3652
        %v3665 = vmul.f32 %v3610, %v3654
        %v3666 = vsub.f32 1.0, %v3655
        %v3667 = vsub.f32 1.0, %v3656
        %v3668 = vsub.f32 1.0, %v3657
        %v3669 = vsub.f32 1.0, %v3658
        %v3670 = vsub.f32 1.0, %v3659
        %v3671 = vsub.f32 1.0, %v3660
        %v3672 = vsub.f32 1.0, %v3661
        %v3673 = vsub.f32 1.0, %v3662
        %v3674 = vsub.f32 1.0, %v3663
        %v3675 = vsub.f32 1.0, %v3664
        %v3676 = vsub.f32 1.0, %v3665
        %vm3677 = vcmp.lt.f32.partialorder %v3303, 0.0
        %vm3678 = vcmp.lt.f32.partialorder %v3304, 0.0
        %vm3679 = vcmp.lt.f32.partialorder %v3305, 0.0
        %vm3680 = vcmp.lt.f32.partialorder %v3306, 0.0
        %vm3681 = vcmp.lt.f32.partialorder %v3307, 0.0
        %vm3682 = vcmp.lt.f32.partialorder %v3308, 0.0
        %vm3683 = vcmp.lt.f32.partialorder %v3309, 0.0
        %vm3684 = vcmp.lt.f32.partialorder %v3310, 0.0
        %vm3685 = vcmp.lt.f32.partialorder %v3311, 0.0
        %vm3686 = vcmp.lt.f32.partialorder %v3312, 0.0
        %vm3687 = vcmp.lt.f32.partialorder %v3313, 0.0
        %v3688 = vsub.f32 0.0, %v3666
        %v3689 = vsub.f32 0.0, %v3667
        %v3690 = vsub.f32 0.0, %v3668
        %v3691 = vsub.f32 0.0, %v3669
        %v3692 = vsub.f32 0.0, %v3670
        %v3693 = vsub.f32 0.0, %v3671
        %v3694 = vsub.f32 0.0, %v3672
        %v3695 = vsub.f32 0.0, %v3673
        %v3696 = vsub.f32 0.0, %v3674
        %v3697 = vsub.f32 0.0, %v3675
        %v3698 = vsub.f32 0.0, %v3676
        %v3699 = vsel %vm3677, %v3688, %v3666
        %v3700 = vsel %vm3678, %v3689, %v3667
        %v3701 = vsel %vm3679, %v3690, %v3668
        %v3702 = vsel %vm3680, %v3691, %v3669
        %v3703 = vsel %vm3681, %v3692, %v3670
        %v3704 = vsel %vm3682, %v3693, %v3671
        %v3705 = vsel %vm3683, %v3694, %v3672
        %v3706 = vsel %vm3684, %v3695, %v3673
        %v3707 = vsel %vm3685, %v3696, %v3674
        %v3708 = vsel %vm3686, %v3697, %v3675
        %v3709 = vsel %vm3687, %v3698, %v3676
        %v3710 = vadd.f32 %v3699, 1.0
        %v3711 = vadd.f32 %v3700, 1.0
        %v3712 = vadd.f32 %v3701, 1.0
        %v3713 = vadd.f32 %v3702, 1.0
        %v3714 = vadd.f32 %v3703, 1.0
        %v3715 = vadd.f32 %v3704, 1.0
        %v3716 = vadd.f32 %v3705, 1.0
        %v3717 = vadd.f32 %v3706, 1.0
        %v3718 = vadd.f32 %v3707, 1.0
        %v3719 = vadd.f32 %v3708, 1.0
        %v3720 = vadd.f32 %v3709, 1.0
        %v3721 = vmul.f32 %v3292, %v3710
        %v3722 = vmul.f32 %v3293, %v3711
        %v3723 = vmul.f32 %v3294, %v3712
        %v3724 = vmul.f32 %v3295, %v3713
        %v3725 = vmul.f32 %v3296, %v3714
        %v3726 = vmul.f32 %v3297, %v3715
        %v3727 = vmul.f32 %v3298, %v3716
        %v3728 = vmul.f32 %v3299, %v3717
        %v3729 = vmul.f32 %v3300, %v3718
        %v3730 = vmul.f32 %v3301, %v3719
        %v3731 = vmul.f32 %v3302, %v3720
        %v3732 = vld [vmem:[%s7] sm:$0xff]
        %v3733 = vld [vmem:[%s7 + $0x8] sm:$0xff]
        %v3734 = vld [vmem:[%s7 + $0x10] sm:$0xff]
        %v3735 = vld [vmem:[%s7 + $0x18] sm:$0xff]
        %v3736 = vld [vmem:[%s7 + $0x20] sm:$0xff]
        %v3737 = vld [vmem:[%s7 + $0x28] sm:$0xff]
        %v3738 = vld [vmem:[%s7 + $0x30] sm:$0xff]
        %v3739 = vld [vmem:[%s7 + $0x38] sm:$0xff]
        %v3740 = vld [vmem:[%s7 + $0x40] sm:$0xff]
        %v3741 = vld [vmem:[%s7 + $0x48] sm:$0xff]
        %v3742 = vld [vmem:[%s7 + $0x50] sm:$0xff]
        %v3743 = vld [vmem:[%s7 + $0x58] sm:$0xff]
        %v3755 = vrot.slane %v3721, 5
        %v3756 = vrot.slane %v3722, 5
        %v3757 = vsel %vm1797, %v3755, %v3756
        %v3758 = vrot.slane %v3723, 5
        %v3759 = vsel %vm1797, %v3756, %v3758
        %v3760 = vrot.slane %v3724, 5
        %v3761 = vsel %vm1797, %v3758, %v3760
        %v3762 = vrot.slane %v3725, 5
        %v3763 = vsel %vm1797, %v3760, %v3762
        %v3764 = vrot.slane %v3726, 5
        %v3765 = vsel %vm1797, %v3762, %v3764
        %v3766 = vrot.slane %v3727, 5
        %v3767 = vsel %vm1797, %v3764, %v3766
        %v3768 = vrot.slane %v3728, 5
        %v3769 = vsel %vm1797, %v3766, %v3768
        %v3770 = vrot.slane %v3729, 5
        %v3771 = vsel %vm1797, %v3768, %v3770
        %v3772 = vrot.slane %v3730, 5
        %v3773 = vsel %vm1797, %v3770, %v3772
        %v3774 = vrot.slane %v3731, 5
        %v3775 = vsel %vm1797, %v3772, %v3774
        %v3776 = vsel %vm2478, %v3757, 0
        %v3778 = vsel %vm2478, %v3759, 0
        %v3780 = vsel %vm2478, %v3761, 0
        %v3782 = vsel %vm2478, %v3763, 0
        %v3784 = vsel %vm2478, %v3765, 0
        %v3786 = vsel %vm2478, %v3767, 0
        %v3788 = vsel %vm2478, %v3769, 0
        %v3790 = vsel %vm2478, %v3771, 0
        %v3792 = vsel %vm2478, %v3773, 0
        %v3794 = vsel %vm2478, %v3775, 0
        %3796 = vmatpush.msra.mxu0 0.0
        %3797 = vmatpush.msra.mxu0 0.0
        %3798 = vmatpush.msra.mxu0 0.0
        %3799 = vmatpush.msra.mxu0 0.0
        %3800 = vmatpush.msra.mxu0 0.0
        %3801 = vmatpush.msra.mxu0 0.0
        %3802 = vmatpush.msra.mxu0 0.0
        %3803 = vmatpush.msra.mxu0 0.0
        %3804 = vmatpush.msra.mxu0 0.0
        %3805 = vmatpush.msra.mxu0 0.0
        %3806 = vmatpush.msra.mxu0 0.0
        %3807 = vmatpush.msra.mxu0 0.0
        %3808 = vmatpush.msra.mxu0 %v3741
        %3809 = vmatpush.msra.mxu0 %v3738
        %3810 = vmatpush.msra.mxu0 %v3735
        %3811 = vmatpush.msra.mxu0 %v3732
        %3812 = vmatmul.f32.gmra.mxu0 %v3776
        %v3813 = vpop.f32.mrf.mxu0
        %v3814 = vadd.f32 0.0, %v3813
        %3815 = vmatmul.f32.gmra.mxu0 %v3778
        %v3816 = vpop.f32.mrf.mxu0
        %v3817 = vadd.f32 0.0, %v3816
        %3818 = vmatmul.f32.gmra.mxu0 %v3780
        %v3819 = vpop.f32.mrf.mxu0
        %v3820 = vadd.f32 0.0, %v3819
        %3821 = vmatmul.f32.gmra.mxu0 %v3782
        %v3822 = vpop.f32.mrf.mxu0
        %v3823 = vadd.f32 0.0, %v3822
        %3824 = vmatmul.f32.gmra.mxu0 %v3784
        %v3825 = vpop.f32.mrf.mxu0
        %v3826 = vadd.f32 0.0, %v3825
        %3827 = vmatmul.f32.gmra.mxu0 %v3786
        %v3828 = vpop.f32.mrf.mxu0
        %v3829 = vadd.f32 0.0, %v3828
        %3830 = vmatmul.f32.gmra.mxu0 %v3788
        %v3831 = vpop.f32.mrf.mxu0
        %v3832 = vadd.f32 0.0, %v3831
        %3833 = vmatmul.f32.gmra.mxu0 %v3790
        %v3834 = vpop.f32.mrf.mxu0
        %v3835 = vadd.f32 0.0, %v3834
        %3836 = vmatmul.f32.gmra.mxu0 %v3792
        %v3837 = vpop.f32.mrf.mxu0
        %v3838 = vadd.f32 0.0, %v3837
        %3839 = vmatmul.f32.gmra.mxu0 %v3794
        %v3840 = vpop.f32.mrf.mxu0
        %v3841 = vadd.f32 0.0, %v3840
        %3842 = vdwg.mxu0
        %3843 = vmatpush.msra.mxu0 0.0
        %3844 = vmatpush.msra.mxu0 0.0
        %3845 = vmatpush.msra.mxu0 0.0
        %3846 = vmatpush.msra.mxu0 0.0
        %3847 = vmatpush.msra.mxu0 0.0
        %3848 = vmatpush.msra.mxu0 0.0
        %3849 = vmatpush.msra.mxu0 0.0
        %3850 = vmatpush.msra.mxu0 0.0
        %3851 = vmatpush.msra.mxu0 0.0
        %3852 = vmatpush.msra.mxu0 0.0
        %3853 = vmatpush.msra.mxu0 0.0
        %3854 = vmatpush.msra.mxu0 0.0
        %3855 = vmatpush.msra.mxu0 %v3742
        %3856 = vmatpush.msra.mxu0 %v3739
        %3857 = vmatpush.msra.mxu0 %v3736
        %3858 = vmatpush.msra.mxu0 %v3733
        %3859 = vmatmul.f32.gmra.mxu0 %v3776
        %v3860 = vpop.f32.mrf.mxu0
        %v3861 = vadd.f32 0.0, %v3860
        %3862 = vmatmul.f32.gmra.mxu0 %v3778
        %v3863 = vpop.f32.mrf.mxu0
        %v3864 = vadd.f32 0.0, %v3863
        %3865 = vmatmul.f32.gmra.mxu0 %v3780
        %v3866 = vpop.f32.mrf.mxu0
        %v3867 = vadd.f32 0.0, %v3866
        %3868 = vmatmul.f32.gmra.mxu0 %v3782
        %v3869 = vpop.f32.mrf.mxu0
        %v3870 = vadd.f32 0.0, %v3869
        %3871 = vmatmul.f32.gmra.mxu0 %v3784
        %v3872 = vpop.f32.mrf.mxu0
        %v3873 = vadd.f32 0.0, %v3872
        %3874 = vmatmul.f32.gmra.mxu0 %v3786
        %v3875 = vpop.f32.mrf.mxu0
        %v3876 = vadd.f32 0.0, %v3875
        %3877 = vmatmul.f32.gmra.mxu0 %v3788
        %v3878 = vpop.f32.mrf.mxu0
        %v3879 = vadd.f32 0.0, %v3878
        %3880 = vmatmul.f32.gmra.mxu0 %v3790
        %v3881 = vpop.f32.mrf.mxu0
        %v3882 = vadd.f32 0.0, %v3881
        %3883 = vmatmul.f32.gmra.mxu0 %v3792
        %v3884 = vpop.f32.mrf.mxu0
        %v3885 = vadd.f32 0.0, %v3884
        %3886 = vmatmul.f32.gmra.mxu0 %v3794
        %v3887 = vpop.f32.mrf.mxu0
        %v3888 = vadd.f32 0.0, %v3887
        %3889 = vdwg.mxu0
        %3890 = vmatpush.msra.mxu0 0.0
        %3891 = vmatpush.msra.mxu0 0.0
        %3892 = vmatpush.msra.mxu0 0.0
        %3893 = vmatpush.msra.mxu0 0.0
        %3894 = vmatpush.msra.mxu0 0.0
        %3895 = vmatpush.msra.mxu0 0.0
        %3896 = vmatpush.msra.mxu0 0.0
        %3897 = vmatpush.msra.mxu0 0.0
        %3898 = vmatpush.msra.mxu0 0.0
        %3899 = vmatpush.msra.mxu0 0.0
        %3900 = vmatpush.msra.mxu0 0.0
        %3901 = vmatpush.msra.mxu0 0.0
        %3902 = vmatpush.msra.mxu0 %v3743
        %3903 = vmatpush.msra.mxu0 %v3740
        %3904 = vmatpush.msra.mxu0 %v3737
        %3905 = vmatpush.msra.mxu0 %v3734
        %3906 = vmatmul.f32.gmra.mxu0 %v3776
        %v3907 = vpop.f32.mrf.mxu0
        %v3908 = vadd.f32 0.0, %v3907
        %3909 = vmatmul.f32.gmra.mxu0 %v3778
        %v3910 = vpop.f32.mrf.mxu0
        %v3911 = vadd.f32 0.0, %v3910
        %3912 = vmatmul.f32.gmra.mxu0 %v3780
        %v3913 = vpop.f32.mrf.mxu0
        %v3914 = vadd.f32 0.0, %v3913
        %3915 = vmatmul.f32.gmra.mxu0 %v3782
        %v3916 = vpop.f32.mrf.mxu0
        %v3917 = vadd.f32 0.0, %v3916
        %3918 = vmatmul.f32.gmra.mxu0 %v3784
        %v3919 = vpop.f32.mrf.mxu0
        %v3920 = vadd.f32 0.0, %v3919
        %3921 = vmatmul.f32.gmra.mxu0 %v3786
        %v3922 = vpop.f32.mrf.mxu0
        %v3923 = vadd.f32 0.0, %v3922
        %3924 = vmatmul.f32.gmra.mxu0 %v3788
        %v3925 = vpop.f32.mrf.mxu0
        %v3926 = vadd.f32 0.0, %v3925
        %3927 = vmatmul.f32.gmra.mxu0 %v3790
        %v3928 = vpop.f32.mrf.mxu0
        %v3929 = vadd.f32 0.0, %v3928
        %3930 = vmatmul.f32.gmra.mxu0 %v3792
        %v3931 = vpop.f32.mrf.mxu0
        %v3932 = vadd.f32 0.0, %v3931
        %3933 = vmatmul.f32.gmra.mxu0 %v3794
        %v3934 = vpop.f32.mrf.mxu0
        %v3935 = vadd.f32 0.0, %v3934
        %3936 = vdwg.mxu0
        %v3937 = vmul.f32 %v3814, %v787
        %v3938 = vmul.f32 %v3817, %v789
        %v3939 = vmul.f32 %v3820, %v791
        %v3940 = vmul.f32 %v3823, %v793
        %v3941 = vmul.f32 %v3826, %v795
        %v3942 = vmul.f32 %v3829, %v797
        %v3943 = vmul.f32 %v3832, %v799
        %v3944 = vmul.f32 %v3835, %v801
        %v3945 = vmul.f32 %v3838, %v803
        %v3946 = vmul.f32 %v3841, %v802
        %v3947 = vmul.f32 %v3814, %v870
        %v3948 = vmul.f32 %v3817, %v872
        %v3949 = vmul.f32 %v3820, %v874
        %v3950 = vmul.f32 %v3823, %v876
        %v3951 = vmul.f32 %v3826, %v878
        %v3952 = vmul.f32 %v3829, %v880
        %v3953 = vmul.f32 %v3832, %v882
        %v3954 = vmul.f32 %v3835, %v884
        %v3955 = vmul.f32 %v3838, %v886
        %v3956 = vmul.f32 %v3841, %v888
        %v3967 = vrot.slane %v3947, 1
        %v3968 = vsel %vm922, %v923, %v3967
        %v3969 = vrot.slane %v3948, 1
        %v3970 = vsel %vm922, %v3967, %v3969
        %v3971 = vrot.slane %v3949, 1
        %v3972 = vsel %vm922, %v3969, %v3971
        %v3973 = vrot.slane %v3950, 1
        %v3974 = vsel %vm922, %v3971, %v3973
        %v3975 = vrot.slane %v3951, 1
        %v3976 = vsel %vm922, %v3973, %v3975
        %v3977 = vrot.slane %v3952, 1
        %v3978 = vsel %vm922, %v3975, %v3977
        %v3979 = vrot.slane %v3953, 1
        %v3980 = vsel %vm922, %v3977, %v3979
        %v3981 = vrot.slane %v3954, 1
        %v3982 = vsel %vm922, %v3979, %v3981
        %v3983 = vrot.slane %v3955, 1
        %v3984 = vsel %vm922, %v3981, %v3983
        %v3985 = vrot.slane %v3956, 1
        %v3986 = vsel %vm922, %v3983, %v3985
        %3987 = vrot.lane.b32.xlu0 %v3968, 96
        %v3988 = vpop.permute.xlu0 %3987
        %3989 = vrot.lane.b32.xlu0 %v3970, 96
        %v3990 = vpop.permute.xlu0 %3989
        %3991 = vrot.lane.b32.xlu0 %v3972, 96
        %v3992 = vpop.permute.xlu0 %3991
        %3993 = vrot.lane.b32.xlu0 %v3974, 96
        %v3994 = vpop.permute.xlu0 %3993
        %3995 = vrot.lane.b32.xlu0 %v3976, 96
        %v3996 = vpop.permute.xlu0 %3995
        %3997 = vrot.lane.b32.xlu0 %v3978, 96
        %v3998 = vpop.permute.xlu0 %3997
        %3999 = vrot.lane.b32.xlu0 %v3980, 96
        %v4000 = vpop.permute.xlu0 %3999
        %4001 = vrot.lane.b32.xlu0 %v3982, 96
        %v4002 = vpop.permute.xlu0 %4001
        %4003 = vrot.lane.b32.xlu0 %v3984, 96
        %v4004 = vpop.permute.xlu0 %4003
        %4005 = vrot.lane.b32.xlu0 %v3986, 96
        %v4006 = vpop.permute.xlu0 %4005
        %4007 = vrot.lane.b32.xlu0 %v3985, 96
        %v4008 = vpop.permute.xlu0 %4007
        %v4020 = vadd.f32 %v815, %v3988
        %v4021 = vadd.f32 %v3937, %v3990
        %v4022 = vadd.f32 %v3938, %v3992
        %v4023 = vadd.f32 %v3939, %v3994
        %v4024 = vadd.f32 %v3940, %v3996
        %v4025 = vadd.f32 %v3941, %v3998
        %v4026 = vadd.f32 %v3942, %v4000
        %v4027 = vadd.f32 %v3943, %v4002
        %v4028 = vadd.f32 %v3944, %v4004
        %v4029 = vadd.f32 %v3945, %v4006
        %v4030 = vadd.f32 %v3946, %v4008
        %v4031 = vmul.f32 %v3814, %v1031
        %v4032 = vmul.f32 %v3817, %v1033
        %v4033 = vmul.f32 %v3820, %v1035
        %v4034 = vmul.f32 %v3823, %v1037
        %v4035 = vmul.f32 %v3826, %v1039
        %v4036 = vmul.f32 %v3829, %v1041
        %v4037 = vmul.f32 %v3832, %v1043
        %v4038 = vmul.f32 %v3835, %v1045
        %v4039 = vmul.f32 %v3838, %v1047
        %v4040 = vmul.f32 %v3841, %v1049
        %v4051 = vrot.slane %v4031, 2
        %v4052 = vsel %vm847, %v1083, %v4051
        %v4053 = vrot.slane %v4032, 2
        %v4054 = vsel %vm847, %v4051, %v4053
        %v4055 = vrot.slane %v4033, 2
        %v4056 = vsel %vm847, %v4053, %v4055
        %v4057 = vrot.slane %v4034, 2
        %v4058 = vsel %vm847, %v4055, %v4057
        %v4059 = vrot.slane %v4035, 2
        %v4060 = vsel %vm847, %v4057, %v4059
        %v4061 = vrot.slane %v4036, 2
        %v4062 = vsel %vm847, %v4059, %v4061
        %v4063 = vrot.slane %v4037, 2
        %v4064 = vsel %vm847, %v4061, %v4063
        %v4065 = vrot.slane %v4038, 2
        %v4066 = vsel %vm847, %v4063, %v4065
        %v4067 = vrot.slane %v4039, 2
        %v4068 = vsel %vm847, %v4065, %v4067
        %v4069 = vrot.slane %v4040, 2
        %v4070 = vsel %vm847, %v4067, %v4069
        %4071 = vrot.lane.b32.xlu0 %v4052, 64
        %v4072 = vpop.permute.xlu0 %4071
        %4073 = vrot.lane.b32.xlu0 %v4054, 64
        %v4074 = vpop.permute.xlu0 %4073
        %4075 = vrot.lane.b32.xlu0 %v4056, 64
        %v4076 = vpop.permute.xlu0 %4075
        %4077 = vrot.lane.b32.xlu0 %v4058, 64
        %v4078 = vpop.permute.xlu0 %4077
        %4079 = vrot.lane.b32.xlu0 %v4060, 64
        %v4080 = vpop.permute.xlu0 %4079
        %4081 = vrot.lane.b32.xlu0 %v4062, 64
        %v4082 = vpop.permute.xlu0 %4081
        %4083 = vrot.lane.b32.xlu0 %v4064, 64
        %v4084 = vpop.permute.xlu0 %4083
        %4085 = vrot.lane.b32.xlu0 %v4066, 64
        %v4086 = vpop.permute.xlu0 %4085
        %4087 = vrot.lane.b32.xlu0 %v4068, 64
        %v4088 = vpop.permute.xlu0 %4087
        %4089 = vrot.lane.b32.xlu0 %v4070, 64
        %v4090 = vpop.permute.xlu0 %4089
        %4091 = vrot.lane.b32.xlu0 %v4069, 64
        %v4092 = vpop.permute.xlu0 %4091
        %v4104 = vadd.f32 %v4020, %v4072
        %v4105 = vadd.f32 %v4021, %v4074
        %v4106 = vadd.f32 %v4022, %v4076
        %v4107 = vadd.f32 %v4023, %v4078
        %v4108 = vadd.f32 %v4024, %v4080
        %v4109 = vadd.f32 %v4025, %v4082
        %v4110 = vadd.f32 %v4026, %v4084
        %v4111 = vadd.f32 %v4027, %v4086
        %v4112 = vadd.f32 %v4028, %v4088
        %v4113 = vadd.f32 %v4029, %v4090
        %v4114 = vadd.f32 %v4030, %v4092
        %v4115 = vmul.f32 %v3814, %v1191
        %v4116 = vmul.f32 %v3817, %v1193
        %v4117 = vmul.f32 %v3820, %v1195
        %v4118 = vmul.f32 %v3823, %v1197
        %v4119 = vmul.f32 %v3826, %v1199
        %v4120 = vmul.f32 %v3829, %v1201
        %v4121 = vmul.f32 %v3832, %v1203
        %v4122 = vmul.f32 %v3835, %v1205
        %v4123 = vmul.f32 %v3838, %v1207
        %v4124 = vmul.f32 %v3841, %v1209
        %v4135 = vrot.slane %v4115, 2
        %v4136 = vsel %vm847, %v1243, %v4135
        %v4137 = vrot.slane %v4116, 2
        %v4138 = vsel %vm847, %v4135, %v4137
        %v4139 = vrot.slane %v4117, 2
        %v4140 = vsel %vm847, %v4137, %v4139
        %v4141 = vrot.slane %v4118, 2
        %v4142 = vsel %vm847, %v4139, %v4141
        %v4143 = vrot.slane %v4119, 2
        %v4144 = vsel %vm847, %v4141, %v4143
        %v4145 = vrot.slane %v4120, 2
        %v4146 = vsel %vm847, %v4143, %v4145
        %v4147 = vrot.slane %v4121, 2
        %v4148 = vsel %vm847, %v4145, %v4147
        %v4149 = vrot.slane %v4122, 2
        %v4150 = vsel %vm847, %v4147, %v4149
        %v4151 = vrot.slane %v4123, 2
        %v4152 = vsel %vm847, %v4149, %v4151
        %v4153 = vrot.slane %v4124, 2
        %v4154 = vsel %vm847, %v4151, %v4153
        %4155 = vrot.lane.b32.xlu0 %v4136, 32
        %v4156 = vpop.permute.xlu0 %4155
        %4157 = vrot.lane.b32.xlu0 %v4138, 32
        %v4158 = vpop.permute.xlu0 %4157
        %4159 = vrot.lane.b32.xlu0 %v4140, 32
        %v4160 = vpop.permute.xlu0 %4159
        %4161 = vrot.lane.b32.xlu0 %v4142, 32
        %v4162 = vpop.permute.xlu0 %4161
        %4163 = vrot.lane.b32.xlu0 %v4144, 32
        %v4164 = vpop.permute.xlu0 %4163
        %4165 = vrot.lane.b32.xlu0 %v4146, 32
        %v4166 = vpop.permute.xlu0 %4165
        %4167 = vrot.lane.b32.xlu0 %v4148, 32
        %v4168 = vpop.permute.xlu0 %4167
        %4169 = vrot.lane.b32.xlu0 %v4150, 32
        %v4170 = vpop.permute.xlu0 %4169
        %4171 = vrot.lane.b32.xlu0 %v4152, 32
        %v4172 = vpop.permute.xlu0 %4171
        %4173 = vrot.lane.b32.xlu0 %v4154, 32
        %v4174 = vpop.permute.xlu0 %4173
        %4175 = vrot.lane.b32.xlu0 %v4153, 32
        %v4176 = vpop.permute.xlu0 %4175
        %v4188 = vadd.f32 %v4104, %v4156
        %v4189 = vadd.f32 %v4105, %v4158
        %v4190 = vadd.f32 %v4106, %v4160
        %v4191 = vadd.f32 %v4107, %v4162
        %v4192 = vadd.f32 %v4108, %v4164
        %v4193 = vadd.f32 %v4109, %v4166
        %v4194 = vadd.f32 %v4110, %v4168
        %v4195 = vadd.f32 %v4111, %v4170
        %v4196 = vadd.f32 %v4112, %v4172
        %v4197 = vadd.f32 %v4113, %v4174
        %v4198 = vadd.f32 %v4114, %v4176
        %v4199 = vmul.f32 %v3861, %v1309
        %v4200 = vmul.f32 %v3864, %v1310
        %v4201 = vmul.f32 %v3867, %v1311
        %v4202 = vmul.f32 %v3870, %v1312
        %v4203 = vmul.f32 %v3873, %v1313
        %v4204 = vmul.f32 %v3876, %v1314
        %v4205 = vmul.f32 %v3879, %v1315
        %v4206 = vmul.f32 %v3882, %v1316
        %v4207 = vmul.f32 %v3885, %v1317
        %v4208 = vmul.f32 %v3888, %v1318
        %v4219 = vrot.slane %v4199, 3
        %v4220 = vrot.slane %v4200, 3
        %v4221 = vsel %vm784, %v4219, %v4220
        %v4222 = vrot.slane %v4201, 3
        %v4223 = vsel %vm784, %v4220, %v4222
        %v4224 = vrot.slane %v4202, 3
        %v4225 = vsel %vm784, %v4222, %v4224
        %v4226 = vrot.slane %v4203, 3
        %v4227 = vsel %vm784, %v4224, %v4226
        %v4228 = vrot.slane %v4204, 3
        %v4229 = vsel %vm784, %v4226, %v4228
        %v4230 = vrot.slane %v4205, 3
        %v4231 = vsel %vm784, %v4228, %v4230
        %v4232 = vrot.slane %v4206, 3
        %v4233 = vsel %vm784, %v4230, %v4232
        %v4234 = vrot.slane %v4207, 3
        %v4235 = vsel %vm784, %v4232, %v4234
        %v4236 = vrot.slane %v4208, 3
        %v4237 = vsel %vm784, %v4234, %v4236
        %v4249 = vadd.f32 %v4188, %v4219
        %v4250 = vadd.f32 %v4189, %v4221
        %v4251 = vadd.f32 %v4190, %v4223
        %v4252 = vadd.f32 %v4191, %v4225
        %v4253 = vadd.f32 %v4192, %v4227
        %v4254 = vadd.f32 %v4193, %v4229
        %v4255 = vadd.f32 %v4194, %v4231
        %v4256 = vadd.f32 %v4195, %v4233
        %v4257 = vadd.f32 %v4196, %v4235
        %v4258 = vadd.f32 %v4197, %v4237
        %v4259 = vadd.f32 %v4198, %v4236
        %v4260 = vmul.f32 %v3861, %v1422
        %v4261 = vmul.f32 %v3864, %v1424
        %v4262 = vmul.f32 %v3867, %v1426
        %v4263 = vmul.f32 %v3870, %v1428
        %v4264 = vmul.f32 %v3873, %v1430
        %v4265 = vmul.f32 %v3876, %v1432
        %v4266 = vmul.f32 %v3879, %v1434
        %v4267 = vmul.f32 %v3882, %v1436
        %v4268 = vmul.f32 %v3885, %v1438
        %v4269 = vmul.f32 %v3888, %v1440
        %v4280 = vrot.slane %v4260, 4
        %v4281 = vrot.slane %v4261, 4
        %v4282 = vsel %vm1476, %v4280, %v4281
        %v4283 = vrot.slane %v4262, 4
        %v4284 = vsel %vm1476, %v4281, %v4283
        %v4285 = vrot.slane %v4263, 4
        %v4286 = vsel %vm1476, %v4283, %v4285
        %v4287 = vrot.slane %v4264, 4
        %v4288 = vsel %vm1476, %v4285, %v4287
        %v4289 = vrot.slane %v4265, 4
        %v4290 = vsel %vm1476, %v4287, %v4289
        %v4291 = vrot.slane %v4266, 4
        %v4292 = vsel %vm1476, %v4289, %v4291
        %v4293 = vrot.slane %v4267, 4
        %v4294 = vsel %vm1476, %v4291, %v4293
        %v4295 = vrot.slane %v4268, 4
        %v4296 = vsel %vm1476, %v4293, %v4295
        %v4297 = vrot.slane %v4269, 4
        %v4298 = vsel %vm1476, %v4295, %v4297
        %v4299 = vsel %vm1476, %v4297, %v1496
        %4300 = vrot.lane.b32.xlu0 %v4280, 96
        %v4301 = vpop.permute.xlu0 %4300
        %4302 = vrot.lane.b32.xlu0 %v4282, 96
        %v4303 = vpop.permute.xlu0 %4302
        %4304 = vrot.lane.b32.xlu0 %v4284, 96
        %v4305 = vpop.permute.xlu0 %4304
        %4306 = vrot.lane.b32.xlu0 %v4286, 96
        %v4307 = vpop.permute.xlu0 %4306
        %4308 = vrot.lane.b32.xlu0 %v4288, 96
        %v4309 = vpop.permute.xlu0 %4308
        %4310 = vrot.lane.b32.xlu0 %v4290, 96
        %v4311 = vpop.permute.xlu0 %4310
        %4312 = vrot.lane.b32.xlu0 %v4292, 96
        %v4313 = vpop.permute.xlu0 %4312
        %4314 = vrot.lane.b32.xlu0 %v4294, 96
        %v4315 = vpop.permute.xlu0 %4314
        %4316 = vrot.lane.b32.xlu0 %v4296, 96
        %v4317 = vpop.permute.xlu0 %4316
        %4318 = vrot.lane.b32.xlu0 %v4298, 96
        %v4319 = vpop.permute.xlu0 %4318
        %4320 = vrot.lane.b32.xlu0 %v4299, 96
        %v4321 = vpop.permute.xlu0 %4320
        %v4333 = vadd.f32 %v4249, %v4301
        %v4334 = vadd.f32 %v4250, %v4303
        %v4335 = vadd.f32 %v4251, %v4305
        %v4336 = vadd.f32 %v4252, %v4307
        %v4337 = vadd.f32 %v4253, %v4309
        %v4338 = vadd.f32 %v4254, %v4311
        %v4339 = vadd.f32 %v4255, %v4313
        %v4340 = vadd.f32 %v4256, %v4315
        %v4341 = vadd.f32 %v4257, %v4317
        %v4342 = vadd.f32 %v4258, %v4319
        %v4343 = vadd.f32 %v4259, %v4321
        %v4344 = vmul.f32 %v3861, %v1583
        %v4345 = vmul.f32 %v3864, %v1585
        %v4346 = vmul.f32 %v3867, %v1587
        %v4347 = vmul.f32 %v3870, %v1589
        %v4348 = vmul.f32 %v3873, %v1591
        %v4349 = vmul.f32 %v3876, %v1593
        %v4350 = vmul.f32 %v3879, %v1595
        %v4351 = vmul.f32 %v3882, %v1597
        %v4352 = vmul.f32 %v3885, %v1599
        %v4353 = vmul.f32 %v3888, %v1601
        %v4364 = vrot.slane %v4344, 4
        %v4365 = vrot.slane %v4345, 4
        %v4366 = vsel %vm1476, %v4364, %v4365
        %v4367 = vrot.slane %v4346, 4
        %v4368 = vsel %vm1476, %v4365, %v4367
        %v4369 = vrot.slane %v4347, 4
        %v4370 = vsel %vm1476, %v4367, %v4369
        %v4371 = vrot.slane %v4348, 4
        %v4372 = vsel %vm1476, %v4369, %v4371
        %v4373 = vrot.slane %v4349, 4
        %v4374 = vsel %vm1476, %v4371, %v4373
        %v4375 = vrot.slane %v4350, 4
        %v4376 = vsel %vm1476, %v4373, %v4375
        %v4377 = vrot.slane %v4351, 4
        %v4378 = vsel %vm1476, %v4375, %v4377
        %v4379 = vrot.slane %v4352, 4
        %v4380 = vsel %vm1476, %v4377, %v4379
        %v4381 = vrot.slane %v4353, 4
        %v4382 = vsel %vm1476, %v4379, %v4381
        %v4383 = vsel %vm1476, %v4381, %v1656
        %4384 = vrot.lane.b32.xlu0 %v4364, 64
        %v4385 = vpop.permute.xlu0 %4384
        %4386 = vrot.lane.b32.xlu0 %v4366, 64
        %v4387 = vpop.permute.xlu0 %4386
        %4388 = vrot.lane.b32.xlu0 %v4368, 64
        %v4389 = vpop.permute.xlu0 %4388
        %4390 = vrot.lane.b32.xlu0 %v4370, 64
        %v4391 = vpop.permute.xlu0 %4390
        %4392 = vrot.lane.b32.xlu0 %v4372, 64
        %v4393 = vpop.permute.xlu0 %4392
        %4394 = vrot.lane.b32.xlu0 %v4374, 64
        %v4395 = vpop.permute.xlu0 %4394
        %4396 = vrot.lane.b32.xlu0 %v4376, 64
        %v4397 = vpop.permute.xlu0 %4396
        %4398 = vrot.lane.b32.xlu0 %v4378, 64
        %v4399 = vpop.permute.xlu0 %4398
        %4400 = vrot.lane.b32.xlu0 %v4380, 64
        %v4401 = vpop.permute.xlu0 %4400
        %4402 = vrot.lane.b32.xlu0 %v4382, 64
        %v4403 = vpop.permute.xlu0 %4402
        %4404 = vrot.lane.b32.xlu0 %v4383, 64
        %v4405 = vpop.permute.xlu0 %4404
        %v4417 = vadd.f32 %v4333, %v4385
        %v4418 = vadd.f32 %v4334, %v4387
        %v4419 = vadd.f32 %v4335, %v4389
        %v4420 = vadd.f32 %v4336, %v4391
        %v4421 = vadd.f32 %v4337, %v4393
        %v4422 = vadd.f32 %v4338, %v4395
        %v4423 = vadd.f32 %v4339, %v4397
        %v4424 = vadd.f32 %v4340, %v4399
        %v4425 = vadd.f32 %v4341, %v4401
        %v4426 = vadd.f32 %v4342, %v4403
        %v4427 = vadd.f32 %v4343, %v4405
        %v4428 = vmul.f32 %v3861, %v1743
        %v4429 = vmul.f32 %v3864, %v1745
        %v4430 = vmul.f32 %v3867, %v1747
        %v4431 = vmul.f32 %v3870, %v1749
        %v4432 = vmul.f32 %v3873, %v1751
        %v4433 = vmul.f32 %v3876, %v1753
        %v4434 = vmul.f32 %v3879, %v1755
        %v4435 = vmul.f32 %v3882, %v1757
        %v4436 = vmul.f32 %v3885, %v1759
        %v4437 = vmul.f32 %v3888, %v1761
        %v4448 = vrot.slane %v4428, 5
        %v4449 = vrot.slane %v4429, 5
        %v4450 = vsel %vm1797, %v4448, %v4449
        %v4451 = vrot.slane %v4430, 5
        %v4452 = vsel %vm1797, %v4449, %v4451
        %v4453 = vrot.slane %v4431, 5
        %v4454 = vsel %vm1797, %v4451, %v4453
        %v4455 = vrot.slane %v4432, 5
        %v4456 = vsel %vm1797, %v4453, %v4455
        %v4457 = vrot.slane %v4433, 5
        %v4458 = vsel %vm1797, %v4455, %v4457
        %v4459 = vrot.slane %v4434, 5
        %v4460 = vsel %vm1797, %v4457, %v4459
        %v4461 = vrot.slane %v4435, 5
        %v4462 = vsel %vm1797, %v4459, %v4461
        %v4463 = vrot.slane %v4436, 5
        %v4464 = vsel %vm1797, %v4461, %v4463
        %v4465 = vrot.slane %v4437, 5
        %v4466 = vsel %vm1797, %v4463, %v4465
        %v4467 = vsel %vm1797, %v4465, %v1817
        %4468 = vrot.lane.b32.xlu0 %v4448, 32
        %v4469 = vpop.permute.xlu0 %4468
        %4470 = vrot.lane.b32.xlu0 %v4450, 32
        %v4471 = vpop.permute.xlu0 %4470
        %4472 = vrot.lane.b32.xlu0 %v4452, 32
        %v4473 = vpop.permute.xlu0 %4472
        %4474 = vrot.lane.b32.xlu0 %v4454, 32
        %v4475 = vpop.permute.xlu0 %4474
        %4476 = vrot.lane.b32.xlu0 %v4456, 32
        %v4477 = vpop.permute.xlu0 %4476
        %4478 = vrot.lane.b32.xlu0 %v4458, 32
        %v4479 = vpop.permute.xlu0 %4478
        %4480 = vrot.lane.b32.xlu0 %v4460, 32
        %v4481 = vpop.permute.xlu0 %4480
        %4482 = vrot.lane.b32.xlu0 %v4462, 32
        %v4483 = vpop.permute.xlu0 %4482
        %4484 = vrot.lane.b32.xlu0 %v4464, 32
        %v4485 = vpop.permute.xlu0 %4484
        %4486 = vrot.lane.b32.xlu0 %v4466, 32
        %v4487 = vpop.permute.xlu0 %4486
        %4488 = vrot.lane.b32.xlu0 %v4467, 32
        %v4489 = vpop.permute.xlu0 %4488
        %v4501 = vadd.f32 %v4417, %v4469
        %v4502 = vadd.f32 %v4418, %v4471
        %v4503 = vadd.f32 %v4419, %v4473
        %v4504 = vadd.f32 %v4420, %v4475
        %v4505 = vadd.f32 %v4421, %v4477
        %v4506 = vadd.f32 %v4422, %v4479
        %v4507 = vadd.f32 %v4423, %v4481
        %v4508 = vadd.f32 %v4424, %v4483
        %v4509 = vadd.f32 %v4425, %v4485
        %v4510 = vadd.f32 %v4426, %v4487
        %v4511 = vadd.f32 %v4427, %v4489
        %v4512 = vmul.f32 %v3908, %v1884
        %v4513 = vmul.f32 %v3911, %v1886
        %v4514 = vmul.f32 %v3914, %v1888
        %v4515 = vmul.f32 %v3917, %v1890
        %v4516 = vmul.f32 %v3920, %v1892
        %v4517 = vmul.f32 %v3923, %v1894
        %v4518 = vmul.f32 %v3926, %v1896
        %v4519 = vmul.f32 %v3929, %v1898
        %v4520 = vmul.f32 %v3932, %v1900
        %v4521 = vmul.f32 %v3935, %v1902
        %v4532 = vrot.slane %v4512, 6
        %v4533 = vrot.slane %v4513, 6
        %v4534 = vsel %vm616, %v4532, %v4533
        %v4535 = vrot.slane %v4514, 6
        %v4536 = vsel %vm616, %v4533, %v4535
        %v4537 = vrot.slane %v4515, 6
        %v4538 = vsel %vm616, %v4535, %v4537
        %v4539 = vrot.slane %v4516, 6
        %v4540 = vsel %vm616, %v4537, %v4539
        %v4541 = vrot.slane %v4517, 6
        %v4542 = vsel %vm616, %v4539, %v4541
        %v4543 = vrot.slane %v4518, 6
        %v4544 = vsel %vm616, %v4541, %v4543
        %v4545 = vrot.slane %v4519, 6
        %v4546 = vsel %vm616, %v4543, %v4545
        %v4547 = vrot.slane %v4520, 6
        %v4548 = vsel %vm616, %v4545, %v4547
        %v4549 = vrot.slane %v4521, 6
        %v4550 = vsel %vm616, %v4547, %v4549
        %v4551 = vsel %vm616, %v4549, %v1955
        %v4563 = vadd.f32 %v4501, %v4532
        %v4564 = vadd.f32 %v4502, %v4534
        %v4565 = vadd.f32 %v4503, %v4536
        %v4566 = vadd.f32 %v4504, %v4538
        %v4567 = vadd.f32 %v4505, %v4540
        %v4568 = vadd.f32 %v4506, %v4542
        %v4569 = vadd.f32 %v4507, %v4544
        %v4570 = vadd.f32 %v4508, %v4546
        %v4571 = vadd.f32 %v4509, %v4548
        %v4572 = vadd.f32 %v4510, %v4550
        %v4573 = vadd.f32 %v4511, %v4551
        %v4574 = vld [vmem:[%s8] sm:$0x1]
        %v4576 = vperm.slane %v4574, 0
        %v4578 = vadd.f32 %v4563, %v4576
        %v4579 = vadd.f32 %v4564, %v4576
        %v4580 = vadd.f32 %v4565, %v4576
        %v4581 = vadd.f32 %v4566, %v4576
        %v4582 = vadd.f32 %v4567, %v4576
        %v4583 = vadd.f32 %v4568, %v4576
        %v4584 = vadd.f32 %v4569, %v4576
        %v4585 = vadd.f32 %v4570, %v4576
        %v4586 = vadd.f32 %v4571, %v4576
        %v4587 = vadd.f32 %v4572, %v4576
        %v4588 = vadd.f32 %v4573, %v4576
        %v4589 = vmul.f32 %v4578, 0.5
        %v4590 = vmul.f32 %v4579, 0.5
        %v4591 = vmul.f32 %v4580, 0.5
        %v4592 = vmul.f32 %v4581, 0.5
        %v4593 = vmul.f32 %v4582, 0.5
        %v4594 = vmul.f32 %v4583, 0.5
        %v4595 = vmul.f32 %v4584, 0.5
        %v4596 = vmul.f32 %v4585, 0.5
        %v4597 = vmul.f32 %v4586, 0.5
        %v4598 = vmul.f32 %v4587, 0.5
        %v4599 = vmul.f32 %v4588, 0.5
        %v4600 = vmul.f32 %v4578, 0.70710677
        %v4601 = vmul.f32 %v4579, 0.70710677
        %v4602 = vmul.f32 %v4580, 0.70710677
        %v4603 = vmul.f32 %v4581, 0.70710677
        %v4604 = vmul.f32 %v4582, 0.70710677
        %v4605 = vmul.f32 %v4583, 0.70710677
        %v4606 = vmul.f32 %v4584, 0.70710677
        %v4607 = vmul.f32 %v4585, 0.70710677
        %v4608 = vmul.f32 %v4586, 0.70710677
        %v4609 = vmul.f32 %v4587, 0.70710677
        %v4610 = vmul.f32 %v4588, 0.70710677
        %v4611 = vand.u32 2147483647, %v4600
        %v4612 = vand.u32 2147483647, %v4601
        %v4613 = vand.u32 2147483647, %v4602
        %v4614 = vand.u32 2147483647, %v4603
        %v4615 = vand.u32 2147483647, %v4604
        %v4616 = vand.u32 2147483647, %v4605
        %v4617 = vand.u32 2147483647, %v4606
        %v4618 = vand.u32 2147483647, %v4607
        %v4619 = vand.u32 2147483647, %v4608
        %v4620 = vand.u32 2147483647, %v4609
        %v4621 = vand.u32 2147483647, %v4610
        %v4622 = vmul.f32 %v4611, 0.3275911
        %v4623 = vmul.f32 %v4612, 0.3275911
        %v4624 = vmul.f32 %v4613, 0.3275911
        %v4625 = vmul.f32 %v4614, 0.3275911
        %v4626 = vmul.f32 %v4615, 0.3275911
        %v4627 = vmul.f32 %v4616, 0.3275911
        %v4628 = vmul.f32 %v4617, 0.3275911
        %v4629 = vmul.f32 %v4618, 0.3275911
        %v4630 = vmul.f32 %v4619, 0.3275911
        %v4631 = vmul.f32 %v4620, 0.3275911
        %v4632 = vmul.f32 %v4621, 0.3275911
        %v4633 = vadd.f32 %v4622, 1.0
        %v4634 = vadd.f32 %v4623, 1.0
        %v4635 = vadd.f32 %v4624, 1.0
        %v4636 = vadd.f32 %v4625, 1.0
        %v4637 = vadd.f32 %v4626, 1.0
        %v4638 = vadd.f32 %v4627, 1.0
        %v4639 = vadd.f32 %v4628, 1.0
        %v4640 = vadd.f32 %v4629, 1.0
        %v4641 = vadd.f32 %v4630, 1.0
        %v4642 = vadd.f32 %v4631, 1.0
        %v4643 = vadd.f32 %v4632, 1.0
        %v4644 = vrcp.pop %v4633
        %v4645 = vmul.f32 %v4633, %v4644
        %v4646 = vsub.f32 1.0, %v4645
        %v4647 = vmul.f32 %v4644, %v4646
        %v4648 = vadd.f32 %v4644, %v4647
        %vm4649 = vweird.f32 %v4633
        %vm4650 = vweird.f32 %v4644
        %vm4651 = vmor %vm4649, %vm4650
        %v4652 = vsel %vm4651, %v4644, %v4648
        %v4653 = vand.u32 2147483647, %v4633
        %vm4654 = vcmp.eq.f32.partialorder %v4653, 8.507059e+37
        %v4655 = vand.u32 %v4633, 2147483648
        %v4656 = vor.u32 1.1754944e-38, %v4655
        %v4657 = vsel %vm4654, %v4656, %v4652
        %v4658 = vmul.f32 1.0, %v4657
        %v4659 = vrcp.pop %v4634
        %v4660 = vmul.f32 %v4634, %v4659
        %v4661 = vsub.f32 1.0, %v4660
        %v4662 = vmul.f32 %v4659, %v4661
        %v4663 = vadd.f32 %v4659, %v4662
        %vm4664 = vweird.f32 %v4634
        %vm4665 = vweird.f32 %v4659
        %vm4666 = vmor %vm4664, %vm4665
        %v4667 = vsel %vm4666, %v4659, %v4663
        %v4668 = vand.u32 2147483647, %v4634
        %vm4669 = vcmp.eq.f32.partialorder %v4668, 8.507059e+37
        %v4670 = vand.u32 %v4634, 2147483648
        %v4671 = vor.u32 1.1754944e-38, %v4670
        %v4672 = vsel %vm4669, %v4671, %v4667
        %v4673 = vmul.f32 1.0, %v4672
        %v4674 = vrcp.pop %v4635
        %v4675 = vmul.f32 %v4635, %v4674
        %v4676 = vsub.f32 1.0, %v4675
        %v4677 = vmul.f32 %v4674, %v4676
        %v4678 = vadd.f32 %v4674, %v4677
        %vm4679 = vweird.f32 %v4635
        %vm4680 = vweird.f32 %v4674
        %vm4681 = vmor %vm4679, %vm4680
        %v4682 = vsel %vm4681, %v4674, %v4678
        %v4683 = vand.u32 2147483647, %v4635
        %vm4684 = vcmp.eq.f32.partialorder %v4683, 8.507059e+37
        %v4685 = vand.u32 %v4635, 2147483648
        %v4686 = vor.u32 1.1754944e-38, %v4685
        %v4687 = vsel %vm4684, %v4686, %v4682
        %v4688 = vmul.f32 1.0, %v4687
        %v4689 = vrcp.pop %v4636
        %v4690 = vmul.f32 %v4636, %v4689
        %v4691 = vsub.f32 1.0, %v4690
        %v4692 = vmul.f32 %v4689, %v4691
        %v4693 = vadd.f32 %v4689, %v4692
        %vm4694 = vweird.f32 %v4636
        %vm4695 = vweird.f32 %v4689
        %vm4696 = vmor %vm4694, %vm4695
        %v4697 = vsel %vm4696, %v4689, %v4693
        %v4698 = vand.u32 2147483647, %v4636
        %vm4699 = vcmp.eq.f32.partialorder %v4698, 8.507059e+37
        %v4700 = vand.u32 %v4636, 2147483648
        %v4701 = vor.u32 1.1754944e-38, %v4700
        %v4702 = vsel %vm4699, %v4701, %v4697
        %v4703 = vmul.f32 1.0, %v4702
        %v4704 = vrcp.pop %v4637
        %v4705 = vmul.f32 %v4637, %v4704
        %v4706 = vsub.f32 1.0, %v4705
        %v4707 = vmul.f32 %v4704, %v4706
        %v4708 = vadd.f32 %v4704, %v4707
        %vm4709 = vweird.f32 %v4637
        %vm4710 = vweird.f32 %v4704
        %vm4711 = vmor %vm4709, %vm4710
        %v4712 = vsel %vm4711, %v4704, %v4708
        %v4713 = vand.u32 2147483647, %v4637
        %vm4714 = vcmp.eq.f32.partialorder %v4713, 8.507059e+37
        %v4715 = vand.u32 %v4637, 2147483648
        %v4716 = vor.u32 1.1754944e-38, %v4715
        %v4717 = vsel %vm4714, %v4716, %v4712
        %v4718 = vmul.f32 1.0, %v4717
        %v4719 = vrcp.pop %v4638
        %v4720 = vmul.f32 %v4638, %v4719
        %v4721 = vsub.f32 1.0, %v4720
        %v4722 = vmul.f32 %v4719, %v4721
        %v4723 = vadd.f32 %v4719, %v4722
        %vm4724 = vweird.f32 %v4638
        %vm4725 = vweird.f32 %v4719
        %vm4726 = vmor %vm4724, %vm4725
        %v4727 = vsel %vm4726, %v4719, %v4723
        %v4728 = vand.u32 2147483647, %v4638
        %vm4729 = vcmp.eq.f32.partialorder %v4728, 8.507059e+37
        %v4730 = vand.u32 %v4638, 2147483648
        %v4731 = vor.u32 1.1754944e-38, %v4730
        %v4732 = vsel %vm4729, %v4731, %v4727
        %v4733 = vmul.f32 1.0, %v4732
        %v4734 = vrcp.pop %v4639
        %v4735 = vmul.f32 %v4639, %v4734
        %v4736 = vsub.f32 1.0, %v4735
        %v4737 = vmul.f32 %v4734, %v4736
        %v4738 = vadd.f32 %v4734, %v4737
        %vm4739 = vweird.f32 %v4639
        %vm4740 = vweird.f32 %v4734
        %vm4741 = vmor %vm4739, %vm4740
        %v4742 = vsel %vm4741, %v4734, %v4738
        %v4743 = vand.u32 2147483647, %v4639
        %vm4744 = vcmp.eq.f32.partialorder %v4743, 8.507059e+37
        %v4745 = vand.u32 %v4639, 2147483648
        %v4746 = vor.u32 1.1754944e-38, %v4745
        %v4747 = vsel %vm4744, %v4746, %v4742
        %v4748 = vmul.f32 1.0, %v4747
        %v4749 = vrcp.pop %v4640
        %v4750 = vmul.f32 %v4640, %v4749
        %v4751 = vsub.f32 1.0, %v4750
        %v4752 = vmul.f32 %v4749, %v4751
        %v4753 = vadd.f32 %v4749, %v4752
        %vm4754 = vweird.f32 %v4640
        %vm4755 = vweird.f32 %v4749
        %vm4756 = vmor %vm4754, %vm4755
        %v4757 = vsel %vm4756, %v4749, %v4753
        %v4758 = vand.u32 2147483647, %v4640
        %vm4759 = vcmp.eq.f32.partialorder %v4758, 8.507059e+37
        %v4760 = vand.u32 %v4640, 2147483648
        %v4761 = vor.u32 1.1754944e-38, %v4760
        %v4762 = vsel %vm4759, %v4761, %v4757
        %v4763 = vmul.f32 1.0, %v4762
        %v4764 = vrcp.pop %v4641
        %v4765 = vmul.f32 %v4641, %v4764
        %v4766 = vsub.f32 1.0, %v4765
        %v4767 = vmul.f32 %v4764, %v4766
        %v4768 = vadd.f32 %v4764, %v4767
        %vm4769 = vweird.f32 %v4641
        %vm4770 = vweird.f32 %v4764
        %vm4771 = vmor %vm4769, %vm4770
        %v4772 = vsel %vm4771, %v4764, %v4768
        %v4773 = vand.u32 2147483647, %v4641
        %vm4774 = vcmp.eq.f32.partialorder %v4773, 8.507059e+37
        %v4775 = vand.u32 %v4641, 2147483648
        %v4776 = vor.u32 1.1754944e-38, %v4775
        %v4777 = vsel %vm4774, %v4776, %v4772
        %v4778 = vmul.f32 1.0, %v4777
        %v4779 = vrcp.pop %v4642
        %v4780 = vmul.f32 %v4642, %v4779
        %v4781 = vsub.f32 1.0, %v4780
        %v4782 = vmul.f32 %v4779, %v4781
        %v4783 = vadd.f32 %v4779, %v4782
        %vm4784 = vweird.f32 %v4642
        %vm4785 = vweird.f32 %v4779
        %vm4786 = vmor %vm4784, %vm4785
        %v4787 = vsel %vm4786, %v4779, %v4783
        %v4788 = vand.u32 2147483647, %v4642
        %vm4789 = vcmp.eq.f32.partialorder %v4788, 8.507059e+37
        %v4790 = vand.u32 %v4642, 2147483648
        %v4791 = vor.u32 1.1754944e-38, %v4790
        %v4792 = vsel %vm4789, %v4791, %v4787
        %v4793 = vmul.f32 1.0, %v4792
        %v4794 = vrcp.pop %v4643
        %v4795 = vmul.f32 %v4643, %v4794
        %v4796 = vsub.f32 1.0, %v4795
        %v4797 = vmul.f32 %v4794, %v4796
        %v4798 = vadd.f32 %v4794, %v4797
        %vm4799 = vweird.f32 %v4643
        %vm4800 = vweird.f32 %v4794
        %vm4801 = vmor %vm4799, %vm4800
        %v4802 = vsel %vm4801, %v4794, %v4798
        %v4803 = vand.u32 2147483647, %v4643
        %vm4804 = vcmp.eq.f32.partialorder %v4803, 8.507059e+37
        %v4805 = vand.u32 %v4643, 2147483648
        %v4806 = vor.u32 1.1754944e-38, %v4805
        %v4807 = vsel %vm4804, %v4806, %v4802
        %v4808 = vmul.f32 1.0, %v4807
        %v4809 = vmul.f32 %v4658, 1.0614054
        %v4810 = vmul.f32 %v4673, 1.0614054
        %v4811 = vmul.f32 %v4688, 1.0614054
        %v4812 = vmul.f32 %v4703, 1.0614054
        %v4813 = vmul.f32 %v4718, 1.0614054
        %v4814 = vmul.f32 %v4733, 1.0614054
        %v4815 = vmul.f32 %v4748, 1.0614054
        %v4816 = vmul.f32 %v4763, 1.0614054
        %v4817 = vmul.f32 %v4778, 1.0614054
        %v4818 = vmul.f32 %v4793, 1.0614054
        %v4819 = vmul.f32 %v4808, 1.0614054
        %v4820 = vadd.f32 %v4809, -1.4531521
        %v4821 = vadd.f32 %v4810, -1.4531521
        %v4822 = vadd.f32 %v4811, -1.4531521
        %v4823 = vadd.f32 %v4812, -1.4531521
        %v4824 = vadd.f32 %v4813, -1.4531521
        %v4825 = vadd.f32 %v4814, -1.4531521
        %v4826 = vadd.f32 %v4815, -1.4531521
        %v4827 = vadd.f32 %v4816, -1.4531521
        %v4828 = vadd.f32 %v4817, -1.4531521
        %v4829 = vadd.f32 %v4818, -1.4531521
        %v4830 = vadd.f32 %v4819, -1.4531521
        %v4831 = vmul.f32 %v4820, %v4658
        %v4832 = vmul.f32 %v4821, %v4673
        %v4833 = vmul.f32 %v4822, %v4688
        %v4834 = vmul.f32 %v4823, %v4703
        %v4835 = vmul.f32 %v4824, %v4718
        %v4836 = vmul.f32 %v4825, %v4733
        %v4837 = vmul.f32 %v4826, %v4748
        %v4838 = vmul.f32 %v4827, %v4763
        %v4839 = vmul.f32 %v4828, %v4778
        %v4840 = vmul.f32 %v4829, %v4793
        %v4841 = vmul.f32 %v4830, %v4808
        %v4842 = vadd.f32 %v4831, 1.4214138
        %v4843 = vadd.f32 %v4832, 1.4214138
        %v4844 = vadd.f32 %v4833, 1.4214138
        %v4845 = vadd.f32 %v4834, 1.4214138
        %v4846 = vadd.f32 %v4835, 1.4214138
        %v4847 = vadd.f32 %v4836, 1.4214138
        %v4848 = vadd.f32 %v4837, 1.4214138
        %v4849 = vadd.f32 %v4838, 1.4214138
        %v4850 = vadd.f32 %v4839, 1.4214138
        %v4851 = vadd.f32 %v4840, 1.4214138
        %v4852 = vadd.f32 %v4841, 1.4214138
        %v4853 = vmul.f32 %v4842, %v4658
        %v4854 = vmul.f32 %v4843, %v4673
        %v4855 = vmul.f32 %v4844, %v4688
        %v4856 = vmul.f32 %v4845, %v4703
        %v4857 = vmul.f32 %v4846, %v4718
        %v4858 = vmul.f32 %v4847, %v4733
        %v4859 = vmul.f32 %v4848, %v4748
        %v4860 = vmul.f32 %v4849, %v4763
        %v4861 = vmul.f32 %v4850, %v4778
        %v4862 = vmul.f32 %v4851, %v4793
        %v4863 = vmul.f32 %v4852, %v4808
        %v4864 = vadd.f32 %v4853, -0.28449672
        %v4865 = vadd.f32 %v4854, -0.28449672
        %v4866 = vadd.f32 %v4855, -0.28449672
        %v4867 = vadd.f32 %v4856, -0.28449672
        %v4868 = vadd.f32 %v4857, -0.28449672
        %v4869 = vadd.f32 %v4858, -0.28449672
        %v4870 = vadd.f32 %v4859, -0.28449672
        %v4871 = vadd.f32 %v4860, -0.28449672
        %v4872 = vadd.f32 %v4861, -0.28449672
        %v4873 = vadd.f32 %v4862, -0.28449672
        %v4874 = vadd.f32 %v4863, -0.28449672
        %v4875 = vmul.f32 %v4864, %v4658
        %v4876 = vmul.f32 %v4865, %v4673
        %v4877 = vmul.f32 %v4866, %v4688
        %v4878 = vmul.f32 %v4867, %v4703
        %v4879 = vmul.f32 %v4868, %v4718
        %v4880 = vmul.f32 %v4869, %v4733
        %v4881 = vmul.f32 %v4870, %v4748
        %v4882 = vmul.f32 %v4871, %v4763
        %v4883 = vmul.f32 %v4872, %v4778
        %v4884 = vmul.f32 %v4873, %v4793
        %v4885 = vmul.f32 %v4874, %v4808
        %v4886 = vadd.f32 %v4875, 0.2548296
        %v4887 = vadd.f32 %v4876, 0.2548296
        %v4888 = vadd.f32 %v4877, 0.2548296
        %v4889 = vadd.f32 %v4878, 0.2548296
        %v4890 = vadd.f32 %v4879, 0.2548296
        %v4891 = vadd.f32 %v4880, 0.2548296
        %v4892 = vadd.f32 %v4881, 0.2548296
        %v4893 = vadd.f32 %v4882, 0.2548296
        %v4894 = vadd.f32 %v4883, 0.2548296
        %v4895 = vadd.f32 %v4884, 0.2548296
        %v4896 = vadd.f32 %v4885, 0.2548296
        %v4897 = vmul.f32 %v4886, %v4658
        %v4898 = vmul.f32 %v4887, %v4673
        %v4899 = vmul.f32 %v4888, %v4688
        %v4900 = vmul.f32 %v4889, %v4703
        %v4901 = vmul.f32 %v4890, %v4718
        %v4902 = vmul.f32 %v4891, %v4733
        %v4903 = vmul.f32 %v4892, %v4748
        %v4904 = vmul.f32 %v4893, %v4763
        %v4905 = vmul.f32 %v4894, %v4778
        %v4906 = vmul.f32 %v4895, %v4793
        %v4907 = vmul.f32 %v4896, %v4808
        %v4908 = vsub.f32 0.0, %v4611
        %v4909 = vsub.f32 0.0, %v4612
        %v4910 = vsub.f32 0.0, %v4613
        %v4911 = vsub.f32 0.0, %v4614
        %v4912 = vsub.f32 0.0, %v4615
        %v4913 = vsub.f32 0.0, %v4616
        %v4914 = vsub.f32 0.0, %v4617
        %v4915 = vsub.f32 0.0, %v4618
        %v4916 = vsub.f32 0.0, %v4619
        %v4917 = vsub.f32 0.0, %v4620
        %v4918 = vsub.f32 0.0, %v4621
        %v4919 = vmul.f32 %v4908, %v4611
        %v4920 = vmul.f32 %v4909, %v4612
        %v4921 = vmul.f32 %v4910, %v4613
        %v4922 = vmul.f32 %v4911, %v4614
        %v4923 = vmul.f32 %v4912, %v4615
        %v4924 = vmul.f32 %v4913, %v4616
        %v4925 = vmul.f32 %v4914, %v4617
        %v4926 = vmul.f32 %v4915, %v4618
        %v4927 = vmul.f32 %v4916, %v4619
        %v4928 = vmul.f32 %v4917, %v4620
        %v4929 = vmul.f32 %v4918, %v4621
        %v4930 = vmul.f32 %v4919, 1.442695
        %v4931 = vpow.pop %v4930
        %v4932 = vmul.f32 %v4920, 1.442695
        %v4933 = vpow.pop %v4932
        %v4934 = vmul.f32 %v4921, 1.442695
        %v4935 = vpow.pop %v4934
        %v4936 = vmul.f32 %v4922, 1.442695
        %v4937 = vpow.pop %v4936
        %v4938 = vmul.f32 %v4923, 1.442695
        %v4939 = vpow.pop %v4938
        %v4940 = vmul.f32 %v4924, 1.442695
        %v4941 = vpow.pop %v4940
        %v4942 = vmul.f32 %v4925, 1.442695
        %v4943 = vpow.pop %v4942
        %v4944 = vmul.f32 %v4926, 1.442695
        %v4945 = vpow.pop %v4944
        %v4946 = vmul.f32 %v4927, 1.442695
        %v4947 = vpow.pop %v4946
        %v4948 = vmul.f32 %v4928, 1.442695
        %v4949 = vpow.pop %v4948
        %v4950 = vmul.f32 %v4929, 1.442695
        %v4951 = vpow.pop %v4950
        %v4952 = vmul.f32 %v4897, %v4931
        %v4953 = vmul.f32 %v4898, %v4933
        %v4954 = vmul.f32 %v4899, %v4935
        %v4955 = vmul.f32 %v4900, %v4937
        %v4956 = vmul.f32 %v4901, %v4939
        %v4957 = vmul.f32 %v4902, %v4941
        %v4958 = vmul.f32 %v4903, %v4943
        %v4959 = vmul.f32 %v4904, %v4945
        %v4960 = vmul.f32 %v4905, %v4947
        %v4961 = vmul.f32 %v4906, %v4949
        %v4962 = vmul.f32 %v4907, %v4951
        %v4963 = vsub.f32 1.0, %v4952
        %v4964 = vsub.f32 1.0, %v4953
        %v4965 = vsub.f32 1.0, %v4954
        %v4966 = vsub.f32 1.0, %v4955
        %v4967 = vsub.f32 1.0, %v4956
        %v4968 = vsub.f32 1.0, %v4957
        %v4969 = vsub.f32 1.0, %v4958
        %v4970 = vsub.f32 1.0, %v4959
        %v4971 = vsub.f32 1.0, %v4960
        %v4972 = vsub.f32 1.0, %v4961
        %v4973 = vsub.f32 1.0, %v4962
        %vm4974 = vcmp.lt.f32.partialorder %v4600, 0.0
        %vm4975 = vcmp.lt.f32.partialorder %v4601, 0.0
        %vm4976 = vcmp.lt.f32.partialorder %v4602, 0.0
        %vm4977 = vcmp.lt.f32.partialorder %v4603, 0.0
        %vm4978 = vcmp.lt.f32.partialorder %v4604, 0.0
        %vm4979 = vcmp.lt.f32.partialorder %v4605, 0.0
        %vm4980 = vcmp.lt.f32.partialorder %v4606, 0.0
        %vm4981 = vcmp.lt.f32.partialorder %v4607, 0.0
        %vm4982 = vcmp.lt.f32.partialorder %v4608, 0.0
        %vm4983 = vcmp.lt.f32.partialorder %v4609, 0.0
        %vm4984 = vcmp.lt.f32.partialorder %v4610, 0.0
        %v4985 = vsub.f32 0.0, %v4963
        %v4986 = vsub.f32 0.0, %v4964
        %v4987 = vsub.f32 0.0, %v4965
        %v4988 = vsub.f32 0.0, %v4966
        %v4989 = vsub.f32 0.0, %v4967
        %v4990 = vsub.f32 0.0, %v4968
        %v4991 = vsub.f32 0.0, %v4969
        %v4992 = vsub.f32 0.0, %v4970
        %v4993 = vsub.f32 0.0, %v4971
        %v4994 = vsub.f32 0.0, %v4972
        %v4995 = vsub.f32 0.0, %v4973
        %v4996 = vsel %vm4974, %v4985, %v4963
        %v4997 = vsel %vm4975, %v4986, %v4964
        %v4998 = vsel %vm4976, %v4987, %v4965
        %v4999 = vsel %vm4977, %v4988, %v4966
        %v5000 = vsel %vm4978, %v4989, %v4967
        %v5001 = vsel %vm4979, %v4990, %v4968
        %v5002 = vsel %vm4980, %v4991, %v4969
        %v5003 = vsel %vm4981, %v4992, %v4970
        %v5004 = vsel %vm4982, %v4993, %v4971
        %v5005 = vsel %vm4983, %v4994, %v4972
        %v5006 = vsel %vm4984, %v4995, %v4973
        %v5007 = vadd.f32 %v4996, 1.0
        %v5008 = vadd.f32 %v4997, 1.0
        %v5009 = vadd.f32 %v4998, 1.0
        %v5010 = vadd.f32 %v4999, 1.0
        %v5011 = vadd.f32 %v5000, 1.0
        %v5012 = vadd.f32 %v5001, 1.0
        %v5013 = vadd.f32 %v5002, 1.0
        %v5014 = vadd.f32 %v5003, 1.0
        %v5015 = vadd.f32 %v5004, 1.0
        %v5016 = vadd.f32 %v5005, 1.0
        %v5017 = vadd.f32 %v5006, 1.0
        %v5018 = vmul.f32 %v4589, %v5007
        %v5019 = vmul.f32 %v4590, %v5008
        %v5020 = vmul.f32 %v4591, %v5009
        %v5021 = vmul.f32 %v4592, %v5010
        %v5022 = vmul.f32 %v4593, %v5011
        %v5023 = vmul.f32 %v4594, %v5012
        %v5024 = vmul.f32 %v4595, %v5013
        %v5025 = vmul.f32 %v4596, %v5014
        %v5026 = vmul.f32 %v4597, %v5015
        %v5027 = vmul.f32 %v4598, %v5016
        %v5028 = vmul.f32 %v4599, %v5017
        %v5029 = vld [vmem:[%s9] sm:$0xff]
        %v5030 = vld [vmem:[%s9 + $0x8] sm:$0xff]
        %v5031 = vld [vmem:[%s9 + $0x10] sm:$0xff]
        %v5032 = vld [vmem:[%s9 + $0x18] sm:$0xff]
        %v5033 = vld [vmem:[%s9 + $0x20] sm:$0xff]
        %v5034 = vld [vmem:[%s9 + $0x28] sm:$0xff]
        %v5035 = vld [vmem:[%s9 + $0x30] sm:$0xff]
        %v5036 = vld [vmem:[%s9 + $0x38] sm:$0xff]
        %v5037 = vld [vmem:[%s9 + $0x40] sm:$0xff]
        %v5038 = vld [vmem:[%s9 + $0x48] sm:$0xff]
        %v5039 = vld [vmem:[%s9 + $0x50] sm:$0xff]
        %v5040 = vld [vmem:[%s9 + $0x58] sm:$0xff]
        %v5052 = vrot.slane %v5018, 5
        %v5053 = vrot.slane %v5019, 5
        %v5054 = vsel %vm1797, %v5052, %v5053
        %v5055 = vrot.slane %v5020, 5
        %v5056 = vsel %vm1797, %v5053, %v5055
        %v5057 = vrot.slane %v5021, 5
        %v5058 = vsel %vm1797, %v5055, %v5057
        %v5059 = vrot.slane %v5022, 5
        %v5060 = vsel %vm1797, %v5057, %v5059
        %v5061 = vrot.slane %v5023, 5
        %v5062 = vsel %vm1797, %v5059, %v5061
        %v5063 = vrot.slane %v5024, 5
        %v5064 = vsel %vm1797, %v5061, %v5063
        %v5065 = vrot.slane %v5025, 5
        %v5066 = vsel %vm1797, %v5063, %v5065
        %v5067 = vrot.slane %v5026, 5
        %v5068 = vsel %vm1797, %v5065, %v5067
        %v5069 = vrot.slane %v5027, 5
        %v5070 = vsel %vm1797, %v5067, %v5069
        %v5071 = vrot.slane %v5028, 5
        %v5072 = vsel %vm1797, %v5069, %v5071
        %v5073 = vsel %vm2478, %v5054, 0
        %v5075 = vsel %vm2478, %v5056, 0
        %v5077 = vsel %vm2478, %v5058, 0
        %v5079 = vsel %vm2478, %v5060, 0
        %v5081 = vsel %vm2478, %v5062, 0
        %v5083 = vsel %vm2478, %v5064, 0
        %v5085 = vsel %vm2478, %v5066, 0
        %v5087 = vsel %vm2478, %v5068, 0
        %v5089 = vsel %vm2478, %v5070, 0
        %v5091 = vsel %vm2478, %v5072, 0
        %5093 = vmatpush.msra.mxu0 0.0
        %5094 = vmatpush.msra.mxu0 0.0
        %5095 = vmatpush.msra.mxu0 0.0
        %5096 = vmatpush.msra.mxu0 0.0
        %5097 = vmatpush.msra.mxu0 0.0
        %5098 = vmatpush.msra.mxu0 0.0
        %5099 = vmatpush.msra.mxu0 0.0
        %5100 = vmatpush.msra.mxu0 0.0
        %5101 = vmatpush.msra.mxu0 0.0
        %5102 = vmatpush.msra.mxu0 0.0
        %5103 = vmatpush.msra.mxu0 0.0
        %5104 = vmatpush.msra.mxu0 0.0
        %5105 = vmatpush.msra.mxu0 %v5038
        %5106 = vmatpush.msra.mxu0 %v5035
        %5107 = vmatpush.msra.mxu0 %v5032
        %5108 = vmatpush.msra.mxu0 %v5029
        %5109 = vmatmul.f32.gmra.mxu0 %v5073
        %v5110 = vpop.f32.mrf.mxu0
        %v5111 = vadd.f32 0.0, %v5110
        %5112 = vmatmul.f32.gmra.mxu0 %v5075
        %v5113 = vpop.f32.mrf.mxu0
        %v5114 = vadd.f32 0.0, %v5113
        %5115 = vmatmul.f32.gmra.mxu0 %v5077
        %v5116 = vpop.f32.mrf.mxu0
        %v5117 = vadd.f32 0.0, %v5116
        %5118 = vmatmul.f32.gmra.mxu0 %v5079
        %v5119 = vpop.f32.mrf.mxu0
        %v5120 = vadd.f32 0.0, %v5119
        %5121 = vmatmul.f32.gmra.mxu0 %v5081
        %v5122 = vpop.f32.mrf.mxu0
        %v5123 = vadd.f32 0.0, %v5122
        %5124 = vmatmul.f32.gmra.mxu0 %v5083
        %v5125 = vpop.f32.mrf.mxu0
        %v5126 = vadd.f32 0.0, %v5125
        %5127 = vmatmul.f32.gmra.mxu0 %v5085
        %v5128 = vpop.f32.mrf.mxu0
        %v5129 = vadd.f32 0.0, %v5128
        %5130 = vmatmul.f32.gmra.mxu0 %v5087
        %v5131 = vpop.f32.mrf.mxu0
        %v5132 = vadd.f32 0.0, %v5131
        %5133 = vmatmul.f32.gmra.mxu0 %v5089
        %v5134 = vpop.f32.mrf.mxu0
        %v5135 = vadd.f32 0.0, %v5134
        %5136 = vmatmul.f32.gmra.mxu0 %v5091
        %v5137 = vpop.f32.mrf.mxu0
        %v5138 = vadd.f32 0.0, %v5137
        %5139 = vdwg.mxu0
        %5140 = vmatpush.msra.mxu0 0.0
        %5141 = vmatpush.msra.mxu0 0.0
        %5142 = vmatpush.msra.mxu0 0.0
        %5143 = vmatpush.msra.mxu0 0.0
        %5144 = vmatpush.msra.mxu0 0.0
        %5145 = vmatpush.msra.mxu0 0.0
        %5146 = vmatpush.msra.mxu0 0.0
        %5147 = vmatpush.msra.mxu0 0.0
        %5148 = vmatpush.msra.mxu0 0.0
        %5149 = vmatpush.msra.mxu0 0.0
        %5150 = vmatpush.msra.mxu0 0.0
        %5151 = vmatpush.msra.mxu0 0.0
        %5152 = vmatpush.msra.mxu0 %v5039
        %5153 = vmatpush.msra.mxu0 %v5036
        %5154 = vmatpush.msra.mxu0 %v5033
        %5155 = vmatpush.msra.mxu0 %v5030
        %5156 = vmatmul.f32.gmra.mxu0 %v5073
        %v5157 = vpop.f32.mrf.mxu0
        %v5158 = vadd.f32 0.0, %v5157
        %5159 = vmatmul.f32.gmra.mxu0 %v5075
        %v5160 = vpop.f32.mrf.mxu0
        %v5161 = vadd.f32 0.0, %v5160
        %5162 = vmatmul.f32.gmra.mxu0 %v5077
        %v5163 = vpop.f32.mrf.mxu0
        %v5164 = vadd.f32 0.0, %v5163
        %5165 = vmatmul.f32.gmra.mxu0 %v5079
        %v5166 = vpop.f32.mrf.mxu0
        %v5167 = vadd.f32 0.0, %v5166
        %5168 = vmatmul.f32.gmra.mxu0 %v5081
        %v5169 = vpop.f32.mrf.mxu0
        %v5170 = vadd.f32 0.0, %v5169
        %5171 = vmatmul.f32.gmra.mxu0 %v5083
        %v5172 = vpop.f32.mrf.mxu0
        %v5173 = vadd.f32 0.0, %v5172
        %5174 = vmatmul.f32.gmra.mxu0 %v5085
        %v5175 = vpop.f32.mrf.mxu0
        %v5176 = vadd.f32 0.0, %v5175
        %5177 = vmatmul.f32.gmra.mxu0 %v5087
        %v5178 = vpop.f32.mrf.mxu0
        %v5179 = vadd.f32 0.0, %v5178
        %5180 = vmatmul.f32.gmra.mxu0 %v5089
        %v5181 = vpop.f32.mrf.mxu0
        %v5182 = vadd.f32 0.0, %v5181
        %5183 = vmatmul.f32.gmra.mxu0 %v5091
        %v5184 = vpop.f32.mrf.mxu0
        %v5185 = vadd.f32 0.0, %v5184
        %5186 = vdwg.mxu0
        %5187 = vmatpush.msra.mxu0 0.0
        %5188 = vmatpush.msra.mxu0 0.0
        %5189 = vmatpush.msra.mxu0 0.0
        %5190 = vmatpush.msra.mxu0 0.0
        %5191 = vmatpush.msra.mxu0 0.0
        %5192 = vmatpush.msra.mxu0 0.0
        %5193 = vmatpush.msra.mxu0 0.0
        %5194 = vmatpush.msra.mxu0 0.0
        %5195 = vmatpush.msra.mxu0 0.0
        %5196 = vmatpush.msra.mxu0 0.0
        %5197 = vmatpush.msra.mxu0 0.0
        %5198 = vmatpush.msra.mxu0 0.0
        %5199 = vmatpush.msra.mxu0 %v5040
        %5200 = vmatpush.msra.mxu0 %v5037
        %5201 = vmatpush.msra.mxu0 %v5034
        %5202 = vmatpush.msra.mxu0 %v5031
        %5203 = vmatmul.f32.gmra.mxu0 %v5073
        %v5204 = vpop.f32.mrf.mxu0
        %v5205 = vadd.f32 0.0, %v5204
        %5206 = vmatmul.f32.gmra.mxu0 %v5075
        %v5207 = vpop.f32.mrf.mxu0
        %v5208 = vadd.f32 0.0, %v5207
        %5209 = vmatmul.f32.gmra.mxu0 %v5077
        %v5210 = vpop.f32.mrf.mxu0
        %v5211 = vadd.f32 0.0, %v5210
        %5212 = vmatmul.f32.gmra.mxu0 %v5079
        %v5213 = vpop.f32.mrf.mxu0
        %v5214 = vadd.f32 0.0, %v5213
        %5215 = vmatmul.f32.gmra.mxu0 %v5081
        %v5216 = vpop.f32.mrf.mxu0
        %v5217 = vadd.f32 0.0, %v5216
        %5218 = vmatmul.f32.gmra.mxu0 %v5083
        %v5219 = vpop.f32.mrf.mxu0
        %v5220 = vadd.f32 0.0, %v5219
        %5221 = vmatmul.f32.gmra.mxu0 %v5085
        %v5222 = vpop.f32.mrf.mxu0
        %v5223 = vadd.f32 0.0, %v5222
        %5224 = vmatmul.f32.gmra.mxu0 %v5087
        %v5225 = vpop.f32.mrf.mxu0
        %v5226 = vadd.f32 0.0, %v5225
        %5227 = vmatmul.f32.gmra.mxu0 %v5089
        %v5228 = vpop.f32.mrf.mxu0
        %v5229 = vadd.f32 0.0, %v5228
        %5230 = vmatmul.f32.gmra.mxu0 %v5091
        %v5231 = vpop.f32.mrf.mxu0
        %v5232 = vadd.f32 0.0, %v5231
        %5233 = vdwg.mxu0
        %v5234 = vmul.f32 %v5111, %v787
        %v5235 = vmul.f32 %v5114, %v789
        %v5236 = vmul.f32 %v5117, %v791
        %v5237 = vmul.f32 %v5120, %v793
        %v5238 = vmul.f32 %v5123, %v795
        %v5239 = vmul.f32 %v5126, %v797
        %v5240 = vmul.f32 %v5129, %v799
        %v5241 = vmul.f32 %v5132, %v801
        %v5242 = vmul.f32 %v5135, %v803
        %v5243 = vmul.f32 %v5138, %v802
        %v5244 = vmul.f32 %v5111, %v870
        %v5245 = vmul.f32 %v5114, %v872
        %v5246 = vmul.f32 %v5117, %v874
        %v5247 = vmul.f32 %v5120, %v876
        %v5248 = vmul.f32 %v5123, %v878
        %v5249 = vmul.f32 %v5126, %v880
        %v5250 = vmul.f32 %v5129, %v882
        %v5251 = vmul.f32 %v5132, %v884
        %v5252 = vmul.f32 %v5135, %v886
        %v5253 = vmul.f32 %v5138, %v888
        %v5264 = vrot.slane %v5244, 1
        %v5265 = vsel %vm922, %v923, %v5264
        %v5266 = vrot.slane %v5245, 1
        %v5267 = vsel %vm922, %v5264, %v5266
        %v5268 = vrot.slane %v5246, 1
        %v5269 = vsel %vm922, %v5266, %v5268
        %v5270 = vrot.slane %v5247, 1
        %v5271 = vsel %vm922, %v5268, %v5270
        %v5272 = vrot.slane %v5248, 1
        %v5273 = vsel %vm922, %v5270, %v5272
        %v5274 = vrot.slane %v5249, 1
        %v5275 = vsel %vm922, %v5272, %v5274
        %v5276 = vrot.slane %v5250, 1
        %v5277 = vsel %vm922, %v5274, %v5276
        %v5278 = vrot.slane %v5251, 1
        %v5279 = vsel %vm922, %v5276, %v5278
        %v5280 = vrot.slane %v5252, 1
        %v5281 = vsel %vm922, %v5278, %v5280
        %v5282 = vrot.slane %v5253, 1
        %v5283 = vsel %vm922, %v5280, %v5282
        %5284 = vrot.lane.b32.xlu0 %v5265, 96
        %v5285 = vpop.permute.xlu0 %5284
        %5286 = vrot.lane.b32.xlu0 %v5267, 96
        %v5287 = vpop.permute.xlu0 %5286
        %5288 = vrot.lane.b32.xlu0 %v5269, 96
        %v5289 = vpop.permute.xlu0 %5288
        %5290 = vrot.lane.b32.xlu0 %v5271, 96
        %v5291 = vpop.permute.xlu0 %5290
        %5292 = vrot.lane.b32.xlu0 %v5273, 96
        %v5293 = vpop.permute.xlu0 %5292
        %5294 = vrot.lane.b32.xlu0 %v5275, 96
        %v5295 = vpop.permute.xlu0 %5294
        %5296 = vrot.lane.b32.xlu0 %v5277, 96
        %v5297 = vpop.permute.xlu0 %5296
        %5298 = vrot.lane.b32.xlu0 %v5279, 96
        %v5299 = vpop.permute.xlu0 %5298
        %5300 = vrot.lane.b32.xlu0 %v5281, 96
        %v5301 = vpop.permute.xlu0 %5300
        %5302 = vrot.lane.b32.xlu0 %v5283, 96
        %v5303 = vpop.permute.xlu0 %5302
        %5304 = vrot.lane.b32.xlu0 %v5282, 96
        %v5305 = vpop.permute.xlu0 %5304
        %v5317 = vadd.f32 %v815, %v5285
        %v5318 = vadd.f32 %v5234, %v5287
        %v5319 = vadd.f32 %v5235, %v5289
        %v5320 = vadd.f32 %v5236, %v5291
        %v5321 = vadd.f32 %v5237, %v5293
        %v5322 = vadd.f32 %v5238, %v5295
        %v5323 = vadd.f32 %v5239, %v5297
        %v5324 = vadd.f32 %v5240, %v5299
        %v5325 = vadd.f32 %v5241, %v5301
        %v5326 = vadd.f32 %v5242, %v5303
        %v5327 = vadd.f32 %v5243, %v5305
        %v5328 = vmul.f32 %v5111, %v1031
        %v5329 = vmul.f32 %v5114, %v1033
        %v5330 = vmul.f32 %v5117, %v1035
        %v5331 = vmul.f32 %v5120, %v1037
        %v5332 = vmul.f32 %v5123, %v1039
        %v5333 = vmul.f32 %v5126, %v1041
        %v5334 = vmul.f32 %v5129, %v1043
        %v5335 = vmul.f32 %v5132, %v1045
        %v5336 = vmul.f32 %v5135, %v1047
        %v5337 = vmul.f32 %v5138, %v1049
        %v5348 = vrot.slane %v5328, 2
        %v5349 = vsel %vm847, %v1083, %v5348
        %v5350 = vrot.slane %v5329, 2
        %v5351 = vsel %vm847, %v5348, %v5350
        %v5352 = vrot.slane %v5330, 2
        %v5353 = vsel %vm847, %v5350, %v5352
        %v5354 = vrot.slane %v5331, 2
        %v5355 = vsel %vm847, %v5352, %v5354
        %v5356 = vrot.slane %v5332, 2
        %v5357 = vsel %vm847, %v5354, %v5356
        %v5358 = vrot.slane %v5333, 2
        %v5359 = vsel %vm847, %v5356, %v5358
        %v5360 = vrot.slane %v5334, 2
        %v5361 = vsel %vm847, %v5358, %v5360
        %v5362 = vrot.slane %v5335, 2
        %v5363 = vsel %vm847, %v5360, %v5362
        %v5364 = vrot.slane %v5336, 2
        %v5365 = vsel %vm847, %v5362, %v5364
        %v5366 = vrot.slane %v5337, 2
        %v5367 = vsel %vm847, %v5364, %v5366
        %5368 = vrot.lane.b32.xlu0 %v5349, 64
        %v5369 = vpop.permute.xlu0 %5368
        %5370 = vrot.lane.b32.xlu0 %v5351, 64
        %v5371 = vpop.permute.xlu0 %5370
        %5372 = vrot.lane.b32.xlu0 %v5353, 64
        %v5373 = vpop.permute.xlu0 %5372
        %5374 = vrot.lane.b32.xlu0 %v5355, 64
        %v5375 = vpop.permute.xlu0 %5374
        %5376 = vrot.lane.b32.xlu0 %v5357, 64
        %v5377 = vpop.permute.xlu0 %5376
        %5378 = vrot.lane.b32.xlu0 %v5359, 64
        %v5379 = vpop.permute.xlu0 %5378
        %5380 = vrot.lane.b32.xlu0 %v5361, 64
        %v5381 = vpop.permute.xlu0 %5380
        %5382 = vrot.lane.b32.xlu0 %v5363, 64
        %v5383 = vpop.permute.xlu0 %5382
        %5384 = vrot.lane.b32.xlu0 %v5365, 64
        %v5385 = vpop.permute.xlu0 %5384
        %5386 = vrot.lane.b32.xlu0 %v5367, 64
        %v5387 = vpop.permute.xlu0 %5386
        %5388 = vrot.lane.b32.xlu0 %v5366, 64
        %v5389 = vpop.permute.xlu0 %5388
        %v5401 = vadd.f32 %v5317, %v5369
        %v5402 = vadd.f32 %v5318, %v5371
        %v5403 = vadd.f32 %v5319, %v5373
        %v5404 = vadd.f32 %v5320, %v5375
        %v5405 = vadd.f32 %v5321, %v5377
        %v5406 = vadd.f32 %v5322, %v5379
        %v5407 = vadd.f32 %v5323, %v5381
        %v5408 = vadd.f32 %v5324, %v5383
        %v5409 = vadd.f32 %v5325, %v5385
        %v5410 = vadd.f32 %v5326, %v5387
        %v5411 = vadd.f32 %v5327, %v5389
        %v5412 = vmul.f32 %v5111, %v1191
        %v5413 = vmul.f32 %v5114, %v1193
        %v5414 = vmul.f32 %v5117, %v1195
        %v5415 = vmul.f32 %v5120, %v1197
        %v5416 = vmul.f32 %v5123, %v1199
        %v5417 = vmul.f32 %v5126, %v1201
        %v5418 = vmul.f32 %v5129, %v1203
        %v5419 = vmul.f32 %v5132, %v1205
        %v5420 = vmul.f32 %v5135, %v1207
        %v5421 = vmul.f32 %v5138, %v1209
        %v5432 = vrot.slane %v5412, 2
        %v5433 = vsel %vm847, %v1243, %v5432
        %v5434 = vrot.slane %v5413, 2
        %v5435 = vsel %vm847, %v5432, %v5434
        %v5436 = vrot.slane %v5414, 2
        %v5437 = vsel %vm847, %v5434, %v5436
        %v5438 = vrot.slane %v5415, 2
        %v5439 = vsel %vm847, %v5436, %v5438
        %v5440 = vrot.slane %v5416, 2
        %v5441 = vsel %vm847, %v5438, %v5440
        %v5442 = vrot.slane %v5417, 2
        %v5443 = vsel %vm847, %v5440, %v5442
        %v5444 = vrot.slane %v5418, 2
        %v5445 = vsel %vm847, %v5442, %v5444
        %v5446 = vrot.slane %v5419, 2
        %v5447 = vsel %vm847, %v5444, %v5446
        %v5448 = vrot.slane %v5420, 2
        %v5449 = vsel %vm847, %v5446, %v5448
        %v5450 = vrot.slane %v5421, 2
        %v5451 = vsel %vm847, %v5448, %v5450
        %5452 = vrot.lane.b32.xlu0 %v5433, 32
        %v5453 = vpop.permute.xlu0 %5452
        %5454 = vrot.lane.b32.xlu0 %v5435, 32
        %v5455 = vpop.permute.xlu0 %5454
        %5456 = vrot.lane.b32.xlu0 %v5437, 32
        %v5457 = vpop.permute.xlu0 %5456
        %5458 = vrot.lane.b32.xlu0 %v5439, 32
        %v5459 = vpop.permute.xlu0 %5458
        %5460 = vrot.lane.b32.xlu0 %v5441, 32
        %v5461 = vpop.permute.xlu0 %5460
        %5462 = vrot.lane.b32.xlu0 %v5443, 32
        %v5463 = vpop.permute.xlu0 %5462
        %5464 = vrot.lane.b32.xlu0 %v5445, 32
        %v5465 = vpop.permute.xlu0 %5464
        %5466 = vrot.lane.b32.xlu0 %v5447, 32
        %v5467 = vpop.permute.xlu0 %5466
        %5468 = vrot.lane.b32.xlu0 %v5449, 32
        %v5469 = vpop.permute.xlu0 %5468
        %5470 = vrot.lane.b32.xlu0 %v5451, 32
        %v5471 = vpop.permute.xlu0 %5470
        %5472 = vrot.lane.b32.xlu0 %v5450, 32
        %v5473 = vpop.permute.xlu0 %5472
        %v5485 = vadd.f32 %v5401, %v5453
        %v5486 = vadd.f32 %v5402, %v5455
        %v5487 = vadd.f32 %v5403, %v5457
        %v5488 = vadd.f32 %v5404, %v5459
        %v5489 = vadd.f32 %v5405, %v5461
        %v5490 = vadd.f32 %v5406, %v5463
        %v5491 = vadd.f32 %v5407, %v5465
        %v5492 = vadd.f32 %v5408, %v5467
        %v5493 = vadd.f32 %v5409, %v5469
        %v5494 = vadd.f32 %v5410, %v5471
        %v5495 = vadd.f32 %v5411, %v5473
        %v5496 = vmul.f32 %v5158, %v1309
        %v5497 = vmul.f32 %v5161, %v1310
        %v5498 = vmul.f32 %v5164, %v1311
        %v5499 = vmul.f32 %v5167, %v1312
        %v5500 = vmul.f32 %v5170, %v1313
        %v5501 = vmul.f32 %v5173, %v1314
        %v5502 = vmul.f32 %v5176, %v1315
        %v5503 = vmul.f32 %v5179, %v1316
        %v5504 = vmul.f32 %v5182, %v1317
        %v5505 = vmul.f32 %v5185, %v1318
        %v5516 = vrot.slane %v5496, 3
        %v5517 = vrot.slane %v5497, 3
        %v5518 = vsel %vm784, %v5516, %v5517
        %v5519 = vrot.slane %v5498, 3
        %v5520 = vsel %vm784, %v5517, %v5519
        %v5521 = vrot.slane %v5499, 3
        %v5522 = vsel %vm784, %v5519, %v5521
        %v5523 = vrot.slane %v5500, 3
        %v5524 = vsel %vm784, %v5521, %v5523
        %v5525 = vrot.slane %v5501, 3
        %v5526 = vsel %vm784, %v5523, %v5525
        %v5527 = vrot.slane %v5502, 3
        %v5528 = vsel %vm784, %v5525, %v5527
        %v5529 = vrot.slane %v5503, 3
        %v5530 = vsel %vm784, %v5527, %v5529
        %v5531 = vrot.slane %v5504, 3
        %v5532 = vsel %vm784, %v5529, %v5531
        %v5533 = vrot.slane %v5505, 3
        %v5534 = vsel %vm784, %v5531, %v5533
        %v5546 = vadd.f32 %v5485, %v5516
        %v5547 = vadd.f32 %v5486, %v5518
        %v5548 = vadd.f32 %v5487, %v5520
        %v5549 = vadd.f32 %v5488, %v5522
        %v5550 = vadd.f32 %v5489, %v5524
        %v5551 = vadd.f32 %v5490, %v5526
        %v5552 = vadd.f32 %v5491, %v5528
        %v5553 = vadd.f32 %v5492, %v5530
        %v5554 = vadd.f32 %v5493, %v5532
        %v5555 = vadd.f32 %v5494, %v5534
        %v5556 = vadd.f32 %v5495, %v5533
        %v5557 = vmul.f32 %v5158, %v1422
        %v5558 = vmul.f32 %v5161, %v1424
        %v5559 = vmul.f32 %v5164, %v1426
        %v5560 = vmul.f32 %v5167, %v1428
        %v5561 = vmul.f32 %v5170, %v1430
        %v5562 = vmul.f32 %v5173, %v1432
        %v5563 = vmul.f32 %v5176, %v1434
        %v5564 = vmul.f32 %v5179, %v1436
        %v5565 = vmul.f32 %v5182, %v1438
        %v5566 = vmul.f32 %v5185, %v1440
        %v5577 = vrot.slane %v5557, 4
        %v5578 = vrot.slane %v5558, 4
        %v5579 = vsel %vm1476, %v5577, %v5578
        %v5580 = vrot.slane %v5559, 4
        %v5581 = vsel %vm1476, %v5578, %v5580
        %v5582 = vrot.slane %v5560, 4
        %v5583 = vsel %vm1476, %v5580, %v5582
        %v5584 = vrot.slane %v5561, 4
        %v5585 = vsel %vm1476, %v5582, %v5584
        %v5586 = vrot.slane %v5562, 4
        %v5587 = vsel %vm1476, %v5584, %v5586
        %v5588 = vrot.slane %v5563, 4
        %v5589 = vsel %vm1476, %v5586, %v5588
        %v5590 = vrot.slane %v5564, 4
        %v5591 = vsel %vm1476, %v5588, %v5590
        %v5592 = vrot.slane %v5565, 4
        %v5593 = vsel %vm1476, %v5590, %v5592
        %v5594 = vrot.slane %v5566, 4
        %v5595 = vsel %vm1476, %v5592, %v5594
        %v5596 = vsel %vm1476, %v5594, %v1496
        %5597 = vrot.lane.b32.xlu0 %v5577, 96
        %v5598 = vpop.permute.xlu0 %5597
        %5599 = vrot.lane.b32.xlu0 %v5579, 96
        %v5600 = vpop.permute.xlu0 %5599
        %5601 = vrot.lane.b32.xlu0 %v5581, 96
        %v5602 = vpop.permute.xlu0 %5601
        %5603 = vrot.lane.b32.xlu0 %v5583, 96
        %v5604 = vpop.permute.xlu0 %5603
        %5605 = vrot.lane.b32.xlu0 %v5585, 96
        %v5606 = vpop.permute.xlu0 %5605
        %5607 = vrot.lane.b32.xlu0 %v5587, 96
        %v5608 = vpop.permute.xlu0 %5607
        %5609 = vrot.lane.b32.xlu0 %v5589, 96
        %v5610 = vpop.permute.xlu0 %5609
        %5611 = vrot.lane.b32.xlu0 %v5591, 96
        %v5612 = vpop.permute.xlu0 %5611
        %5613 = vrot.lane.b32.xlu0 %v5593, 96
        %v5614 = vpop.permute.xlu0 %5613
        %5615 = vrot.lane.b32.xlu0 %v5595, 96
        %v5616 = vpop.permute.xlu0 %5615
        %5617 = vrot.lane.b32.xlu0 %v5596, 96
        %v5618 = vpop.permute.xlu0 %5617
        %v5630 = vadd.f32 %v5546, %v5598
        %v5631 = vadd.f32 %v5547, %v5600
        %v5632 = vadd.f32 %v5548, %v5602
        %v5633 = vadd.f32 %v5549, %v5604
        %v5634 = vadd.f32 %v5550, %v5606
        %v5635 = vadd.f32 %v5551, %v5608
        %v5636 = vadd.f32 %v5552, %v5610
        %v5637 = vadd.f32 %v5553, %v5612
        %v5638 = vadd.f32 %v5554, %v5614
        %v5639 = vadd.f32 %v5555, %v5616
        %v5640 = vadd.f32 %v5556, %v5618
        %v5641 = vmul.f32 %v5158, %v1583
        %v5642 = vmul.f32 %v5161, %v1585
        %v5643 = vmul.f32 %v5164, %v1587
        %v5644 = vmul.f32 %v5167, %v1589
        %v5645 = vmul.f32 %v5170, %v1591
        %v5646 = vmul.f32 %v5173, %v1593
        %v5647 = vmul.f32 %v5176, %v1595
        %v5648 = vmul.f32 %v5179, %v1597
        %v5649 = vmul.f32 %v5182, %v1599
        %v5650 = vmul.f32 %v5185, %v1601
        %v5661 = vrot.slane %v5641, 4
        %v5662 = vrot.slane %v5642, 4
        %v5663 = vsel %vm1476, %v5661, %v5662
        %v5664 = vrot.slane %v5643, 4
        %v5665 = vsel %vm1476, %v5662, %v5664
        %v5666 = vrot.slane %v5644, 4
        %v5667 = vsel %vm1476, %v5664, %v5666
        %v5668 = vrot.slane %v5645, 4
        %v5669 = vsel %vm1476, %v5666, %v5668
        %v5670 = vrot.slane %v5646, 4
        %v5671 = vsel %vm1476, %v5668, %v5670
        %v5672 = vrot.slane %v5647, 4
        %v5673 = vsel %vm1476, %v5670, %v5672
        %v5674 = vrot.slane %v5648, 4
        %v5675 = vsel %vm1476, %v5672, %v5674
        %v5676 = vrot.slane %v5649, 4
        %v5677 = vsel %vm1476, %v5674, %v5676
        %v5678 = vrot.slane %v5650, 4
        %v5679 = vsel %vm1476, %v5676, %v5678
        %v5680 = vsel %vm1476, %v5678, %v1656
        %5681 = vrot.lane.b32.xlu0 %v5661, 64
        %v5682 = vpop.permute.xlu0 %5681
        %5683 = vrot.lane.b32.xlu0 %v5663, 64
        %v5684 = vpop.permute.xlu0 %5683
        %5685 = vrot.lane.b32.xlu0 %v5665, 64
        %v5686 = vpop.permute.xlu0 %5685
        %5687 = vrot.lane.b32.xlu0 %v5667, 64
        %v5688 = vpop.permute.xlu0 %5687
        %5689 = vrot.lane.b32.xlu0 %v5669, 64
        %v5690 = vpop.permute.xlu0 %5689
        %5691 = vrot.lane.b32.xlu0 %v5671, 64
        %v5692 = vpop.permute.xlu0 %5691
        %5693 = vrot.lane.b32.xlu0 %v5673, 64
        %v5694 = vpop.permute.xlu0 %5693
        %5695 = vrot.lane.b32.xlu0 %v5675, 64
        %v5696 = vpop.permute.xlu0 %5695
        %5697 = vrot.lane.b32.xlu0 %v5677, 64
        %v5698 = vpop.permute.xlu0 %5697
        %5699 = vrot.lane.b32.xlu0 %v5679, 64
        %v5700 = vpop.permute.xlu0 %5699
        %5701 = vrot.lane.b32.xlu0 %v5680, 64
        %v5702 = vpop.permute.xlu0 %5701
        %v5714 = vadd.f32 %v5630, %v5682
        %v5715 = vadd.f32 %v5631, %v5684
        %v5716 = vadd.f32 %v5632, %v5686
        %v5717 = vadd.f32 %v5633, %v5688
        %v5718 = vadd.f32 %v5634, %v5690
        %v5719 = vadd.f32 %v5635, %v5692
        %v5720 = vadd.f32 %v5636, %v5694
        %v5721 = vadd.f32 %v5637, %v5696
        %v5722 = vadd.f32 %v5638, %v5698
        %v5723 = vadd.f32 %v5639, %v5700
        %v5724 = vadd.f32 %v5640, %v5702
        %v5725 = vmul.f32 %v5158, %v1743
        %v5726 = vmul.f32 %v5161, %v1745
        %v5727 = vmul.f32 %v5164, %v1747
        %v5728 = vmul.f32 %v5167, %v1749
        %v5729 = vmul.f32 %v5170, %v1751
        %v5730 = vmul.f32 %v5173, %v1753
        %v5731 = vmul.f32 %v5176, %v1755
        %v5732 = vmul.f32 %v5179, %v1757
        %v5733 = vmul.f32 %v5182, %v1759
        %v5734 = vmul.f32 %v5185, %v1761
        %v5745 = vrot.slane %v5725, 5
        %v5746 = vrot.slane %v5726, 5
        %v5747 = vsel %vm1797, %v5745, %v5746
        %v5748 = vrot.slane %v5727, 5
        %v5749 = vsel %vm1797, %v5746, %v5748
        %v5750 = vrot.slane %v5728, 5
        %v5751 = vsel %vm1797, %v5748, %v5750
        %v5752 = vrot.slane %v5729, 5
        %v5753 = vsel %vm1797, %v5750, %v5752
        %v5754 = vrot.slane %v5730, 5
        %v5755 = vsel %vm1797, %v5752, %v5754
        %v5756 = vrot.slane %v5731, 5
        %v5757 = vsel %vm1797, %v5754, %v5756
        %v5758 = vrot.slane %v5732, 5
        %v5759 = vsel %vm1797, %v5756, %v5758
        %v5760 = vrot.slane %v5733, 5
        %v5761 = vsel %vm1797, %v5758, %v5760
        %v5762 = vrot.slane %v5734, 5
        %v5763 = vsel %vm1797, %v5760, %v5762
        %v5764 = vsel %vm1797, %v5762, %v1817
        %5765 = vrot.lane.b32.xlu0 %v5745, 32
        %v5766 = vpop.permute.xlu0 %5765
        %5767 = vrot.lane.b32.xlu0 %v5747, 32
        %v5768 = vpop.permute.xlu0 %5767
        %5769 = vrot.lane.b32.xlu0 %v5749, 32
        %v5770 = vpop.permute.xlu0 %5769
        %5771 = vrot.lane.b32.xlu0 %v5751, 32
        %v5772 = vpop.permute.xlu0 %5771
        %5773 = vrot.lane.b32.xlu0 %v5753, 32
        %v5774 = vpop.permute.xlu0 %5773
        %5775 = vrot.lane.b32.xlu0 %v5755, 32
        %v5776 = vpop.permute.xlu0 %5775
        %5777 = vrot.lane.b32.xlu0 %v5757, 32
        %v5778 = vpop.permute.xlu0 %5777
        %5779 = vrot.lane.b32.xlu0 %v5759, 32
        %v5780 = vpop.permute.xlu0 %5779
        %5781 = vrot.lane.b32.xlu0 %v5761, 32
        %v5782 = vpop.permute.xlu0 %5781
        %5783 = vrot.lane.b32.xlu0 %v5763, 32
        %v5784 = vpop.permute.xlu0 %5783
        %5785 = vrot.lane.b32.xlu0 %v5764, 32
        %v5786 = vpop.permute.xlu0 %5785
        %v5798 = vadd.f32 %v5714, %v5766
        %v5799 = vadd.f32 %v5715, %v5768
        %v5800 = vadd.f32 %v5716, %v5770
        %v5801 = vadd.f32 %v5717, %v5772
        %v5802 = vadd.f32 %v5718, %v5774
        %v5803 = vadd.f32 %v5719, %v5776
        %v5804 = vadd.f32 %v5720, %v5778
        %v5805 = vadd.f32 %v5721, %v5780
        %v5806 = vadd.f32 %v5722, %v5782
        %v5807 = vadd.f32 %v5723, %v5784
        %v5808 = vadd.f32 %v5724, %v5786
        %v5809 = vmul.f32 %v5205, %v1884
        %v5810 = vmul.f32 %v5208, %v1886
        %v5811 = vmul.f32 %v5211, %v1888
        %v5812 = vmul.f32 %v5214, %v1890
        %v5813 = vmul.f32 %v5217, %v1892
        %v5814 = vmul.f32 %v5220, %v1894
        %v5815 = vmul.f32 %v5223, %v1896
        %v5816 = vmul.f32 %v5226, %v1898
        %v5817 = vmul.f32 %v5229, %v1900
        %v5818 = vmul.f32 %v5232, %v1902
        %v5829 = vrot.slane %v5809, 6
        %v5830 = vrot.slane %v5810, 6
        %v5831 = vsel %vm616, %v5829, %v5830
        %v5832 = vrot.slane %v5811, 6
        %v5833 = vsel %vm616, %v5830, %v5832
        %v5834 = vrot.slane %v5812, 6
        %v5835 = vsel %vm616, %v5832, %v5834
        %v5836 = vrot.slane %v5813, 6
        %v5837 = vsel %vm616, %v5834, %v5836
        %v5838 = vrot.slane %v5814, 6
        %v5839 = vsel %vm616, %v5836, %v5838
        %v5840 = vrot.slane %v5815, 6
        %v5841 = vsel %vm616, %v5838, %v5840
        %v5842 = vrot.slane %v5816, 6
        %v5843 = vsel %vm616, %v5840, %v5842
        %v5844 = vrot.slane %v5817, 6
        %v5845 = vsel %vm616, %v5842, %v5844
        %v5846 = vrot.slane %v5818, 6
        %v5847 = vsel %vm616, %v5844, %v5846
        %v5848 = vsel %vm616, %v5846, %v1955
        %v5860 = vadd.f32 %v5798, %v5829
        %v5861 = vadd.f32 %v5799, %v5831
        %v5862 = vadd.f32 %v5800, %v5833
        %v5863 = vadd.f32 %v5801, %v5835
        %v5864 = vadd.f32 %v5802, %v5837
        %v5865 = vadd.f32 %v5803, %v5839
        %v5866 = vadd.f32 %v5804, %v5841
        %v5867 = vadd.f32 %v5805, %v5843
        %v5868 = vadd.f32 %v5806, %v5845
        %v5869 = vadd.f32 %v5807, %v5847
        %v5870 = vadd.f32 %v5808, %v5848
        %v5871 = vld [vmem:[%s10] sm:$0x1]
        %v5873 = vperm.slane %v5871, 0
        %v5875 = vadd.f32 %v5860, %v5873
        %v5876 = vadd.f32 %v5861, %v5873
        %v5877 = vadd.f32 %v5862, %v5873
        %v5878 = vadd.f32 %v5863, %v5873
        %v5879 = vadd.f32 %v5864, %v5873
        %v5880 = vadd.f32 %v5865, %v5873
        %v5881 = vadd.f32 %v5866, %v5873
        %v5882 = vadd.f32 %v5867, %v5873
        %v5883 = vadd.f32 %v5868, %v5873
        %v5884 = vadd.f32 %v5869, %v5873
        %v5885 = vadd.f32 %v5870, %v5873
        %v5886 = vmul.f32 %v5875, 0.5
        %v5887 = vmul.f32 %v5876, 0.5
        %v5888 = vmul.f32 %v5877, 0.5
        %v5889 = vmul.f32 %v5878, 0.5
        %v5890 = vmul.f32 %v5879, 0.5
        %v5891 = vmul.f32 %v5880, 0.5
        %v5892 = vmul.f32 %v5881, 0.5
        %v5893 = vmul.f32 %v5882, 0.5
        %v5894 = vmul.f32 %v5883, 0.5
        %v5895 = vmul.f32 %v5884, 0.5
        %v5896 = vmul.f32 %v5885, 0.5
        %v5897 = vmul.f32 %v5875, 0.70710677
        %v5898 = vmul.f32 %v5876, 0.70710677
        %v5899 = vmul.f32 %v5877, 0.70710677
        %v5900 = vmul.f32 %v5878, 0.70710677
        %v5901 = vmul.f32 %v5879, 0.70710677
        %v5902 = vmul.f32 %v5880, 0.70710677
        %v5903 = vmul.f32 %v5881, 0.70710677
        %v5904 = vmul.f32 %v5882, 0.70710677
        %v5905 = vmul.f32 %v5883, 0.70710677
        %v5906 = vmul.f32 %v5884, 0.70710677
        %v5907 = vmul.f32 %v5885, 0.70710677
        %v5908 = vand.u32 2147483647, %v5897
        %v5909 = vand.u32 2147483647, %v5898
        %v5910 = vand.u32 2147483647, %v5899
        %v5911 = vand.u32 2147483647, %v5900
        %v5912 = vand.u32 2147483647, %v5901
        %v5913 = vand.u32 2147483647, %v5902
        %v5914 = vand.u32 2147483647, %v5903
        %v5915 = vand.u32 2147483647, %v5904
        %v5916 = vand.u32 2147483647, %v5905
        %v5917 = vand.u32 2147483647, %v5906
        %v5918 = vand.u32 2147483647, %v5907
        %v5919 = vmul.f32 %v5908, 0.3275911
        %v5920 = vmul.f32 %v5909, 0.3275911
        %v5921 = vmul.f32 %v5910, 0.3275911
        %v5922 = vmul.f32 %v5911, 0.3275911
        %v5923 = vmul.f32 %v5912, 0.3275911
        %v5924 = vmul.f32 %v5913, 0.3275911
        %v5925 = vmul.f32 %v5914, 0.3275911
        %v5926 = vmul.f32 %v5915, 0.3275911
        %v5927 = vmul.f32 %v5916, 0.3275911
        %v5928 = vmul.f32 %v5917, 0.3275911
        %v5929 = vmul.f32 %v5918, 0.3275911
        %v5930 = vadd.f32 %v5919, 1.0
        %v5931 = vadd.f32 %v5920, 1.0
        %v5932 = vadd.f32 %v5921, 1.0
        %v5933 = vadd.f32 %v5922, 1.0
        %v5934 = vadd.f32 %v5923, 1.0
        %v5935 = vadd.f32 %v5924, 1.0
        %v5936 = vadd.f32 %v5925, 1.0
        %v5937 = vadd.f32 %v5926, 1.0
        %v5938 = vadd.f32 %v5927, 1.0
        %v5939 = vadd.f32 %v5928, 1.0
        %v5940 = vadd.f32 %v5929, 1.0
        %v5941 = vrcp.pop %v5930
        %v5942 = vmul.f32 %v5930, %v5941
        %v5943 = vsub.f32 1.0, %v5942
        %v5944 = vmul.f32 %v5941, %v5943
        %v5945 = vadd.f32 %v5941, %v5944
        %vm5946 = vweird.f32 %v5930
        %vm5947 = vweird.f32 %v5941
        %vm5948 = vmor %vm5946, %vm5947
        %v5949 = vsel %vm5948, %v5941, %v5945
        %v5950 = vand.u32 2147483647, %v5930
        %vm5951 = vcmp.eq.f32.partialorder %v5950, 8.507059e+37
        %v5952 = vand.u32 %v5930, 2147483648
        %v5953 = vor.u32 1.1754944e-38, %v5952
        %v5954 = vsel %vm5951, %v5953, %v5949
        %v5955 = vmul.f32 1.0, %v5954
        %v5956 = vrcp.pop %v5931
        %v5957 = vmul.f32 %v5931, %v5956
        %v5958 = vsub.f32 1.0, %v5957
        %v5959 = vmul.f32 %v5956, %v5958
        %v5960 = vadd.f32 %v5956, %v5959
        %vm5961 = vweird.f32 %v5931
        %vm5962 = vweird.f32 %v5956
        %vm5963 = vmor %vm5961, %vm5962
        %v5964 = vsel %vm5963, %v5956, %v5960
        %v5965 = vand.u32 2147483647, %v5931
        %vm5966 = vcmp.eq.f32.partialorder %v5965, 8.507059e+37
        %v5967 = vand.u32 %v5931, 2147483648
        %v5968 = vor.u32 1.1754944e-38, %v5967
        %v5969 = vsel %vm5966, %v5968, %v5964
        %v5970 = vmul.f32 1.0, %v5969
        %v5971 = vrcp.pop %v5932
        %v5972 = vmul.f32 %v5932, %v5971
        %v5973 = vsub.f32 1.0, %v5972
        %v5974 = vmul.f32 %v5971, %v5973
        %v5975 = vadd.f32 %v5971, %v5974
        %vm5976 = vweird.f32 %v5932
        %vm5977 = vweird.f32 %v5971
        %vm5978 = vmor %vm5976, %vm5977
        %v5979 = vsel %vm5978, %v5971, %v5975
        %v5980 = vand.u32 2147483647, %v5932
        %vm5981 = vcmp.eq.f32.partialorder %v5980, 8.507059e+37
        %v5982 = vand.u32 %v5932, 2147483648
        %v5983 = vor.u32 1.1754944e-38, %v5982
        %v5984 = vsel %vm5981, %v5983, %v5979
        %v5985 = vmul.f32 1.0, %v5984
        %v5986 = vrcp.pop %v5933
        %v5987 = vmul.f32 %v5933, %v5986
        %v5988 = vsub.f32 1.0, %v5987
        %v5989 = vmul.f32 %v5986, %v5988
        %v5990 = vadd.f32 %v5986, %v5989
        %vm5991 = vweird.f32 %v5933
        %vm5992 = vweird.f32 %v5986
        %vm5993 = vmor %vm5991, %vm5992
        %v5994 = vsel %vm5993, %v5986, %v5990
        %v5995 = vand.u32 2147483647, %v5933
        %vm5996 = vcmp.eq.f32.partialorder %v5995, 8.507059e+37
        %v5997 = vand.u32 %v5933, 2147483648
        %v5998 = vor.u32 1.1754944e-38, %v5997
        %v5999 = vsel %vm5996, %v5998, %v5994
        %v6000 = vmul.f32 1.0, %v5999
        %v6001 = vrcp.pop %v5934
        %v6002 = vmul.f32 %v5934, %v6001
        %v6003 = vsub.f32 1.0, %v6002
        %v6004 = vmul.f32 %v6001, %v6003
        %v6005 = vadd.f32 %v6001, %v6004
        %vm6006 = vweird.f32 %v5934
        %vm6007 = vweird.f32 %v6001
        %vm6008 = vmor %vm6006, %vm6007
        %v6009 = vsel %vm6008, %v6001, %v6005
        %v6010 = vand.u32 2147483647, %v5934
        %vm6011 = vcmp.eq.f32.partialorder %v6010, 8.507059e+37
        %v6012 = vand.u32 %v5934, 2147483648
        %v6013 = vor.u32 1.1754944e-38, %v6012
        %v6014 = vsel %vm6011, %v6013, %v6009
        %v6015 = vmul.f32 1.0, %v6014
        %v6016 = vrcp.pop %v5935
        %v6017 = vmul.f32 %v5935, %v6016
        %v6018 = vsub.f32 1.0, %v6017
        %v6019 = vmul.f32 %v6016, %v6018
        %v6020 = vadd.f32 %v6016, %v6019
        %vm6021 = vweird.f32 %v5935
        %vm6022 = vweird.f32 %v6016
        %vm6023 = vmor %vm6021, %vm6022
        %v6024 = vsel %vm6023, %v6016, %v6020
        %v6025 = vand.u32 2147483647, %v5935
        %vm6026 = vcmp.eq.f32.partialorder %v6025, 8.507059e+37
        %v6027 = vand.u32 %v5935, 2147483648
        %v6028 = vor.u32 1.1754944e-38, %v6027
        %v6029 = vsel %vm6026, %v6028, %v6024
        %v6030 = vmul.f32 1.0, %v6029
        %v6031 = vrcp.pop %v5936
        %v6032 = vmul.f32 %v5936, %v6031
        %v6033 = vsub.f32 1.0, %v6032
        %v6034 = vmul.f32 %v6031, %v6033
        %v6035 = vadd.f32 %v6031, %v6034
        %vm6036 = vweird.f32 %v5936
        %vm6037 = vweird.f32 %v6031
        %vm6038 = vmor %vm6036, %vm6037
        %v6039 = vsel %vm6038, %v6031, %v6035
        %v6040 = vand.u32 2147483647, %v5936
        %vm6041 = vcmp.eq.f32.partialorder %v6040, 8.507059e+37
        %v6042 = vand.u32 %v5936, 2147483648
        %v6043 = vor.u32 1.1754944e-38, %v6042
        %v6044 = vsel %vm6041, %v6043, %v6039
        %v6045 = vmul.f32 1.0, %v6044
        %v6046 = vrcp.pop %v5937
        %v6047 = vmul.f32 %v5937, %v6046
        %v6048 = vsub.f32 1.0, %v6047
        %v6049 = vmul.f32 %v6046, %v6048
        %v6050 = vadd.f32 %v6046, %v6049
        %vm6051 = vweird.f32 %v5937
        %vm6052 = vweird.f32 %v6046
        %vm6053 = vmor %vm6051, %vm6052
        %v6054 = vsel %vm6053, %v6046, %v6050
        %v6055 = vand.u32 2147483647, %v5937
        %vm6056 = vcmp.eq.f32.partialorder %v6055, 8.507059e+37
        %v6057 = vand.u32 %v5937, 2147483648
        %v6058 = vor.u32 1.1754944e-38, %v6057
        %v6059 = vsel %vm6056, %v6058, %v6054
        %v6060 = vmul.f32 1.0, %v6059
        %v6061 = vrcp.pop %v5938
        %v6062 = vmul.f32 %v5938, %v6061
        %v6063 = vsub.f32 1.0, %v6062
        %v6064 = vmul.f32 %v6061, %v6063
        %v6065 = vadd.f32 %v6061, %v6064
        %vm6066 = vweird.f32 %v5938
        %vm6067 = vweird.f32 %v6061
        %vm6068 = vmor %vm6066, %vm6067
        %v6069 = vsel %vm6068, %v6061, %v6065
        %v6070 = vand.u32 2147483647, %v5938
        %vm6071 = vcmp.eq.f32.partialorder %v6070, 8.507059e+37
        %v6072 = vand.u32 %v5938, 2147483648
        %v6073 = vor.u32 1.1754944e-38, %v6072
        %v6074 = vsel %vm6071, %v6073, %v6069
        %v6075 = vmul.f32 1.0, %v6074
        %v6076 = vrcp.pop %v5939
        %v6077 = vmul.f32 %v5939, %v6076
        %v6078 = vsub.f32 1.0, %v6077
        %v6079 = vmul.f32 %v6076, %v6078
        %v6080 = vadd.f32 %v6076, %v6079
        %vm6081 = vweird.f32 %v5939
        %vm6082 = vweird.f32 %v6076
        %vm6083 = vmor %vm6081, %vm6082
        %v6084 = vsel %vm6083, %v6076, %v6080
        %v6085 = vand.u32 2147483647, %v5939
        %vm6086 = vcmp.eq.f32.partialorder %v6085, 8.507059e+37
        %v6087 = vand.u32 %v5939, 2147483648
        %v6088 = vor.u32 1.1754944e-38, %v6087
        %v6089 = vsel %vm6086, %v6088, %v6084
        %v6090 = vmul.f32 1.0, %v6089
        %v6091 = vrcp.pop %v5940
        %v6092 = vmul.f32 %v5940, %v6091
        %v6093 = vsub.f32 1.0, %v6092
        %v6094 = vmul.f32 %v6091, %v6093
        %v6095 = vadd.f32 %v6091, %v6094
        %vm6096 = vweird.f32 %v5940
        %vm6097 = vweird.f32 %v6091
        %vm6098 = vmor %vm6096, %vm6097
        %v6099 = vsel %vm6098, %v6091, %v6095
        %v6100 = vand.u32 2147483647, %v5940
        %vm6101 = vcmp.eq.f32.partialorder %v6100, 8.507059e+37
        %v6102 = vand.u32 %v5940, 2147483648
        %v6103 = vor.u32 1.1754944e-38, %v6102
        %v6104 = vsel %vm6101, %v6103, %v6099
        %v6105 = vmul.f32 1.0, %v6104
        %v6106 = vmul.f32 %v5955, 1.0614054
        %v6107 = vmul.f32 %v5970, 1.0614054
        %v6108 = vmul.f32 %v5985, 1.0614054
        %v6109 = vmul.f32 %v6000, 1.0614054
        %v6110 = vmul.f32 %v6015, 1.0614054
        %v6111 = vmul.f32 %v6030, 1.0614054
        %v6112 = vmul.f32 %v6045, 1.0614054
        %v6113 = vmul.f32 %v6060, 1.0614054
        %v6114 = vmul.f32 %v6075, 1.0614054
        %v6115 = vmul.f32 %v6090, 1.0614054
        %v6116 = vmul.f32 %v6105, 1.0614054
        %v6117 = vadd.f32 %v6106, -1.4531521
        %v6118 = vadd.f32 %v6107, -1.4531521
        %v6119 = vadd.f32 %v6108, -1.4531521
        %v6120 = vadd.f32 %v6109, -1.4531521
        %v6121 = vadd.f32 %v6110, -1.4531521
        %v6122 = vadd.f32 %v6111, -1.4531521
        %v6123 = vadd.f32 %v6112, -1.4531521
        %v6124 = vadd.f32 %v6113, -1.4531521
        %v6125 = vadd.f32 %v6114, -1.4531521
        %v6126 = vadd.f32 %v6115, -1.4531521
        %v6127 = vadd.f32 %v6116, -1.4531521
        %v6128 = vmul.f32 %v6117, %v5955
        %v6129 = vmul.f32 %v6118, %v5970
        %v6130 = vmul.f32 %v6119, %v5985
        %v6131 = vmul.f32 %v6120, %v6000
        %v6132 = vmul.f32 %v6121, %v6015
        %v6133 = vmul.f32 %v6122, %v6030
        %v6134 = vmul.f32 %v6123, %v6045
        %v6135 = vmul.f32 %v6124, %v6060
        %v6136 = vmul.f32 %v6125, %v6075
        %v6137 = vmul.f32 %v6126, %v6090
        %v6138 = vmul.f32 %v6127, %v6105
        %v6139 = vadd.f32 %v6128, 1.4214138
        %v6140 = vadd.f32 %v6129, 1.4214138
        %v6141 = vadd.f32 %v6130, 1.4214138
        %v6142 = vadd.f32 %v6131, 1.4214138
        %v6143 = vadd.f32 %v6132, 1.4214138
        %v6144 = vadd.f32 %v6133, 1.4214138
        %v6145 = vadd.f32 %v6134, 1.4214138
        %v6146 = vadd.f32 %v6135, 1.4214138
        %v6147 = vadd.f32 %v6136, 1.4214138
        %v6148 = vadd.f32 %v6137, 1.4214138
        %v6149 = vadd.f32 %v6138, 1.4214138
        %v6150 = vmul.f32 %v6139, %v5955
        %v6151 = vmul.f32 %v6140, %v5970
        %v6152 = vmul.f32 %v6141, %v5985
        %v6153 = vmul.f32 %v6142, %v6000
        %v6154 = vmul.f32 %v6143, %v6015
        %v6155 = vmul.f32 %v6144, %v6030
        %v6156 = vmul.f32 %v6145, %v6045
        %v6157 = vmul.f32 %v6146, %v6060
        %v6158 = vmul.f32 %v6147, %v6075
        %v6159 = vmul.f32 %v6148, %v6090
        %v6160 = vmul.f32 %v6149, %v6105
        %v6161 = vadd.f32 %v6150, -0.28449672
        %v6162 = vadd.f32 %v6151, -0.28449672
        %v6163 = vadd.f32 %v6152, -0.28449672
        %v6164 = vadd.f32 %v6153, -0.28449672
        %v6165 = vadd.f32 %v6154, -0.28449672
        %v6166 = vadd.f32 %v6155, -0.28449672
        %v6167 = vadd.f32 %v6156, -0.28449672
        %v6168 = vadd.f32 %v6157, -0.28449672
        %v6169 = vadd.f32 %v6158, -0.28449672
        %v6170 = vadd.f32 %v6159, -0.28449672
        %v6171 = vadd.f32 %v6160, -0.28449672
        %v6172 = vmul.f32 %v6161, %v5955
        %v6173 = vmul.f32 %v6162, %v5970
        %v6174 = vmul.f32 %v6163, %v5985
        %v6175 = vmul.f32 %v6164, %v6000
        %v6176 = vmul.f32 %v6165, %v6015
        %v6177 = vmul.f32 %v6166, %v6030
        %v6178 = vmul.f32 %v6167, %v6045
        %v6179 = vmul.f32 %v6168, %v6060
        %v6180 = vmul.f32 %v6169, %v6075
        %v6181 = vmul.f32 %v6170, %v6090
        %v6182 = vmul.f32 %v6171, %v6105
        %v6183 = vadd.f32 %v6172, 0.2548296
        %v6184 = vadd.f32 %v6173, 0.2548296
        %v6185 = vadd.f32 %v6174, 0.2548296
        %v6186 = vadd.f32 %v6175, 0.2548296
        %v6187 = vadd.f32 %v6176, 0.2548296
        %v6188 = vadd.f32 %v6177, 0.2548296
        %v6189 = vadd.f32 %v6178, 0.2548296
        %v6190 = vadd.f32 %v6179, 0.2548296
        %v6191 = vadd.f32 %v6180, 0.2548296
        %v6192 = vadd.f32 %v6181, 0.2548296
        %v6193 = vadd.f32 %v6182, 0.2548296
        %v6194 = vmul.f32 %v6183, %v5955
        %v6195 = vmul.f32 %v6184, %v5970
        %v6196 = vmul.f32 %v6185, %v5985
        %v6197 = vmul.f32 %v6186, %v6000
        %v6198 = vmul.f32 %v6187, %v6015
        %v6199 = vmul.f32 %v6188, %v6030
        %v6200 = vmul.f32 %v6189, %v6045
        %v6201 = vmul.f32 %v6190, %v6060
        %v6202 = vmul.f32 %v6191, %v6075
        %v6203 = vmul.f32 %v6192, %v6090
        %v6204 = vmul.f32 %v6193, %v6105
        %v6205 = vsub.f32 0.0, %v5908
        %v6206 = vsub.f32 0.0, %v5909
        %v6207 = vsub.f32 0.0, %v5910
        %v6208 = vsub.f32 0.0, %v5911
        %v6209 = vsub.f32 0.0, %v5912
        %v6210 = vsub.f32 0.0, %v5913
        %v6211 = vsub.f32 0.0, %v5914
        %v6212 = vsub.f32 0.0, %v5915
        %v6213 = vsub.f32 0.0, %v5916
        %v6214 = vsub.f32 0.0, %v5917
        %v6215 = vsub.f32 0.0, %v5918
        %v6216 = vmul.f32 %v6205, %v5908
        %v6217 = vmul.f32 %v6206, %v5909
        %v6218 = vmul.f32 %v6207, %v5910
        %v6219 = vmul.f32 %v6208, %v5911
        %v6220 = vmul.f32 %v6209, %v5912
        %v6221 = vmul.f32 %v6210, %v5913
        %v6222 = vmul.f32 %v6211, %v5914
        %v6223 = vmul.f32 %v6212, %v5915
        %v6224 = vmul.f32 %v6213, %v5916
        %v6225 = vmul.f32 %v6214, %v5917
        %v6226 = vmul.f32 %v6215, %v5918
        %v6227 = vmul.f32 %v6216, 1.442695
        %v6228 = vpow.pop %v6227
        %v6229 = vmul.f32 %v6217, 1.442695
        %v6230 = vpow.pop %v6229
        %v6231 = vmul.f32 %v6218, 1.442695
        %v6232 = vpow.pop %v6231
        %v6233 = vmul.f32 %v6219, 1.442695
        %v6234 = vpow.pop %v6233
        %v6235 = vmul.f32 %v6220, 1.442695
        %v6236 = vpow.pop %v6235
        %v6237 = vmul.f32 %v6221, 1.442695
        %v6238 = vpow.pop %v6237
        %v6239 = vmul.f32 %v6222, 1.442695
        %v6240 = vpow.pop %v6239
        %v6241 = vmul.f32 %v6223, 1.442695
        %v6242 = vpow.pop %v6241
        %v6243 = vmul.f32 %v6224, 1.442695
        %v6244 = vpow.pop %v6243
        %v6245 = vmul.f32 %v6225, 1.442695
        %v6246 = vpow.pop %v6245
        %v6247 = vmul.f32 %v6226, 1.442695
        %v6248 = vpow.pop %v6247
        %v6249 = vmul.f32 %v6194, %v6228
        %v6250 = vmul.f32 %v6195, %v6230
        %v6251 = vmul.f32 %v6196, %v6232
        %v6252 = vmul.f32 %v6197, %v6234
        %v6253 = vmul.f32 %v6198, %v6236
        %v6254 = vmul.f32 %v6199, %v6238
        %v6255 = vmul.f32 %v6200, %v6240
        %v6256 = vmul.f32 %v6201, %v6242
        %v6257 = vmul.f32 %v6202, %v6244
        %v6258 = vmul.f32 %v6203, %v6246
        %v6259 = vmul.f32 %v6204, %v6248
        %v6260 = vsub.f32 1.0, %v6249
        %v6261 = vsub.f32 1.0, %v6250
        %v6262 = vsub.f32 1.0, %v6251
        %v6263 = vsub.f32 1.0, %v6252
        %v6264 = vsub.f32 1.0, %v6253
        %v6265 = vsub.f32 1.0, %v6254
        %v6266 = vsub.f32 1.0, %v6255
        %v6267 = vsub.f32 1.0, %v6256
        %v6268 = vsub.f32 1.0, %v6257
        %v6269 = vsub.f32 1.0, %v6258
        %v6270 = vsub.f32 1.0, %v6259
        %vm6271 = vcmp.lt.f32.partialorder %v5897, 0.0
        %vm6272 = vcmp.lt.f32.partialorder %v5898, 0.0
        %vm6273 = vcmp.lt.f32.partialorder %v5899, 0.0
        %vm6274 = vcmp.lt.f32.partialorder %v5900, 0.0
        %vm6275 = vcmp.lt.f32.partialorder %v5901, 0.0
        %vm6276 = vcmp.lt.f32.partialorder %v5902, 0.0
        %vm6277 = vcmp.lt.f32.partialorder %v5903, 0.0
        %vm6278 = vcmp.lt.f32.partialorder %v5904, 0.0
        %vm6279 = vcmp.lt.f32.partialorder %v5905, 0.0
        %vm6280 = vcmp.lt.f32.partialorder %v5906, 0.0
        %vm6281 = vcmp.lt.f32.partialorder %v5907, 0.0
        %v6282 = vsub.f32 0.0, %v6260
        %v6283 = vsub.f32 0.0, %v6261
        %v6284 = vsub.f32 0.0, %v6262
        %v6285 = vsub.f32 0.0, %v6263
        %v6286 = vsub.f32 0.0, %v6264
        %v6287 = vsub.f32 0.0, %v6265
        %v6288 = vsub.f32 0.0, %v6266
        %v6289 = vsub.f32 0.0, %v6267
        %v6290 = vsub.f32 0.0, %v6268
        %v6291 = vsub.f32 0.0, %v6269
        %v6292 = vsub.f32 0.0, %v6270
        %v6293 = vsel %vm6271, %v6282, %v6260
        %v6294 = vsel %vm6272, %v6283, %v6261
        %v6295 = vsel %vm6273, %v6284, %v6262
        %v6296 = vsel %vm6274, %v6285, %v6263
        %v6297 = vsel %vm6275, %v6286, %v6264
        %v6298 = vsel %vm6276, %v6287, %v6265
        %v6299 = vsel %vm6277, %v6288, %v6266
        %v6300 = vsel %vm6278, %v6289, %v6267
        %v6301 = vsel %vm6279, %v6290, %v6268
        %v6302 = vsel %vm6280, %v6291, %v6269
        %v6303 = vsel %vm6281, %v6292, %v6270
        %v6304 = vadd.f32 %v6293, 1.0
        %v6305 = vadd.f32 %v6294, 1.0
        %v6306 = vadd.f32 %v6295, 1.0
        %v6307 = vadd.f32 %v6296, 1.0
        %v6308 = vadd.f32 %v6297, 1.0
        %v6309 = vadd.f32 %v6298, 1.0
        %v6310 = vadd.f32 %v6299, 1.0
        %v6311 = vadd.f32 %v6300, 1.0
        %v6312 = vadd.f32 %v6301, 1.0
        %v6313 = vadd.f32 %v6302, 1.0
        %v6314 = vadd.f32 %v6303, 1.0
        %v6315 = vmul.f32 %v5886, %v6304
        %v6316 = vmul.f32 %v5887, %v6305
        %v6317 = vmul.f32 %v5888, %v6306
        %v6318 = vmul.f32 %v5889, %v6307
        %v6319 = vmul.f32 %v5890, %v6308
        %v6320 = vmul.f32 %v5891, %v6309
        %v6321 = vmul.f32 %v5892, %v6310
        %v6322 = vmul.f32 %v5893, %v6311
        %v6323 = vmul.f32 %v5894, %v6312
        %v6324 = vmul.f32 %v5895, %v6313
        %v6325 = vmul.f32 %v5896, %v6314
        %vm6326 = vcmask 261125
        %v6327 = vsel %vm6326, %v6315, 0.0
        %6328 = vadd.xlane.f32.xlu0 %v6327
        %v6329 = vpop.xlane.xlu0 %6328
        %v6330 = vsel %vm2478, %v6316, 0.0
        %6331 = vadd.xlane.f32.xlu0 %v6330
        %v6332 = vpop.xlane.xlu0 %6331
        %v6333 = vsel %vm2478, %v6317, 0.0
        %6334 = vadd.xlane.f32.xlu0 %v6333
        %v6335 = vpop.xlane.xlu0 %6334
        %v6336 = vsel %vm2478, %v6318, 0.0
        %6337 = vadd.xlane.f32.xlu0 %v6336
        %v6338 = vpop.xlane.xlu0 %6337
        %v6339 = vsel %vm2478, %v6319, 0.0
        %6340 = vadd.xlane.f32.xlu0 %v6339
        %v6341 = vpop.xlane.xlu0 %6340
        %v6342 = vsel %vm2478, %v6320, 0.0
        %6343 = vadd.xlane.f32.xlu0 %v6342
        %v6344 = vpop.xlane.xlu0 %6343
        %v6345 = vsel %vm2478, %v6321, 0.0
        %6346 = vadd.xlane.f32.xlu0 %v6345
        %v6347 = vpop.xlane.xlu0 %6346
        %v6348 = vsel %vm2478, %v6322, 0.0
        %6349 = vadd.xlane.f32.xlu0 %v6348
        %v6350 = vpop.xlane.xlu0 %6349
        %v6351 = vsel %vm2478, %v6323, 0.0
        %6352 = vadd.xlane.f32.xlu0 %v6351
        %v6353 = vpop.xlane.xlu0 %6352
        %v6354 = vsel %vm2478, %v6324, 0.0
        %6355 = vadd.xlane.f32.xlu0 %v6354
        %v6356 = vpop.xlane.xlu0 %6355
        %vm6357 = vcmask 258048
        %v6358 = vsel %vm6357, %v6325, 0.0
        %6359 = vadd.xlane.f32.xlu0 %v6358
        %v6360 = vpop.xlane.xlu0 %6359
        %v6361 = vrcp.pop 32.0
        %v6362 = vmul.f32 32.0, %v6361
        %v6363 = vsub.f32 1.0, %v6362
        %v6364 = vmul.f32 %v6361, %v6363
        %v6365 = vadd.f32 %v6361, %v6364
        %vm6366 = vweird.f32 %v6361
        %v6367 = vsel %vm6366, %v6361, %v6365
        %v6368 = vmul.f32 %v6329, %v6367
        %v6369 = vmul.f32 %v6332, %v6367
        %v6370 = vmul.f32 %v6335, %v6367
        %v6371 = vmul.f32 %v6338, %v6367
        %v6372 = vmul.f32 %v6341, %v6367
        %v6373 = vmul.f32 %v6344, %v6367
        %v6374 = vmul.f32 %v6347, %v6367
        %v6375 = vmul.f32 %v6350, %v6367
        %v6376 = vmul.f32 %v6353, %v6367
        %v6377 = vmul.f32 %v6356, %v6367
        %v6378 = vmul.f32 %v6360, %v6367
        %v6379 = vsub.f32 %v6315, %v6368
        %v6380 = vsub.f32 %v6316, %v6369
        %v6381 = vsub.f32 %v6317, %v6370
        %v6382 = vsub.f32 %v6318, %v6371
        %v6383 = vsub.f32 %v6319, %v6372
        %v6384 = vsub.f32 %v6320, %v6373
        %v6385 = vsub.f32 %v6321, %v6374
        %v6386 = vsub.f32 %v6322, %v6375
        %v6387 = vsub.f32 %v6323, %v6376
        %v6388 = vsub.f32 %v6324, %v6377
        %v6389 = vsub.f32 %v6325, %v6378
        %v6390 = vmul.f32 %v6379, %v6379
        %v6391 = vmul.f32 %v6380, %v6380
        %v6392 = vmul.f32 %v6381, %v6381
        %v6393 = vmul.f32 %v6382, %v6382
        %v6394 = vmul.f32 %v6383, %v6383
        %v6395 = vmul.f32 %v6384, %v6384
        %v6396 = vmul.f32 %v6385, %v6385
        %v6397 = vmul.f32 %v6386, %v6386
        %v6398 = vmul.f32 %v6387, %v6387
        %v6399 = vmul.f32 %v6388, %v6388
        %v6400 = vmul.f32 %v6389, %v6389
        %v6401 = vsel %vm6326, %v6390, 0.0
        %6402 = vadd.xlane.f32.xlu0 %v6401
        %v6403 = vpop.xlane.xlu0 %6402
        %v6404 = vsel %vm2478, %v6391, 0.0
        %6405 = vadd.xlane.f32.xlu0 %v6404
        %v6406 = vpop.xlane.xlu0 %6405
        %v6407 = vsel %vm2478, %v6392, 0.0
        %6408 = vadd.xlane.f32.xlu0 %v6407
        %v6409 = vpop.xlane.xlu0 %6408
        %v6410 = vsel %vm2478, %v6393, 0.0
        %6411 = vadd.xlane.f32.xlu0 %v6410
        %v6412 = vpop.xlane.xlu0 %6411
        %v6413 = vsel %vm2478, %v6394, 0.0
        %6414 = vadd.xlane.f32.xlu0 %v6413
        %v6415 = vpop.xlane.xlu0 %6414
        %v6416 = vsel %vm2478, %v6395, 0.0
        %6417 = vadd.xlane.f32.xlu0 %v6416
        %v6418 = vpop.xlane.xlu0 %6417
        %v6419 = vsel %vm2478, %v6396, 0.0
        %6420 = vadd.xlane.f32.xlu0 %v6419
        %v6421 = vpop.xlane.xlu0 %6420
        %v6422 = vsel %vm2478, %v6397, 0.0
        %6423 = vadd.xlane.f32.xlu0 %v6422
        %v6424 = vpop.xlane.xlu0 %6423
        %v6425 = vsel %vm2478, %v6398, 0.0
        %6426 = vadd.xlane.f32.xlu0 %v6425
        %v6427 = vpop.xlane.xlu0 %6426
        %v6428 = vsel %vm2478, %v6399, 0.0
        %6429 = vadd.xlane.f32.xlu0 %v6428
        %v6430 = vpop.xlane.xlu0 %6429
        %v6431 = vsel %vm6357, %v6400, 0.0
        %6432 = vadd.xlane.f32.xlu0 %v6431
        %v6433 = vpop.xlane.xlu0 %6432
        %v6434 = vmul.f32 %v6403, %v6367
        %v6435 = vmul.f32 %v6406, %v6367
        %v6436 = vmul.f32 %v6409, %v6367
        %v6437 = vmul.f32 %v6412, %v6367
        %v6438 = vmul.f32 %v6415, %v6367
        %v6439 = vmul.f32 %v6418, %v6367
        %v6440 = vmul.f32 %v6421, %v6367
        %v6441 = vmul.f32 %v6424, %v6367
        %v6442 = vmul.f32 %v6427, %v6367
        %v6443 = vmul.f32 %v6430, %v6367
        %v6444 = vmul.f32 %v6433, %v6367
        %v6445 = vadd.f32 %v6434, 1e-05
        %v6446 = vadd.f32 %v6435, 1e-05
        %v6447 = vadd.f32 %v6436, 1e-05
        %v6448 = vadd.f32 %v6437, 1e-05
        %v6449 = vadd.f32 %v6438, 1e-05
        %v6450 = vadd.f32 %v6439, 1e-05
        %v6451 = vadd.f32 %v6440, 1e-05
        %v6452 = vadd.f32 %v6441, 1e-05
        %v6453 = vadd.f32 %v6442, 1e-05
        %v6454 = vadd.f32 %v6443, 1e-05
        %v6455 = vadd.f32 %v6444, 1e-05
        %v6456 = vrsqrt.pop %v6445
        %v6457 = vmul.f32 %v6456, %v6445
        %v6458 = vmul.f32 %v6457, %v6456
        %v6459 = vmul.f32 0.5, %v6458
        %v6460 = vsub.f32 1.5, %v6459
        %v6461 = vmul.f32 %v6456, %v6460
        %vm6462 = vweird.f32 %v6445
        %vm6463 = vweird.f32 %v6456
        %vm6464 = vmor %vm6462, %vm6463
        %v6465 = vsel %vm6464, %v6456, %v6461
        %v6466 = vrsqrt.pop %v6446
        %v6467 = vmul.f32 %v6466, %v6446
        %v6468 = vmul.f32 %v6467, %v6466
        %v6469 = vmul.f32 0.5, %v6468
        %v6470 = vsub.f32 1.5, %v6469
        %v6471 = vmul.f32 %v6466, %v6470
        %vm6472 = vweird.f32 %v6446
        %vm6473 = vweird.f32 %v6466
        %vm6474 = vmor %vm6472, %vm6473
        %v6475 = vsel %vm6474, %v6466, %v6471
        %v6476 = vrsqrt.pop %v6447
        %v6477 = vmul.f32 %v6476, %v6447
        %v6478 = vmul.f32 %v6477, %v6476
        %v6479 = vmul.f32 0.5, %v6478
        %v6480 = vsub.f32 1.5, %v6479
        %v6481 = vmul.f32 %v6476, %v6480
        %vm6482 = vweird.f32 %v6447
        %vm6483 = vweird.f32 %v6476
        %vm6484 = vmor %vm6482, %vm6483
        %v6485 = vsel %vm6484, %v6476, %v6481
        %v6486 = vrsqrt.pop %v6448
        %v6487 = vmul.f32 %v6486, %v6448
        %v6488 = vmul.f32 %v6487, %v6486
        %v6489 = vmul.f32 0.5, %v6488
        %v6490 = vsub.f32 1.5, %v6489
        %v6491 = vmul.f32 %v6486, %v6490
        %vm6492 = vweird.f32 %v6448
        %vm6493 = vweird.f32 %v6486
        %vm6494 = vmor %vm6492, %vm6493
        %v6495 = vsel %vm6494, %v6486, %v6491
        %v6496 = vrsqrt.pop %v6449
        %v6497 = vmul.f32 %v6496, %v6449
        %v6498 = vmul.f32 %v6497, %v6496
        %v6499 = vmul.f32 0.5, %v6498
        %v6500 = vsub.f32 1.5, %v6499
        %v6501 = vmul.f32 %v6496, %v6500
        %vm6502 = vweird.f32 %v6449
        %vm6503 = vweird.f32 %v6496
        %vm6504 = vmor %vm6502, %vm6503
        %v6505 = vsel %vm6504, %v6496, %v6501
        %v6506 = vrsqrt.pop %v6450
        %v6507 = vmul.f32 %v6506, %v6450
        %v6508 = vmul.f32 %v6507, %v6506
        %v6509 = vmul.f32 0.5, %v6508
        %v6510 = vsub.f32 1.5, %v6509
        %v6511 = vmul.f32 %v6506, %v6510
        %vm6512 = vweird.f32 %v6450
        %vm6513 = vweird.f32 %v6506
        %vm6514 = vmor %vm6512, %vm6513
        %v6515 = vsel %vm6514, %v6506, %v6511
        %v6516 = vrsqrt.pop %v6451
        %v6517 = vmul.f32 %v6516, %v6451
        %v6518 = vmul.f32 %v6517, %v6516
        %v6519 = vmul.f32 0.5, %v6518
        %v6520 = vsub.f32 1.5, %v6519
        %v6521 = vmul.f32 %v6516, %v6520
        %vm6522 = vweird.f32 %v6451
        %vm6523 = vweird.f32 %v6516
        %vm6524 = vmor %vm6522, %vm6523
        %v6525 = vsel %vm6524, %v6516, %v6521
        %v6526 = vrsqrt.pop %v6452
        %v6527 = vmul.f32 %v6526, %v6452
        %v6528 = vmul.f32 %v6527, %v6526
        %v6529 = vmul.f32 0.5, %v6528
        %v6530 = vsub.f32 1.5, %v6529
        %v6531 = vmul.f32 %v6526, %v6530
        %vm6532 = vweird.f32 %v6452
        %vm6533 = vweird.f32 %v6526
        %vm6534 = vmor %vm6532, %vm6533
        %v6535 = vsel %vm6534, %v6526, %v6531
        %v6536 = vrsqrt.pop %v6453
        %v6537 = vmul.f32 %v6536, %v6453
        %v6538 = vmul.f32 %v6537, %v6536
        %v6539 = vmul.f32 0.5, %v6538
        %v6540 = vsub.f32 1.5, %v6539
        %v6541 = vmul.f32 %v6536, %v6540
        %vm6542 = vweird.f32 %v6453
        %vm6543 = vweird.f32 %v6536
        %vm6544 = vmor %vm6542, %vm6543
        %v6545 = vsel %vm6544, %v6536, %v6541
        %v6546 = vrsqrt.pop %v6454
        %v6547 = vmul.f32 %v6546, %v6454
        %v6548 = vmul.f32 %v6547, %v6546
        %v6549 = vmul.f32 0.5, %v6548
        %v6550 = vsub.f32 1.5, %v6549
        %v6551 = vmul.f32 %v6546, %v6550
        %vm6552 = vweird.f32 %v6454
        %vm6553 = vweird.f32 %v6546
        %vm6554 = vmor %vm6552, %vm6553
        %v6555 = vsel %vm6554, %v6546, %v6551
        %v6556 = vrsqrt.pop %v6455
        %v6557 = vmul.f32 %v6556, %v6455
        %v6558 = vmul.f32 %v6557, %v6556
        %v6559 = vmul.f32 0.5, %v6558
        %v6560 = vsub.f32 1.5, %v6559
        %v6561 = vmul.f32 %v6556, %v6560
        %vm6562 = vweird.f32 %v6455
        %vm6563 = vweird.f32 %v6556
        %vm6564 = vmor %vm6562, %vm6563
        %v6565 = vsel %vm6564, %v6556, %v6561
        %v6566 = vmul.f32 %v6379, %v6465
        %v6567 = vmul.f32 %v6380, %v6475
        %v6568 = vmul.f32 %v6381, %v6485
        %v6569 = vmul.f32 %v6382, %v6495
        %v6570 = vmul.f32 %v6383, %v6505
        %v6571 = vmul.f32 %v6384, %v6515
        %v6572 = vmul.f32 %v6385, %v6525
        %v6573 = vmul.f32 %v6386, %v6535
        %v6574 = vmul.f32 %v6387, %v6545
        %v6575 = vmul.f32 %v6388, %v6555
        %v6576 = vmul.f32 %v6389, %v6565
        %v6577 = vld [vmem:[%s11] sm:$0x1]
        %v6579 = vperm.slane %v6577, 0
        %v6581 = vmul.f32 %v6566, %v6579
        %v6582 = vmul.f32 %v6567, %v6579
        %v6583 = vmul.f32 %v6568, %v6579
        %v6584 = vmul.f32 %v6569, %v6579
        %v6585 = vmul.f32 %v6570, %v6579
        %v6586 = vmul.f32 %v6571, %v6579
        %v6587 = vmul.f32 %v6572, %v6579
        %v6588 = vmul.f32 %v6573, %v6579
        %v6589 = vmul.f32 %v6574, %v6579
        %v6590 = vmul.f32 %v6575, %v6579
        %v6591 = vmul.f32 %v6576, %v6579
        %v6592 = vld [vmem:[%s12] sm:$0x1]
        %v6594 = vperm.slane %v6592, 0
        %v6596 = vadd.f32 %v6581, %v6594
        %v6597 = vadd.f32 %v6582, %v6594
        %v6598 = vadd.f32 %v6583, %v6594
        %v6599 = vadd.f32 %v6584, %v6594
        %v6600 = vadd.f32 %v6585, %v6594
        %v6601 = vadd.f32 %v6586, %v6594
        %v6602 = vadd.f32 %v6587, %v6594
        %v6603 = vadd.f32 %v6588, %v6594
        %v6604 = vadd.f32 %v6589, %v6594
        %v6605 = vadd.f32 %v6590, %v6594
        %v6606 = vadd.f32 %v6591, %v6594
        %v6607 = vld [vmem:[%s13] sm:$0xff]
        %v6608 = vld [vmem:[%s13 + $0x8] sm:$0xff]
        %v6609 = vld [vmem:[%s13 + $0x10] sm:$0xff]
        %v6610 = vld [vmem:[%s13 + $0x18] sm:$0xff]
        %v6611 = vld [vmem:[%s14] sm:$0x1]
        %v6613 = vperm.slane %v6611, 0
        %v6626 = vrot.slane %v6596, 5
        %v6627 = vrot.slane %v6597, 5
        %v6628 = vsel %vm1797, %v6626, %v6627
        %v6629 = vrot.slane %v6598, 5
        %v6630 = vsel %vm1797, %v6627, %v6629
        %v6631 = vrot.slane %v6599, 5
        %v6632 = vsel %vm1797, %v6629, %v6631
        %v6633 = vrot.slane %v6600, 5
        %v6634 = vsel %vm1797, %v6631, %v6633
        %v6635 = vrot.slane %v6601, 5
        %v6636 = vsel %vm1797, %v6633, %v6635
        %v6637 = vrot.slane %v6602, 5
        %v6638 = vsel %vm1797, %v6635, %v6637
        %v6639 = vrot.slane %v6603, 5
        %v6640 = vsel %vm1797, %v6637, %v6639
        %v6641 = vrot.slane %v6604, 5
        %v6642 = vsel %vm1797, %v6639, %v6641
        %v6643 = vrot.slane %v6605, 5
        %v6644 = vsel %vm1797, %v6641, %v6643
        %v6645 = vrot.slane %v6606, 5
        %v6646 = vsel %vm1797, %v6643, %v6645
        %v6647 = vsel %vm2478, %v6628, 0
        %v6649 = vsel %vm2478, %v6630, 0
        %v6651 = vsel %vm2478, %v6632, 0
        %v6653 = vsel %vm2478, %v6634, 0
        %v6655 = vsel %vm2478, %v6636, 0
        %v6657 = vsel %vm2478, %v6638, 0
        %v6659 = vsel %vm2478, %v6640, 0
        %v6661 = vsel %vm2478, %v6642, 0
        %v6663 = vsel %vm2478, %v6644, 0
        %v6665 = vsel %vm2478, %v6646, 0
        %6667 = vmatpush.msra.mxu0 0.0
        %6668 = vmatpush.msra.mxu0 0.0
        %6669 = vmatpush.msra.mxu0 0.0
        %6670 = vmatpush.msra.mxu0 0.0
        %6671 = vmatpush.msra.mxu0 0.0
        %6672 = vmatpush.msra.mxu0 0.0
        %6673 = vmatpush.msra.mxu0 0.0
        %6674 = vmatpush.msra.mxu0 0.0
        %6675 = vmatpush.msra.mxu0 0.0
        %6676 = vmatpush.msra.mxu0 0.0
        %6677 = vmatpush.msra.mxu0 0.0
        %6678 = vmatpush.msra.mxu0 0.0
        %6679 = vmatpush.msra.mxu0 %v6610
        %6680 = vmatpush.msra.mxu0 %v6609
        %6681 = vmatpush.msra.mxu0 %v6608
        %6682 = vmatpush.msra.mxu0 %v6607
        %6683 = vmatmul.f32.gmra.mxu0 %v6647
        %v6684 = vpop.f32.mrf.mxu0
        %v6685 = vadd.f32 %v6613, %v6684
        %6686 = vmatmul.f32.gmra.mxu0 %v6649
        %v6687 = vpop.f32.mrf.mxu0
        %v6688 = vadd.f32 %v6613, %v6687
        %6689 = vmatmul.f32.gmra.mxu0 %v6651
        %v6690 = vpop.f32.mrf.mxu0
        %v6691 = vadd.f32 %v6613, %v6690
        %6692 = vmatmul.f32.gmra.mxu0 %v6653
        %v6693 = vpop.f32.mrf.mxu0
        %v6694 = vadd.f32 %v6613, %v6693
        %6695 = vmatmul.f32.gmra.mxu0 %v6655
        %v6696 = vpop.f32.mrf.mxu0
        %v6697 = vadd.f32 %v6613, %v6696
        %6698 = vmatmul.f32.gmra.mxu0 %v6657
        %v6699 = vpop.f32.mrf.mxu0
        %v6700 = vadd.f32 %v6613, %v6699
        %6701 = vmatmul.f32.gmra.mxu0 %v6659
        %v6702 = vpop.f32.mrf.mxu0
        %v6703 = vadd.f32 %v6613, %v6702
        %6704 = vmatmul.f32.gmra.mxu0 %v6661
        %v6705 = vpop.f32.mrf.mxu0
        %v6706 = vadd.f32 %v6613, %v6705
        %6707 = vmatmul.f32.gmra.mxu0 %v6663
        %v6708 = vpop.f32.mrf.mxu0
        %v6709 = vadd.f32 %v6613, %v6708
        %6710 = vmatmul.f32.gmra.mxu0 %v6665
        %v6711 = vpop.f32.mrf.mxu0
        %v6712 = vadd.f32 %v6613, %v6711
        %6713 = vdwg.mxu0
        %v6714 = vld [vmem:[%s2] sm:$0x1]
        %6720 = vrot.lane.b32.xlu0 %v6685, 96
        %v6721 = vpop.permute.xlu0 %6720
        %6722 = vrot.lane.b32.xlu0 %v6688, 96
        %v6723 = vpop.permute.xlu0 %6722
        %6724 = vrot.lane.b32.xlu0 %v6691, 96
        %v6725 = vpop.permute.xlu0 %6724
        %6726 = vrot.lane.b32.xlu0 %v6694, 96
        %v6727 = vpop.permute.xlu0 %6726
        %6728 = vrot.lane.b32.xlu0 %v6697, 96
        %v6729 = vpop.permute.xlu0 %6728
        %vm6730 = vcmask 64512
        %v6731 = vsel %vm6730, %v6685, 0
        %v6733 = vsel %vm6730, %v6688, 0
        %v6735 = vsel %vm6730, %v6691, 0
        %v6737 = vsel %vm6730, %v6694, 0
        %v6739 = vsel %vm6730, %v6697, 0
        %v6741 = vsel %vm6730, %v6721, 0
        %v6743 = vsel %vm6730, %v6723, 0
        %v6745 = vsel %vm6730, %v6725, 0
        %v6747 = vsel %vm6730, %v6727, 0
        %v6749 = vsel %vm6730, %v6729, 0
        %6751 = vmatpush.xpose.msra.mxu0 0.0
        %6752 = vmatpush.xpose.msra.mxu0 0.0
        %6753 = vmatpush.xpose.msra.mxu0 0.0
        %6754 = vmatpush.xpose.msra.mxu0 0.0
        %6755 = vmatpush.xpose.msra.mxu0 0.0
        %6756 = vmatpush.xpose.msra.mxu0 0.0
        %6757 = vmatpush.xpose.msra.mxu0 0.0
        %6758 = vmatpush.xpose.msra.mxu0 0.0
        %6759 = vmatpush.xpose.msra.mxu0 0.0
        %6760 = vmatpush.xpose.msra.mxu0 0.0
        %6761 = vmatpush.xpose.msra.mxu0 0.0
        %6762 = vmatpush.xpose.msra.mxu0 %v6749
        %6763 = vmatpush.xpose.msra.mxu0 %v6747
        %6764 = vmatpush.xpose.msra.mxu0 %v6745
        %6765 = vmatpush.xpose.msra.mxu0 %v6743
        %6766 = vmatpush.xpose.msra.mxu0 %v6741
        %6767 = vmatmul.f32.gmra.mxu0 %v6731
        %v6768 = vpop.f32.mrf.mxu0
        %v6769 = vadd.f32 0.0, %v6768
        %6770 = vmatmul.f32.gmra.mxu0 %v6733
        %v6771 = vpop.f32.mrf.mxu0
        %v6772 = vadd.f32 0.0, %v6771
        %6773 = vmatmul.f32.gmra.mxu0 %v6735
        %v6774 = vpop.f32.mrf.mxu0
        %v6775 = vadd.f32 0.0, %v6774
        %6776 = vmatmul.f32.gmra.mxu0 %v6737
        %v6777 = vpop.f32.mrf.mxu0
        %v6778 = vadd.f32 0.0, %v6777
        %6779 = vmatmul.f32.gmra.mxu0 %v6739
        %v6780 = vpop.f32.mrf.mxu0
        %v6781 = vadd.f32 0.0, %v6780
        %6782 = vdwg.mxu0
        %6788 = vrot.lane.b32.xlu0 %v6700, 96
        %v6789 = vpop.permute.xlu0 %6788
        %6790 = vrot.lane.b32.xlu0 %v6703, 96
        %v6791 = vpop.permute.xlu0 %6790
        %6792 = vrot.lane.b32.xlu0 %v6706, 96
        %v6793 = vpop.permute.xlu0 %6792
        %6794 = vrot.lane.b32.xlu0 %v6709, 96
        %v6795 = vpop.permute.xlu0 %6794
        %6796 = vrot.lane.b32.xlu0 %v6712, 96
        %v6797 = vpop.permute.xlu0 %6796
        %v6798 = vsel %vm6730, %v6700, 0
        %v6800 = vsel %vm6730, %v6703, 0
        %v6802 = vsel %vm6730, %v6706, 0
        %v6804 = vsel %vm6730, %v6709, 0
        %v6806 = vsel %vm6730, %v6712, 0
        %v6808 = vsel %vm6730, %v6789, 0
        %v6810 = vsel %vm6730, %v6791, 0
        %v6812 = vsel %vm6730, %v6793, 0
        %v6814 = vsel %vm6730, %v6795, 0
        %v6816 = vsel %vm6730, %v6797, 0
        %6818 = vmatpush.xpose.msra.mxu0 0.0
        %6819 = vmatpush.xpose.msra.mxu0 0.0
        %6820 = vmatpush.xpose.msra.mxu0 0.0
        %6821 = vmatpush.xpose.msra.mxu0 0.0
        %6822 = vmatpush.xpose.msra.mxu0 0.0
        %6823 = vmatpush.xpose.msra.mxu0 0.0
        %6824 = vmatpush.xpose.msra.mxu0 0.0
        %6825 = vmatpush.xpose.msra.mxu0 0.0
        %6826 = vmatpush.xpose.msra.mxu0 0.0
        %6827 = vmatpush.xpose.msra.mxu0 0.0
        %6828 = vmatpush.xpose.msra.mxu0 0.0
        %6829 = vmatpush.xpose.msra.mxu0 %v6816
        %6830 = vmatpush.xpose.msra.mxu0 %v6814
        %6831 = vmatpush.xpose.msra.mxu0 %v6812
        %6832 = vmatpush.xpose.msra.mxu0 %v6810
        %6833 = vmatpush.xpose.msra.mxu0 %v6808
        %6834 = vmatmul.f32.gmra.mxu0 %v6798
        %v6835 = vpop.f32.mrf.mxu0
        %v6836 = vadd.f32 0.0, %v6835
        %6837 = vmatmul.f32.gmra.mxu0 %v6800
        %v6838 = vpop.f32.mrf.mxu0
        %v6839 = vadd.f32 0.0, %v6838
        %6840 = vmatmul.f32.gmra.mxu0 %v6802
        %v6841 = vpop.f32.mrf.mxu0
        %v6842 = vadd.f32 0.0, %v6841
        %6843 = vmatmul.f32.gmra.mxu0 %v6804
        %v6844 = vpop.f32.mrf.mxu0
        %v6845 = vadd.f32 0.0, %v6844
        %6846 = vmatmul.f32.gmra.mxu0 %v6806
        %v6847 = vpop.f32.mrf.mxu0
        %v6848 = vadd.f32 0.0, %v6847
        %6849 = vdwg.mxu0
        %v6850 = vmul.f32 %v6769, 0.35355338
        %v6851 = vmul.f32 %v6772, 0.35355338
        %v6852 = vmul.f32 %v6775, 0.35355338
        %v6853 = vmul.f32 %v6778, 0.35355338
        %v6854 = vmul.f32 %v6781, 0.35355338
        %v6855 = vmul.f32 %v6836, 0.35355338
        %v6856 = vmul.f32 %v6839, 0.35355338
        %v6857 = vmul.f32 %v6842, 0.35355338
        %v6858 = vmul.f32 %v6845, 0.35355338
        %v6859 = vmul.f32 %v6848, 0.35355338
        %v6861 = vperm.slane %v6714, 0
        %v6863 = vadd.f32 %v6850, %v6861
        %v6864 = vadd.f32 %v6851, %v6861
        %v6865 = vadd.f32 %v6852, %v6861
        %v6866 = vadd.f32 %v6853, %v6861
        %v6867 = vadd.f32 %v6854, %v6861
        %v6868 = vadd.f32 %v6855, %v6861
        %v6869 = vadd.f32 %v6856, %v6861
        %v6870 = vadd.f32 %v6857, %v6861
        %v6871 = vadd.f32 %v6858, %v6861
        %v6872 = vadd.f32 %v6859, %v6861
        %vm6873 = vcmask 326656
        %v6874 = vsel %vm6873, %v6863, -inf
        %6875 = vmax.xlane.f32.xlu0 %v6874
        %v6876 = vpop.xlane.xlu0 %6875
        %v6877 = vsel %vm6873, %v6864, -inf
        %6878 = vmax.xlane.f32.xlu0 %v6877
        %v6879 = vpop.xlane.xlu0 %6878
        %v6880 = vsel %vm6873, %v6865, -inf
        %6881 = vmax.xlane.f32.xlu0 %v6880
        %v6882 = vpop.xlane.xlu0 %6881
        %v6883 = vsel %vm6873, %v6866, -inf
        %6884 = vmax.xlane.f32.xlu0 %v6883
        %v6885 = vpop.xlane.xlu0 %6884
        %v6886 = vsel %vm6873, %v6867, -inf
        %6887 = vmax.xlane.f32.xlu0 %v6886
        %v6888 = vpop.xlane.xlu0 %6887
        %v6889 = vsel %vm6873, %v6868, -inf
        %6890 = vmax.xlane.f32.xlu0 %v6889
        %v6891 = vpop.xlane.xlu0 %6890
        %v6892 = vsel %vm6873, %v6869, -inf
        %6893 = vmax.xlane.f32.xlu0 %v6892
        %v6894 = vpop.xlane.xlu0 %6893
        %v6895 = vsel %vm6873, %v6870, -inf
        %6896 = vmax.xlane.f32.xlu0 %v6895
        %v6897 = vpop.xlane.xlu0 %6896
        %v6898 = vsel %vm6873, %v6871, -inf
        %6899 = vmax.xlane.f32.xlu0 %v6898
        %v6900 = vpop.xlane.xlu0 %6899
        %v6901 = vsel %vm6873, %v6872, -inf
        %6902 = vmax.xlane.f32.xlu0 %v6901
        %v6903 = vpop.xlane.xlu0 %6902
        %v6904 = vsub.f32 %v6863, %v6876
        %v6905 = vsub.f32 %v6864, %v6879
        %v6906 = vsub.f32 %v6865, %v6882
        %v6907 = vsub.f32 %v6866, %v6885
        %v6908 = vsub.f32 %v6867, %v6888
        %v6909 = vsub.f32 %v6868, %v6891
        %v6910 = vsub.f32 %v6869, %v6894
        %v6911 = vsub.f32 %v6870, %v6897
        %v6912 = vsub.f32 %v6871, %v6900
        %v6913 = vsub.f32 %v6872, %v6903
        %v6914 = vmul.f32 %v6904, 1.442695
        %v6915 = vpow.pop %v6914
        %v6916 = vmul.f32 %v6905, 1.442695
        %v6917 = vpow.pop %v6916
        %v6918 = vmul.f32 %v6906, 1.442695
        %v6919 = vpow.pop %v6918
        %v6920 = vmul.f32 %v6907, 1.442695
        %v6921 = vpow.pop %v6920
        %v6922 = vmul.f32 %v6908, 1.442695
        %v6923 = vpow.pop %v6922
        %v6924 = vmul.f32 %v6909, 1.442695
        %v6925 = vpow.pop %v6924
        %v6926 = vmul.f32 %v6910, 1.442695
        %v6927 = vpow.pop %v6926
        %v6928 = vmul.f32 %v6911, 1.442695
        %v6929 = vpow.pop %v6928
        %v6930 = vmul.f32 %v6912, 1.442695
        %v6931 = vpow.pop %v6930
        %v6932 = vmul.f32 %v6913, 1.442695
        %v6933 = vpow.pop %v6932
        %v6934 = vsel %vm6873, %v6915, 0.0
        %6935 = vadd.xlane.f32.xlu0 %v6934
        %v6936 = vpop.xlane.xlu0 %6935
        %v6937 = vsel %vm6873, %v6917, 0.0
        %6938 = vadd.xlane.f32.xlu0 %v6937
        %v6939 = vpop.xlane.xlu0 %6938
        %v6940 = vsel %vm6873, %v6919, 0.0
        %6941 = vadd.xlane.f32.xlu0 %v6940
        %v6942 = vpop.xlane.xlu0 %6941
        %v6943 = vsel %vm6873, %v6921, 0.0
        %6944 = vadd.xlane.f32.xlu0 %v6943
        %v6945 = vpop.xlane.xlu0 %6944
        %v6946 = vsel %vm6873, %v6923, 0.0
        %6947 = vadd.xlane.f32.xlu0 %v6946
        %v6948 = vpop.xlane.xlu0 %6947
        %v6949 = vsel %vm6873, %v6925, 0.0
        %6950 = vadd.xlane.f32.xlu0 %v6949
        %v6951 = vpop.xlane.xlu0 %6950
        %v6952 = vsel %vm6873, %v6927, 0.0
        %6953 = vadd.xlane.f32.xlu0 %v6952
        %v6954 = vpop.xlane.xlu0 %6953
        %v6955 = vsel %vm6873, %v6929, 0.0
        %6956 = vadd.xlane.f32.xlu0 %v6955
        %v6957 = vpop.xlane.xlu0 %6956
        %v6958 = vsel %vm6873, %v6931, 0.0
        %6959 = vadd.xlane.f32.xlu0 %v6958
        %v6960 = vpop.xlane.xlu0 %6959
        %v6961 = vsel %vm6873, %v6933, 0.0
        %6962 = vadd.xlane.f32.xlu0 %v6961
        %v6963 = vpop.xlane.xlu0 %6962
        %v6964 = vrcp.pop %v6936
        %v6965 = vrcp.pop %v6939
        %v6966 = vrcp.pop %v6942
        %v6967 = vrcp.pop %v6945
        %v6968 = vrcp.pop %v6948
        %v6969 = vrcp.pop %v6951
        %v6970 = vrcp.pop %v6954
        %v6971 = vrcp.pop %v6957
        %v6972 = vrcp.pop %v6960
        %v6973 = vrcp.pop %v6963
        %v6974 = vmul.f32 %v6915, %v6964
        %v6975 = vmul.f32 %v6917, %v6965
        %v6976 = vmul.f32 %v6919, %v6966
        %v6977 = vmul.f32 %v6921, %v6967
        %v6978 = vmul.f32 %v6923, %v6968
        %v6979 = vmul.f32 %v6925, %v6969
        %v6980 = vmul.f32 %v6927, %v6970
        %v6981 = vmul.f32 %v6929, %v6971
        %v6982 = vmul.f32 %v6931, %v6972
        %v6983 = vmul.f32 %v6933, %v6973
        %6984 = vrot.lane.b32.xlu0 %v6685, 64
        %v6985 = vpop.permute.xlu0 %6984
        %6986 = vrot.lane.b32.xlu0 %v6688, 64
        %v6987 = vpop.permute.xlu0 %6986
        %6988 = vrot.lane.b32.xlu0 %v6691, 64
        %v6989 = vpop.permute.xlu0 %6988
        %6990 = vrot.lane.b32.xlu0 %v6694, 64
        %v6991 = vpop.permute.xlu0 %6990
        %6992 = vrot.lane.b32.xlu0 %v6697, 64
        %v6993 = vpop.permute.xlu0 %6992
        %v7000 = vsel %vm6873, %v6974, 0
        %v7003 = vsel %vm6873, %v6975, 0
        %v7006 = vsel %vm6873, %v6976, 0
        %v7009 = vsel %vm6873, %v6977, 0
        %v7012 = vsel %vm6873, %v6978, 0
        %7014 = vmatpush.msra.mxu0 0.0
        %7015 = vmatpush.msra.mxu0 0.0
        %7016 = vmatpush.msra.mxu0 0.0
        %7017 = vmatpush.msra.mxu0 0.0
        %7018 = vmatpush.msra.mxu0 0.0
        %7019 = vmatpush.msra.mxu0 0.0
        %7020 = vmatpush.msra.mxu0 0.0
        %7021 = vmatpush.msra.mxu0 0.0
        %7022 = vmatpush.msra.mxu0 0.0
        %7023 = vmatpush.msra.mxu0 0.0
        %7024 = vmatpush.msra.mxu0 0.0
        %7025 = vmatpush.msra.mxu0 %v6993
        %7026 = vmatpush.msra.mxu0 %v6991
        %7027 = vmatpush.msra.mxu0 %v6989
        %7028 = vmatpush.msra.mxu0 %v6987
        %7029 = vmatpush.msra.mxu0 %v6985
        %7030 = vmatmul.f32.gmra.mxu0 %v7000
        %v7031 = vpop.f32.mrf.mxu0
        %v7032 = vadd.f32 0.0, %v7031
        %7033 = vmatmul.f32.gmra.mxu0 %v7003
        %v7034 = vpop.f32.mrf.mxu0
        %v7035 = vadd.f32 0.0, %v7034
        %7036 = vmatmul.f32.gmra.mxu0 %v7006
        %v7037 = vpop.f32.mrf.mxu0
        %v7038 = vadd.f32 0.0, %v7037
        %7039 = vmatmul.f32.gmra.mxu0 %v7009
        %v7040 = vpop.f32.mrf.mxu0
        %v7041 = vadd.f32 0.0, %v7040
        %7042 = vmatmul.f32.gmra.mxu0 %v7012
        %v7043 = vpop.f32.mrf.mxu0
        %v7044 = vadd.f32 0.0, %v7043
        %7045 = vdwg.mxu0
        %7046 = vrot.lane.b32.xlu0 %v6700, 64
        %v7047 = vpop.permute.xlu0 %7046
        %7048 = vrot.lane.b32.xlu0 %v6703, 64
        %v7049 = vpop.permute.xlu0 %7048
        %7050 = vrot.lane.b32.xlu0 %v6706, 64
        %v7051 = vpop.permute.xlu0 %7050
        %7052 = vrot.lane.b32.xlu0 %v6709, 64
        %v7053 = vpop.permute.xlu0 %7052
        %7054 = vrot.lane.b32.xlu0 %v6712, 64
        %v7055 = vpop.permute.xlu0 %7054
        %v7062 = vsel %vm6873, %v6979, 0
        %v7065 = vsel %vm6873, %v6980, 0
        %v7068 = vsel %vm6873, %v6981, 0
        %v7071 = vsel %vm6873, %v6982, 0
        %v7074 = vsel %vm6873, %v6983, 0
        %7076 = vmatpush.msra.mxu0 0.0
        %7077 = vmatpush.msra.mxu0 0.0
        %7078 = vmatpush.msra.mxu0 0.0
        %7079 = vmatpush.msra.mxu0 0.0
        %7080 = vmatpush.msra.mxu0 0.0
        %7081 = vmatpush.msra.mxu0 0.0
        %7082 = vmatpush.msra.mxu0 0.0
        %7083 = vmatpush.msra.mxu0 0.0
        %7084 = vmatpush.msra.mxu0 0.0
        %7085 = vmatpush.msra.mxu0 0.0
        %7086 = vmatpush.msra.mxu0 0.0
        %7087 = vmatpush.msra.mxu0 %v7055
        %7088 = vmatpush.msra.mxu0 %v7053
        %7089 = vmatpush.msra.mxu0 %v7051
        %7090 = vmatpush.msra.mxu0 %v7049
        %7091 = vmatpush.msra.mxu0 %v7047
        %7092 = vmatmul.f32.gmra.mxu0 %v7062
        %v7093 = vpop.f32.mrf.mxu0
        %v7094 = vadd.f32 0.0, %v7093
        %7095 = vmatmul.f32.gmra.mxu0 %v7065
        %v7096 = vpop.f32.mrf.mxu0
        %v7097 = vadd.f32 0.0, %v7096
        %7098 = vmatmul.f32.gmra.mxu0 %v7068
        %v7099 = vpop.f32.mrf.mxu0
        %v7100 = vadd.f32 0.0, %v7099
        %7101 = vmatmul.f32.gmra.mxu0 %v7071
        %v7102 = vpop.f32.mrf.mxu0
        %v7103 = vadd.f32 0.0, %v7102
        %7104 = vmatmul.f32.gmra.mxu0 %v7074
        %v7105 = vpop.f32.mrf.mxu0
        %v7106 = vadd.f32 0.0, %v7105
        %7107 = vdwg.mxu0
        %7108 = vrot.lane.b32.xlu0 %v6685, 120
        %v7109 = vpop.permute.xlu0 %7108
        %7110 = vrot.lane.b32.xlu0 %v6688, 120
        %v7111 = vpop.permute.xlu0 %7110
        %7112 = vrot.lane.b32.xlu0 %v6691, 120
        %v7113 = vpop.permute.xlu0 %7112
        %7114 = vrot.lane.b32.xlu0 %v6694, 120
        %v7115 = vpop.permute.xlu0 %7114
        %7116 = vrot.lane.b32.xlu0 %v6697, 120
        %v7117 = vpop.permute.xlu0 %7116
        %7118 = vrot.lane.b32.xlu0 %v6685, 88
        %v7119 = vpop.permute.xlu0 %7118
        %7120 = vrot.lane.b32.xlu0 %v6688, 88
        %v7121 = vpop.permute.xlu0 %7120
        %7122 = vrot.lane.b32.xlu0 %v6691, 88
        %v7123 = vpop.permute.xlu0 %7122
        %7124 = vrot.lane.b32.xlu0 %v6694, 88
        %v7125 = vpop.permute.xlu0 %7124
        %7126 = vrot.lane.b32.xlu0 %v6697, 88
        %v7127 = vpop.permute.xlu0 %7126
        %v7128 = vsel %vm6730, %v7109, 0
        %v7130 = vsel %vm6730, %v7111, 0
        %v7132 = vsel %vm6730, %v7113, 0
        %v7134 = vsel %vm6730, %v7115, 0
        %v7136 = vsel %vm6730, %v7117, 0
        %v7138 = vsel %vm6730, %v7119, 0
        %v7140 = vsel %vm6730, %v7121, 0
        %v7142 = vsel %vm6730, %v7123, 0
        %v7144 = vsel %vm6730, %v7125, 0
        %v7146 = vsel %vm6730, %v7127, 0
        %7148 = vmatpush.xpose.msra.mxu0 0.0
        %7149 = vmatpush.xpose.msra.mxu0 0.0
        %7150 = vmatpush.xpose.msra.mxu0 0.0
        %7151 = vmatpush.xpose.msra.mxu0 0.0
        %7152 = vmatpush.xpose.msra.mxu0 0.0
        %7153 = vmatpush.xpose.msra.mxu0 0.0
        %7154 = vmatpush.xpose.msra.mxu0 0.0
        %7155 = vmatpush.xpose.msra.mxu0 0.0
        %7156 = vmatpush.xpose.msra.mxu0 0.0
        %7157 = vmatpush.xpose.msra.mxu0 0.0
        %7158 = vmatpush.xpose.msra.mxu0 0.0
        %7159 = vmatpush.xpose.msra.mxu0 %v7146
        %7160 = vmatpush.xpose.msra.mxu0 %v7144
        %7161 = vmatpush.xpose.msra.mxu0 %v7142
        %7162 = vmatpush.xpose.msra.mxu0 %v7140
        %7163 = vmatpush.xpose.msra.mxu0 %v7138
        %7164 = vmatmul.f32.gmra.mxu0 %v7128
        %v7165 = vpop.f32.mrf.mxu0
        %v7166 = vadd.f32 0.0, %v7165
        %7167 = vmatmul.f32.gmra.mxu0 %v7130
        %v7168 = vpop.f32.mrf.mxu0
        %v7169 = vadd.f32 0.0, %v7168
        %7170 = vmatmul.f32.gmra.mxu0 %v7132
        %v7171 = vpop.f32.mrf.mxu0
        %v7172 = vadd.f32 0.0, %v7171
        %7173 = vmatmul.f32.gmra.mxu0 %v7134
        %v7174 = vpop.f32.mrf.mxu0
        %v7175 = vadd.f32 0.0, %v7174
        %7176 = vmatmul.f32.gmra.mxu0 %v7136
        %v7177 = vpop.f32.mrf.mxu0
        %v7178 = vadd.f32 0.0, %v7177
        %7179 = vdwg.mxu0
        %7180 = vrot.lane.b32.xlu0 %v6700, 120
        %v7181 = vpop.permute.xlu0 %7180
        %7182 = vrot.lane.b32.xlu0 %v6703, 120
        %v7183 = vpop.permute.xlu0 %7182
        %7184 = vrot.lane.b32.xlu0 %v6706, 120
        %v7185 = vpop.permute.xlu0 %7184
        %7186 = vrot.lane.b32.xlu0 %v6709, 120
        %v7187 = vpop.permute.xlu0 %7186
        %7188 = vrot.lane.b32.xlu0 %v6712, 120
        %v7189 = vpop.permute.xlu0 %7188
        %7190 = vrot.lane.b32.xlu0 %v6700, 88
        %v7191 = vpop.permute.xlu0 %7190
        %7192 = vrot.lane.b32.xlu0 %v6703, 88
        %v7193 = vpop.permute.xlu0 %7192
        %7194 = vrot.lane.b32.xlu0 %v6706, 88
        %v7195 = vpop.permute.xlu0 %7194
        %7196 = vrot.lane.b32.xlu0 %v6709, 88
        %v7197 = vpop.permute.xlu0 %7196
        %7198 = vrot.lane.b32.xlu0 %v6712, 88
        %v7199 = vpop.permute.xlu0 %7198
        %v7200 = vsel %vm6730, %v7181, 0
        %v7202 = vsel %vm6730, %v7183, 0
        %v7204 = vsel %vm6730, %v7185, 0
        %v7206 = vsel %vm6730, %v7187, 0
        %v7208 = vsel %vm6730, %v7189, 0
        %v7210 = vsel %vm6730, %v7191, 0
        %v7212 = vsel %vm6730, %v7193, 0
        %v7214 = vsel %vm6730, %v7195, 0
        %v7216 = vsel %vm6730, %v7197, 0
        %v7218 = vsel %vm6730, %v7199, 0
        %7220 = vmatpush.xpose.msra.mxu0 0.0
        %7221 = vmatpush.xpose.msra.mxu0 0.0
        %7222 = vmatpush.xpose.msra.mxu0 0.0
        %7223 = vmatpush.xpose.msra.mxu0 0.0
        %7224 = vmatpush.xpose.msra.mxu0 0.0
        %7225 = vmatpush.xpose.msra.mxu0 0.0
        %7226 = vmatpush.xpose.msra.mxu0 0.0
        %7227 = vmatpush.xpose.msra.mxu0 0.0
        %7228 = vmatpush.xpose.msra.mxu0 0.0
        %7229 = vmatpush.xpose.msra.mxu0 0.0
        %7230 = vmatpush.xpose.msra.mxu0 0.0
        %7231 = vmatpush.xpose.msra.mxu0 %v7218
        %7232 = vmatpush.xpose.msra.mxu0 %v7216
        %7233 = vmatpush.xpose.msra.mxu0 %v7214
        %7234 = vmatpush.xpose.msra.mxu0 %v7212
        %7235 = vmatpush.xpose.msra.mxu0 %v7210
        %7236 = vmatmul.f32.gmra.mxu0 %v7200
        %v7237 = vpop.f32.mrf.mxu0
        %v7238 = vadd.f32 0.0, %v7237
        %7239 = vmatmul.f32.gmra.mxu0 %v7202
        %v7240 = vpop.f32.mrf.mxu0
        %v7241 = vadd.f32 0.0, %v7240
        %7242 = vmatmul.f32.gmra.mxu0 %v7204
        %v7243 = vpop.f32.mrf.mxu0
        %v7244 = vadd.f32 0.0, %v7243
        %7245 = vmatmul.f32.gmra.mxu0 %v7206
        %v7246 = vpop.f32.mrf.mxu0
        %v7247 = vadd.f32 0.0, %v7246
        %7248 = vmatmul.f32.gmra.mxu0 %v7208
        %v7249 = vpop.f32.mrf.mxu0
        %v7250 = vadd.f32 0.0, %v7249
        %7251 = vdwg.mxu0
        %v7252 = vmul.f32 %v7166, 0.35355338
        %v7253 = vmul.f32 %v7169, 0.35355338
        %v7254 = vmul.f32 %v7172, 0.35355338
        %v7255 = vmul.f32 %v7175, 0.35355338
        %v7256 = vmul.f32 %v7178, 0.35355338
        %v7257 = vmul.f32 %v7238, 0.35355338
        %v7258 = vmul.f32 %v7241, 0.35355338
        %v7259 = vmul.f32 %v7244, 0.35355338
        %v7260 = vmul.f32 %v7247, 0.35355338
        %v7261 = vmul.f32 %v7250, 0.35355338
        %v7262 = vadd.f32 %v7252, %v6861
        %v7263 = vadd.f32 %v7253, %v6861
        %v7264 = vadd.f32 %v7254, %v6861
        %v7265 = vadd.f32 %v7255, %v6861
        %v7266 = vadd.f32 %v7256, %v6861
        %v7267 = vadd.f32 %v7257, %v6861
        %v7268 = vadd.f32 %v7258, %v6861
        %v7269 = vadd.f32 %v7259, %v6861
        %v7270 = vadd.f32 %v7260, %v6861
        %v7271 = vadd.f32 %v7261, %v6861
        %v7272 = vsel %vm6873, %v7262, -inf
        %7273 = vmax.xlane.f32.xlu0 %v7272
        %v7274 = vpop.xlane.xlu0 %7273
        %v7275 = vsel %vm6873, %v7263, -inf
        %7276 = vmax.xlane.f32.xlu0 %v7275
        %v7277 = vpop.xlane.xlu0 %7276
        %v7278 = vsel %vm6873, %v7264, -inf
        %7279 = vmax.xlane.f32.xlu0 %v7278
        %v7280 = vpop.xlane.xlu0 %7279
        %v7281 = vsel %vm6873, %v7265, -inf
        %7282 = vmax.xlane.f32.xlu0 %v7281
        %v7283 = vpop.xlane.xlu0 %7282
        %v7284 = vsel %vm6873, %v7266, -inf
        %7285 = vmax.xlane.f32.xlu0 %v7284
        %v7286 = vpop.xlane.xlu0 %7285
        %v7287 = vsel %vm6873, %v7267, -inf
        %7288 = vmax.xlane.f32.xlu0 %v7287
        %v7289 = vpop.xlane.xlu0 %7288
        %v7290 = vsel %vm6873, %v7268, -inf
        %7291 = vmax.xlane.f32.xlu0 %v7290
        %v7292 = vpop.xlane.xlu0 %7291
        %v7293 = vsel %vm6873, %v7269, -inf
        %7294 = vmax.xlane.f32.xlu0 %v7293
        %v7295 = vpop.xlane.xlu0 %7294
        %v7296 = vsel %vm6873, %v7270, -inf
        %7297 = vmax.xlane.f32.xlu0 %v7296
        %v7298 = vpop.xlane.xlu0 %7297
        %v7299 = vsel %vm6873, %v7271, -inf
        %7300 = vmax.xlane.f32.xlu0 %v7299
        %v7301 = vpop.xlane.xlu0 %7300
        %v7302 = vsub.f32 %v7262, %v7274
        %v7303 = vsub.f32 %v7263, %v7277
        %v7304 = vsub.f32 %v7264, %v7280
        %v7305 = vsub.f32 %v7265, %v7283
        %v7306 = vsub.f32 %v7266, %v7286
        %v7307 = vsub.f32 %v7267, %v7289
        %v7308 = vsub.f32 %v7268, %v7292
        %v7309 = vsub.f32 %v7269, %v7295
        %v7310 = vsub.f32 %v7270, %v7298
        %v7311 = vsub.f32 %v7271, %v7301
        %v7312 = vmul.f32 %v7302, 1.442695
        %v7313 = vpow.pop %v7312
        %v7314 = vmul.f32 %v7303, 1.442695
        %v7315 = vpow.pop %v7314
        %v7316 = vmul.f32 %v7304, 1.442695
        %v7317 = vpow.pop %v7316
        %v7318 = vmul.f32 %v7305, 1.442695
        %v7319 = vpow.pop %v7318
        %v7320 = vmul.f32 %v7306, 1.442695
        %v7321 = vpow.pop %v7320
        %v7322 = vmul.f32 %v7307, 1.442695
        %v7323 = vpow.pop %v7322
        %v7324 = vmul.f32 %v7308, 1.442695
        %v7325 = vpow.pop %v7324
        %v7326 = vmul.f32 %v7309, 1.442695
        %v7327 = vpow.pop %v7326
        %v7328 = vmul.f32 %v7310, 1.442695
        %v7329 = vpow.pop %v7328
        %v7330 = vmul.f32 %v7311, 1.442695
        %v7331 = vpow.pop %v7330
        %v7332 = vsel %vm6873, %v7313, 0.0
        %7333 = vadd.xlane.f32.xlu0 %v7332
        %v7334 = vpop.xlane.xlu0 %7333
        %v7335 = vsel %vm6873, %v7315, 0.0
        %7336 = vadd.xlane.f32.xlu0 %v7335
        %v7337 = vpop.xlane.xlu0 %7336
        %v7338 = vsel %vm6873, %v7317, 0.0
        %7339 = vadd.xlane.f32.xlu0 %v7338
        %v7340 = vpop.xlane.xlu0 %7339
        %v7341 = vsel %vm6873, %v7319, 0.0
        %7342 = vadd.xlane.f32.xlu0 %v7341
        %v7343 = vpop.xlane.xlu0 %7342
        %v7344 = vsel %vm6873, %v7321, 0.0
        %7345 = vadd.xlane.f32.xlu0 %v7344
        %v7346 = vpop.xlane.xlu0 %7345
        %v7347 = vsel %vm6873, %v7323, 0.0
        %7348 = vadd.xlane.f32.xlu0 %v7347
        %v7349 = vpop.xlane.xlu0 %7348
        %v7350 = vsel %vm6873, %v7325, 0.0
        %7351 = vadd.xlane.f32.xlu0 %v7350
        %v7352 = vpop.xlane.xlu0 %7351
        %v7353 = vsel %vm6873, %v7327, 0.0
        %7354 = vadd.xlane.f32.xlu0 %v7353
        %v7355 = vpop.xlane.xlu0 %7354
        %v7356 = vsel %vm6873, %v7329, 0.0
        %7357 = vadd.xlane.f32.xlu0 %v7356
        %v7358 = vpop.xlane.xlu0 %7357
        %v7359 = vsel %vm6873, %v7331, 0.0
        %7360 = vadd.xlane.f32.xlu0 %v7359
        %v7361 = vpop.xlane.xlu0 %7360
        %v7362 = vrcp.pop %v7334
        %v7363 = vrcp.pop %v7337
        %v7364 = vrcp.pop %v7340
        %v7365 = vrcp.pop %v7343
        %v7366 = vrcp.pop %v7346
        %v7367 = vrcp.pop %v7349
        %v7368 = vrcp.pop %v7352
        %v7369 = vrcp.pop %v7355
        %v7370 = vrcp.pop %v7358
        %v7371 = vrcp.pop %v7361
        %v7372 = vmul.f32 %v7313, %v7362
        %v7373 = vmul.f32 %v7315, %v7363
        %v7374 = vmul.f32 %v7317, %v7364
        %v7375 = vmul.f32 %v7319, %v7365
        %v7376 = vmul.f32 %v7321, %v7366
        %v7377 = vmul.f32 %v7323, %v7367
        %v7378 = vmul.f32 %v7325, %v7368
        %v7379 = vmul.f32 %v7327, %v7369
        %v7380 = vmul.f32 %v7329, %v7370
        %v7381 = vmul.f32 %v7331, %v7371
        %7382 = vrot.lane.b32.xlu0 %v6685, 56
        %v7383 = vpop.permute.xlu0 %7382
        %7384 = vrot.lane.b32.xlu0 %v6688, 56
        %v7385 = vpop.permute.xlu0 %7384
        %7386 = vrot.lane.b32.xlu0 %v6691, 56
        %v7387 = vpop.permute.xlu0 %7386
        %7388 = vrot.lane.b32.xlu0 %v6694, 56
        %v7389 = vpop.permute.xlu0 %7388
        %7390 = vrot.lane.b32.xlu0 %v6697, 56
        %v7391 = vpop.permute.xlu0 %7390
        %v7398 = vsel %vm6873, %v7372, 0
        %v7401 = vsel %vm6873, %v7373, 0
        %v7404 = vsel %vm6873, %v7374, 0
        %v7407 = vsel %vm6873, %v7375, 0
        %v7410 = vsel %vm6873, %v7376, 0
        %7412 = vmatpush.msra.mxu0 0.0
        %7413 = vmatpush.msra.mxu0 0.0
        %7414 = vmatpush.msra.mxu0 0.0
        %7415 = vmatpush.msra.mxu0 0.0
        %7416 = vmatpush.msra.mxu0 0.0
        %7417 = vmatpush.msra.mxu0 0.0
        %7418 = vmatpush.msra.mxu0 0.0
        %7419 = vmatpush.msra.mxu0 0.0
        %7420 = vmatpush.msra.mxu0 0.0
        %7421 = vmatpush.msra.mxu0 0.0
        %7422 = vmatpush.msra.mxu0 0.0
        %7423 = vmatpush.msra.mxu0 %v7391
        %7424 = vmatpush.msra.mxu0 %v7389
        %7425 = vmatpush.msra.mxu0 %v7387
        %7426 = vmatpush.msra.mxu0 %v7385
        %7427 = vmatpush.msra.mxu0 %v7383
        %7428 = vmatmul.f32.gmra.mxu0 %v7398
        %v7429 = vpop.f32.mrf.mxu0
        %v7430 = vadd.f32 0.0, %v7429
        %7431 = vmatmul.f32.gmra.mxu0 %v7401
        %v7432 = vpop.f32.mrf.mxu0
        %v7433 = vadd.f32 0.0, %v7432
        %7434 = vmatmul.f32.gmra.mxu0 %v7404
        %v7435 = vpop.f32.mrf.mxu0
        %v7436 = vadd.f32 0.0, %v7435
        %7437 = vmatmul.f32.gmra.mxu0 %v7407
        %v7438 = vpop.f32.mrf.mxu0
        %v7439 = vadd.f32 0.0, %v7438
        %7440 = vmatmul.f32.gmra.mxu0 %v7410
        %v7441 = vpop.f32.mrf.mxu0
        %v7442 = vadd.f32 0.0, %v7441
        %7443 = vdwg.mxu0
        %7444 = vrot.lane.b32.xlu0 %v6700, 56
        %v7445 = vpop.permute.xlu0 %7444
        %7446 = vrot.lane.b32.xlu0 %v6703, 56
        %v7447 = vpop.permute.xlu0 %7446
        %7448 = vrot.lane.b32.xlu0 %v6706, 56
        %v7449 = vpop.permute.xlu0 %7448
        %7450 = vrot.lane.b32.xlu0 %v6709, 56
        %v7451 = vpop.permute.xlu0 %7450
        %7452 = vrot.lane.b32.xlu0 %v6712, 56
        %v7453 = vpop.permute.xlu0 %7452
        %v7460 = vsel %vm6873, %v7377, 0
        %v7463 = vsel %vm6873, %v7378, 0
        %v7466 = vsel %vm6873, %v7379, 0
        %v7469 = vsel %vm6873, %v7380, 0
        %v7472 = vsel %vm6873, %v7381, 0
        %7474 = vmatpush.msra.mxu0 0.0
        %7475 = vmatpush.msra.mxu0 0.0
        %7476 = vmatpush.msra.mxu0 0.0
        %7477 = vmatpush.msra.mxu0 0.0
        %7478 = vmatpush.msra.mxu0 0.0
        %7479 = vmatpush.msra.mxu0 0.0
        %7480 = vmatpush.msra.mxu0 0.0
        %7481 = vmatpush.msra.mxu0 0.0
        %7482 = vmatpush.msra.mxu0 0.0
        %7483 = vmatpush.msra.mxu0 0.0
        %7484 = vmatpush.msra.mxu0 0.0
        %7485 = vmatpush.msra.mxu0 %v7453
        %7486 = vmatpush.msra.mxu0 %v7451
        %7487 = vmatpush.msra.mxu0 %v7449
        %7488 = vmatpush.msra.mxu0 %v7447
        %7489 = vmatpush.msra.mxu0 %v7445
        %7490 = vmatmul.f32.gmra.mxu0 %v7460
        %v7491 = vpop.f32.mrf.mxu0
        %v7492 = vadd.f32 0.0, %v7491
        %7493 = vmatmul.f32.gmra.mxu0 %v7463
        %v7494 = vpop.f32.mrf.mxu0
        %v7495 = vadd.f32 0.0, %v7494
        %7496 = vmatmul.f32.gmra.mxu0 %v7466
        %v7497 = vpop.f32.mrf.mxu0
        %v7498 = vadd.f32 0.0, %v7497
        %7499 = vmatmul.f32.gmra.mxu0 %v7469
        %v7500 = vpop.f32.mrf.mxu0
        %v7501 = vadd.f32 0.0, %v7500
        %7502 = vmatmul.f32.gmra.mxu0 %v7472
        %v7503 = vpop.f32.mrf.mxu0
        %v7504 = vadd.f32 0.0, %v7503
        %7505 = vdwg.mxu0
        %7506 = vrot.lane.b32.xlu0 %v6685, 112
        %v7507 = vpop.permute.xlu0 %7506
        %7508 = vrot.lane.b32.xlu0 %v6688, 112
        %v7509 = vpop.permute.xlu0 %7508
        %7510 = vrot.lane.b32.xlu0 %v6691, 112
        %v7511 = vpop.permute.xlu0 %7510
        %7512 = vrot.lane.b32.xlu0 %v6694, 112
        %v7513 = vpop.permute.xlu0 %7512
        %7514 = vrot.lane.b32.xlu0 %v6697, 112
        %v7515 = vpop.permute.xlu0 %7514
        %7516 = vrot.lane.b32.xlu0 %v6685, 80
        %v7517 = vpop.permute.xlu0 %7516
        %7518 = vrot.lane.b32.xlu0 %v6688, 80
        %v7519 = vpop.permute.xlu0 %7518
        %7520 = vrot.lane.b32.xlu0 %v6691, 80
        %v7521 = vpop.permute.xlu0 %7520
        %7522 = vrot.lane.b32.xlu0 %v6694, 80
        %v7523 = vpop.permute.xlu0 %7522
        %7524 = vrot.lane.b32.xlu0 %v6697, 80
        %v7525 = vpop.permute.xlu0 %7524
        %v7526 = vsel %vm6730, %v7507, 0
        %v7528 = vsel %vm6730, %v7509, 0
        %v7530 = vsel %vm6730, %v7511, 0
        %v7532 = vsel %vm6730, %v7513, 0
        %v7534 = vsel %vm6730, %v7515, 0
        %v7536 = vsel %vm6730, %v7517, 0
        %v7538 = vsel %vm6730, %v7519, 0
        %v7540 = vsel %vm6730, %v7521, 0
        %v7542 = vsel %vm6730, %v7523, 0
        %v7544 = vsel %vm6730, %v7525, 0
        %7546 = vmatpush.xpose.msra.mxu0 0.0
        %7547 = vmatpush.xpose.msra.mxu0 0.0
        %7548 = vmatpush.xpose.msra.mxu0 0.0
        %7549 = vmatpush.xpose.msra.mxu0 0.0
        %7550 = vmatpush.xpose.msra.mxu0 0.0
        %7551 = vmatpush.xpose.msra.mxu0 0.0
        %7552 = vmatpush.xpose.msra.mxu0 0.0
        %7553 = vmatpush.xpose.msra.mxu0 0.0
        %7554 = vmatpush.xpose.msra.mxu0 0.0
        %7555 = vmatpush.xpose.msra.mxu0 0.0
        %7556 = vmatpush.xpose.msra.mxu0 0.0
        %7557 = vmatpush.xpose.msra.mxu0 %v7544
        %7558 = vmatpush.xpose.msra.mxu0 %v7542
        %7559 = vmatpush.xpose.msra.mxu0 %v7540
        %7560 = vmatpush.xpose.msra.mxu0 %v7538
        %7561 = vmatpush.xpose.msra.mxu0 %v7536
        %7562 = vmatmul.f32.gmra.mxu0 %v7526
        %v7563 = vpop.f32.mrf.mxu0
        %v7564 = vadd.f32 0.0, %v7563
        %7565 = vmatmul.f32.gmra.mxu0 %v7528
        %v7566 = vpop.f32.mrf.mxu0
        %v7567 = vadd.f32 0.0, %v7566
        %7568 = vmatmul.f32.gmra.mxu0 %v7530
        %v7569 = vpop.f32.mrf.mxu0
        %v7570 = vadd.f32 0.0, %v7569
        %7571 = vmatmul.f32.gmra.mxu0 %v7532
        %v7572 = vpop.f32.mrf.mxu0
        %v7573 = vadd.f32 0.0, %v7572
        %7574 = vmatmul.f32.gmra.mxu0 %v7534
        %v7575 = vpop.f32.mrf.mxu0
        %v7576 = vadd.f32 0.0, %v7575
        %7577 = vdwg.mxu0
        %7578 = vrot.lane.b32.xlu0 %v6700, 112
        %v7579 = vpop.permute.xlu0 %7578
        %7580 = vrot.lane.b32.xlu0 %v6703, 112
        %v7581 = vpop.permute.xlu0 %7580
        %7582 = vrot.lane.b32.xlu0 %v6706, 112
        %v7583 = vpop.permute.xlu0 %7582
        %7584 = vrot.lane.b32.xlu0 %v6709, 112
        %v7585 = vpop.permute.xlu0 %7584
        %7586 = vrot.lane.b32.xlu0 %v6712, 112
        %v7587 = vpop.permute.xlu0 %7586
        %7588 = vrot.lane.b32.xlu0 %v6700, 80
        %v7589 = vpop.permute.xlu0 %7588
        %7590 = vrot.lane.b32.xlu0 %v6703, 80
        %v7591 = vpop.permute.xlu0 %7590
        %7592 = vrot.lane.b32.xlu0 %v6706, 80
        %v7593 = vpop.permute.xlu0 %7592
        %7594 = vrot.lane.b32.xlu0 %v6709, 80
        %v7595 = vpop.permute.xlu0 %7594
        %7596 = vrot.lane.b32.xlu0 %v6712, 80
        %v7597 = vpop.permute.xlu0 %7596
        %v7598 = vsel %vm6730, %v7579, 0
        %v7600 = vsel %vm6730, %v7581, 0
        %v7602 = vsel %vm6730, %v7583, 0
        %v7604 = vsel %vm6730, %v7585, 0
        %v7606 = vsel %vm6730, %v7587, 0
        %v7608 = vsel %vm6730, %v7589, 0
        %v7610 = vsel %vm6730, %v7591, 0
        %v7612 = vsel %vm6730, %v7593, 0
        %v7614 = vsel %vm6730, %v7595, 0
        %v7616 = vsel %vm6730, %v7597, 0
        %7618 = vmatpush.xpose.msra.mxu0 0.0
        %7619 = vmatpush.xpose.msra.mxu0 0.0
        %7620 = vmatpush.xpose.msra.mxu0 0.0
        %7621 = vmatpush.xpose.msra.mxu0 0.0
        %7622 = vmatpush.xpose.msra.mxu0 0.0
        %7623 = vmatpush.xpose.msra.mxu0 0.0
        %7624 = vmatpush.xpose.msra.mxu0 0.0
        %7625 = vmatpush.xpose.msra.mxu0 0.0
        %7626 = vmatpush.xpose.msra.mxu0 0.0
        %7627 = vmatpush.xpose.msra.mxu0 0.0
        %7628 = vmatpush.xpose.msra.mxu0 0.0
        %7629 = vmatpush.xpose.msra.mxu0 %v7616
        %7630 = vmatpush.xpose.msra.mxu0 %v7614
        %7631 = vmatpush.xpose.msra.mxu0 %v7612
        %7632 = vmatpush.xpose.msra.mxu0 %v7610
        %7633 = vmatpush.xpose.msra.mxu0 %v7608
        %7634 = vmatmul.f32.gmra.mxu0 %v7598
        %v7635 = vpop.f32.mrf.mxu0
        %v7636 = vadd.f32 0.0, %v7635
        %7637 = vmatmul.f32.gmra.mxu0 %v7600
        %v7638 = vpop.f32.mrf.mxu0
        %v7639 = vadd.f32 0.0, %v7638
        %7640 = vmatmul.f32.gmra.mxu0 %v7602
        %v7641 = vpop.f32.mrf.mxu0
        %v7642 = vadd.f32 0.0, %v7641
        %7643 = vmatmul.f32.gmra.mxu0 %v7604
        %v7644 = vpop.f32.mrf.mxu0
        %v7645 = vadd.f32 0.0, %v7644
        %7646 = vmatmul.f32.gmra.mxu0 %v7606
        %v7647 = vpop.f32.mrf.mxu0
        %v7648 = vadd.f32 0.0, %v7647
        %7649 = vdwg.mxu0
        %v7650 = vmul.f32 %v7564, 0.35355338
        %v7651 = vmul.f32 %v7567, 0.35355338
        %v7652 = vmul.f32 %v7570, 0.35355338
        %v7653 = vmul.f32 %v7573, 0.35355338
        %v7654 = vmul.f32 %v7576, 0.35355338
        %v7655 = vmul.f32 %v7636, 0.35355338
        %v7656 = vmul.f32 %v7639, 0.35355338
        %v7657 = vmul.f32 %v7642, 0.35355338
        %v7658 = vmul.f32 %v7645, 0.35355338
        %v7659 = vmul.f32 %v7648, 0.35355338
        %v7660 = vadd.f32 %v7650, %v6861
        %v7661 = vadd.f32 %v7651, %v6861
        %v7662 = vadd.f32 %v7652, %v6861
        %v7663 = vadd.f32 %v7653, %v6861
        %v7664 = vadd.f32 %v7654, %v6861
        %v7665 = vadd.f32 %v7655, %v6861
        %v7666 = vadd.f32 %v7656, %v6861
        %v7667 = vadd.f32 %v7657, %v6861
        %v7668 = vadd.f32 %v7658, %v6861
        %v7669 = vadd.f32 %v7659, %v6861
        %v7670 = vsel %vm6873, %v7660, -inf
        %7671 = vmax.xlane.f32.xlu0 %v7670
        %v7672 = vpop.xlane.xlu0 %7671
        %v7673 = vsel %vm6873, %v7661, -inf
        %7674 = vmax.xlane.f32.xlu0 %v7673
        %v7675 = vpop.xlane.xlu0 %7674
        %v7676 = vsel %vm6873, %v7662, -inf
        %7677 = vmax.xlane.f32.xlu0 %v7676
        %v7678 = vpop.xlane.xlu0 %7677
        %v7679 = vsel %vm6873, %v7663, -inf
        %7680 = vmax.xlane.f32.xlu0 %v7679
        %v7681 = vpop.xlane.xlu0 %7680
        %v7682 = vsel %vm6873, %v7664, -inf
        %7683 = vmax.xlane.f32.xlu0 %v7682
        %v7684 = vpop.xlane.xlu0 %7683
        %v7685 = vsel %vm6873, %v7665, -inf
        %7686 = vmax.xlane.f32.xlu0 %v7685
        %v7687 = vpop.xlane.xlu0 %7686
        %v7688 = vsel %vm6873, %v7666, -inf
        %7689 = vmax.xlane.f32.xlu0 %v7688
        %v7690 = vpop.xlane.xlu0 %7689
        %v7691 = vsel %vm6873, %v7667, -inf
        %7692 = vmax.xlane.f32.xlu0 %v7691
        %v7693 = vpop.xlane.xlu0 %7692
        %v7694 = vsel %vm6873, %v7668, -inf
        %7695 = vmax.xlane.f32.xlu0 %v7694
        %v7696 = vpop.xlane.xlu0 %7695
        %v7697 = vsel %vm6873, %v7669, -inf
        %7698 = vmax.xlane.f32.xlu0 %v7697
        %v7699 = vpop.xlane.xlu0 %7698
        %v7700 = vsub.f32 %v7660, %v7672
        %v7701 = vsub.f32 %v7661, %v7675
        %v7702 = vsub.f32 %v7662, %v7678
        %v7703 = vsub.f32 %v7663, %v7681
        %v7704 = vsub.f32 %v7664, %v7684
        %v7705 = vsub.f32 %v7665, %v7687
        %v7706 = vsub.f32 %v7666, %v7690
        %v7707 = vsub.f32 %v7667, %v7693
        %v7708 = vsub.f32 %v7668, %v7696
        %v7709 = vsub.f32 %v7669, %v7699
        %v7710 = vmul.f32 %v7700, 1.442695
        %v7711 = vpow.pop %v7710
        %v7712 = vmul.f32 %v7701, 1.442695
        %v7713 = vpow.pop %v7712
        %v7714 = vmul.f32 %v7702, 1.442695
        %v7715 = vpow.pop %v7714
        %v7716 = vmul.f32 %v7703, 1.442695
        %v7717 = vpow.pop %v7716
        %v7718 = vmul.f32 %v7704, 1.442695
        %v7719 = vpow.pop %v7718
        %v7720 = vmul.f32 %v7705, 1.442695
        %v7721 = vpow.pop %v7720
        %v7722 = vmul.f32 %v7706, 1.442695
        %v7723 = vpow.pop %v7722
        %v7724 = vmul.f32 %v7707, 1.442695
        %v7725 = vpow.pop %v7724
        %v7726 = vmul.f32 %v7708, 1.442695
        %v7727 = vpow.pop %v7726
        %v7728 = vmul.f32 %v7709, 1.442695
        %v7729 = vpow.pop %v7728
        %v7730 = vsel %vm6873, %v7711, 0.0
        %7731 = vadd.xlane.f32.xlu0 %v7730
        %v7732 = vpop.xlane.xlu0 %7731
        %v7733 = vsel %vm6873, %v7713, 0.0
        %7734 = vadd.xlane.f32.xlu0 %v7733
        %v7735 = vpop.xlane.xlu0 %7734
        %v7736 = vsel %vm6873, %v7715, 0.0
        %7737 = vadd.xlane.f32.xlu0 %v7736
        %v7738 = vpop.xlane.xlu0 %7737
        %v7739 = vsel %vm6873, %v7717, 0.0
        %7740 = vadd.xlane.f32.xlu0 %v7739
        %v7741 = vpop.xlane.xlu0 %7740
        %v7742 = vsel %vm6873, %v7719, 0.0
        %7743 = vadd.xlane.f32.xlu0 %v7742
        %v7744 = vpop.xlane.xlu0 %7743
        %v7745 = vsel %vm6873, %v7721, 0.0
        %7746 = vadd.xlane.f32.xlu0 %v7745
        %v7747 = vpop.xlane.xlu0 %7746
        %v7748 = vsel %vm6873, %v7723, 0.0
        %7749 = vadd.xlane.f32.xlu0 %v7748
        %v7750 = vpop.xlane.xlu0 %7749
        %v7751 = vsel %vm6873, %v7725, 0.0
        %7752 = vadd.xlane.f32.xlu0 %v7751
        %v7753 = vpop.xlane.xlu0 %7752
        %v7754 = vsel %vm6873, %v7727, 0.0
        %7755 = vadd.xlane.f32.xlu0 %v7754
        %v7756 = vpop.xlane.xlu0 %7755
        %v7757 = vsel %vm6873, %v7729, 0.0
        %7758 = vadd.xlane.f32.xlu0 %v7757
        %v7759 = vpop.xlane.xlu0 %7758
        %v7760 = vrcp.pop %v7732
        %v7761 = vrcp.pop %v7735
        %v7762 = vrcp.pop %v7738
        %v7763 = vrcp.pop %v7741
        %v7764 = vrcp.pop %v7744
        %v7765 = vrcp.pop %v7747
        %v7766 = vrcp.pop %v7750
        %v7767 = vrcp.pop %v7753
        %v7768 = vrcp.pop %v7756
        %v7769 = vrcp.pop %v7759
        %v7770 = vmul.f32 %v7711, %v7760
        %v7771 = vmul.f32 %v7713, %v7761
        %v7772 = vmul.f32 %v7715, %v7762
        %v7773 = vmul.f32 %v7717, %v7763
        %v7774 = vmul.f32 %v7719, %v7764
        %v7775 = vmul.f32 %v7721, %v7765
        %v7776 = vmul.f32 %v7723, %v7766
        %v7777 = vmul.f32 %v7725, %v7767
        %v7778 = vmul.f32 %v7727, %v7768
        %v7779 = vmul.f32 %v7729, %v7769
        %7780 = vrot.lane.b32.xlu0 %v6685, 48
        %v7781 = vpop.permute.xlu0 %7780
        %7782 = vrot.lane.b32.xlu0 %v6688, 48
        %v7783 = vpop.permute.xlu0 %7782
        %7784 = vrot.lane.b32.xlu0 %v6691, 48
        %v7785 = vpop.permute.xlu0 %7784
        %7786 = vrot.lane.b32.xlu0 %v6694, 48
        %v7787 = vpop.permute.xlu0 %7786
        %7788 = vrot.lane.b32.xlu0 %v6697, 48
        %v7789 = vpop.permute.xlu0 %7788
        %v7796 = vsel %vm6873, %v7770, 0
        %v7799 = vsel %vm6873, %v7771, 0
        %v7802 = vsel %vm6873, %v7772, 0
        %v7805 = vsel %vm6873, %v7773, 0
        %v7808 = vsel %vm6873, %v7774, 0
        %7810 = vmatpush.msra.mxu0 0.0
        %7811 = vmatpush.msra.mxu0 0.0
        %7812 = vmatpush.msra.mxu0 0.0
        %7813 = vmatpush.msra.mxu0 0.0
        %7814 = vmatpush.msra.mxu0 0.0
        %7815 = vmatpush.msra.mxu0 0.0
        %7816 = vmatpush.msra.mxu0 0.0
        %7817 = vmatpush.msra.mxu0 0.0
        %7818 = vmatpush.msra.mxu0 0.0
        %7819 = vmatpush.msra.mxu0 0.0
        %7820 = vmatpush.msra.mxu0 0.0
        %7821 = vmatpush.msra.mxu0 %v7789
        %7822 = vmatpush.msra.mxu0 %v7787
        %7823 = vmatpush.msra.mxu0 %v7785
        %7824 = vmatpush.msra.mxu0 %v7783
        %7825 = vmatpush.msra.mxu0 %v7781
        %7826 = vmatmul.f32.gmra.mxu0 %v7796
        %v7827 = vpop.f32.mrf.mxu0
        %v7828 = vadd.f32 0.0, %v7827
        %7829 = vmatmul.f32.gmra.mxu0 %v7799
        %v7830 = vpop.f32.mrf.mxu0
        %v7831 = vadd.f32 0.0, %v7830
        %7832 = vmatmul.f32.gmra.mxu0 %v7802
        %v7833 = vpop.f32.mrf.mxu0
        %v7834 = vadd.f32 0.0, %v7833
        %7835 = vmatmul.f32.gmra.mxu0 %v7805
        %v7836 = vpop.f32.mrf.mxu0
        %v7837 = vadd.f32 0.0, %v7836
        %7838 = vmatmul.f32.gmra.mxu0 %v7808
        %v7839 = vpop.f32.mrf.mxu0
        %v7840 = vadd.f32 0.0, %v7839
        %7841 = vdwg.mxu0
        %7842 = vrot.lane.b32.xlu0 %v6700, 48
        %v7843 = vpop.permute.xlu0 %7842
        %7844 = vrot.lane.b32.xlu0 %v6703, 48
        %v7845 = vpop.permute.xlu0 %7844
        %7846 = vrot.lane.b32.xlu0 %v6706, 48
        %v7847 = vpop.permute.xlu0 %7846
        %7848 = vrot.lane.b32.xlu0 %v6709, 48
        %v7849 = vpop.permute.xlu0 %7848
        %7850 = vrot.lane.b32.xlu0 %v6712, 48
        %v7851 = vpop.permute.xlu0 %7850
        %v7858 = vsel %vm6873, %v7775, 0
        %v7861 = vsel %vm6873, %v7776, 0
        %v7864 = vsel %vm6873, %v7777, 0
        %v7867 = vsel %vm6873, %v7778, 0
        %v7870 = vsel %vm6873, %v7779, 0
        %7872 = vmatpush.msra.mxu0 0.0
        %7873 = vmatpush.msra.mxu0 0.0
        %7874 = vmatpush.msra.mxu0 0.0
        %7875 = vmatpush.msra.mxu0 0.0
        %7876 = vmatpush.msra.mxu0 0.0
        %7877 = vmatpush.msra.mxu0 0.0
        %7878 = vmatpush.msra.mxu0 0.0
        %7879 = vmatpush.msra.mxu0 0.0
        %7880 = vmatpush.msra.mxu0 0.0
        %7881 = vmatpush.msra.mxu0 0.0
        %7882 = vmatpush.msra.mxu0 0.0
        %7883 = vmatpush.msra.mxu0 %v7851
        %7884 = vmatpush.msra.mxu0 %v7849
        %7885 = vmatpush.msra.mxu0 %v7847
        %7886 = vmatpush.msra.mxu0 %v7845
        %7887 = vmatpush.msra.mxu0 %v7843
        %7888 = vmatmul.f32.gmra.mxu0 %v7858
        %v7889 = vpop.f32.mrf.mxu0
        %v7890 = vadd.f32 0.0, %v7889
        %7891 = vmatmul.f32.gmra.mxu0 %v7861
        %v7892 = vpop.f32.mrf.mxu0
        %v7893 = vadd.f32 0.0, %v7892
        %7894 = vmatmul.f32.gmra.mxu0 %v7864
        %v7895 = vpop.f32.mrf.mxu0
        %v7896 = vadd.f32 0.0, %v7895
        %7897 = vmatmul.f32.gmra.mxu0 %v7867
        %v7898 = vpop.f32.mrf.mxu0
        %v7899 = vadd.f32 0.0, %v7898
        %7900 = vmatmul.f32.gmra.mxu0 %v7870
        %v7901 = vpop.f32.mrf.mxu0
        %v7902 = vadd.f32 0.0, %v7901
        %7903 = vdwg.mxu0
        %7904 = vrot.lane.b32.xlu0 %v6685, 104
        %v7905 = vpop.permute.xlu0 %7904
        %7906 = vrot.lane.b32.xlu0 %v6688, 104
        %v7907 = vpop.permute.xlu0 %7906
        %7908 = vrot.lane.b32.xlu0 %v6691, 104
        %v7909 = vpop.permute.xlu0 %7908
        %7910 = vrot.lane.b32.xlu0 %v6694, 104
        %v7911 = vpop.permute.xlu0 %7910
        %7912 = vrot.lane.b32.xlu0 %v6697, 104
        %v7913 = vpop.permute.xlu0 %7912
        %7914 = vrot.lane.b32.xlu0 %v6685, 72
        %v7915 = vpop.permute.xlu0 %7914
        %7916 = vrot.lane.b32.xlu0 %v6688, 72
        %v7917 = vpop.permute.xlu0 %7916
        %7918 = vrot.lane.b32.xlu0 %v6691, 72
        %v7919 = vpop.permute.xlu0 %7918
        %7920 = vrot.lane.b32.xlu0 %v6694, 72
        %v7921 = vpop.permute.xlu0 %7920
        %7922 = vrot.lane.b32.xlu0 %v6697, 72
        %v7923 = vpop.permute.xlu0 %7922
        %v7924 = vsel %vm6730, %v7905, 0
        %v7926 = vsel %vm6730, %v7907, 0
        %v7928 = vsel %vm6730, %v7909, 0
        %v7930 = vsel %vm6730, %v7911, 0
        %v7932 = vsel %vm6730, %v7913, 0
        %v7934 = vsel %vm6730, %v7915, 0
        %v7936 = vsel %vm6730, %v7917, 0
        %v7938 = vsel %vm6730, %v7919, 0
        %v7940 = vsel %vm6730, %v7921, 0
        %v7942 = vsel %vm6730, %v7923, 0
        %7944 = vmatpush.xpose.msra.mxu0 0.0
        %7945 = vmatpush.xpose.msra.mxu0 0.0
        %7946 = vmatpush.xpose.msra.mxu0 0.0
        %7947 = vmatpush.xpose.msra.mxu0 0.0
        %7948 = vmatpush.xpose.msra.mxu0 0.0
        %7949 = vmatpush.xpose.msra.mxu0 0.0
        %7950 = vmatpush.xpose.msra.mxu0 0.0
        %7951 = vmatpush.xpose.msra.mxu0 0.0
        %7952 = vmatpush.xpose.msra.mxu0 0.0
        %7953 = vmatpush.xpose.msra.mxu0 0.0
        %7954 = vmatpush.xpose.msra.mxu0 0.0
        %7955 = vmatpush.xpose.msra.mxu0 %v7942
        %7956 = vmatpush.xpose.msra.mxu0 %v7940
        %7957 = vmatpush.xpose.msra.mxu0 %v7938
        %7958 = vmatpush.xpose.msra.mxu0 %v7936
        %7959 = vmatpush.xpose.msra.mxu0 %v7934
        %7960 = vmatmul.f32.gmra.mxu0 %v7924
        %v7961 = vpop.f32.mrf.mxu0
        %v7962 = vadd.f32 0.0, %v7961
        %7963 = vmatmul.f32.gmra.mxu0 %v7926
        %v7964 = vpop.f32.mrf.mxu0
        %v7965 = vadd.f32 0.0, %v7964
        %7966 = vmatmul.f32.gmra.mxu0 %v7928
        %v7967 = vpop.f32.mrf.mxu0
        %v7968 = vadd.f32 0.0, %v7967
        %7969 = vmatmul.f32.gmra.mxu0 %v7930
        %v7970 = vpop.f32.mrf.mxu0
        %v7971 = vadd.f32 0.0, %v7970
        %7972 = vmatmul.f32.gmra.mxu0 %v7932
        %v7973 = vpop.f32.mrf.mxu0
        %v7974 = vadd.f32 0.0, %v7973
        %7975 = vdwg.mxu0
        %7976 = vrot.lane.b32.xlu0 %v6700, 104
        %v7977 = vpop.permute.xlu0 %7976
        %7978 = vrot.lane.b32.xlu0 %v6703, 104
        %v7979 = vpop.permute.xlu0 %7978
        %7980 = vrot.lane.b32.xlu0 %v6706, 104
        %v7981 = vpop.permute.xlu0 %7980
        %7982 = vrot.lane.b32.xlu0 %v6709, 104
        %v7983 = vpop.permute.xlu0 %7982
        %7984 = vrot.lane.b32.xlu0 %v6712, 104
        %v7985 = vpop.permute.xlu0 %7984
        %7986 = vrot.lane.b32.xlu0 %v6700, 72
        %v7987 = vpop.permute.xlu0 %7986
        %7988 = vrot.lane.b32.xlu0 %v6703, 72
        %v7989 = vpop.permute.xlu0 %7988
        %7990 = vrot.lane.b32.xlu0 %v6706, 72
        %v7991 = vpop.permute.xlu0 %7990
        %7992 = vrot.lane.b32.xlu0 %v6709, 72
        %v7993 = vpop.permute.xlu0 %7992
        %7994 = vrot.lane.b32.xlu0 %v6712, 72
        %v7995 = vpop.permute.xlu0 %7994
        %v7996 = vsel %vm6730, %v7977, 0
        %v7998 = vsel %vm6730, %v7979, 0
        %v8000 = vsel %vm6730, %v7981, 0
        %v8002 = vsel %vm6730, %v7983, 0
        %v8004 = vsel %vm6730, %v7985, 0
        %v8006 = vsel %vm6730, %v7987, 0
        %v8008 = vsel %vm6730, %v7989, 0
        %v8010 = vsel %vm6730, %v7991, 0
        %v8012 = vsel %vm6730, %v7993, 0
        %v8014 = vsel %vm6730, %v7995, 0
        %8016 = vmatpush.xpose.msra.mxu0 0.0
        %8017 = vmatpush.xpose.msra.mxu0 0.0
        %8018 = vmatpush.xpose.msra.mxu0 0.0
        %8019 = vmatpush.xpose.msra.mxu0 0.0
        %8020 = vmatpush.xpose.msra.mxu0 0.0
        %8021 = vmatpush.xpose.msra.mxu0 0.0
        %8022 = vmatpush.xpose.msra.mxu0 0.0
        %8023 = vmatpush.xpose.msra.mxu0 0.0
        %8024 = vmatpush.xpose.msra.mxu0 0.0
        %8025 = vmatpush.xpose.msra.mxu0 0.0
        %8026 = vmatpush.xpose.msra.mxu0 0.0
        %8027 = vmatpush.xpose.msra.mxu0 %v8014
        %8028 = vmatpush.xpose.msra.mxu0 %v8012
        %8029 = vmatpush.xpose.msra.mxu0 %v8010
        %8030 = vmatpush.xpose.msra.mxu0 %v8008
        %8031 = vmatpush.xpose.msra.mxu0 %v8006
        %8032 = vmatmul.f32.gmra.mxu0 %v7996
        %v8033 = vpop.f32.mrf.mxu0
        %v8034 = vadd.f32 0.0, %v8033
        %8035 = vmatmul.f32.gmra.mxu0 %v7998
        %v8036 = vpop.f32.mrf.mxu0
        %v8037 = vadd.f32 0.0, %v8036
        %8038 = vmatmul.f32.gmra.mxu0 %v8000
        %v8039 = vpop.f32.mrf.mxu0
        %v8040 = vadd.f32 0.0, %v8039
        %8041 = vmatmul.f32.gmra.mxu0 %v8002
        %v8042 = vpop.f32.mrf.mxu0
        %v8043 = vadd.f32 0.0, %v8042
        %8044 = vmatmul.f32.gmra.mxu0 %v8004
        %v8045 = vpop.f32.mrf.mxu0
        %v8046 = vadd.f32 0.0, %v8045
        %8047 = vdwg.mxu0
        %v8048 = vmul.f32 %v7962, 0.35355338
        %v8049 = vmul.f32 %v7965, 0.35355338
        %v8050 = vmul.f32 %v7968, 0.35355338
        %v8051 = vmul.f32 %v7971, 0.35355338
        %v8052 = vmul.f32 %v7974, 0.35355338
        %v8053 = vmul.f32 %v8034, 0.35355338
        %v8054 = vmul.f32 %v8037, 0.35355338
        %v8055 = vmul.f32 %v8040, 0.35355338
        %v8056 = vmul.f32 %v8043, 0.35355338
        %v8057 = vmul.f32 %v8046, 0.35355338
        %v8058 = vadd.f32 %v8048, %v6861
        %v8059 = vadd.f32 %v8049, %v6861
        %v8060 = vadd.f32 %v8050, %v6861
        %v8061 = vadd.f32 %v8051, %v6861
        %v8062 = vadd.f32 %v8052, %v6861
        %v8063 = vadd.f32 %v8053, %v6861
        %v8064 = vadd.f32 %v8054, %v6861
        %v8065 = vadd.f32 %v8055, %v6861
        %v8066 = vadd.f32 %v8056, %v6861
        %v8067 = vadd.f32 %v8057, %v6861
        %v8068 = vsel %vm6873, %v8058, -inf
        %8069 = vmax.xlane.f32.xlu0 %v8068
        %v8070 = vpop.xlane.xlu0 %8069
        %v8071 = vsel %vm6873, %v8059, -inf
        %8072 = vmax.xlane.f32.xlu0 %v8071
        %v8073 = vpop.xlane.xlu0 %8072
        %v8074 = vsel %vm6873, %v8060, -inf
        %8075 = vmax.xlane.f32.xlu0 %v8074
        %v8076 = vpop.xlane.xlu0 %8075
        %v8077 = vsel %vm6873, %v8061, -inf
        %8078 = vmax.xlane.f32.xlu0 %v8077
        %v8079 = vpop.xlane.xlu0 %8078
        %v8080 = vsel %vm6873, %v8062, -inf
        %8081 = vmax.xlane.f32.xlu0 %v8080
        %v8082 = vpop.xlane.xlu0 %8081
        %v8083 = vsel %vm6873, %v8063, -inf
        %8084 = vmax.xlane.f32.xlu0 %v8083
        %v8085 = vpop.xlane.xlu0 %8084
        %v8086 = vsel %vm6873, %v8064, -inf
        %8087 = vmax.xlane.f32.xlu0 %v8086
        %v8088 = vpop.xlane.xlu0 %8087
        %v8089 = vsel %vm6873, %v8065, -inf
        %8090 = vmax.xlane.f32.xlu0 %v8089
        %v8091 = vpop.xlane.xlu0 %8090
        %v8092 = vsel %vm6873, %v8066, -inf
        %8093 = vmax.xlane.f32.xlu0 %v8092
        %v8094 = vpop.xlane.xlu0 %8093
        %v8095 = vsel %vm6873, %v8067, -inf
        %8096 = vmax.xlane.f32.xlu0 %v8095
        %v8097 = vpop.xlane.xlu0 %8096
        %v8098 = vsub.f32 %v8058, %v8070
        %v8099 = vsub.f32 %v8059, %v8073
        %v8100 = vsub.f32 %v8060, %v8076
        %v8101 = vsub.f32 %v8061, %v8079
        %v8102 = vsub.f32 %v8062, %v8082
        %v8103 = vsub.f32 %v8063, %v8085
        %v8104 = vsub.f32 %v8064, %v8088
        %v8105 = vsub.f32 %v8065, %v8091
        %v8106 = vsub.f32 %v8066, %v8094
        %v8107 = vsub.f32 %v8067, %v8097
        %v8108 = vmul.f32 %v8098, 1.442695
        %v8109 = vpow.pop %v8108
        %v8110 = vmul.f32 %v8099, 1.442695
        %v8111 = vpow.pop %v8110
        %v8112 = vmul.f32 %v8100, 1.442695
        %v8113 = vpow.pop %v8112
        %v8114 = vmul.f32 %v8101, 1.442695
        %v8115 = vpow.pop %v8114
        %v8116 = vmul.f32 %v8102, 1.442695
        %v8117 = vpow.pop %v8116
        %v8118 = vmul.f32 %v8103, 1.442695
        %v8119 = vpow.pop %v8118
        %v8120 = vmul.f32 %v8104, 1.442695
        %v8121 = vpow.pop %v8120
        %v8122 = vmul.f32 %v8105, 1.442695
        %v8123 = vpow.pop %v8122
        %v8124 = vmul.f32 %v8106, 1.442695
        %v8125 = vpow.pop %v8124
        %v8126 = vmul.f32 %v8107, 1.442695
        %v8127 = vpow.pop %v8126
        %v8128 = vsel %vm6873, %v8109, 0.0
        %8129 = vadd.xlane.f32.xlu0 %v8128
        %v8130 = vpop.xlane.xlu0 %8129
        %v8131 = vsel %vm6873, %v8111, 0.0
        %8132 = vadd.xlane.f32.xlu0 %v8131
        %v8133 = vpop.xlane.xlu0 %8132
        %v8134 = vsel %vm6873, %v8113, 0.0
        %8135 = vadd.xlane.f32.xlu0 %v8134
        %v8136 = vpop.xlane.xlu0 %8135
        %v8137 = vsel %vm6873, %v8115, 0.0
        %8138 = vadd.xlane.f32.xlu0 %v8137
        %v8139 = vpop.xlane.xlu0 %8138
        %v8140 = vsel %vm6873, %v8117, 0.0
        %8141 = vadd.xlane.f32.xlu0 %v8140
        %v8142 = vpop.xlane.xlu0 %8141
        %v8143 = vsel %vm6873, %v8119, 0.0
        %8144 = vadd.xlane.f32.xlu0 %v8143
        %v8145 = vpop.xlane.xlu0 %8144
        %v8146 = vsel %vm6873, %v8121, 0.0
        %8147 = vadd.xlane.f32.xlu0 %v8146
        %v8148 = vpop.xlane.xlu0 %8147
        %v8149 = vsel %vm6873, %v8123, 0.0
        %8150 = vadd.xlane.f32.xlu0 %v8149
        %v8151 = vpop.xlane.xlu0 %8150
        %v8152 = vsel %vm6873, %v8125, 0.0
        %8153 = vadd.xlane.f32.xlu0 %v8152
        %v8154 = vpop.xlane.xlu0 %8153
        %v8155 = vsel %vm6873, %v8127, 0.0
        %8156 = vadd.xlane.f32.xlu0 %v8155
        %v8157 = vpop.xlane.xlu0 %8156
        %v8158 = vrcp.pop %v8130
        %v8159 = vrcp.pop %v8133
        %v8160 = vrcp.pop %v8136
        %v8161 = vrcp.pop %v8139
        %v8162 = vrcp.pop %v8142
        %v8163 = vrcp.pop %v8145
        %v8164 = vrcp.pop %v8148
        %v8165 = vrcp.pop %v8151
        %v8166 = vrcp.pop %v8154
        %v8167 = vrcp.pop %v8157
        %v8168 = vmul.f32 %v8109, %v8158
        %v8169 = vmul.f32 %v8111, %v8159
        %v8170 = vmul.f32 %v8113, %v8160
        %v8171 = vmul.f32 %v8115, %v8161
        %v8172 = vmul.f32 %v8117, %v8162
        %v8173 = vmul.f32 %v8119, %v8163
        %v8174 = vmul.f32 %v8121, %v8164
        %v8175 = vmul.f32 %v8123, %v8165
        %v8176 = vmul.f32 %v8125, %v8166
        %v8177 = vmul.f32 %v8127, %v8167
        %8178 = vrot.lane.b32.xlu0 %v6685, 40
        %v8179 = vpop.permute.xlu0 %8178
        %8180 = vrot.lane.b32.xlu0 %v6688, 40
        %v8181 = vpop.permute.xlu0 %8180
        %8182 = vrot.lane.b32.xlu0 %v6691, 40
        %v8183 = vpop.permute.xlu0 %8182
        %8184 = vrot.lane.b32.xlu0 %v6694, 40
        %v8185 = vpop.permute.xlu0 %8184
        %8186 = vrot.lane.b32.xlu0 %v6697, 40
        %v8187 = vpop.permute.xlu0 %8186
        %v8194 = vsel %vm6873, %v8168, 0
        %v8197 = vsel %vm6873, %v8169, 0
        %v8200 = vsel %vm6873, %v8170, 0
        %v8203 = vsel %vm6873, %v8171, 0
        %v8206 = vsel %vm6873, %v8172, 0
        %8208 = vmatpush.msra.mxu0 0.0
        %8209 = vmatpush.msra.mxu0 0.0
        %8210 = vmatpush.msra.mxu0 0.0
        %8211 = vmatpush.msra.mxu0 0.0
        %8212 = vmatpush.msra.mxu0 0.0
        %8213 = vmatpush.msra.mxu0 0.0
        %8214 = vmatpush.msra.mxu0 0.0
        %8215 = vmatpush.msra.mxu0 0.0
        %8216 = vmatpush.msra.mxu0 0.0
        %8217 = vmatpush.msra.mxu0 0.0
        %8218 = vmatpush.msra.mxu0 0.0
        %8219 = vmatpush.msra.mxu0 %v8187
        %8220 = vmatpush.msra.mxu0 %v8185
        %8221 = vmatpush.msra.mxu0 %v8183
        %8222 = vmatpush.msra.mxu0 %v8181
        %8223 = vmatpush.msra.mxu0 %v8179
        %8224 = vmatmul.f32.gmra.mxu0 %v8194
        %v8225 = vpop.f32.mrf.mxu0
        %v8226 = vadd.f32 0.0, %v8225
        %8227 = vmatmul.f32.gmra.mxu0 %v8197
        %v8228 = vpop.f32.mrf.mxu0
        %v8229 = vadd.f32 0.0, %v8228
        %8230 = vmatmul.f32.gmra.mxu0 %v8200
        %v8231 = vpop.f32.mrf.mxu0
        %v8232 = vadd.f32 0.0, %v8231
        %8233 = vmatmul.f32.gmra.mxu0 %v8203
        %v8234 = vpop.f32.mrf.mxu0
        %v8235 = vadd.f32 0.0, %v8234
        %8236 = vmatmul.f32.gmra.mxu0 %v8206
        %v8237 = vpop.f32.mrf.mxu0
        %v8238 = vadd.f32 0.0, %v8237
        %8239 = vdwg.mxu0
        %8240 = vrot.lane.b32.xlu0 %v6700, 40
        %v8241 = vpop.permute.xlu0 %8240
        %8242 = vrot.lane.b32.xlu0 %v6703, 40
        %v8243 = vpop.permute.xlu0 %8242
        %8244 = vrot.lane.b32.xlu0 %v6706, 40
        %v8245 = vpop.permute.xlu0 %8244
        %8246 = vrot.lane.b32.xlu0 %v6709, 40
        %v8247 = vpop.permute.xlu0 %8246
        %8248 = vrot.lane.b32.xlu0 %v6712, 40
        %v8249 = vpop.permute.xlu0 %8248
        %v8256 = vsel %vm6873, %v8173, 0
        %v8259 = vsel %vm6873, %v8174, 0
        %v8262 = vsel %vm6873, %v8175, 0
        %v8265 = vsel %vm6873, %v8176, 0
        %v8268 = vsel %vm6873, %v8177, 0
        %8270 = vmatpush.msra.mxu0 0.0
        %8271 = vmatpush.msra.mxu0 0.0
        %8272 = vmatpush.msra.mxu0 0.0
        %8273 = vmatpush.msra.mxu0 0.0
        %8274 = vmatpush.msra.mxu0 0.0
        %8275 = vmatpush.msra.mxu0 0.0
        %8276 = vmatpush.msra.mxu0 0.0
        %8277 = vmatpush.msra.mxu0 0.0
        %8278 = vmatpush.msra.mxu0 0.0
        %8279 = vmatpush.msra.mxu0 0.0
        %8280 = vmatpush.msra.mxu0 0.0
        %8281 = vmatpush.msra.mxu0 %v8249
        %8282 = vmatpush.msra.mxu0 %v8247
        %8283 = vmatpush.msra.mxu0 %v8245
        %8284 = vmatpush.msra.mxu0 %v8243
        %8285 = vmatpush.msra.mxu0 %v8241
        %8286 = vmatmul.f32.gmra.mxu0 %v8256
        %v8287 = vpop.f32.mrf.mxu0
        %v8288 = vadd.f32 0.0, %v8287
        %8289 = vmatmul.f32.gmra.mxu0 %v8259
        %v8290 = vpop.f32.mrf.mxu0
        %v8291 = vadd.f32 0.0, %v8290
        %8292 = vmatmul.f32.gmra.mxu0 %v8262
        %v8293 = vpop.f32.mrf.mxu0
        %v8294 = vadd.f32 0.0, %v8293
        %8295 = vmatmul.f32.gmra.mxu0 %v8265
        %v8296 = vpop.f32.mrf.mxu0
        %v8297 = vadd.f32 0.0, %v8296
        %8298 = vmatmul.f32.gmra.mxu0 %v8268
        %v8299 = vpop.f32.mrf.mxu0
        %v8300 = vadd.f32 0.0, %v8299
        %8301 = vdwg.mxu0
        %8312 = vrot.lane.b32.xlu0 %v7430, 8
        %v8313 = vpop.permute.xlu0 %8312
        %8314 = vrot.lane.b32.xlu0 %v7433, 8
        %v8315 = vpop.permute.xlu0 %8314
        %8316 = vrot.lane.b32.xlu0 %v7436, 8
        %v8317 = vpop.permute.xlu0 %8316
        %8318 = vrot.lane.b32.xlu0 %v7439, 8
        %v8319 = vpop.permute.xlu0 %8318
        %8320 = vrot.lane.b32.xlu0 %v7442, 8
        %v8321 = vpop.permute.xlu0 %8320
        %8322 = vrot.lane.b32.xlu0 %v7492, 8
        %v8323 = vpop.permute.xlu0 %8322
        %8324 = vrot.lane.b32.xlu0 %v7495, 8
        %v8325 = vpop.permute.xlu0 %8324
        %8326 = vrot.lane.b32.xlu0 %v7498, 8
        %v8327 = vpop.permute.xlu0 %8326
        %8328 = vrot.lane.b32.xlu0 %v7501, 8
        %v8329 = vpop.permute.xlu0 %8328
        %8330 = vrot.lane.b32.xlu0 %v7504, 8
        %v8331 = vpop.permute.xlu0 %8330
        %8352 = vrot.lane.b32.xlu0 %v7828, 16
        %v8353 = vpop.permute.xlu0 %8352
        %8354 = vrot.lane.b32.xlu0 %v7831, 16
        %v8355 = vpop.permute.xlu0 %8354
        %8356 = vrot.lane.b32.xlu0 %v7834, 16
        %v8357 = vpop.permute.xlu0 %8356
        %8358 = vrot.lane.b32.xlu0 %v7837, 16
        %v8359 = vpop.permute.xlu0 %8358
        %8360 = vrot.lane.b32.xlu0 %v7840, 16
        %v8361 = vpop.permute.xlu0 %8360
        %8362 = vrot.lane.b32.xlu0 %v7890, 16
        %v8363 = vpop.permute.xlu0 %8362
        %8364 = vrot.lane.b32.xlu0 %v7893, 16
        %v8365 = vpop.permute.xlu0 %8364
        %8366 = vrot.lane.b32.xlu0 %v7896, 16
        %v8367 = vpop.permute.xlu0 %8366
        %8368 = vrot.lane.b32.xlu0 %v7899, 16
        %v8369 = vpop.permute.xlu0 %8368
        %8370 = vrot.lane.b32.xlu0 %v7902, 16
        %v8371 = vpop.permute.xlu0 %8370
        %8392 = vrot.lane.b32.xlu0 %v8226, 24
        %v8393 = vpop.permute.xlu0 %8392
        %8394 = vrot.lane.b32.xlu0 %v8229, 24
        %v8395 = vpop.permute.xlu0 %8394
        %8396 = vrot.lane.b32.xlu0 %v8232, 24
        %v8397 = vpop.permute.xlu0 %8396
        %8398 = vrot.lane.b32.xlu0 %v8235, 24
        %v8399 = vpop.permute.xlu0 %8398
        %8400 = vrot.lane.b32.xlu0 %v8238, 24
        %v8401 = vpop.permute.xlu0 %8400
        %8402 = vrot.lane.b32.xlu0 %v8288, 24
        %v8403 = vpop.permute.xlu0 %8402
        %8404 = vrot.lane.b32.xlu0 %v8291, 24
        %v8405 = vpop.permute.xlu0 %8404
        %8406 = vrot.lane.b32.xlu0 %v8294, 24
        %v8407 = vpop.permute.xlu0 %8406
        %8408 = vrot.lane.b32.xlu0 %v8297, 24
        %v8409 = vpop.permute.xlu0 %8408
        %8410 = vrot.lane.b32.xlu0 %v8300, 24
        %v8411 = vpop.permute.xlu0 %8410
        %v8422 = vsel %vm6730, %v7032, %v8313
        %v8423 = vsel %vm6730, %v7035, %v8315
        %v8424 = vsel %vm6730, %v7038, %v8317
        %v8425 = vsel %vm6730, %v7041, %v8319
        %v8426 = vsel %vm6730, %v7044, %v8321
        %v8427 = vsel %vm6730, %v7094, %v8323
        %v8428 = vsel %vm6730, %v7097, %v8325
        %v8429 = vsel %vm6730, %v7100, %v8327
        %v8430 = vsel %vm6730, %v7103, %v8329
        %v8431 = vsel %vm6730, %v7106, %v8331
        %vm8432 = vcmask 130048
        %v8433 = vsel %vm8432, %v8422, %v8353
        %v8434 = vsel %vm8432, %v8423, %v8355
        %v8435 = vsel %vm8432, %v8424, %v8357
        %v8436 = vsel %vm8432, %v8425, %v8359
        %v8437 = vsel %vm8432, %v8426, %v8361
        %v8438 = vsel %vm8432, %v8427, %v8363
        %v8439 = vsel %vm8432, %v8428, %v8365
        %v8440 = vsel %vm8432, %v8429, %v8367
        %v8441 = vsel %vm8432, %v8430, %v8369
        %v8442 = vsel %vm8432, %v8431, %v8371
        %vm8443 = vcmask 195584
        %v8444 = vsel %vm8443, %v8433, %v8393
        %v8445 = vsel %vm8443, %v8434, %v8395
        %v8446 = vsel %vm8443, %v8435, %v8397
        %v8447 = vsel %vm8443, %v8436, %v8399
        %v8448 = vsel %vm8443, %v8437, %v8401
        %v8449 = vsel %vm8443, %v8438, %v8403
        %v8450 = vsel %vm8443, %v8439, %v8405
        %v8451 = vsel %vm8443, %v8440, %v8407
        %v8452 = vsel %vm8443, %v8441, %v8409
        %v8453 = vsel %vm8443, %v8442, %v8411
        %v8454 = vld [vmem:[%s15] sm:$0xff]
        %v8455 = vld [vmem:[%s15 + $0x8] sm:$0xff]
        %v8456 = vld [vmem:[%s15 + $0x10] sm:$0xff]
        %v8457 = vld [vmem:[%s15 + $0x18] sm:$0xff]
        %v8458 = vld [vmem:[%s16] sm:$0x1]
        %v8460 = vperm.slane %v8458, 0
        %v8463 = vsel %vm2478, %v8444, 0
        %v8466 = vsel %vm2478, %v8445, 0
        %v8469 = vsel %vm2478, %v8446, 0
        %v8472 = vsel %vm2478, %v8447, 0
        %v8475 = vsel %vm2478, %v8448, 0
        %v8478 = vsel %vm2478, %v8449, 0
        %v8481 = vsel %vm2478, %v8450, 0
        %v8484 = vsel %vm2478, %v8451, 0
        %v8487 = vsel %vm2478, %v8452, 0
        %v8490 = vsel %vm2478, %v8453, 0
        %8492 = vmatpush.msra.mxu0 0.0
        %8493 = vmatpush.msra.mxu0 0.0
        %8494 = vmatpush.msra.mxu0 0.0
        %8495 = vmatpush.msra.mxu0 0.0
        %8496 = vmatpush.msra.mxu0 0.0
        %8497 = vmatpush.msra.mxu0 0.0
        %8498 = vmatpush.msra.mxu0 0.0
        %8499 = vmatpush.msra.mxu0 0.0
        %8500 = vmatpush.msra.mxu0 0.0
        %8501 = vmatpush.msra.mxu0 0.0
        %8502 = vmatpush.msra.mxu0 0.0
        %8503 = vmatpush.msra.mxu0 0.0
        %8504 = vmatpush.msra.mxu0 %v8457
        %8505 = vmatpush.msra.mxu0 %v8456
        %8506 = vmatpush.msra.mxu0 %v8455
        %8507 = vmatpush.msra.mxu0 %v8454
        %8508 = vmatmul.f32.gmra.mxu0 %v8463
        %v8509 = vpop.f32.mrf.mxu0
        %v8510 = vadd.f32 %v8460, %v8509
        %8511 = vmatmul.f32.gmra.mxu0 %v8466
        %v8512 = vpop.f32.mrf.mxu0
        %v8513 = vadd.f32 %v8460, %v8512
        %8514 = vmatmul.f32.gmra.mxu0 %v8469
        %v8515 = vpop.f32.mrf.mxu0
        %v8516 = vadd.f32 %v8460, %v8515
        %8517 = vmatmul.f32.gmra.mxu0 %v8472
        %v8518 = vpop.f32.mrf.mxu0
        %v8519 = vadd.f32 %v8460, %v8518
        %8520 = vmatmul.f32.gmra.mxu0 %v8475
        %v8521 = vpop.f32.mrf.mxu0
        %v8522 = vadd.f32 %v8460, %v8521
        %8523 = vmatmul.f32.gmra.mxu0 %v8478
        %v8524 = vpop.f32.mrf.mxu0
        %v8525 = vadd.f32 %v8460, %v8524
        %8526 = vmatmul.f32.gmra.mxu0 %v8481
        %v8527 = vpop.f32.mrf.mxu0
        %v8528 = vadd.f32 %v8460, %v8527
        %8529 = vmatmul.f32.gmra.mxu0 %v8484
        %v8530 = vpop.f32.mrf.mxu0
        %v8531 = vadd.f32 %v8460, %v8530
        %8532 = vmatmul.f32.gmra.mxu0 %v8487
        %v8533 = vpop.f32.mrf.mxu0
        %v8534 = vadd.f32 %v8460, %v8533
        %8535 = vmatmul.f32.gmra.mxu0 %v8490
        %v8536 = vpop.f32.mrf.mxu0
        %v8537 = vadd.f32 %v8460, %v8536
        %8538 = vdwg.mxu0
        %v8549 = vrot.slane %v8510, 3
        %v8550 = vrot.slane %v8513, 3
        %v8551 = vsel %vm784, %v8549, %v8550
        %v8552 = vrot.slane %v8516, 3
        %v8553 = vsel %vm784, %v8550, %v8552
        %v8554 = vrot.slane %v8519, 3
        %v8555 = vsel %vm784, %v8552, %v8554
        %v8556 = vrot.slane %v8522, 3
        %v8557 = vsel %vm784, %v8554, %v8556
        %v8558 = vrot.slane %v8525, 3
        %v8559 = vsel %vm784, %v8556, %v8558
        %v8560 = vrot.slane %v8528, 3
        %v8561 = vsel %vm784, %v8558, %v8560
        %v8562 = vrot.slane %v8531, 3
        %v8563 = vsel %vm784, %v8560, %v8562
        %v8564 = vrot.slane %v8534, 3
        %v8565 = vsel %vm784, %v8562, %v8564
        %v8566 = vrot.slane %v8537, 3
        %v8567 = vsel %vm784, %v8564, %v8566
        %v8579 = vadd.f32 %v6315, %v8549
        %v8580 = vadd.f32 %v6316, %v8551
        %v8581 = vadd.f32 %v6317, %v8553
        %v8582 = vadd.f32 %v6318, %v8555
        %v8583 = vadd.f32 %v6319, %v8557
        %v8584 = vadd.f32 %v6320, %v8559
        %v8585 = vadd.f32 %v6321, %v8561
        %v8586 = vadd.f32 %v6322, %v8563
        %v8587 = vadd.f32 %v6323, %v8565
        %v8588 = vadd.f32 %v6324, %v8567
        %v8589 = vadd.f32 %v6325, %v8566
        %8590 = vst.msk [vmem:[%s567 - $0x5] sm:$0xe0] %vm6326, %v8579
        %8591 = vst.msk [vmem:[%s567 + $0x3] sm:$0xff] %vm2478, %v8580
        %8592 = vst.msk [vmem:[%s567 + $0xb] sm:$0xff] %vm2478, %v8581
        %8593 = vst.msk [vmem:[%s567 + $0x13] sm:$0xff] %vm2478, %v8582
        %8594 = vst.msk [vmem:[%s567 + $0x1b] sm:$0xff] %vm2478, %v8583
        %8595 = vst.msk [vmem:[%s567 + $0x23] sm:$0xff] %vm2478, %v8584
        %8596 = vst.msk [vmem:[%s567 + $0x2b] sm:$0xff] %vm2478, %v8585
        %8597 = vst.msk [vmem:[%s567 + $0x33] sm:$0xff] %vm2478, %v8586
        %8598 = vst.msk [vmem:[%s567 + $0x3b] sm:$0xff] %vm2478, %v8587
        %8599 = vst.msk [vmem:[%s567 + $0x43] sm:$0xff] %vm2478, %v8588
        %8600 = vst.msk [vmem:[%s567 + $0x4b] sm:$0x1f] %vm6357, %v8589
        %s8601 = smul.u32 10, %s29
        %p8602 = scmp.lt.s32.totalorder %s8601, 19
        %s8603 = scalar_select %p8602, %s8601, 19
        %s8604 = smul.addr %s8603, 8
        %s8605 = scalar_lea.vmem %s17, %s8604
        // Predicated region
        $region93: #{pilot_encoder_forward.1} parent=87 // pred_check
          %p8606 = pneg %p409
        $region94: #{pilot_encoder_forward.1} parent=87 // pred_check_branch
          %8608 = sbr.rel (%p8606) target = $region96
        $region95: #{pilot_encoder_forward.1} parent=87 // pred_region
          %s8609 = smul.u32 10, %s29
        $region96: #{pilot_encoder_forward.1} parent=87 // pred_fallthru
          _
      $region88: #{pilot_encoder_forward.1} parent=5 // pred_fallthru
        _
      %p8610 = scmp.le.s32.totalorder 2, %s24
      // Predicated region
      $region97: #{pilot_encoder_forward.1} parent=5 // pred_check
        %p8611 = pneg %p8610
      $region98: #{pilot_encoder_forward.1} parent=5 // pred_check_branch
        %8613 = sbr.rel (%p8611) target = $region100
      $region99: #{pilot_encoder_forward.1} parent=5 // pred_region
        %s8614 = ssub.s32 %s24, 2
        // Predicated region
        $region101: #{pilot_encoder_forward.1} parent=99 // pred_check
          %p8615 = pneg %p415
        $region102: #{pilot_encoder_forward.1} parent=99 // pred_check_branch
          %8617 = sbr.rel (%p8615) target = $region104
        $region103: #{pilot_encoder_forward.1} parent=99 // pred_region
          %s8618 = smul.u32 10, %s30
          %p8619 = scmp.lt.s32.totalorder %s8618, 19
          %s8620 = scalar_select %p8619, %s8618, 19
          %s8621 = smul.addr %s8620, 8
          %s8622 = scalar_lea.vmem %s17, %s8621
        $region104: #{pilot_encoder_forward.1} parent=99 // pred_fallthru
          _
      $region100: #{pilot_encoder_forward.1} parent=5 // pred_fallthru
        _
    $region6: #{pilot_encoder_forward.1} parent=1 // loop_footer
      %s28 = sadd.s32 1, %s24
    $region7: #{pilot_encoder_forward.1} parent=1 // loop_footer_branch
      %23 = sbr.rel target = $region3
    $region8: #{pilot_encoder_forward.1} parent=1 // loop_exit
      _
    %8623 = vsyncpa [#allocation3], 1
    %s8624 = scalar_lea.sflag [#allocation3], 1
    %8625 = vsyncpa %s8624, 1

</llo_original>
